<compile_context>
chip_gen: v6e
topology: v6e:2x2x1
jax: 0.10.0
libtpu: 0.0.40
codegen_flags: <defaults>
</compile_context>

<pallas_src>
import functools

import jax
import jax.numpy as jnp
from jax import lax
from jax.experimental import pallas as pl
from jax.experimental.pallas import tpu as pltpu


# ---------------------------------------------------------------------------
# Pallas kernel: fused 5x (3x3 conv + folded-BN shift + ReLU), VMEM resident
# ---------------------------------------------------------------------------
def fused_dense_block_kernel(x_ref, w_ref, shift_ref, o_ref, pad_ref, acc_ref,
                             *, BB, H, W, C, n_layers):
    """One batch tile (BB batch elements).

    x_ref:     (BB, H, W, C)           input activation (NHWC, compute dtype)
    w_ref:     (n_layers, 9, C, C)     per-tap conv weights, BN scale folded in
    shift_ref: (n_layers, 1, C)        folded BN shift (incl. conv bias), f32
    o_ref:     (BB, H, W, C)           output of the last conv (no ReLU), f32
    pad_ref:   (BB, H+2, W+2, C)       VMEM scratch: zero-padded activation
    acc_ref:   (BB*H*W, C)             VMEM scratch: f32 matmul accumulator
    """
    M = BB * H * W
    cdt = pad_ref.dtype

    # Zero ONLY the 1-pixel border (two row strips + two column strips); the
    # interior is overwritten immediately below and between layers, and the
    # border stays zero for every layer.
    zrow = jnp.zeros((BB, 1, W + 2, C), cdt)
    pad_ref[:, 0:1, :, :] = zrow
    pad_ref[:, H + 1:H + 2, :, :] = zrow
    zcol = jnp.zeros((BB, H, 1, C), cdt)
    pad_ref[:, 1:H + 1, 0:1, :] = zcol
    pad_ref[:, 1:H + 1, W + 1:W + 2, :] = zcol

    # TODO(synk): the x_ref -> pad_ref interior copy is one redundant
    # activation-sized vld+vst per grid step; it could be removed by taking x
    # with memory_space=pl.ANY and DMA-ing it straight into the pad interior.
    pad_ref[:, 1:H + 1, 1:W + 1, :] = x_ref[...].astype(cdt)

    for layer in range(n_layers):                        # static unroll (5)
        # 9 accumulating MXU matmuls straight from strided views of pad_ref
        # into the explicit f32 accumulator (no im2col materialization).
        for dy in range(3):
            for dx in range(3):
                tap = dy * 3 + dx
                lhs = pad_ref[:, dy:dy + H, dx:dx + W, :].reshape(M, C)
                part = jnp.dot(lhs, w_ref[layer, tap],
                               preferred_element_type=jnp.float32)
                if tap == 0:
                    acc_ref[...] = part
                else:
                    acc_ref[...] += part
        y = acc_ref[...] + shift_ref[layer]              # f32 epilogue
        if layer < n_layers - 1:                         # ReLU on layers 0..3
            pad_ref[:, 1:H + 1, 1:W + 1, :] = (
                jnp.maximum(y, 0.0).reshape(BB, H, W, C).astype(cdt))
        else:
            o_ref[...] = y.reshape(BB, H, W, C).astype(o_ref.dtype)


def _pick_batch_tile(B, H, W, C, n_layers, compute_itemsize, budget_bytes):
    """Largest divisor of B whose per-grid-step VMEM footprint fits the budget."""
    best = 1
    for bb in range(1, B + 1):
        if B % bb:
            continue
        pad_b = bb * (H + 2) * (W + 2) * C * compute_itemsize
        acc_b = bb * H * W * C * 4
        io_b = 2 * bb * H * W * C * compute_itemsize + 2 * bb * H * W * C * 4
        w_b = 2 * (n_layers * 9 * C * C * compute_itemsize + n_layers * C * 4)
        if pad_b + acc_b + io_b + w_b <= budget_bytes:
            best = bb
    return best


def dense_conv_block(x_nhwc, layer_params, *, compute_dtype=jnp.float32,
                     vmem_budget_bytes=20 * 1024 * 1024):
    """Fused conv0..conv4 of the PyTorch dense_conv_block (single pallas_call).

    `compute_dtype=jnp.bfloat16` halves weight/activation DMA bytes and uses
    the bf16-native MXU on v6e/v7x (accumulation and epilogue stay f32).
    """
    B, H, W, C = x_nhwc.shape
    n_layers = len(layer_params)
    itemsize = jnp.dtype(compute_dtype).itemsize

    # Offline param prep: fold the BN scale into the conv weights so only the
    # f32 shift add remains in-kernel.  Weights are (n_layers, 9, Cin, Cout).
    w_list, shift_list = [], []
    for p in layer_params:
        w32 = p["w"].astype(jnp.float32)                        # (3,3,Cin,Cout)
        w32 = w32 * p["scale"].astype(jnp.float32)[None, None, None, :]
        w_list.append(w32.reshape(9, C, C).astype(compute_dtype))
        shift_list.append(p["shift"].astype(jnp.float32).reshape(1, C))
    w_all = jnp.stack(w_list)            # (n_layers, 9, C, C) compute_dtype
    shift_all = jnp.stack(shift_list)    # (n_layers, 1, C)    f32

    # Cast the input once in the wrapper so the input DMA moves compute_dtype
    # bytes (half for bf16).
    x_nhwc = x_nhwc.astype(compute_dtype)

    # Batch tile: single big tile when it fits VMEM (best MXU fill on single-TC
    # v5e/v6e); more, smaller steps when the budget is tight (v7x 64 MiB) —
    # those steps pipeline and shard across TensorCores ("parallel").
    BB = _pick_batch_tile(B, H, W, C, n_layers, itemsize, vmem_budget_bytes)
    grid = (B // BB,)

    flops = 2 * n_layers * (B * H * W) * 9 * C * C
    bytes_accessed = (B * H * W * C * itemsize          # input
                      + B * H * W * C * 4               # output
                      + n_layers * 9 * C * C * itemsize # weights
                      + n_layers * C * 4)               # shifts
    cost = pl.CostEstimate(flops=flops, transcendentals=0,
                           bytes_accessed=bytes_accessed)

    kernel = functools.partial(fused_dense_block_kernel,
                               BB=BB, H=H, W=W, C=C, n_layers=n_layers)
    return pl.pallas_call(
        kernel,
        out_shape=jax.ShapeDtypeStruct((B, H, W, C), jnp.float32),
        grid=grid,
        in_specs=[
            pl.BlockSpec((BB, H, W, C), lambda i: (i, 0, 0, 0)),
            pl.BlockSpec((n_layers, 9, C, C), lambda i: (0, 0, 0, 0)),
            pl.BlockSpec((n_layers, 1, C), lambda i: (0, 0, 0)),
        ],
        out_specs=pl.BlockSpec((BB, H, W, C), lambda i: (i, 0, 0, 0)),
        scratch_shapes=[
            pltpu.VMEM((BB, H + 2, W + 2, C), compute_dtype),   # padded act
            pltpu.VMEM((BB * H * W, C), jnp.float32),           # f32 accumulator
        ],
        compiler_params=pltpu.CompilerParams(
            dimension_semantics=("parallel",),
            vmem_limit_bytes=32 * 1024 * 1024),
        cost_estimate=cost,
    )(x_nhwc, w_all, shift_all)


# ---------------------------------------------------------------------------
# Dense approximation of the sparse Minkowski branch (plain JAX glue)
# ---------------------------------------------------------------------------
# TODO(synk): MinkowskiEngine sparse convolution / pooling (coordinate-map
# management, .dense()) has no clean Pallas equivalent; approximated here as
# dense 4D convs (stride [2,2,2,1], pad 1) + sum pooling on a densified grid.
def _conv4d_xyz_stride2(x, w):
    """x: (B, Cin, X, Y, Z, T), w: (Cout, Cin, 3, 3, 3, 3)."""
    B, Cin, X, Y, Z, T = x.shape
    xp = jnp.pad(x, ((0, 0), (0, 0), (0, 0), (0, 0), (0, 0), (1, 1)))
    dn = ("NCDHW", "OIDHW", "NCDHW")
    outs = []
    for t in range(T):
        acc = None
        for kt in range(3):
            y = lax.conv_general_dilated(
                xp[..., t + kt], w[..., kt],
                window_strides=(2, 2, 2),
                padding=((1, 1), (1, 1), (1, 1)),
                dimension_numbers=dn)
            acc = y if acc is None else acc + y
        outs.append(acc)
    return jnp.stack(outs, axis=-1)


def _bn_eval(y, gamma, beta, mean, var, eps=1e-5):
    scale = gamma / jnp.sqrt(var + eps)
    shift = beta - mean * scale
    shape = (1, -1) + (1,) * (y.ndim - 2)
    return y * scale.reshape(shape) + shift.reshape(shape)


def sparse_branch(x_dense, p):
    y = _conv4d_xyz_stride2(x_dense, p["conv0_w"])
    y = _bn_eval(y, *p["bn0"])
    y = _conv4d_xyz_stride2(y, p["conv1_w"])
    y = _bn_eval(y, *p["bn1"])
    y = jnp.sum(y, axis=-1)   # MinkowskiSumPooling over full t extent
    y = jnp.sum(y, axis=-1)   # MinkowskiSumPooling over full z extent
    return y                  # (B, Cout, X//4, Y//4), equivalent to .dense()+squeeze


def dense_feat_head_forward(x_dense, params):
    fmap = sparse_branch(x_dense, params["sparse"])       # NCHW
    x_nhwc = jnp.transpose(fmap, (0, 2, 3, 1))
    y = dense_conv_block(x_nhwc, params["dense"])         # fused Pallas hot path
    return jnp.transpose(y, (0, 3, 1, 2))                 # back to NCHW


# ---------------------------------------------------------------------------
# Deterministic parameter init (eval-mode BN folded into scale/shift)
# ---------------------------------------------------------------------------
def init_params(key, in_channels, out_channels, eps=1e-5):
    ks = jax.random.split(key, 32)
    it = iter(range(32))

    def nrm(k, shape, s=0.1):
        return (s * jax.random.normal(k, shape)).astype(jnp.float32)

    def bn_params():
        gamma = 1.0 + nrm(ks[next(it)], (out_channels,))
        beta = nrm(ks[next(it)], (out_channels,))
        mean = nrm(ks[next(it)], (out_channels,))
        var = jnp.ones((out_channels,), jnp.float32)
        return gamma, beta, mean, var

    sparse = {
        "conv0_w": nrm(ks[next(it)], (out_channels, in_channels, 3, 3, 3, 3)),
        "bn0": bn_params(),
        "conv1_w": nrm(ks[next(it)], (out_channels, out_channels, 3, 3, 3, 3)),
        "bn1": bn_params(),
    }

    dense = []
    for layer in range(5):
        w = nrm(ks[next(it)], (3, 3, out_channels, out_channels))   # HWIO
        b = nrm(ks[next(it)], (out_channels,))
        if layer < 4:
            gamma, beta, mean, var = bn_params()
            scale = gamma / jnp.sqrt(var + eps)
            shift = beta + scale * (b - mean)
        else:
            scale = jnp.ones((out_channels,), jnp.float32)
            shift = b
        dense.append({"w": w, "scale": scale, "shift": shift})
    return {"sparse": sparse, "dense": dense}


# Pure-JAX reference for the Pallas dense block (sanity check).
def dense_conv_block_ref(x_nhwc, layer_params):
    y = x_nhwc
    n = len(layer_params)
    for i, p in enumerate(layer_params):
        y = lax.conv_general_dilated(
            y, p["w"].astype(jnp.float32), (1, 1), ((1, 1), (1, 1)),
            dimension_numbers=("NHWC", "HWIO", "NHWC"))
        y = y * p["scale"] + p["shift"]
        if i < n - 1:
            y = jnp.maximum(y, 0.0)
    return y


if __name__ == "__main__":
    B, Cin, Cout = 2, 4, 8
    X = Y = 16
    Z, T = 8, 4   # featmap_shape = [B, Cout, X//4, Y//4, Z//4, T]

    key = jax.random.PRNGKey(0)
    kx, kp = jax.random.split(key)
    # Dense stand-in for the (fully occupied) sparse 4D input tensor.
    x_dense = (0.1 * jax.random.normal(kx, (B, Cin, X, Y, Z, T))).astype(jnp.float32)
    params = init_params(kp, Cin, Cout)

    fwd = jax.jit(dense_feat_head_forward)
    out = jax.block_until_ready(fwd(x_dense, params))

    # Reference: fused Pallas dense_conv_block vs lax.conv (f32 path, tight).
    fmap = sparse_branch(x_dense, params["sparse"])
    x_nhwc = jnp.transpose(fmap, (0, 2, 3, 1))
    ref = dense_conv_block_ref(x_nhwc, params["dense"])
    ref_nchw = jnp.transpose(ref, (0, 3, 1, 2))
    assert out.shape == (B, Cout, X // 4, Y // 4), out.shape
    assert jnp.allclose(out, ref_nchw, atol=1e-3, rtol=1e-3)

    # bf16-operand path (production default for v6e/v7x): loose tolerance
    # because inter-layer activations/weights are bf16 (accumulation is f32).
    out_bf16 = jax.block_until_ready(
        dense_conv_block(x_nhwc, params["dense"], compute_dtype=jnp.bfloat16))
    out_bf16 = jnp.transpose(out_bf16, (0, 3, 1, 2))
    rel_err = (jnp.linalg.norm(out_bf16 - ref_nchw) /
               (jnp.linalg.norm(ref_nchw) + 1e-8))
    assert float(rel_err) < 5e-2, float(rel_err)

    print("KERNEL_OK")
</pallas_src>

<mosaic_0001>
module attributes {stable_mosaic.version = 11 : i64} {
  func.func @fused_dense_block_kernel(%arg0: i32, %arg1: memref<2x4x4x8xf32, #tpu.memory_space<vmem>>, %arg2: memref<5x9x8x8xf32, #tpu.memory_space<vmem>>, %arg3: memref<5x1x8xf32, #tpu.memory_space<vmem>>, %arg4: memref<2x4x4x8xf32, #tpu.memory_space<vmem>>, %arg5: memref<2x6x6x8xf32, #tpu.memory_space<vmem>>, %arg6: memref<32x8xf32, #tpu.memory_space<vmem>>) attributes {dimension_semantics = [#tpu.dimension_semantics<parallel>], iteration_bounds = array<i64: 1>, scalar_prefetch = 0 : i64, scratch_operands = 2 : i64, tpu.core_type = #tpu.core_type<tc>, window_params = [{transform_indices = @transform_0, window_bounds = array<i64: 2, 4, 4, 8>}, {pipeline_mode = #tpu.pipeline_mode<synchronous>, transform_indices = @transform_1, window_bounds = array<i64: 5, 9, 8, 8>}, {pipeline_mode = #tpu.pipeline_mode<synchronous>, transform_indices = @transform_2, window_bounds = array<i64: 5, 1, 8>}, {transform_indices = @transform_3, window_bounds = array<i64: 2, 4, 4, 8>}]} {
    %cst = arith.constant 0.000000e+00 : f32
    %0 = vector.broadcast %cst : f32 to vector<2x1x6x8xf32>
    %c0 = arith.constant 0 : index
    %c0_0 = arith.constant 0 : index
    %c0_1 = arith.constant 0 : index
    %c0_2 = arith.constant 0 : index
    %1 = vector.load %arg5[%c0, %c0_0, %c0_1, %c0_2] : memref<2x6x6x8xf32, #tpu.memory_space<vmem>>, vector<2x1x6x8xf32>
    tpu.vector_store %arg5[%c0, %c0_0, %c0_1, %c0_2], %0 {strides = array<i32>} : memref<2x6x6x8xf32, #tpu.memory_space<vmem>>, vector<2x1x6x8xf32>,
    %c0_3 = arith.constant 0 : index
    %c5 = arith.constant 5 : index
    %c0_4 = arith.constant 0 : index
    %c0_5 = arith.constant 0 : index
    %2 = vector.load %arg5[%c0_3, %c5, %c0_4, %c0_5] : memref<2x6x6x8xf32, #tpu.memory_space<vmem>>, vector<2x1x6x8xf32>
    tpu.vector_store %arg5[%c0_3, %c5, %c0_4, %c0_5], %0 {strides = array<i32>} : memref<2x6x6x8xf32, #tpu.memory_space<vmem>>, vector<2x1x6x8xf32>,
    %cst_6 = arith.constant 0.000000e+00 : f32
    %3 = vector.broadcast %cst_6 : f32 to vector<2x4x1x8xf32>
    %c0_7 = arith.constant 0 : index
    %c1 = arith.constant 1 : index
    %c0_8 = arith.constant 0 : index
    %c0_9 = arith.constant 0 : index
    %4 = vector.load %arg5[%c0_7, %c1, %c0_8, %c0_9] : memref<2x6x6x8xf32, #tpu.memory_space<vmem>>, vector<2x4x1x8xf32>
    tpu.vector_store %arg5[%c0_7, %c1, %c0_8, %c0_9], %3 {strides = array<i32>} : memref<2x6x6x8xf32, #tpu.memory_space<vmem>>, vector<2x4x1x8xf32>,
    %c0_10 = arith.constant 0 : index
    %c1_11 = arith.constant 1 : index
    %c5_12 = arith.constant 5 : index
    %c0_13 = arith.constant 0 : index
    %5 = vector.load %arg5[%c0_10, %c1_11, %c5_12, %c0_13] : memref<2x6x6x8xf32, #tpu.memory_space<vmem>>, vector<2x4x1x8xf32>
    tpu.vector_store %arg5[%c0_10, %c1_11, %c5_12, %c0_13], %3 {strides = array<i32>} : memref<2x6x6x8xf32, #tpu.memory_space<vmem>>, vector<2x4x1x8xf32>,
    %c0_14 = arith.constant 0 : index
    %c0_15 = arith.constant 0 : index
    %c0_16 = arith.constant 0 : index
    %c0_17 = arith.constant 0 : index
    %6 = vector.load %arg1[%c0_14, %c0_15, %c0_16, %c0_17] : memref<2x4x4x8xf32, #tpu.memory_space<vmem>>, vector<2x4x4x8xf32>
    %c0_18 = arith.constant 0 : index
    %c1_19 = arith.constant 1 : index
    %c1_20 = arith.constant 1 : index
    %c0_21 = arith.constant 0 : index
    %7 = vector.load %arg5[%c0_18, %c1_19, %c1_20, %c0_21] : memref<2x6x6x8xf32, #tpu.memory_space<vmem>>, vector<2x4x4x8xf32>
    tpu.vector_store %arg5[%c0_18, %c1_19, %c1_20, %c0_21], %6 {strides = array<i32>} : memref<2x6x6x8xf32, #tpu.memory_space<vmem>>, vector<2x4x4x8xf32>,
    %c0_22 = arith.constant 0 : index
    %c0_23 = arith.constant 0 : index
    %c0_24 = arith.constant 0 : index
    %c0_25 = arith.constant 0 : index
    %8 = vector.load %arg5[%c0_22, %c0_23, %c0_24, %c0_25] : memref<2x6x6x8xf32, #tpu.memory_space<vmem>>, vector<2x4x4x8xf32>
    %9 = vector.shape_cast %8 : vector<2x4x4x8xf32> to vector<32x8xf32>
    %c0_26 = arith.constant 0 : index
    %c0_27 = arith.constant 0 : index
    %c0_28 = arith.constant 0 : index
    %c0_29 = arith.constant 0 : index
    %10 = vector.load %arg2[%c0_26, %c0_27, %c0_28, %c0_29] : memref<5x9x8x8xf32, #tpu.memory_space<vmem>>, vector<1x1x8x8xf32>
    %11 = vector.shape_cast %10 : vector<1x1x8x8xf32> to vector<8x8xf32>
    %cst_30 = arith.constant dense<0.000000e+00> : vector<32x8xf32>
    %12 = tpu.matmul %9, %11, %cst_30 {dimension_numbers = #tpu.dot_dimension_numbers<[1], [0], [0], [1], [0, 0, 1, 1], [], []>} : vector<32x8xf32>, vector<8x8xf32>, vector<32x8xf32> -> vector<32x8xf32>
    %c0_31 = arith.constant 0 : index
    %c0_32 = arith.constant 0 : index
    %13 = vector.load %arg6[%c0_31, %c0_32] : memref<32x8xf32, #tpu.memory_space<vmem>>, vector<32x8xf32>
    tpu.vector_store %arg6[%c0_31, %c0_32], %12 {strides = array<i32>} : memref<32x8xf32, #tpu.memory_space<vmem>>, vector<32x8xf32>,
    %c0_33 = arith.constant 0 : index
    %c0_34 = arith.constant 0 : index
    %c1_35 = arith.constant 1 : index
    %c0_36 = arith.constant 0 : index
    %14 = vector.load %arg5[%c0_33, %c0_34, %c1_35, %c0_36] : memref<2x6x6x8xf32, #tpu.memory_space<vmem>>, vector<2x4x4x8xf32>
    %15 = vector.shape_cast %14 : vector<2x4x4x8xf32> to vector<32x8xf32>
    %c0_37 = arith.constant 0 : index
    %c1_38 = arith.constant 1 : index
    %c0_39 = arith.constant 0 : index
    %c0_40 = arith.constant 0 : index
    %16 = vector.load %arg2[%c0_37, %c1_38, %c0_39, %c0_40] : memref<5x9x8x8xf32, #tpu.memory_space<vmem>>, vector<1x1x8x8xf32>
    %17 = vector.shape_cast %16 : vector<1x1x8x8xf32> to vector<8x8xf32>
    %cst_41 = arith.constant dense<0.000000e+00> : vector<32x8xf32>
    %18 = tpu.matmul %15, %17, %cst_41 {dimension_numbers = #tpu.dot_dimension_numbers<[1], [0], [0], [1], [0, 0, 1, 1], [], []>} : vector<32x8xf32>, vector<8x8xf32>, vector<32x8xf32> -> vector<32x8xf32>
    %c0_42 = arith.constant 0 : index
    %c0_43 = arith.constant 0 : index
    %19 = vector.load %arg6[%c0_42, %c0_43] : memref<32x8xf32, #tpu.memory_space<vmem>>, vector<32x8xf32>
    %20 = arith.addf %19, %18 : vector<32x8xf32>
    %c0_44 = arith.constant 0 : index
    %c0_45 = arith.constant 0 : index
    %21 = vector.load %arg6[%c0_44, %c0_45] : memref<32x8xf32, #tpu.memory_space<vmem>>, vector<32x8xf32>
    tpu.vector_store %arg6[%c0_44, %c0_45], %20 {strides = array<i32>} : memref<32x8xf32, #tpu.memory_space<vmem>>, vector<32x8xf32>,
    %c0_46 = arith.constant 0 : index
    %c0_47 = arith.constant 0 : index
    %c2 = arith.constant 2 : index
    %c0_48 = arith.constant 0 : index
    %22 = vector.load %arg5[%c0_46, %c0_47, %c2, %c0_48] : memref<2x6x6x8xf32, #tpu.memory_space<vmem>>, vector<2x4x4x8xf32>
    %23 = vector.shape_cast %22 : vector<2x4x4x8xf32> to vector<32x8xf32>
    %c0_49 = arith.constant 0 : index
    %c2_50 = arith.constant 2 : index
    %c0_51 = arith.constant 0 : index
    %c0_52 = arith.constant 0 : index
    %24 = vector.load %arg2[%c0_49, %c2_50, %c0_51, %c0_52] : memref<5x9x8x8xf32, #tpu.memory_space<vmem>>, vector<1x1x8x8xf32>
    %25 = vector.shape_cast %24 : vector<1x1x8x8xf32> to vector<8x8xf32>
    %cst_53 = arith.constant dense<0.000000e+00> : vector<32x8xf32>
    %26 = tpu.matmul %23, %25, %cst_53 {dimension_numbers = #tpu.dot_dimension_numbers<[1], [0], [0], [1], [0, 0, 1, 1], [], []>} : vector<32x8xf32>, vector<8x8xf32>, vector<32x8xf32> -> vector<32x8xf32>
    %c0_54 = arith.constant 0 : index
    %c0_55 = arith.constant 0 : index
    %27 = vector.load %arg6[%c0_54, %c0_55] : memref<32x8xf32, #tpu.memory_space<vmem>>, vector<32x8xf32>
    %28 = arith.addf %27, %26 : vector<32x8xf32>
    %c0_56 = arith.constant 0 : index
    %c0_57 = arith.constant 0 : index
    %29 = vector.load %arg6[%c0_56, %c0_57] : memref<32x8xf32, #tpu.memory_space<vmem>>, vector<32x8xf32>
    tpu.vector_store %arg6[%c0_56, %c0_57], %28 {strides = array<i32>} : memref<32x8xf32, #tpu.memory_space<vmem>>, vector<32x8xf32>,
    %c0_58 = arith.constant 0 : index
    %c1_59 = arith.constant 1 : index
    %c0_60 = arith.constant 0 : index
    %c0_61 = arith.constant 0 : index
    %30 = vector.load %arg5[%c0_58, %c1_59, %c0_60, %c0_61] : memref<2x6x6x8xf32, #tpu.memory_space<vmem>>, vector<2x4x4x8xf32>
    %31 = vector.shape_cast %30 : vector<2x4x4x8xf32> to vector<32x8xf32>
    %c0_62 = arith.constant 0 : index
    %c3 = arith.constant 3 : index
    %c0_63 = arith.constant 0 : index
    %c0_64 = arith.constant 0 : index
    %32 = vector.load %arg2[%c0_62, %c3, %c0_63, %c0_64] : memref<5x9x8x8xf32, #tpu.memory_space<vmem>>, vector<1x1x8x8xf32>
    %33 = vector.shape_cast %32 : vector<1x1x8x8xf32> to vector<8x8xf32>
    %cst_65 = arith.constant dense<0.000000e+00> : vector<32x8xf32>
    %34 = tpu.matmul %31, %33, %cst_65 {dimension_numbers = #tpu.dot_dimension_numbers<[1], [0], [0], [1], [0, 0, 1, 1], [], []>} : vector<32x8xf32>, vector<8x8xf32>, vector<32x8xf32> -> vector<32x8xf32>
    %c0_66 = arith.constant 0 : index
    %c0_67 = arith.constant 0 : index
    %35 = vector.load %arg6[%c0_66, %c0_67] : memref<32x8xf32, #tpu.memory_space<vmem>>, vector<32x8xf32>
    %36 = arith.addf %35, %34 : vector<32x8xf32>
    %c0_68 = arith.constant 0 : index
    %c0_69 = arith.constant 0 : index
    %37 = vector.load %arg6[%c0_68, %c0_69] : memref<32x8xf32, #tpu.memory_space<vmem>>, vector<32x8xf32>
    tpu.vector_store %arg6[%c0_68, %c0_69], %36 {strides = array<i32>} : memref<32x8xf32, #tpu.memory_space<vmem>>, vector<32x8xf32>,
    %c0_70 = arith.constant 0 : index
    %c1_71 = arith.constant 1 : index
    %c1_72 = arith.constant 1 : index
    %c0_73 = arith.constant 0 : index
    %38 = vector.load %arg5[%c0_70, %c1_71, %c1_72, %c0_73] : memref<2x6x6x8xf32, #tpu.memory_space<vmem>>, vector<2x4x4x8xf32>
    %39 = vector.shape_cast %38 : vector<2x4x4x8xf32> to vector<32x8xf32>
    %c0_74 = arith.constant 0 : index
    %c4 = arith.constant 4 : index
    %c0_75 = arith.constant 0 : index
    %c0_76 = arith.constant 0 : index
    %40 = vector.load %arg2[%c0_74, %c4, %c0_75, %c0_76] : memref<5x9x8x8xf32, #tpu.memory_space<vmem>>, vector<1x1x8x8xf32>
    %41 = vector.shape_cast %40 : vector<1x1x8x8xf32> to vector<8x8xf32>
    %cst_77 = arith.constant dense<0.000000e+00> : vector<32x8xf32>
    %42 = tpu.matmul %39, %41, %cst_77 {dimension_numbers = #tpu.dot_dimension_numbers<[1], [0], [0], [1], [0, 0, 1, 1], [], []>} : vector<32x8xf32>, vector<8x8xf32>, vector<32x8xf32> -> vector<32x8xf32>
    %c0_78 = arith.constant 0 : index
    %c0_79 = arith.constant 0 : index
    %43 = vector.load %arg6[%c0_78, %c0_79] : memref<32x8xf32, #tpu.memory_space<vmem>>, vector<32x8xf32>
    %44 = arith.addf %43, %42 : vector<32x8xf32>
    %c0_80 = arith.constant 0 : index
    %c0_81 = arith.constant 0 : index
    %45 = vector.load %arg6[%c0_80, %c0_81] : memref<32x8xf32, #tpu.memory_space<vmem>>, vector<32x8xf32>
    tpu.vector_store %arg6[%c0_80, %c0_81], %44 {strides = array<i32>} : memref<32x8xf32, #tpu.memory_space<vmem>>, vector<32x8xf32>,
    %c0_82 = arith.constant 0 : index
    %c1_83 = arith.constant 1 : index
    %c2_84 = arith.constant 2 : index
    %c0_85 = arith.constant 0 : index
    %46 = vector.load %arg5[%c0_82, %c1_83, %c2_84, %c0_85] : memref<2x6x6x8xf32, #tpu.memory_space<vmem>>, vector<2x4x4x8xf32>
    %47 = vector.shape_cast %46 : vector<2x4x4x8xf32> to vector<32x8xf32>
    %c0_86 = arith.constant 0 : index
    %c5_87 = arith.constant 5 : index
    %c0_88 = arith.constant 0 : index
    %c0_89 = arith.constant 0 : index
    %48 = vector.load %arg2[%c0_86, %c5_87, %c0_88, %c0_89] : memref<5x9x8x8xf32, #tpu.memory_space<vmem>>, vector<1x1x8x8xf32>
    %49 = vector.shape_cast %48 : vector<1x1x8x8xf32> to vector<8x8xf32>
    %cst_90 = arith.constant dense<0.000000e+00> : vector<32x8xf32>
    %50 = tpu.matmul %47, %49, %cst_90 {dimension_numbers = #tpu.dot_dimension_numbers<[1], [0], [0], [1], [0, 0, 1, 1], [], []>} : vector<32x8xf32>, vector<8x8xf32>, vector<32x8xf32> -> vector<32x8xf32>
    %c0_91 = arith.constant 0 : index
    %c0_92 = arith.constant 0 : index
    %51 = vector.load %arg6[%c0_91, %c0_92] : memref<32x8xf32, #tpu.memory_space<vmem>>, vector<32x8xf32>
    %52 = arith.addf %51, %50 : vector<32x8xf32>
    %c0_93 = arith.constant 0 : index
    %c0_94 = arith.constant 0 : index
    %53 = vector.load %arg6[%c0_93, %c0_94] : memref<32x8xf32, #tpu.memory_space<vmem>>, vector<32x8xf32>
    tpu.vector_store %arg6[%c0_93, %c0_94], %52 {strides = array<i32>} : memref<32x8xf32, #tpu.memory_space<vmem>>, vector<32x8xf32>,
    %c0_95 = arith.constant 0 : index
    %c2_96 = arith.constant 2 : index
    %c0_97 = arith.constant 0 : index
    %c0_98 = arith.constant 0 : index
    %54 = vector.load %arg5[%c0_95, %c2_96, %c0_97, %c0_98] : memref<2x6x6x8xf32, #tpu.memory_space<vmem>>, vector<2x4x4x8xf32>
    %55 = vector.shape_cast %54 : vector<2x4x4x8xf32> to vector<32x8xf32>
    %c0_99 = arith.constant 0 : index
    %c6 = arith.constant 6 : index
    %c0_100 = arith.constant 0 : index
    %c0_101 = arith.constant 0 : index
    %56 = vector.load %arg2[%c0_99, %c6, %c0_100, %c0_101] : memref<5x9x8x8xf32, #tpu.memory_space<vmem>>, vector<1x1x8x8xf32>
    %57 = vector.shape_cast %56 : vector<1x1x8x8xf32> to vector<8x8xf32>
    %cst_102 = arith.constant dense<0.000000e+00> : vector<32x8xf32>
    %58 = tpu.matmul %55, %57, %cst_102 {dimension_numbers = #tpu.dot_dimension_numbers<[1], [0], [0], [1], [0, 0, 1, 1], [], []>} : vector<32x8xf32>, vector<8x8xf32>, vector<32x8xf32> -> vector<32x8xf32>
    %c0_103 = arith.constant 0 : index
    %c0_104 = arith.constant 0 : index
    %59 = vector.load %arg6[%c0_103, %c0_104] : memref<32x8xf32, #tpu.memory_space<vmem>>, vector<32x8xf32>
    %60 = arith.addf %59, %58 : vector<32x8xf32>
    %c0_105 = arith.constant 0 : index
    %c0_106 = arith.constant 0 : index
    %61 = vector.load %arg6[%c0_105, %c0_106] : memref<32x8xf32, #tpu.memory_space<vmem>>, vector<32x8xf32>
    tpu.vector_store %arg6[%c0_105, %c0_106], %60 {strides = array<i32>} : memref<32x8xf32, #tpu.memory_space<vmem>>, vector<32x8xf32>,
    %c0_107 = arith.constant 0 : index
    %c2_108 = arith.constant 2 : index
    %c1_109 = arith.constant 1 : index
    %c0_110 = arith.constant 0 : index
    %62 = vector.load %arg5[%c0_107, %c2_108, %c1_109, %c0_110] : memref<2x6x6x8xf32, #tpu.memory_space<vmem>>, vector<2x4x4x8xf32>
    %63 = vector.shape_cast %62 : vector<2x4x4x8xf32> to vector<32x8xf32>
    %c0_111 = arith.constant 0 : index
    %c7 = arith.constant 7 : index
    %c0_112 = arith.constant 0 : index
    %c0_113 = arith.constant 0 : index
    %64 = vector.load %arg2[%c0_111, %c7, %c0_112, %c0_113] : memref<5x9x8x8xf32, #tpu.memory_space<vmem>>, vector<1x1x8x8xf32>
    %65 = vector.shape_cast %64 : vector<1x1x8x8xf32> to vector<8x8xf32>
    %cst_114 = arith.constant dense<0.000000e+00> : vector<32x8xf32>
    %66 = tpu.matmul %63, %65, %cst_114 {dimension_numbers = #tpu.dot_dimension_numbers<[1], [0], [0], [1], [0, 0, 1, 1], [], []>} : vector<32x8xf32>, vector<8x8xf32>, vector<32x8xf32> -> vector<32x8xf32>
    %c0_115 = arith.constant 0 : index
    %c0_116 = arith.constant 0 : index
    %67 = vector.load %arg6[%c0_115, %c0_116] : memref<32x8xf32, #tpu.memory_space<vmem>>, vector<32x8xf32>
    %68 = arith.addf %67, %66 : vector<32x8xf32>
    %c0_117 = arith.constant 0 : index
    %c0_118 = arith.constant 0 : index
    %69 = vector.load %arg6[%c0_117, %c0_118] : memref<32x8xf32, #tpu.memory_space<vmem>>, vector<32x8xf32>
    tpu.vector_store %arg6[%c0_117, %c0_118], %68 {strides = array<i32>} : memref<32x8xf32, #tpu.memory_space<vmem>>, vector<32x8xf32>,
    %c0_119 = arith.constant 0 : index
    %c2_120 = arith.constant 2 : index
    %c2_121 = arith.constant 2 : index
    %c0_122 = arith.constant 0 : index
    %70 = vector.load %arg5[%c0_119, %c2_120, %c2_121, %c0_122] : memref<2x6x6x8xf32, #tpu.memory_space<vmem>>, vector<2x4x4x8xf32>
    %71 = vector.shape_cast %70 : vector<2x4x4x8xf32> to vector<32x8xf32>
    %c0_123 = arith.constant 0 : index
    %c8 = arith.constant 8 : index
    %c0_124 = arith.constant 0 : index
    %c0_125 = arith.constant 0 : index
    %72 = vector.load %arg2[%c0_123, %c8, %c0_124, %c0_125] : memref<5x9x8x8xf32, #tpu.memory_space<vmem>>, vector<1x1x8x8xf32>
    %73 = vector.shape_cast %72 : vector<1x1x8x8xf32> to vector<8x8xf32>
    %cst_126 = arith.constant dense<0.000000e+00> : vector<32x8xf32>
    %74 = tpu.matmul %71, %73, %cst_126 {dimension_numbers = #tpu.dot_dimension_numbers<[1], [0], [0], [1], [0, 0, 1, 1], [], []>} : vector<32x8xf32>, vector<8x8xf32>, vector<32x8xf32> -> vector<32x8xf32>
    %c0_127 = arith.constant 0 : index
    %c0_128 = arith.constant 0 : index
    %75 = vector.load %arg6[%c0_127, %c0_128] : memref<32x8xf32, #tpu.memory_space<vmem>>, vector<32x8xf32>
    %76 = arith.addf %75, %74 : vector<32x8xf32>
    %c0_129 = arith.constant 0 : index
    %c0_130 = arith.constant 0 : index
    %77 = vector.load %arg6[%c0_129, %c0_130] : memref<32x8xf32, #tpu.memory_space<vmem>>, vector<32x8xf32>
    tpu.vector_store %arg6[%c0_129, %c0_130], %76 {strides = array<i32>} : memref<32x8xf32, #tpu.memory_space<vmem>>, vector<32x8xf32>,
    %c0_131 = arith.constant 0 : index
    %c0_132 = arith.constant 0 : index
    %78 = vector.load %arg6[%c0_131, %c0_132] : memref<32x8xf32, #tpu.memory_space<vmem>>, vector<32x8xf32>
    %c0_133 = arith.constant 0 : index
    %c0_134 = arith.constant 0 : index
    %c0_135 = arith.constant 0 : index
    %79 = vector.load %arg3[%c0_133, %c0_134, %c0_135] : memref<5x1x8xf32, #tpu.memory_space<vmem>>, vector<1x1x8xf32>
    %80 = vector.shape_cast %79 : vector<1x1x8xf32> to vector<1x8xf32>
    %81 = vector.broadcast %80 : vector<1x8xf32> to vector<32x8xf32>
    %82 = arith.addf %78, %81 : vector<32x8xf32>
    %cst_136 = arith.constant 0.000000e+00 : f32
    %83 = vector.broadcast %cst_136 : f32 to vector<32x8xf32>
    %84 = arith.maximumf %82, %83 : vector<32x8xf32>
    %85 = vector.shape_cast %84 : vector<32x8xf32> to vector<2x4x4x8xf32>
    %c0_137 = arith.constant 0 : index
    %c1_138 = arith.constant 1 : index
    %c1_139 = arith.constant 1 : index
    %c0_140 = arith.constant 0 : index
    %86 = vector.load %arg5[%c0_137, %c1_138, %c1_139, %c0_140] : memref<2x6x6x8xf32, #tpu.memory_space<vmem>>, vector<2x4x4x8xf32>
    tpu.vector_store %arg5[%c0_137, %c1_138, %c1_139, %c0_140], %85 {strides = array<i32>} : memref<2x6x6x8xf32, #tpu.memory_space<vmem>>, vector<2x4x4x8xf32>,
    %c0_141 = arith.constant 0 : index
    %c0_142 = arith.constant 0 : index
    %c0_143 = arith.constant 0 : index
    %c0_144 = arith.constant 0 : index
    %87 = vector.load %arg5[%c0_141, %c0_142, %c0_143, %c0_144] : memref<2x6x6x8xf32, #tpu.memory_space<vmem>>, vector<2x4x4x8xf32>
    %88 = vector.shape_cast %87 : vector<2x4x4x8xf32> to vector<32x8xf32>
    %c1_145 = arith.constant 1 : index
    %c0_146 = arith.constant 0 : index
    %c0_147 = arith.constant 0 : index
    %c0_148 = arith.constant 0 : index
    %89 = vector.load %arg2[%c1_145, %c0_146, %c0_147, %c0_148] : memref<5x9x8x8xf32, #tpu.memory_space<vmem>>, vector<1x1x8x8xf32>
    %90 = vector.shape_cast %89 : vector<1x1x8x8xf32> to vector<8x8xf32>
    %cst_149 = arith.constant dense<0.000000e+00> : vector<32x8xf32>
    %91 = tpu.matmul %88, %90, %cst_149 {dimension_numbers = #tpu.dot_dimension_numbers<[1], [0], [0], [1], [0, 0, 1, 1], [], []>} : vector<32x8xf32>, vector<8x8xf32>, vector<32x8xf32> -> vector<32x8xf32>
    %c0_150 = arith.constant 0 : index
    %c0_151 = arith.constant 0 : index
    %92 = vector.load %arg6[%c0_150, %c0_151] : memref<32x8xf32, #tpu.memory_space<vmem>>, vector<32x8xf32>
    tpu.vector_store %arg6[%c0_150, %c0_151], %91 {strides = array<i32>} : memref<32x8xf32, #tpu.memory_space<vmem>>, vector<32x8xf32>,
    %c0_152 = arith.constant 0 : index
    %c0_153 = arith.constant 0 : index
    %c1_154 = arith.constant 1 : index
    %c0_155 = arith.constant 0 : index
    %93 = vector.load %arg5[%c0_152, %c0_153, %c1_154, %c0_155] : memref<2x6x6x8xf32, #tpu.memory_space<vmem>>, vector<2x4x4x8xf32>
    %94 = vector.shape_cast %93 : vector<2x4x4x8xf32> to vector<32x8xf32>
    %c1_156 = arith.constant 1 : index
    %c1_157 = arith.constant 1 : index
    %c0_158 = arith.constant 0 : index
    %c0_159 = arith.constant 0 : index
    %95 = vector.load %arg2[%c1_156, %c1_157, %c0_158, %c0_159] : memref<5x9x8x8xf32, #tpu.memory_space<vmem>>, vector<1x1x8x8xf32>
    %96 = vector.shape_cast %95 : vector<1x1x8x8xf32> to vector<8x8xf32>
    %cst_160 = arith.constant dense<0.000000e+00> : vector<32x8xf32>
    %97 = tpu.matmul %94, %96, %cst_160 {dimension_numbers = #tpu.dot_dimension_numbers<[1], [0], [0], [1], [0, 0, 1, 1], [], []>} : vector<32x8xf32>, vector<8x8xf32>, vector<32x8xf32> -> vector<32x8xf32>
    %c0_161 = arith.constant 0 : index
    %c0_162 = arith.constant 0 : index
    %98 = vector.load %arg6[%c0_161, %c0_162] : memref<32x8xf32, #tpu.memory_space<vmem>>, vector<32x8xf32>
    %99 = arith.addf %98, %97 : vector<32x8xf32>
    %c0_163 = arith.constant 0 : index
    %c0_164 = arith.constant 0 : index
    %100 = vector.load %arg6[%c0_163, %c0_164] : memref<32x8xf32, #tpu.memory_space<vmem>>, vector<32x8xf32>
    tpu.vector_store %arg6[%c0_163, %c0_164], %99 {strides = array<i32>} : memref<32x8xf32, #tpu.memory_space<vmem>>, vector<32x8xf32>,
    %c0_165 = arith.constant 0 : index
    %c0_166 = arith.constant 0 : index
    %c2_167 = arith.constant 2 : index
    %c0_168 = arith.constant 0 : index
    %101 = vector.load %arg5[%c0_165, %c0_166, %c2_167, %c0_168] : memref<2x6x6x8xf32, #tpu.memory_space<vmem>>, vector<2x4x4x8xf32>
    %102 = vector.shape_cast %101 : vector<2x4x4x8xf32> to vector<32x8xf32>
    %c1_169 = arith.constant 1 : index
    %c2_170 = arith.constant 2 : index
    %c0_171 = arith.constant 0 : index
    %c0_172 = arith.constant 0 : index
    %103 = vector.load %arg2[%c1_169, %c2_170, %c0_171, %c0_172] : memref<5x9x8x8xf32, #tpu.memory_space<vmem>>, vector<1x1x8x8xf32>
    %104 = vector.shape_cast %103 : vector<1x1x8x8xf32> to vector<8x8xf32>
    %cst_173 = arith.constant dense<0.000000e+00> : vector<32x8xf32>
    %105 = tpu.matmul %102, %104, %cst_173 {dimension_numbers = #tpu.dot_dimension_numbers<[1], [0], [0], [1], [0, 0, 1, 1], [], []>} : vector<32x8xf32>, vector<8x8xf32>, vector<32x8xf32> -> vector<32x8xf32>
    %c0_174 = arith.constant 0 : index
    %c0_175 = arith.constant 0 : index
    %106 = vector.load %arg6[%c0_174, %c0_175] : memref<32x8xf32, #tpu.memory_space<vmem>>, vector<32x8xf32>
    %107 = arith.addf %106, %105 : vector<32x8xf32>
    %c0_176 = arith.constant 0 : index
    %c0_177 = arith.constant 0 : index
    %108 = vector.load %arg6[%c0_176, %c0_177] : memref<32x8xf32, #tpu.memory_space<vmem>>, vector<32x8xf32>
    tpu.vector_store %arg6[%c0_176, %c0_177], %107 {strides = array<i32>} : memref<32x8xf32, #tpu.memory_space<vmem>>, vector<32x8xf32>,
    %c0_178 = arith.constant 0 : index
    %c1_179 = arith.constant 1 : index
    %c0_180 = arith.constant 0 : index
    %c0_181 = arith.constant 0 : index
    %109 = vector.load %arg5[%c0_178, %c1_179, %c0_180, %c0_181] : memref<2x6x6x8xf32, #tpu.memory_space<vmem>>, vector<2x4x4x8xf32>
    %110 = vector.shape_cast %109 : vector<2x4x4x8xf32> to vector<32x8xf32>
    %c1_182 = arith.constant 1 : index
    %c3_183 = arith.constant 3 : index
    %c0_184 = arith.constant 0 : index
    %c0_185 = arith.constant 0 : index
    %111 = vector.load %arg2[%c1_182, %c3_183, %c0_184, %c0_185] : memref<5x9x8x8xf32, #tpu.memory_space<vmem>>, vector<1x1x8x8xf32>
    %112 = vector.shape_cast %111 : vector<1x1x8x8xf32> to vector<8x8xf32>
    %cst_186 = arith.constant dense<0.000000e+00> : vector<32x8xf32>
    %113 = tpu.matmul %110, %112, %cst_186 {dimension_numbers = #tpu.dot_dimension_numbers<[1], [0], [0], [1], [0, 0, 1, 1], [], []>} : vector<32x8xf32>, vector<8x8xf32>, vector<32x8xf32> -> vector<32x8xf32>
    %c0_187 = arith.constant 0 : index
    %c0_188 = arith.constant 0 : index
    %114 = vector.load %arg6[%c0_187, %c0_188] : memref<32x8xf32, #tpu.memory_space<vmem>>, vector<32x8xf32>
    %115 = arith.addf %114, %113 : vector<32x8xf32>
    %c0_189 = arith.constant 0 : index
    %c0_190 = arith.constant 0 : index
    %116 = vector.load %arg6[%c0_189, %c0_190] : memref<32x8xf32, #tpu.memory_space<vmem>>, vector<32x8xf32>
    tpu.vector_store %arg6[%c0_189, %c0_190], %115 {strides = array<i32>} : memref<32x8xf32, #tpu.memory_space<vmem>>, vector<32x8xf32>,
    %c0_191 = arith.constant 0 : index
    %c1_192 = arith.constant 1 : index
    %c1_193 = arith.constant 1 : index
    %c0_194 = arith.constant 0 : index
    %117 = vector.load %arg5[%c0_191, %c1_192, %c1_193, %c0_194] : memref<2x6x6x8xf32, #tpu.memory_space<vmem>>, vector<2x4x4x8xf32>
    %118 = vector.shape_cast %117 : vector<2x4x4x8xf32> to vector<32x8xf32>
    %c1_195 = arith.constant 1 : index
    %c4_196 = arith.constant 4 : index
    %c0_197 = arith.constant 0 : index
    %c0_198 = arith.constant 0 : index
    %119 = vector.load %arg2[%c1_195, %c4_196, %c0_197, %c0_198] : memref<5x9x8x8xf32, #tpu.memory_space<vmem>>, vector<1x1x8x8xf32>
    %120 = vector.shape_cast %119 : vector<1x1x8x8xf32> to vector<8x8xf32>
    %cst_199 = arith.constant dense<0.000000e+00> : vector<32x8xf32>
    %121 = tpu.matmul %118, %120, %cst_199 {dimension_numbers = #tpu.dot_dimension_numbers<[1], [0], [0], [1], [0, 0, 1, 1], [], []>} : vector<32x8xf32>, vector<8x8xf32>, vector<32x8xf32> -> vector<32x8xf32>
    %c0_200 = arith.constant 0 : index
    %c0_201 = arith.constant 0 : index
    %122 = vector.load %arg6[%c0_200, %c0_201] : memref<32x8xf32, #tpu.memory_space<vmem>>, vector<32x8xf32>
    %123 = arith.addf %122, %121 : vector<32x8xf32>
    %c0_202 = arith.constant 0 : index
    %c0_203 = arith.constant 0 : index
    %124 = vector.load %arg6[%c0_202, %c0_203] : memref<32x8xf32, #tpu.memory_space<vmem>>, vector<32x8xf32>
    tpu.vector_store %arg6[%c0_202, %c0_203], %123 {strides = array<i32>} : memref<32x8xf32, #tpu.memory_space<vmem>>, vector<32x8xf32>,
    %c0_204 = arith.constant 0 : index
    %c1_205 = arith.constant 1 : index
    %c2_206 = arith.constant 2 : index
    %c0_207 = arith.constant 0 : index
    %125 = vector.load %arg5[%c0_204, %c1_205, %c2_206, %c0_207] : memref<2x6x6x8xf32, #tpu.memory_space<vmem>>, vector<2x4x4x8xf32>
    %126 = vector.shape_cast %125 : vector<2x4x4x8xf32> to vector<32x8xf32>
    %c1_208 = arith.constant 1 : index
    %c5_209 = arith.constant 5 : index
    %c0_210 = arith.constant 0 : index
    %c0_211 = arith.constant 0 : index
    %127 = vector.load %arg2[%c1_208, %c5_209, %c0_210, %c0_211] : memref<5x9x8x8xf32, #tpu.memory_space<vmem>>, vector<1x1x8x8xf32>
    %128 = vector.shape_cast %127 : vector<1x1x8x8xf32> to vector<8x8xf32>
    %cst_212 = arith.constant dense<0.000000e+00> : vector<32x8xf32>
    %129 = tpu.matmul %126, %128, %cst_212 {dimension_numbers = #tpu.dot_dimension_numbers<[1], [0], [0], [1], [0, 0, 1, 1], [], []>} : vector<32x8xf32>, vector<8x8xf32>, vector<32x8xf32> -> vector<32x8xf32>
    %c0_213 = arith.constant 0 : index
    %c0_214 = arith.constant 0 : index
    %130 = vector.load %arg6[%c0_213, %c0_214] : memref<32x8xf32, #tpu.memory_space<vmem>>, vector<32x8xf32>
    %131 = arith.addf %130, %129 : vector<32x8xf32>
    %c0_215 = arith.constant 0 : index
    %c0_216 = arith.constant 0 : index
    %132 = vector.load %arg6[%c0_215, %c0_216] : memref<32x8xf32, #tpu.memory_space<vmem>>, vector<32x8xf32>
    tpu.vector_store %arg6[%c0_215, %c0_216], %131 {strides = array<i32>} : memref<32x8xf32, #tpu.memory_space<vmem>>, vector<32x8xf32>,
    %c0_217 = arith.constant 0 : index
    %c2_218 = arith.constant 2 : index
    %c0_219 = arith.constant 0 : index
    %c0_220 = arith.constant 0 : index
    %133 = vector.load %arg5[%c0_217, %c2_218, %c0_219, %c0_220] : memref<2x6x6x8xf32, #tpu.memory_space<vmem>>, vector<2x4x4x8xf32>
    %134 = vector.shape_cast %133 : vector<2x4x4x8xf32> to vector<32x8xf32>
    %c1_221 = arith.constant 1 : index
    %c6_222 = arith.constant 6 : index
    %c0_223 = arith.constant 0 : index
    %c0_224 = arith.constant 0 : index
    %135 = vector.load %arg2[%c1_221, %c6_222, %c0_223, %c0_224] : memref<5x9x8x8xf32, #tpu.memory_space<vmem>>, vector<1x1x8x8xf32>
    %136 = vector.shape_cast %135 : vector<1x1x8x8xf32> to vector<8x8xf32>
    %cst_225 = arith.constant dense<0.000000e+00> : vector<32x8xf32>
    %137 = tpu.matmul %134, %136, %cst_225 {dimension_numbers = #tpu.dot_dimension_numbers<[1], [0], [0], [1], [0, 0, 1, 1], [], []>} : vector<32x8xf32>, vector<8x8xf32>, vector<32x8xf32> -> vector<32x8xf32>
    %c0_226 = arith.constant 0 : index
    %c0_227 = arith.constant 0 : index
    %138 = vector.load %arg6[%c0_226, %c0_227] : memref<32x8xf32, #tpu.memory_space<vmem>>, vector<32x8xf32>
    %139 = arith.addf %138, %137 : vector<32x8xf32>
    %c0_228 = arith.constant 0 : index
    %c0_229 = arith.constant 0 : index
    %140 = vector.load %arg6[%c0_228, %c0_229] : memref<32x8xf32, #tpu.memory_space<vmem>>, vector<32x8xf32>
    tpu.vector_store %arg6[%c0_228, %c0_229], %139 {strides = array<i32>} : memref<32x8xf32, #tpu.memory_space<vmem>>, vector<32x8xf32>,
    %c0_230 = arith.constant 0 : index
    %c2_231 = arith.constant 2 : index
    %c1_232 = arith.constant 1 : index
    %c0_233 = arith.constant 0 : index
    %141 = vector.load %arg5[%c0_230, %c2_231, %c1_232, %c0_233] : memref<2x6x6x8xf32, #tpu.memory_space<vmem>>, vector<2x4x4x8xf32>
    %142 = vector.shape_cast %141 : vector<2x4x4x8xf32> to vector<32x8xf32>
    %c1_234 = arith.constant 1 : index
    %c7_235 = arith.constant 7 : index
    %c0_236 = arith.constant 0 : index
    %c0_237 = arith.constant 0 : index
    %143 = vector.load %arg2[%c1_234, %c7_235, %c0_236, %c0_237] : memref<5x9x8x8xf32, #tpu.memory_space<vmem>>, vector<1x1x8x8xf32>
    %144 = vector.shape_cast %143 : vector<1x1x8x8xf32> to vector<8x8xf32>
    %cst_238 = arith.constant dense<0.000000e+00> : vector<32x8xf32>
    %145 = tpu.matmul %142, %144, %cst_238 {dimension_numbers = #tpu.dot_dimension_numbers<[1], [0], [0], [1], [0, 0, 1, 1], [], []>} : vector<32x8xf32>, vector<8x8xf32>, vector<32x8xf32> -> vector<32x8xf32>
    %c0_239 = arith.constant 0 : index
    %c0_240 = arith.constant 0 : index
    %146 = vector.load %arg6[%c0_239, %c0_240] : memref<32x8xf32, #tpu.memory_space<vmem>>, vector<32x8xf32>
    %147 = arith.addf %146, %145 : vector<32x8xf32>
    %c0_241 = arith.constant 0 : index
    %c0_242 = arith.constant 0 : index
    %148 = vector.load %arg6[%c0_241, %c0_242] : memref<32x8xf32, #tpu.memory_space<vmem>>, vector<32x8xf32>
    tpu.vector_store %arg6[%c0_241, %c0_242], %147 {strides = array<i32>} : memref<32x8xf32, #tpu.memory_space<vmem>>, vector<32x8xf32>,
    %c0_243 = arith.constant 0 : index
    %c2_244 = arith.constant 2 : index
    %c2_245 = arith.constant 2 : index
    %c0_246 = arith.constant 0 : index
    %149 = vector.load %arg5[%c0_243, %c2_244, %c2_245, %c0_246] : memref<2x6x6x8xf32, #tpu.memory_space<vmem>>, vector<2x4x4x8xf32>
    %150 = vector.shape_cast %149 : vector<2x4x4x8xf32> to vector<32x8xf32>
    %c1_247 = arith.constant 1 : index
    %c8_248 = arith.constant 8 : index
    %c0_249 = arith.constant 0 : index
    %c0_250 = arith.constant 0 : index
    %151 = vector.load %arg2[%c1_247, %c8_248, %c0_249, %c0_250] : memref<5x9x8x8xf32, #tpu.memory_space<vmem>>, vector<1x1x8x8xf32>
    %152 = vector.shape_cast %151 : vector<1x1x8x8xf32> to vector<8x8xf32>
    %cst_251 = arith.constant dense<0.000000e+00> : vector<32x8xf32>
    %153 = tpu.matmul %150, %152, %cst_251 {dimension_numbers = #tpu.dot_dimension_numbers<[1], [0], [0], [1], [0, 0, 1, 1], [], []>} : vector<32x8xf32>, vector<8x8xf32>, vector<32x8xf32> -> vector<32x8xf32>
    %c0_252 = arith.constant 0 : index
    %c0_253 = arith.constant 0 : index
    %154 = vector.load %arg6[%c0_252, %c0_253] : memref<32x8xf32, #tpu.memory_space<vmem>>, vector<32x8xf32>
    %155 = arith.addf %154, %153 : vector<32x8xf32>
    %c0_254 = arith.constant 0 : index
    %c0_255 = arith.constant 0 : index
    %156 = vector.load %arg6[%c0_254, %c0_255] : memref<32x8xf32, #tpu.memory_space<vmem>>, vector<32x8xf32>
    tpu.vector_store %arg6[%c0_254, %c0_255], %155 {strides = array<i32>} : memref<32x8xf32, #tpu.memory_space<vmem>>, vector<32x8xf32>,
    %c0_256 = arith.constant 0 : index
    %c0_257 = arith.constant 0 : index
    %157 = vector.load %arg6[%c0_256, %c0_257] : memref<32x8xf32, #tpu.memory_space<vmem>>, vector<32x8xf32>
    %c1_258 = arith.constant 1 : index
    %c0_259 = arith.constant 0 : index
    %c0_260 = arith.constant 0 : index
    %158 = vector.load %arg3[%c1_258, %c0_259, %c0_260] : memref<5x1x8xf32, #tpu.memory_space<vmem>>, vector<1x1x8xf32>
    %159 = vector.shape_cast %158 : vector<1x1x8xf32> to vector<1x8xf32>
    %160 = vector.broadcast %159 : vector<1x8xf32> to vector<32x8xf32>
    %161 = arith.addf %157, %160 : vector<32x8xf32>
    %cst_261 = arith.constant 0.000000e+00 : f32
    %162 = vector.broadcast %cst_261 : f32 to vector<32x8xf32>
    %163 = arith.maximumf %161, %162 : vector<32x8xf32>
    %164 = vector.shape_cast %163 : vector<32x8xf32> to vector<2x4x4x8xf32>
    %c0_262 = arith.constant 0 : index
    %c1_263 = arith.constant 1 : index
    %c1_264 = arith.constant 1 : index
    %c0_265 = arith.constant 0 : index
    %165 = vector.load %arg5[%c0_262, %c1_263, %c1_264, %c0_265] : memref<2x6x6x8xf32, #tpu.memory_space<vmem>>, vector<2x4x4x8xf32>
    tpu.vector_store %arg5[%c0_262, %c1_263, %c1_264, %c0_265], %164 {strides = array<i32>} : memref<2x6x6x8xf32, #tpu.memory_space<vmem>>, vector<2x4x4x8xf32>,
    %c0_266 = arith.constant 0 : index
    %c0_267 = arith.constant 0 : index
    %c0_268 = arith.constant 0 : index
    %c0_269 = arith.constant 0 : index
    %166 = vector.load %arg5[%c0_266, %c0_267, %c0_268, %c0_269] : memref<2x6x6x8xf32, #tpu.memory_space<vmem>>, vector<2x4x4x8xf32>
    %167 = vector.shape_cast %166 : vector<2x4x4x8xf32> to vector<32x8xf32>
    %c2_270 = arith.constant 2 : index
    %c0_271 = arith.constant 0 : index
    %c0_272 = arith.constant 0 : index
    %c0_273 = arith.constant 0 : index
    %168 = vector.load %arg2[%c2_270, %c0_271, %c0_272, %c0_273] : memref<5x9x8x8xf32, #tpu.memory_space<vmem>>, vector<1x1x8x8xf32>
    %169 = vector.shape_cast %168 : vector<1x1x8x8xf32> to vector<8x8xf32>
    %cst_274 = arith.constant dense<0.000000e+00> : vector<32x8xf32>
    %170 = tpu.matmul %167, %169, %cst_274 {dimension_numbers = #tpu.dot_dimension_numbers<[1], [0], [0], [1], [0, 0, 1, 1], [], []>} : vector<32x8xf32>, vector<8x8xf32>, vector<32x8xf32> -> vector<32x8xf32>
    %c0_275 = arith.constant 0 : index
    %c0_276 = arith.constant 0 : index
    %171 = vector.load %arg6[%c0_275, %c0_276] : memref<32x8xf32, #tpu.memory_space<vmem>>, vector<32x8xf32>
    tpu.vector_store %arg6[%c0_275, %c0_276], %170 {strides = array<i32>} : memref<32x8xf32, #tpu.memory_space<vmem>>, vector<32x8xf32>,
    %c0_277 = arith.constant 0 : index
    %c0_278 = arith.constant 0 : index
    %c1_279 = arith.constant 1 : index
    %c0_280 = arith.constant 0 : index
    %172 = vector.load %arg5[%c0_277, %c0_278, %c1_279, %c0_280] : memref<2x6x6x8xf32, #tpu.memory_space<vmem>>, vector<2x4x4x8xf32>
    %173 = vector.shape_cast %172 : vector<2x4x4x8xf32> to vector<32x8xf32>
    %c2_281 = arith.constant 2 : index
    %c1_282 = arith.constant 1 : index
    %c0_283 = arith.constant 0 : index
    %c0_284 = arith.constant 0 : index
    %174 = vector.load %arg2[%c2_281, %c1_282, %c0_283, %c0_284] : memref<5x9x8x8xf32, #tpu.memory_space<vmem>>, vector<1x1x8x8xf32>
    %175 = vector.shape_cast %174 : vector<1x1x8x8xf32> to vector<8x8xf32>
    %cst_285 = arith.constant dense<0.000000e+00> : vector<32x8xf32>
    %176 = tpu.matmul %173, %175, %cst_285 {dimension_numbers = #tpu.dot_dimension_numbers<[1], [0], [0], [1], [0, 0, 1, 1], [], []>} : vector<32x8xf32>, vector<8x8xf32>, vector<32x8xf32> -> vector<32x8xf32>
    %c0_286 = arith.constant 0 : index
    %c0_287 = arith.constant 0 : index
    %177 = vector.load %arg6[%c0_286, %c0_287] : memref<32x8xf32, #tpu.memory_space<vmem>>, vector<32x8xf32>
    %178 = arith.addf %177, %176 : vector<32x8xf32>
    %c0_288 = arith.constant 0 : index
    %c0_289 = arith.constant 0 : index
    %179 = vector.load %arg6[%c0_288, %c0_289] : memref<32x8xf32, #tpu.memory_space<vmem>>, vector<32x8xf32>
    tpu.vector_store %arg6[%c0_288, %c0_289], %178 {strides = array<i32>} : memref<32x8xf32, #tpu.memory_space<vmem>>, vector<32x8xf32>,
    %c0_290 = arith.constant 0 : index
    %c0_291 = arith.constant 0 : index
    %c2_292 = arith.constant 2 : index
    %c0_293 = arith.constant 0 : index
    %180 = vector.load %arg5[%c0_290, %c0_291, %c2_292, %c0_293] : memref<2x6x6x8xf32, #tpu.memory_space<vmem>>, vector<2x4x4x8xf32>
    %181 = vector.shape_cast %180 : vector<2x4x4x8xf32> to vector<32x8xf32>
    %c2_294 = arith.constant 2 : index
    %c2_295 = arith.constant 2 : index
    %c0_296 = arith.constant 0 : index
    %c0_297 = arith.constant 0 : index
    %182 = vector.load %arg2[%c2_294, %c2_295, %c0_296, %c0_297] : memref<5x9x8x8xf32, #tpu.memory_space<vmem>>, vector<1x1x8x8xf32>
    %183 = vector.shape_cast %182 : vector<1x1x8x8xf32> to vector<8x8xf32>
    %cst_298 = arith.constant dense<0.000000e+00> : vector<32x8xf32>
    %184 = tpu.matmul %181, %183, %cst_298 {dimension_numbers = #tpu.dot_dimension_numbers<[1], [0], [0], [1], [0, 0, 1, 1], [], []>} : vector<32x8xf32>, vector<8x8xf32>, vector<32x8xf32> -> vector<32x8xf32>
    %c0_299 = arith.constant 0 : index
    %c0_300 = arith.constant 0 : index
    %185 = vector.load %arg6[%c0_299, %c0_300] : memref<32x8xf32, #tpu.memory_space<vmem>>, vector<32x8xf32>
    %186 = arith.addf %185, %184 : vector<32x8xf32>
    %c0_301 = arith.constant 0 : index
    %c0_302 = arith.constant 0 : index
    %187 = vector.load %arg6[%c0_301, %c0_302] : memref<32x8xf32, #tpu.memory_space<vmem>>, vector<32x8xf32>
    tpu.vector_store %arg6[%c0_301, %c0_302], %186 {strides = array<i32>} : memref<32x8xf32, #tpu.memory_space<vmem>>, vector<32x8xf32>,
    %c0_303 = arith.constant 0 : index
    %c1_304 = arith.constant 1 : index
    %c0_305 = arith.constant 0 : index
    %c0_306 = arith.constant 0 : index
    %188 = vector.load %arg5[%c0_303, %c1_304, %c0_305, %c0_306] : memref<2x6x6x8xf32, #tpu.memory_space<vmem>>, vector<2x4x4x8xf32>
    %189 = vector.shape_cast %188 : vector<2x4x4x8xf32> to vector<32x8xf32>
    %c2_307 = arith.constant 2 : index
    %c3_308 = arith.constant 3 : index
    %c0_309 = arith.constant 0 : index
    %c0_310 = arith.constant 0 : index
    %190 = vector.load %arg2[%c2_307, %c3_308, %c0_309, %c0_310] : memref<5x9x8x8xf32, #tpu.memory_space<vmem>>, vector<1x1x8x8xf32>
    %191 = vector.shape_cast %190 : vector<1x1x8x8xf32> to vector<8x8xf32>
    %cst_311 = arith.constant dense<0.000000e+00> : vector<32x8xf32>
    %192 = tpu.matmul %189, %191, %cst_311 {dimension_numbers = #tpu.dot_dimension_numbers<[1], [0], [0], [1], [0, 0, 1, 1], [], []>} : vector<32x8xf32>, vector<8x8xf32>, vector<32x8xf32> -> vector<32x8xf32>
    %c0_312 = arith.constant 0 : index
    %c0_313 = arith.constant 0 : index
    %193 = vector.load %arg6[%c0_312, %c0_313] : memref<32x8xf32, #tpu.memory_space<vmem>>, vector<32x8xf32>
    %194 = arith.addf %193, %192 : vector<32x8xf32>
    %c0_314 = arith.constant 0 : index
    %c0_315 = arith.constant 0 : index
    %195 = vector.load %arg6[%c0_314, %c0_315] : memref<32x8xf32, #tpu.memory_space<vmem>>, vector<32x8xf32>
    tpu.vector_store %arg6[%c0_314, %c0_315], %194 {strides = array<i32>} : memref<32x8xf32, #tpu.memory_space<vmem>>, vector<32x8xf32>,
    %c0_316 = arith.constant 0 : index
    %c1_317 = arith.constant 1 : index
    %c1_318 = arith.constant 1 : index
    %c0_319 = arith.constant 0 : index
    %196 = vector.load %arg5[%c0_316, %c1_317, %c1_318, %c0_319] : memref<2x6x6x8xf32, #tpu.memory_space<vmem>>, vector<2x4x4x8xf32>
    %197 = vector.shape_cast %196 : vector<2x4x4x8xf32> to vector<32x8xf32>
    %c2_320 = arith.constant 2 : index
    %c4_321 = arith.constant 4 : index
    %c0_322 = arith.constant 0 : index
    %c0_323 = arith.constant 0 : index
    %198 = vector.load %arg2[%c2_320, %c4_321, %c0_322, %c0_323] : memref<5x9x8x8xf32, #tpu.memory_space<vmem>>, vector<1x1x8x8xf32>
    %199 = vector.shape_cast %198 : vector<1x1x8x8xf32> to vector<8x8xf32>
    %cst_324 = arith.constant dense<0.000000e+00> : vector<32x8xf32>
    %200 = tpu.matmul %197, %199, %cst_324 {dimension_numbers = #tpu.dot_dimension_numbers<[1], [0], [0], [1], [0, 0, 1, 1], [], []>} : vector<32x8xf32>, vector<8x8xf32>, vector<32x8xf32> -> vector<32x8xf32>
    %c0_325 = arith.constant 0 : index
    %c0_326 = arith.constant 0 : index
    %201 = vector.load %arg6[%c0_325, %c0_326] : memref<32x8xf32, #tpu.memory_space<vmem>>, vector<32x8xf32>
    %202 = arith.addf %201, %200 : vector<32x8xf32>
    %c0_327 = arith.constant 0 : index
    %c0_328 = arith.constant 0 : index
    %203 = vector.load %arg6[%c0_327, %c0_328] : memref<32x8xf32, #tpu.memory_space<vmem>>, vector<32x8xf32>
    tpu.vector_store %arg6[%c0_327, %c0_328], %202 {strides = array<i32>} : memref<32x8xf32, #tpu.memory_space<vmem>>, vector<32x8xf32>,
    %c0_329 = arith.constant 0 : index
    %c1_330 = arith.constant 1 : index
    %c2_331 = arith.constant 2 : index
    %c0_332 = arith.constant 0 : index
    %204 = vector.load %arg5[%c0_329, %c1_330, %c2_331, %c0_332] : memref<2x6x6x8xf32, #tpu.memory_space<vmem>>, vector<2x4x4x8xf32>
    %205 = vector.shape_cast %204 : vector<2x4x4x8xf32> to vector<32x8xf32>
    %c2_333 = arith.constant 2 : index
    %c5_334 = arith.constant 5 : index
    %c0_335 = arith.constant 0 : index
    %c0_336 = arith.constant 0 : index
    %206 = vector.load %arg2[%c2_333, %c5_334, %c0_335, %c0_336] : memref<5x9x8x8xf32, #tpu.memory_space<vmem>>, vector<1x1x8x8xf32>
    %207 = vector.shape_cast %206 : vector<1x1x8x8xf32> to vector<8x8xf32>
    %cst_337 = arith.constant dense<0.000000e+00> : vector<32x8xf32>
    %208 = tpu.matmul %205, %207, %cst_337 {dimension_numbers = #tpu.dot_dimension_numbers<[1], [0], [0], [1], [0, 0, 1, 1], [], []>} : vector<32x8xf32>, vector<8x8xf32>, vector<32x8xf32> -> vector<32x8xf32>
    %c0_338 = arith.constant 0 : index
    %c0_339 = arith.constant 0 : index
    %209 = vector.load %arg6[%c0_338, %c0_339] : memref<32x8xf32, #tpu.memory_space<vmem>>, vector<32x8xf32>
    %210 = arith.addf %209, %208 : vector<32x8xf32>
    %c0_340 = arith.constant 0 : index
    %c0_341 = arith.constant 0 : index
    %211 = vector.load %arg6[%c0_340, %c0_341] : memref<32x8xf32, #tpu.memory_space<vmem>>, vector<32x8xf32>
    tpu.vector_store %arg6[%c0_340, %c0_341], %210 {strides = array<i32>} : memref<32x8xf32, #tpu.memory_space<vmem>>, vector<32x8xf32>,
    %c0_342 = arith.constant 0 : index
    %c2_343 = arith.constant 2 : index
    %c0_344 = arith.constant 0 : index
    %c0_345 = arith.constant 0 : index
    %212 = vector.load %arg5[%c0_342, %c2_343, %c0_344, %c0_345] : memref<2x6x6x8xf32, #tpu.memory_space<vmem>>, vector<2x4x4x8xf32>
    %213 = vector.shape_cast %212 : vector<2x4x4x8xf32> to vector<32x8xf32>
    %c2_346 = arith.constant 2 : index
    %c6_347 = arith.constant 6 : index
    %c0_348 = arith.constant 0 : index
    %c0_349 = arith.constant 0 : index
    %214 = vector.load %arg2[%c2_346, %c6_347, %c0_348, %c0_349] : memref<5x9x8x8xf32, #tpu.memory_space<vmem>>, vector<1x1x8x8xf32>
    %215 = vector.shape_cast %214 : vector<1x1x8x8xf32> to vector<8x8xf32>
    %cst_350 = arith.constant dense<0.000000e+00> : vector<32x8xf32>
    %216 = tpu.matmul %213, %215, %cst_350 {dimension_numbers = #tpu.dot_dimension_numbers<[1], [0], [0], [1], [0, 0, 1, 1], [], []>} : vector<32x8xf32>, vector<8x8xf32>, vector<32x8xf32> -> vector<32x8xf32>
    %c0_351 = arith.constant 0 : index
    %c0_352 = arith.constant 0 : index
    %217 = vector.load %arg6[%c0_351, %c0_352] : memref<32x8xf32, #tpu.memory_space<vmem>>, vector<32x8xf32>
    %218 = arith.addf %217, %216 : vector<32x8xf32>
    %c0_353 = arith.constant 0 : index
    %c0_354 = arith.constant 0 : index
    %219 = vector.load %arg6[%c0_353, %c0_354] : memref<32x8xf32, #tpu.memory_space<vmem>>, vector<32x8xf32>
    tpu.vector_store %arg6[%c0_353, %c0_354], %218 {strides = array<i32>} : memref<32x8xf32, #tpu.memory_space<vmem>>, vector<32x8xf32>,
    %c0_355 = arith.constant 0 : index
    %c2_356 = arith.constant 2 : index
    %c1_357 = arith.constant 1 : index
    %c0_358 = arith.constant 0 : index
    %220 = vector.load %arg5[%c0_355, %c2_356, %c1_357, %c0_358] : memref<2x6x6x8xf32, #tpu.memory_space<vmem>>, vector<2x4x4x8xf32>
    %221 = vector.shape_cast %220 : vector<2x4x4x8xf32> to vector<32x8xf32>
    %c2_359 = arith.constant 2 : index
    %c7_360 = arith.constant 7 : index
    %c0_361 = arith.constant 0 : index
    %c0_362 = arith.constant 0 : index
    %222 = vector.load %arg2[%c2_359, %c7_360, %c0_361, %c0_362] : memref<5x9x8x8xf32, #tpu.memory_space<vmem>>, vector<1x1x8x8xf32>
    %223 = vector.shape_cast %222 : vector<1x1x8x8xf32> to vector<8x8xf32>
    %cst_363 = arith.constant dense<0.000000e+00> : vector<32x8xf32>
    %224 = tpu.matmul %221, %223, %cst_363 {dimension_numbers = #tpu.dot_dimension_numbers<[1], [0], [0], [1], [0, 0, 1, 1], [], []>} : vector<32x8xf32>, vector<8x8xf32>, vector<32x8xf32> -> vector<32x8xf32>
    %c0_364 = arith.constant 0 : index
    %c0_365 = arith.constant 0 : index
    %225 = vector.load %arg6[%c0_364, %c0_365] : memref<32x8xf32, #tpu.memory_space<vmem>>, vector<32x8xf32>
    %226 = arith.addf %225, %224 : vector<32x8xf32>
    %c0_366 = arith.constant 0 : index
    %c0_367 = arith.constant 0 : index
    %227 = vector.load %arg6[%c0_366, %c0_367] : memref<32x8xf32, #tpu.memory_space<vmem>>, vector<32x8xf32>
    tpu.vector_store %arg6[%c0_366, %c0_367], %226 {strides = array<i32>} : memref<32x8xf32, #tpu.memory_space<vmem>>, vector<32x8xf32>,
    %c0_368 = arith.constant 0 : index
    %c2_369 = arith.constant 2 : index
    %c2_370 = arith.constant 2 : index
    %c0_371 = arith.constant 0 : index
    %228 = vector.load %arg5[%c0_368, %c2_369, %c2_370, %c0_371] : memref<2x6x6x8xf32, #tpu.memory_space<vmem>>, vector<2x4x4x8xf32>
    %229 = vector.shape_cast %228 : vector<2x4x4x8xf32> to vector<32x8xf32>
    %c2_372 = arith.constant 2 : index
    %c8_373 = arith.constant 8 : index
    %c0_374 = arith.constant 0 : index
    %c0_375 = arith.constant 0 : index
    %230 = vector.load %arg2[%c2_372, %c8_373, %c0_374, %c0_375] : memref<5x9x8x8xf32, #tpu.memory_space<vmem>>, vector<1x1x8x8xf32>
    %231 = vector.shape_cast %230 : vector<1x1x8x8xf32> to vector<8x8xf32>
    %cst_376 = arith.constant dense<0.000000e+00> : vector<32x8xf32>
    %232 = tpu.matmul %229, %231, %cst_376 {dimension_numbers = #tpu.dot_dimension_numbers<[1], [0], [0], [1], [0, 0, 1, 1], [], []>} : vector<32x8xf32>, vector<8x8xf32>, vector<32x8xf32> -> vector<32x8xf32>
    %c0_377 = arith.constant 0 : index
    %c0_378 = arith.constant 0 : index
    %233 = vector.load %arg6[%c0_377, %c0_378] : memref<32x8xf32, #tpu.memory_space<vmem>>, vector<32x8xf32>
    %234 = arith.addf %233, %232 : vector<32x8xf32>
    %c0_379 = arith.constant 0 : index
    %c0_380 = arith.constant 0 : index
    %235 = vector.load %arg6[%c0_379, %c0_380] : memref<32x8xf32, #tpu.memory_space<vmem>>, vector<32x8xf32>
    tpu.vector_store %arg6[%c0_379, %c0_380], %234 {strides = array<i32>} : memref<32x8xf32, #tpu.memory_space<vmem>>, vector<32x8xf32>,
    %c0_381 = arith.constant 0 : index
    %c0_382 = arith.constant 0 : index
    %236 = vector.load %arg6[%c0_381, %c0_382] : memref<32x8xf32, #tpu.memory_space<vmem>>, vector<32x8xf32>
    %c2_383 = arith.constant 2 : index
    %c0_384 = arith.constant 0 : index
    %c0_385 = arith.constant 0 : index
    %237 = vector.load %arg3[%c2_383, %c0_384, %c0_385] : memref<5x1x8xf32, #tpu.memory_space<vmem>>, vector<1x1x8xf32>
    %238 = vector.shape_cast %237 : vector<1x1x8xf32> to vector<1x8xf32>
    %239 = vector.broadcast %238 : vector<1x8xf32> to vector<32x8xf32>
    %240 = arith.addf %236, %239 : vector<32x8xf32>
    %cst_386 = arith.constant 0.000000e+00 : f32
    %241 = vector.broadcast %cst_386 : f32 to vector<32x8xf32>
    %242 = arith.maximumf %240, %241 : vector<32x8xf32>
    %243 = vector.shape_cast %242 : vector<32x8xf32> to vector<2x4x4x8xf32>
    %c0_387 = arith.constant 0 : index
    %c1_388 = arith.constant 1 : index
    %c1_389 = arith.constant 1 : index
    %c0_390 = arith.constant 0 : index
    %244 = vector.load %arg5[%c0_387, %c1_388, %c1_389, %c0_390] : memref<2x6x6x8xf32, #tpu.memory_space<vmem>>, vector<2x4x4x8xf32>
    tpu.vector_store %arg5[%c0_387, %c1_388, %c1_389, %c0_390], %243 {strides = array<i32>} : memref<2x6x6x8xf32, #tpu.memory_space<vmem>>, vector<2x4x4x8xf32>,
    %c0_391 = arith.constant 0 : index
    %c0_392 = arith.constant 0 : index
    %c0_393 = arith.constant 0 : index
    %c0_394 = arith.constant 0 : index
    %245 = vector.load %arg5[%c0_391, %c0_392, %c0_393, %c0_394] : memref<2x6x6x8xf32, #tpu.memory_space<vmem>>, vector<2x4x4x8xf32>
    %246 = vector.shape_cast %245 : vector<2x4x4x8xf32> to vector<32x8xf32>
    %c3_395 = arith.constant 3 : index
    %c0_396 = arith.constant 0 : index
    %c0_397 = arith.constant 0 : index
    %c0_398 = arith.constant 0 : index
    %247 = vector.load %arg2[%c3_395, %c0_396, %c0_397, %c0_398] : memref<5x9x8x8xf32, #tpu.memory_space<vmem>>, vector<1x1x8x8xf32>
    %248 = vector.shape_cast %247 : vector<1x1x8x8xf32> to vector<8x8xf32>
    %cst_399 = arith.constant dense<0.000000e+00> : vector<32x8xf32>
    %249 = tpu.matmul %246, %248, %cst_399 {dimension_numbers = #tpu.dot_dimension_numbers<[1], [0], [0], [1], [0, 0, 1, 1], [], []>} : vector<32x8xf32>, vector<8x8xf32>, vector<32x8xf32> -> vector<32x8xf32>
    %c0_400 = arith.constant 0 : index
    %c0_401 = arith.constant 0 : index
    %250 = vector.load %arg6[%c0_400, %c0_401] : memref<32x8xf32, #tpu.memory_space<vmem>>, vector<32x8xf32>
    tpu.vector_store %arg6[%c0_400, %c0_401], %249 {strides = array<i32>} : memref<32x8xf32, #tpu.memory_space<vmem>>, vector<32x8xf32>,
    %c0_402 = arith.constant 0 : index
    %c0_403 = arith.constant 0 : index
    %c1_404 = arith.constant 1 : index
    %c0_405 = arith.constant 0 : index
    %251 = vector.load %arg5[%c0_402, %c0_403, %c1_404, %c0_405] : memref<2x6x6x8xf32, #tpu.memory_space<vmem>>, vector<2x4x4x8xf32>
    %252 = vector.shape_cast %251 : vector<2x4x4x8xf32> to vector<32x8xf32>
    %c3_406 = arith.constant 3 : index
    %c1_407 = arith.constant 1 : index
    %c0_408 = arith.constant 0 : index
    %c0_409 = arith.constant 0 : index
    %253 = vector.load %arg2[%c3_406, %c1_407, %c0_408, %c0_409] : memref<5x9x8x8xf32, #tpu.memory_space<vmem>>, vector<1x1x8x8xf32>
    %254 = vector.shape_cast %253 : vector<1x1x8x8xf32> to vector<8x8xf32>
    %cst_410 = arith.constant dense<0.000000e+00> : vector<32x8xf32>
    %255 = tpu.matmul %252, %254, %cst_410 {dimension_numbers = #tpu.dot_dimension_numbers<[1], [0], [0], [1], [0, 0, 1, 1], [], []>} : vector<32x8xf32>, vector<8x8xf32>, vector<32x8xf32> -> vector<32x8xf32>
    %c0_411 = arith.constant 0 : index
    %c0_412 = arith.constant 0 : index
    %256 = vector.load %arg6[%c0_411, %c0_412] : memref<32x8xf32, #tpu.memory_space<vmem>>, vector<32x8xf32>
    %257 = arith.addf %256, %255 : vector<32x8xf32>
    %c0_413 = arith.constant 0 : index
    %c0_414 = arith.constant 0 : index
    %258 = vector.load %arg6[%c0_413, %c0_414] : memref<32x8xf32, #tpu.memory_space<vmem>>, vector<32x8xf32>
    tpu.vector_store %arg6[%c0_413, %c0_414], %257 {strides = array<i32>} : memref<32x8xf32, #tpu.memory_space<vmem>>, vector<32x8xf32>,
    %c0_415 = arith.constant 0 : index
    %c0_416 = arith.constant 0 : index
    %c2_417 = arith.constant 2 : index
    %c0_418 = arith.constant 0 : index
    %259 = vector.load %arg5[%c0_415, %c0_416, %c2_417, %c0_418] : memref<2x6x6x8xf32, #tpu.memory_space<vmem>>, vector<2x4x4x8xf32>
    %260 = vector.shape_cast %259 : vector<2x4x4x8xf32> to vector<32x8xf32>
    %c3_419 = arith.constant 3 : index
    %c2_420 = arith.constant 2 : index
    %c0_421 = arith.constant 0 : index
    %c0_422 = arith.constant 0 : index
    %261 = vector.load %arg2[%c3_419, %c2_420, %c0_421, %c0_422] : memref<5x9x8x8xf32, #tpu.memory_space<vmem>>, vector<1x1x8x8xf32>
    %262 = vector.shape_cast %261 : vector<1x1x8x8xf32> to vector<8x8xf32>
    %cst_423 = arith.constant dense<0.000000e+00> : vector<32x8xf32>
    %263 = tpu.matmul %260, %262, %cst_423 {dimension_numbers = #tpu.dot_dimension_numbers<[1], [0], [0], [1], [0, 0, 1, 1], [], []>} : vector<32x8xf32>, vector<8x8xf32>, vector<32x8xf32> -> vector<32x8xf32>
    %c0_424 = arith.constant 0 : index
    %c0_425 = arith.constant 0 : index
    %264 = vector.load %arg6[%c0_424, %c0_425] : memref<32x8xf32, #tpu.memory_space<vmem>>, vector<32x8xf32>
    %265 = arith.addf %264, %263 : vector<32x8xf32>
    %c0_426 = arith.constant 0 : index
    %c0_427 = arith.constant 0 : index
    %266 = vector.load %arg6[%c0_426, %c0_427] : memref<32x8xf32, #tpu.memory_space<vmem>>, vector<32x8xf32>
    tpu.vector_store %arg6[%c0_426, %c0_427], %265 {strides = array<i32>} : memref<32x8xf32, #tpu.memory_space<vmem>>, vector<32x8xf32>,
    %c0_428 = arith.constant 0 : index
    %c1_429 = arith.constant 1 : index
    %c0_430 = arith.constant 0 : index
    %c0_431 = arith.constant 0 : index
    %267 = vector.load %arg5[%c0_428, %c1_429, %c0_430, %c0_431] : memref<2x6x6x8xf32, #tpu.memory_space<vmem>>, vector<2x4x4x8xf32>
    %268 = vector.shape_cast %267 : vector<2x4x4x8xf32> to vector<32x8xf32>
    %c3_432 = arith.constant 3 : index
    %c3_433 = arith.constant 3 : index
    %c0_434 = arith.constant 0 : index
    %c0_435 = arith.constant 0 : index
    %269 = vector.load %arg2[%c3_432, %c3_433, %c0_434, %c0_435] : memref<5x9x8x8xf32, #tpu.memory_space<vmem>>, vector<1x1x8x8xf32>
    %270 = vector.shape_cast %269 : vector<1x1x8x8xf32> to vector<8x8xf32>
    %cst_436 = arith.constant dense<0.000000e+00> : vector<32x8xf32>
    %271 = tpu.matmul %268, %270, %cst_436 {dimension_numbers = #tpu.dot_dimension_numbers<[1], [0], [0], [1], [0, 0, 1, 1], [], []>} : vector<32x8xf32>, vector<8x8xf32>, vector<32x8xf32> -> vector<32x8xf32>
    %c0_437 = arith.constant 0 : index
    %c0_438 = arith.constant 0 : index
    %272 = vector.load %arg6[%c0_437, %c0_438] : memref<32x8xf32, #tpu.memory_space<vmem>>, vector<32x8xf32>
    %273 = arith.addf %272, %271 : vector<32x8xf32>
    %c0_439 = arith.constant 0 : index
    %c0_440 = arith.constant 0 : index
    %274 = vector.load %arg6[%c0_439, %c0_440] : memref<32x8xf32, #tpu.memory_space<vmem>>, vector<32x8xf32>
    tpu.vector_store %arg6[%c0_439, %c0_440], %273 {strides = array<i32>} : memref<32x8xf32, #tpu.memory_space<vmem>>, vector<32x8xf32>,
    %c0_441 = arith.constant 0 : index
    %c1_442 = arith.constant 1 : index
    %c1_443 = arith.constant 1 : index
    %c0_444 = arith.constant 0 : index
    %275 = vector.load %arg5[%c0_441, %c1_442, %c1_443, %c0_444] : memref<2x6x6x8xf32, #tpu.memory_space<vmem>>, vector<2x4x4x8xf32>
    %276 = vector.shape_cast %275 : vector<2x4x4x8xf32> to vector<32x8xf32>
    %c3_445 = arith.constant 3 : index
    %c4_446 = arith.constant 4 : index
    %c0_447 = arith.constant 0 : index
    %c0_448 = arith.constant 0 : index
    %277 = vector.load %arg2[%c3_445, %c4_446, %c0_447, %c0_448] : memref<5x9x8x8xf32, #tpu.memory_space<vmem>>, vector<1x1x8x8xf32>
    %278 = vector.shape_cast %277 : vector<1x1x8x8xf32> to vector<8x8xf32>
    %cst_449 = arith.constant dense<0.000000e+00> : vector<32x8xf32>
    %279 = tpu.matmul %276, %278, %cst_449 {dimension_numbers = #tpu.dot_dimension_numbers<[1], [0], [0], [1], [0, 0, 1, 1], [], []>} : vector<32x8xf32>, vector<8x8xf32>, vector<32x8xf32> -> vector<32x8xf32>
    %c0_450 = arith.constant 0 : index
    %c0_451 = arith.constant 0 : index
    %280 = vector.load %arg6[%c0_450, %c0_451] : memref<32x8xf32, #tpu.memory_space<vmem>>, vector<32x8xf32>
    %281 = arith.addf %280, %279 : vector<32x8xf32>
    %c0_452 = arith.constant 0 : index
    %c0_453 = arith.constant 0 : index
    %282 = vector.load %arg6[%c0_452, %c0_453] : memref<32x8xf32, #tpu.memory_space<vmem>>, vector<32x8xf32>
    tpu.vector_store %arg6[%c0_452, %c0_453], %281 {strides = array<i32>} : memref<32x8xf32, #tpu.memory_space<vmem>>, vector<32x8xf32>,
    %c0_454 = arith.constant 0 : index
    %c1_455 = arith.constant 1 : index
    %c2_456 = arith.constant 2 : index
    %c0_457 = arith.constant 0 : index
    %283 = vector.load %arg5[%c0_454, %c1_455, %c2_456, %c0_457] : memref<2x6x6x8xf32, #tpu.memory_space<vmem>>, vector<2x4x4x8xf32>
    %284 = vector.shape_cast %283 : vector<2x4x4x8xf32> to vector<32x8xf32>
    %c3_458 = arith.constant 3 : index
    %c5_459 = arith.constant 5 : index
    %c0_460 = arith.constant 0 : index
    %c0_461 = arith.constant 0 : index
    %285 = vector.load %arg2[%c3_458, %c5_459, %c0_460, %c0_461] : memref<5x9x8x8xf32, #tpu.memory_space<vmem>>, vector<1x1x8x8xf32>
    %286 = vector.shape_cast %285 : vector<1x1x8x8xf32> to vector<8x8xf32>
    %cst_462 = arith.constant dense<0.000000e+00> : vector<32x8xf32>
    %287 = tpu.matmul %284, %286, %cst_462 {dimension_numbers = #tpu.dot_dimension_numbers<[1], [0], [0], [1], [0, 0, 1, 1], [], []>} : vector<32x8xf32>, vector<8x8xf32>, vector<32x8xf32> -> vector<32x8xf32>
    %c0_463 = arith.constant 0 : index
    %c0_464 = arith.constant 0 : index
    %288 = vector.load %arg6[%c0_463, %c0_464] : memref<32x8xf32, #tpu.memory_space<vmem>>, vector<32x8xf32>
    %289 = arith.addf %288, %287 : vector<32x8xf32>
    %c0_465 = arith.constant 0 : index
    %c0_466 = arith.constant 0 : index
    %290 = vector.load %arg6[%c0_465, %c0_466] : memref<32x8xf32, #tpu.memory_space<vmem>>, vector<32x8xf32>
    tpu.vector_store %arg6[%c0_465, %c0_466], %289 {strides = array<i32>} : memref<32x8xf32, #tpu.memory_space<vmem>>, vector<32x8xf32>,
    %c0_467 = arith.constant 0 : index
    %c2_468 = arith.constant 2 : index
    %c0_469 = arith.constant 0 : index
    %c0_470 = arith.constant 0 : index
    %291 = vector.load %arg5[%c0_467, %c2_468, %c0_469, %c0_470] : memref<2x6x6x8xf32, #tpu.memory_space<vmem>>, vector<2x4x4x8xf32>
    %292 = vector.shape_cast %291 : vector<2x4x4x8xf32> to vector<32x8xf32>
    %c3_471 = arith.constant 3 : index
    %c6_472 = arith.constant 6 : index
    %c0_473 = arith.constant 0 : index
    %c0_474 = arith.constant 0 : index
    %293 = vector.load %arg2[%c3_471, %c6_472, %c0_473, %c0_474] : memref<5x9x8x8xf32, #tpu.memory_space<vmem>>, vector<1x1x8x8xf32>
    %294 = vector.shape_cast %293 : vector<1x1x8x8xf32> to vector<8x8xf32>
    %cst_475 = arith.constant dense<0.000000e+00> : vector<32x8xf32>
    %295 = tpu.matmul %292, %294, %cst_475 {dimension_numbers = #tpu.dot_dimension_numbers<[1], [0], [0], [1], [0, 0, 1, 1], [], []>} : vector<32x8xf32>, vector<8x8xf32>, vector<32x8xf32> -> vector<32x8xf32>
    %c0_476 = arith.constant 0 : index
    %c0_477 = arith.constant 0 : index
    %296 = vector.load %arg6[%c0_476, %c0_477] : memref<32x8xf32, #tpu.memory_space<vmem>>, vector<32x8xf32>
    %297 = arith.addf %296, %295 : vector<32x8xf32>
    %c0_478 = arith.constant 0 : index
    %c0_479 = arith.constant 0 : index
    %298 = vector.load %arg6[%c0_478, %c0_479] : memref<32x8xf32, #tpu.memory_space<vmem>>, vector<32x8xf32>
    tpu.vector_store %arg6[%c0_478, %c0_479], %297 {strides = array<i32>} : memref<32x8xf32, #tpu.memory_space<vmem>>, vector<32x8xf32>,
    %c0_480 = arith.constant 0 : index
    %c2_481 = arith.constant 2 : index
    %c1_482 = arith.constant 1 : index
    %c0_483 = arith.constant 0 : index
    %299 = vector.load %arg5[%c0_480, %c2_481, %c1_482, %c0_483] : memref<2x6x6x8xf32, #tpu.memory_space<vmem>>, vector<2x4x4x8xf32>
    %300 = vector.shape_cast %299 : vector<2x4x4x8xf32> to vector<32x8xf32>
    %c3_484 = arith.constant 3 : index
    %c7_485 = arith.constant 7 : index
    %c0_486 = arith.constant 0 : index
    %c0_487 = arith.constant 0 : index
    %301 = vector.load %arg2[%c3_484, %c7_485, %c0_486, %c0_487] : memref<5x9x8x8xf32, #tpu.memory_space<vmem>>, vector<1x1x8x8xf32>
    %302 = vector.shape_cast %301 : vector<1x1x8x8xf32> to vector<8x8xf32>
    %cst_488 = arith.constant dense<0.000000e+00> : vector<32x8xf32>
    %303 = tpu.matmul %300, %302, %cst_488 {dimension_numbers = #tpu.dot_dimension_numbers<[1], [0], [0], [1], [0, 0, 1, 1], [], []>} : vector<32x8xf32>, vector<8x8xf32>, vector<32x8xf32> -> vector<32x8xf32>
    %c0_489 = arith.constant 0 : index
    %c0_490 = arith.constant 0 : index
    %304 = vector.load %arg6[%c0_489, %c0_490] : memref<32x8xf32, #tpu.memory_space<vmem>>, vector<32x8xf32>
    %305 = arith.addf %304, %303 : vector<32x8xf32>
    %c0_491 = arith.constant 0 : index
    %c0_492 = arith.constant 0 : index
    %306 = vector.load %arg6[%c0_491, %c0_492] : memref<32x8xf32, #tpu.memory_space<vmem>>, vector<32x8xf32>
    tpu.vector_store %arg6[%c0_491, %c0_492], %305 {strides = array<i32>} : memref<32x8xf32, #tpu.memory_space<vmem>>, vector<32x8xf32>,
    %c0_493 = arith.constant 0 : index
    %c2_494 = arith.constant 2 : index
    %c2_495 = arith.constant 2 : index
    %c0_496 = arith.constant 0 : index
    %307 = vector.load %arg5[%c0_493, %c2_494, %c2_495, %c0_496] : memref<2x6x6x8xf32, #tpu.memory_space<vmem>>, vector<2x4x4x8xf32>
    %308 = vector.shape_cast %307 : vector<2x4x4x8xf32> to vector<32x8xf32>
    %c3_497 = arith.constant 3 : index
    %c8_498 = arith.constant 8 : index
    %c0_499 = arith.constant 0 : index
    %c0_500 = arith.constant 0 : index
    %309 = vector.load %arg2[%c3_497, %c8_498, %c0_499, %c0_500] : memref<5x9x8x8xf32, #tpu.memory_space<vmem>>, vector<1x1x8x8xf32>
    %310 = vector.shape_cast %309 : vector<1x1x8x8xf32> to vector<8x8xf32>
    %cst_501 = arith.constant dense<0.000000e+00> : vector<32x8xf32>
    %311 = tpu.matmul %308, %310, %cst_501 {dimension_numbers = #tpu.dot_dimension_numbers<[1], [0], [0], [1], [0, 0, 1, 1], [], []>} : vector<32x8xf32>, vector<8x8xf32>, vector<32x8xf32> -> vector<32x8xf32>
    %c0_502 = arith.constant 0 : index
    %c0_503 = arith.constant 0 : index
    %312 = vector.load %arg6[%c0_502, %c0_503] : memref<32x8xf32, #tpu.memory_space<vmem>>, vector<32x8xf32>
    %313 = arith.addf %312, %311 : vector<32x8xf32>
    %c0_504 = arith.constant 0 : index
    %c0_505 = arith.constant 0 : index
    %314 = vector.load %arg6[%c0_504, %c0_505] : memref<32x8xf32, #tpu.memory_space<vmem>>, vector<32x8xf32>
    tpu.vector_store %arg6[%c0_504, %c0_505], %313 {strides = array<i32>} : memref<32x8xf32, #tpu.memory_space<vmem>>, vector<32x8xf32>,
    %c0_506 = arith.constant 0 : index
    %c0_507 = arith.constant 0 : index
    %315 = vector.load %arg6[%c0_506, %c0_507] : memref<32x8xf32, #tpu.memory_space<vmem>>, vector<32x8xf32>
    %c3_508 = arith.constant 3 : index
    %c0_509 = arith.constant 0 : index
    %c0_510 = arith.constant 0 : index
    %316 = vector.load %arg3[%c3_508, %c0_509, %c0_510] : memref<5x1x8xf32, #tpu.memory_space<vmem>>, vector<1x1x8xf32>
    %317 = vector.shape_cast %316 : vector<1x1x8xf32> to vector<1x8xf32>
    %318 = vector.broadcast %317 : vector<1x8xf32> to vector<32x8xf32>
    %319 = arith.addf %315, %318 : vector<32x8xf32>
    %cst_511 = arith.constant 0.000000e+00 : f32
    %320 = vector.broadcast %cst_511 : f32 to vector<32x8xf32>
    %321 = arith.maximumf %319, %320 : vector<32x8xf32>
    %322 = vector.shape_cast %321 : vector<32x8xf32> to vector<2x4x4x8xf32>
    %c0_512 = arith.constant 0 : index
    %c1_513 = arith.constant 1 : index
    %c1_514 = arith.constant 1 : index
    %c0_515 = arith.constant 0 : index
    %323 = vector.load %arg5[%c0_512, %c1_513, %c1_514, %c0_515] : memref<2x6x6x8xf32, #tpu.memory_space<vmem>>, vector<2x4x4x8xf32>
    tpu.vector_store %arg5[%c0_512, %c1_513, %c1_514, %c0_515], %322 {strides = array<i32>} : memref<2x6x6x8xf32, #tpu.memory_space<vmem>>, vector<2x4x4x8xf32>,
    %c0_516 = arith.constant 0 : index
    %c0_517 = arith.constant 0 : index
    %c0_518 = arith.constant 0 : index
    %c0_519 = arith.constant 0 : index
    %324 = vector.load %arg5[%c0_516, %c0_517, %c0_518, %c0_519] : memref<2x6x6x8xf32, #tpu.memory_space<vmem>>, vector<2x4x4x8xf32>
    %325 = vector.shape_cast %324 : vector<2x4x4x8xf32> to vector<32x8xf32>
    %c4_520 = arith.constant 4 : index
    %c0_521 = arith.constant 0 : index
    %c0_522 = arith.constant 0 : index
    %c0_523 = arith.constant 0 : index
    %326 = vector.load %arg2[%c4_520, %c0_521, %c0_522, %c0_523] : memref<5x9x8x8xf32, #tpu.memory_space<vmem>>, vector<1x1x8x8xf32>
    %327 = vector.shape_cast %326 : vector<1x1x8x8xf32> to vector<8x8xf32>
    %cst_524 = arith.constant dense<0.000000e+00> : vector<32x8xf32>
    %328 = tpu.matmul %325, %327, %cst_524 {dimension_numbers = #tpu.dot_dimension_numbers<[1], [0], [0], [1], [0, 0, 1, 1], [], []>} : vector<32x8xf32>, vector<8x8xf32>, vector<32x8xf32> -> vector<32x8xf32>
    %c0_525 = arith.constant 0 : index
    %c0_526 = arith.constant 0 : index
    %329 = vector.load %arg6[%c0_525, %c0_526] : memref<32x8xf32, #tpu.memory_space<vmem>>, vector<32x8xf32>
    tpu.vector_store %arg6[%c0_525, %c0_526], %328 {strides = array<i32>} : memref<32x8xf32, #tpu.memory_space<vmem>>, vector<32x8xf32>,
    %c0_527 = arith.constant 0 : index
    %c0_528 = arith.constant 0 : index
    %c1_529 = arith.constant 1 : index
    %c0_530 = arith.constant 0 : index
    %330 = vector.load %arg5[%c0_527, %c0_528, %c1_529, %c0_530] : memref<2x6x6x8xf32, #tpu.memory_space<vmem>>, vector<2x4x4x8xf32>
    %331 = vector.shape_cast %330 : vector<2x4x4x8xf32> to vector<32x8xf32>
    %c4_531 = arith.constant 4 : index
    %c1_532 = arith.constant 1 : index
    %c0_533 = arith.constant 0 : index
    %c0_534 = arith.constant 0 : index
    %332 = vector.load %arg2[%c4_531, %c1_532, %c0_533, %c0_534] : memref<5x9x8x8xf32, #tpu.memory_space<vmem>>, vector<1x1x8x8xf32>
    %333 = vector.shape_cast %332 : vector<1x1x8x8xf32> to vector<8x8xf32>
    %cst_535 = arith.constant dense<0.000000e+00> : vector<32x8xf32>
    %334 = tpu.matmul %331, %333, %cst_535 {dimension_numbers = #tpu.dot_dimension_numbers<[1], [0], [0], [1], [0, 0, 1, 1], [], []>} : vector<32x8xf32>, vector<8x8xf32>, vector<32x8xf32> -> vector<32x8xf32>
    %c0_536 = arith.constant 0 : index
    %c0_537 = arith.constant 0 : index
    %335 = vector.load %arg6[%c0_536, %c0_537] : memref<32x8xf32, #tpu.memory_space<vmem>>, vector<32x8xf32>
    %336 = arith.addf %335, %334 : vector<32x8xf32>
    %c0_538 = arith.constant 0 : index
    %c0_539 = arith.constant 0 : index
    %337 = vector.load %arg6[%c0_538, %c0_539] : memref<32x8xf32, #tpu.memory_space<vmem>>, vector<32x8xf32>
    tpu.vector_store %arg6[%c0_538, %c0_539], %336 {strides = array<i32>} : memref<32x8xf32, #tpu.memory_space<vmem>>, vector<32x8xf32>,
    %c0_540 = arith.constant 0 : index
    %c0_541 = arith.constant 0 : index
    %c2_542 = arith.constant 2 : index
    %c0_543 = arith.constant 0 : index
    %338 = vector.load %arg5[%c0_540, %c0_541, %c2_542, %c0_543] : memref<2x6x6x8xf32, #tpu.memory_space<vmem>>, vector<2x4x4x8xf32>
    %339 = vector.shape_cast %338 : vector<2x4x4x8xf32> to vector<32x8xf32>
    %c4_544 = arith.constant 4 : index
    %c2_545 = arith.constant 2 : index
    %c0_546 = arith.constant 0 : index
    %c0_547 = arith.constant 0 : index
    %340 = vector.load %arg2[%c4_544, %c2_545, %c0_546, %c0_547] : memref<5x9x8x8xf32, #tpu.memory_space<vmem>>, vector<1x1x8x8xf32>
    %341 = vector.shape_cast %340 : vector<1x1x8x8xf32> to vector<8x8xf32>
    %cst_548 = arith.constant dense<0.000000e+00> : vector<32x8xf32>
    %342 = tpu.matmul %339, %341, %cst_548 {dimension_numbers = #tpu.dot_dimension_numbers<[1], [0], [0], [1], [0, 0, 1, 1], [], []>} : vector<32x8xf32>, vector<8x8xf32>, vector<32x8xf32> -> vector<32x8xf32>
    %c0_549 = arith.constant 0 : index
    %c0_550 = arith.constant 0 : index
    %343 = vector.load %arg6[%c0_549, %c0_550] : memref<32x8xf32, #tpu.memory_space<vmem>>, vector<32x8xf32>
    %344 = arith.addf %343, %342 : vector<32x8xf32>
    %c0_551 = arith.constant 0 : index
    %c0_552 = arith.constant 0 : index
    %345 = vector.load %arg6[%c0_551, %c0_552] : memref<32x8xf32, #tpu.memory_space<vmem>>, vector<32x8xf32>
    tpu.vector_store %arg6[%c0_551, %c0_552], %344 {strides = array<i32>} : memref<32x8xf32, #tpu.memory_space<vmem>>, vector<32x8xf32>,
    %c0_553 = arith.constant 0 : index
    %c1_554 = arith.constant 1 : index
    %c0_555 = arith.constant 0 : index
    %c0_556 = arith.constant 0 : index
    %346 = vector.load %arg5[%c0_553, %c1_554, %c0_555, %c0_556] : memref<2x6x6x8xf32, #tpu.memory_space<vmem>>, vector<2x4x4x8xf32>
    %347 = vector.shape_cast %346 : vector<2x4x4x8xf32> to vector<32x8xf32>
    %c4_557 = arith.constant 4 : index
    %c3_558 = arith.constant 3 : index
    %c0_559 = arith.constant 0 : index
    %c0_560 = arith.constant 0 : index
    %348 = vector.load %arg2[%c4_557, %c3_558, %c0_559, %c0_560] : memref<5x9x8x8xf32, #tpu.memory_space<vmem>>, vector<1x1x8x8xf32>
    %349 = vector.shape_cast %348 : vector<1x1x8x8xf32> to vector<8x8xf32>
    %cst_561 = arith.constant dense<0.000000e+00> : vector<32x8xf32>
    %350 = tpu.matmul %347, %349, %cst_561 {dimension_numbers = #tpu.dot_dimension_numbers<[1], [0], [0], [1], [0, 0, 1, 1], [], []>} : vector<32x8xf32>, vector<8x8xf32>, vector<32x8xf32> -> vector<32x8xf32>
    %c0_562 = arith.constant 0 : index
    %c0_563 = arith.constant 0 : index
    %351 = vector.load %arg6[%c0_562, %c0_563] : memref<32x8xf32, #tpu.memory_space<vmem>>, vector<32x8xf32>
    %352 = arith.addf %351, %350 : vector<32x8xf32>
    %c0_564 = arith.constant 0 : index
    %c0_565 = arith.constant 0 : index
    %353 = vector.load %arg6[%c0_564, %c0_565] : memref<32x8xf32, #tpu.memory_space<vmem>>, vector<32x8xf32>
    tpu.vector_store %arg6[%c0_564, %c0_565], %352 {strides = array<i32>} : memref<32x8xf32, #tpu.memory_space<vmem>>, vector<32x8xf32>,
    %c0_566 = arith.constant 0 : index
    %c1_567 = arith.constant 1 : index
    %c1_568 = arith.constant 1 : index
    %c0_569 = arith.constant 0 : index
    %354 = vector.load %arg5[%c0_566, %c1_567, %c1_568, %c0_569] : memref<2x6x6x8xf32, #tpu.memory_space<vmem>>, vector<2x4x4x8xf32>
    %355 = vector.shape_cast %354 : vector<2x4x4x8xf32> to vector<32x8xf32>
    %c4_570 = arith.constant 4 : index
    %c4_571 = arith.constant 4 : index
    %c0_572 = arith.constant 0 : index
    %c0_573 = arith.constant 0 : index
    %356 = vector.load %arg2[%c4_570, %c4_571, %c0_572, %c0_573] : memref<5x9x8x8xf32, #tpu.memory_space<vmem>>, vector<1x1x8x8xf32>
    %357 = vector.shape_cast %356 : vector<1x1x8x8xf32> to vector<8x8xf32>
    %cst_574 = arith.constant dense<0.000000e+00> : vector<32x8xf32>
    %358 = tpu.matmul %355, %357, %cst_574 {dimension_numbers = #tpu.dot_dimension_numbers<[1], [0], [0], [1], [0, 0, 1, 1], [], []>} : vector<32x8xf32>, vector<8x8xf32>, vector<32x8xf32> -> vector<32x8xf32>
    %c0_575 = arith.constant 0 : index
    %c0_576 = arith.constant 0 : index
    %359 = vector.load %arg6[%c0_575, %c0_576] : memref<32x8xf32, #tpu.memory_space<vmem>>, vector<32x8xf32>
    %360 = arith.addf %359, %358 : vector<32x8xf32>
    %c0_577 = arith.constant 0 : index
    %c0_578 = arith.constant 0 : index
    %361 = vector.load %arg6[%c0_577, %c0_578] : memref<32x8xf32, #tpu.memory_space<vmem>>, vector<32x8xf32>
    tpu.vector_store %arg6[%c0_577, %c0_578], %360 {strides = array<i32>} : memref<32x8xf32, #tpu.memory_space<vmem>>, vector<32x8xf32>,
    %c0_579 = arith.constant 0 : index
    %c1_580 = arith.constant 1 : index
    %c2_581 = arith.constant 2 : index
    %c0_582 = arith.constant 0 : index
    %362 = vector.load %arg5[%c0_579, %c1_580, %c2_581, %c0_582] : memref<2x6x6x8xf32, #tpu.memory_space<vmem>>, vector<2x4x4x8xf32>
    %363 = vector.shape_cast %362 : vector<2x4x4x8xf32> to vector<32x8xf32>
    %c4_583 = arith.constant 4 : index
    %c5_584 = arith.constant 5 : index
    %c0_585 = arith.constant 0 : index
    %c0_586 = arith.constant 0 : index
    %364 = vector.load %arg2[%c4_583, %c5_584, %c0_585, %c0_586] : memref<5x9x8x8xf32, #tpu.memory_space<vmem>>, vector<1x1x8x8xf32>
    %365 = vector.shape_cast %364 : vector<1x1x8x8xf32> to vector<8x8xf32>
    %cst_587 = arith.constant dense<0.000000e+00> : vector<32x8xf32>
    %366 = tpu.matmul %363, %365, %cst_587 {dimension_numbers = #tpu.dot_dimension_numbers<[1], [0], [0], [1], [0, 0, 1, 1], [], []>} : vector<32x8xf32>, vector<8x8xf32>, vector<32x8xf32> -> vector<32x8xf32>
    %c0_588 = arith.constant 0 : index
    %c0_589 = arith.constant 0 : index
    %367 = vector.load %arg6[%c0_588, %c0_589] : memref<32x8xf32, #tpu.memory_space<vmem>>, vector<32x8xf32>
    %368 = arith.addf %367, %366 : vector<32x8xf32>
    %c0_590 = arith.constant 0 : index
    %c0_591 = arith.constant 0 : index
    %369 = vector.load %arg6[%c0_590, %c0_591] : memref<32x8xf32, #tpu.memory_space<vmem>>, vector<32x8xf32>
    tpu.vector_store %arg6[%c0_590, %c0_591], %368 {strides = array<i32>} : memref<32x8xf32, #tpu.memory_space<vmem>>, vector<32x8xf32>,
    %c0_592 = arith.constant 0 : index
    %c2_593 = arith.constant 2 : index
    %c0_594 = arith.constant 0 : index
    %c0_595 = arith.constant 0 : index
    %370 = vector.load %arg5[%c0_592, %c2_593, %c0_594, %c0_595] : memref<2x6x6x8xf32, #tpu.memory_space<vmem>>, vector<2x4x4x8xf32>
    %371 = vector.shape_cast %370 : vector<2x4x4x8xf32> to vector<32x8xf32>
    %c4_596 = arith.constant 4 : index
    %c6_597 = arith.constant 6 : index
    %c0_598 = arith.constant 0 : index
    %c0_599 = arith.constant 0 : index
    %372 = vector.load %arg2[%c4_596, %c6_597, %c0_598, %c0_599] : memref<5x9x8x8xf32, #tpu.memory_space<vmem>>, vector<1x1x8x8xf32>
    %373 = vector.shape_cast %372 : vector<1x1x8x8xf32> to vector<8x8xf32>
    %cst_600 = arith.constant dense<0.000000e+00> : vector<32x8xf32>
    %374 = tpu.matmul %371, %373, %cst_600 {dimension_numbers = #tpu.dot_dimension_numbers<[1], [0], [0], [1], [0, 0, 1, 1], [], []>} : vector<32x8xf32>, vector<8x8xf32>, vector<32x8xf32> -> vector<32x8xf32>
    %c0_601 = arith.constant 0 : index
    %c0_602 = arith.constant 0 : index
    %375 = vector.load %arg6[%c0_601, %c0_602] : memref<32x8xf32, #tpu.memory_space<vmem>>, vector<32x8xf32>
    %376 = arith.addf %375, %374 : vector<32x8xf32>
    %c0_603 = arith.constant 0 : index
    %c0_604 = arith.constant 0 : index
    %377 = vector.load %arg6[%c0_603, %c0_604] : memref<32x8xf32, #tpu.memory_space<vmem>>, vector<32x8xf32>
    tpu.vector_store %arg6[%c0_603, %c0_604], %376 {strides = array<i32>} : memref<32x8xf32, #tpu.memory_space<vmem>>, vector<32x8xf32>,
    %c0_605 = arith.constant 0 : index
    %c2_606 = arith.constant 2 : index
    %c1_607 = arith.constant 1 : index
    %c0_608 = arith.constant 0 : index
    %378 = vector.load %arg5[%c0_605, %c2_606, %c1_607, %c0_608] : memref<2x6x6x8xf32, #tpu.memory_space<vmem>>, vector<2x4x4x8xf32>
    %379 = vector.shape_cast %378 : vector<2x4x4x8xf32> to vector<32x8xf32>
    %c4_609 = arith.constant 4 : index
    %c7_610 = arith.constant 7 : index
    %c0_611 = arith.constant 0 : index
    %c0_612 = arith.constant 0 : index
    %380 = vector.load %arg2[%c4_609, %c7_610, %c0_611, %c0_612] : memref<5x9x8x8xf32, #tpu.memory_space<vmem>>, vector<1x1x8x8xf32>
    %381 = vector.shape_cast %380 : vector<1x1x8x8xf32> to vector<8x8xf32>
    %cst_613 = arith.constant dense<0.000000e+00> : vector<32x8xf32>
    %382 = tpu.matmul %379, %381, %cst_613 {dimension_numbers = #tpu.dot_dimension_numbers<[1], [0], [0], [1], [0, 0, 1, 1], [], []>} : vector<32x8xf32>, vector<8x8xf32>, vector<32x8xf32> -> vector<32x8xf32>
    %c0_614 = arith.constant 0 : index
    %c0_615 = arith.constant 0 : index
    %383 = vector.load %arg6[%c0_614, %c0_615] : memref<32x8xf32, #tpu.memory_space<vmem>>, vector<32x8xf32>
    %384 = arith.addf %383, %382 : vector<32x8xf32>
    %c0_616 = arith.constant 0 : index
    %c0_617 = arith.constant 0 : index
    %385 = vector.load %arg6[%c0_616, %c0_617] : memref<32x8xf32, #tpu.memory_space<vmem>>, vector<32x8xf32>
    tpu.vector_store %arg6[%c0_616, %c0_617], %384 {strides = array<i32>} : memref<32x8xf32, #tpu.memory_space<vmem>>, vector<32x8xf32>,
    %c0_618 = arith.constant 0 : index
    %c2_619 = arith.constant 2 : index
    %c2_620 = arith.constant 2 : index
    %c0_621 = arith.constant 0 : index
    %386 = vector.load %arg5[%c0_618, %c2_619, %c2_620, %c0_621] : memref<2x6x6x8xf32, #tpu.memory_space<vmem>>, vector<2x4x4x8xf32>
    %387 = vector.shape_cast %386 : vector<2x4x4x8xf32> to vector<32x8xf32>
    %c4_622 = arith.constant 4 : index
    %c8_623 = arith.constant 8 : index
    %c0_624 = arith.constant 0 : index
    %c0_625 = arith.constant 0 : index
    %388 = vector.load %arg2[%c4_622, %c8_623, %c0_624, %c0_625] : memref<5x9x8x8xf32, #tpu.memory_space<vmem>>, vector<1x1x8x8xf32>
    %389 = vector.shape_cast %388 : vector<1x1x8x8xf32> to vector<8x8xf32>
    %cst_626 = arith.constant dense<0.000000e+00> : vector<32x8xf32>
    %390 = tpu.matmul %387, %389, %cst_626 {dimension_numbers = #tpu.dot_dimension_numbers<[1], [0], [0], [1], [0, 0, 1, 1], [], []>} : vector<32x8xf32>, vector<8x8xf32>, vector<32x8xf32> -> vector<32x8xf32>
    %c0_627 = arith.constant 0 : index
    %c0_628 = arith.constant 0 : index
    %391 = vector.load %arg6[%c0_627, %c0_628] : memref<32x8xf32, #tpu.memory_space<vmem>>, vector<32x8xf32>
    %392 = arith.addf %391, %390 : vector<32x8xf32>
    %c0_629 = arith.constant 0 : index
    %c0_630 = arith.constant 0 : index
    %393 = vector.load %arg6[%c0_629, %c0_630] : memref<32x8xf32, #tpu.memory_space<vmem>>, vector<32x8xf32>
    tpu.vector_store %arg6[%c0_629, %c0_630], %392 {strides = array<i32>} : memref<32x8xf32, #tpu.memory_space<vmem>>, vector<32x8xf32>,
    %c0_631 = arith.constant 0 : index
    %c0_632 = arith.constant 0 : index
    %394 = vector.load %arg6[%c0_631, %c0_632] : memref<32x8xf32, #tpu.memory_space<vmem>>, vector<32x8xf32>
    %c4_633 = arith.constant 4 : index
    %c0_634 = arith.constant 0 : index
    %c0_635 = arith.constant 0 : index
    %395 = vector.load %arg3[%c4_633, %c0_634, %c0_635] : memref<5x1x8xf32, #tpu.memory_space<vmem>>, vector<1x1x8xf32>
    %396 = vector.shape_cast %395 : vector<1x1x8xf32> to vector<1x8xf32>
    %397 = vector.broadcast %396 : vector<1x8xf32> to vector<32x8xf32>
    %398 = arith.addf %394, %397 : vector<32x8xf32>
    %399 = vector.shape_cast %398 : vector<32x8xf32> to vector<2x4x4x8xf32>
    %c0_636 = arith.constant 0 : index
    %c0_637 = arith.constant 0 : index
    %c0_638 = arith.constant 0 : index
    %c0_639 = arith.constant 0 : index
    %400 = vector.load %arg4[%c0_636, %c0_637, %c0_638, %c0_639] : memref<2x4x4x8xf32, #tpu.memory_space<vmem>>, vector<2x4x4x8xf32>
    tpu.vector_store %arg4[%c0_636, %c0_637, %c0_638, %c0_639], %399 {strides = array<i32>} : memref<2x4x4x8xf32, #tpu.memory_space<vmem>>, vector<2x4x4x8xf32>,
    return
  }
  func.func @transform_0(%arg0: i32) -> (i32, i32, i32, i32) {
    %c0_i32 = arith.constant 0 : i32
    %c0_i32_0 = arith.constant 0 : i32
    %c0_i32_1 = arith.constant 0 : i32
    %c0_i32_2 = arith.constant 0 : i32
    return %arg0, %c0_i32, %c0_i32_0, %c0_i32_1 : i32, i32, i32, i32
  }
  func.func @transform_1(%arg0: i32) -> (i32, i32, i32, i32) {
    %c0_i32 = arith.constant 0 : i32
    %c0_i32_0 = arith.constant 0 : i32
    %c0_i32_1 = arith.constant 0 : i32
    %c0_i32_2 = arith.constant 0 : i32
    %c0_i32_3 = arith.constant 0 : i32
    return %c0_i32, %c0_i32_0, %c0_i32_1, %c0_i32_2 : i32, i32, i32, i32
  }
  func.func @transform_2(%arg0: i32) -> (i32, i32, i32) {
    %c0_i32 = arith.constant 0 : i32
    %c0_i32_0 = arith.constant 0 : i32
    %c0_i32_1 = arith.constant 0 : i32
    %c0_i32_2 = arith.constant 0 : i32
    return %c0_i32, %c0_i32_0, %c0_i32_1 : i32, i32, i32
  }
  func.func @transform_3(%arg0: i32) -> (i32, i32, i32, i32) {
    %c0_i32 = arith.constant 0 : i32
    %c0_i32_0 = arith.constant 0 : i32
    %c0_i32_1 = arith.constant 0 : i32
    %c0_i32_2 = arith.constant 0 : i32
    return %arg0, %c0_i32, %c0_i32_0, %c0_i32_1 : i32, i32, i32, i32
  }
}

</mosaic_0001>

<llo_original>
// kernel: dense_feat_head_forward.1
$region0: #{dense_feat_head_forward.1}
  #allocation0 [shape = 'u32[]', space=smem, size = 0x4, offset = 0x4, fixed_abs, tag = 'smem constant byte address 0x4 - core index']
  #allocation1 [shape = 'u32[144,128]{1,0:T(1,128)}', space=vmem, size = 0x12000, scoped, tag = 'internal scratch']
  #allocation2 [shape = 'f32[2,6,6,8]{3,2,1,0:T(8,128)}', space=vmem, size = 0xc000, scoped, tag = 'scratch operand']
  #allocation3 [shape = 'f32[32,8]{1,0:T(8,128)}', space=vmem, size = 0x4000, scoped, tag = 'scratch operand']
  %s0 = inlined_call_operand.vmem [shape: f32[2,4,4,8], index: 0, kind: input, shape index: {}]
  %s1 = inlined_call_operand.vmem [shape: f32[5,9,8,8], index: 1, kind: input, shape index: {}]
  %s2 = inlined_call_operand.vmem [shape: f32[5,1,8], index: 2, kind: input, shape index: {}]
  %s3 = inlined_call_operand.hbm [shape: f32[2,4,4,8], index: 3, kind: output, shape index: {}]
  %s4 = sld [smem:[#allocation0]]
  $region22: #{dense_feat_head_forward.1} parent=0
    _
  %s6 = ssub.s32 1, %s4
  %s7 = scalar_select 0, %s6, %s4
  $region1: #{dense_feat_head_forward.1} parent=0
    #allocation4 [shape = 'u8[16384]{0}', space=vmem, size = 0x4000, scoped, tag = 'output window, operand 0, single buffered']
    #allocation5 [shape = 's32[1]{0}', space=sflag, size = 0x4, scoped, tag = 'scoped memory for dense_feat_head_forward.1']
    %8 = vsyncpa [#allocation5], 0
    // Predicated region
    $region2: #{dense_feat_head_forward.1} parent=1 // pred_check
      _
    $region3: #{dense_feat_head_forward.1} parent=1 // pred_check_branch
      %10 = sbr.rel (0) target = $region5
    $region4: #{dense_feat_head_forward.1} parent=1 // pred_region
      _
    $region5: #{dense_feat_head_forward.1} parent=1 // pred_fallthru
      _
    // Predicated region
    $region6: #{dense_feat_head_forward.1} parent=1 // pred_check
      _
    $region7: #{dense_feat_head_forward.1} parent=1 // pred_check_branch
      %12 = sbr.rel (0) target = $region9
    $region8: #{dense_feat_head_forward.1} parent=1 // pred_region
      _
    $region9: #{dense_feat_head_forward.1} parent=1 // pred_fallthru
      _
    // Predicated region
    $region10: #{dense_feat_head_forward.1} parent=1 // pred_check
      _
    $region11: #{dense_feat_head_forward.1} parent=1 // pred_check_branch
      %14 = sbr.rel (0) target = $region13
    $region12: #{dense_feat_head_forward.1} parent=1 // pred_region
      _
    $region13: #{dense_feat_head_forward.1} parent=1 // pred_fallthru
      _
    %vm15 = vcmask 62464
    %16 = vst.msk [vmem:[#allocation2] sm:$0x3f] %vm15, 0.0
    %17 = vst.msk [vmem:[#allocation2 + $0x30] sm:$0x3f] %vm15, 0.0
    %s18 = scalar_lea.vmem [#allocation2], 40
    %19 = vst.msk [vmem:[%s18] sm:$0x3f] %vm15, 0.0
    %20 = vst.msk [vmem:[%s18 + $0x30] sm:$0x3f] %vm15, 0.0
    %s21 = scalar_lea.vmem [#allocation2], 8
    %vm22 = vcmask 57344
    %23 = vst.msk [vmem:[%s21] sm:$0x1] %vm22, 0.0
    %24 = vst.msk [vmem:[%s21 + $0x8] sm:$0x1] %vm22, 0.0
    %25 = vst.msk [vmem:[%s21 + $0x10] sm:$0x1] %vm22, 0.0
    %26 = vst.msk [vmem:[%s21 + $0x18] sm:$0x1] %vm22, 0.0
    %27 = vst.msk [vmem:[%s21 + $0x30] sm:$0x1] %vm22, 0.0
    %28 = vst.msk [vmem:[%s21 + $0x38] sm:$0x1] %vm22, 0.0
    %29 = vst.msk [vmem:[%s21 + $0x40] sm:$0x1] %vm22, 0.0
    %30 = vst.msk [vmem:[%s21 + $0x48] sm:$0x1] %vm22, 0.0
    %31 = vst.msk [vmem:[%s21 + $0x5] sm:$0x1] %vm22, 0.0
    %32 = vst.msk [vmem:[%s21 + $0xd] sm:$0x1] %vm22, 0.0
    %33 = vst.msk [vmem:[%s21 + $0x15] sm:$0x1] %vm22, 0.0
    %34 = vst.msk [vmem:[%s21 + $0x1d] sm:$0x1] %vm22, 0.0
    %35 = vst.msk [vmem:[%s21 + $0x35] sm:$0x1] %vm22, 0.0
    %36 = vst.msk [vmem:[%s21 + $0x3d] sm:$0x1] %vm22, 0.0
    %37 = vst.msk [vmem:[%s21 + $0x45] sm:$0x1] %vm22, 0.0
    %38 = vst.msk [vmem:[%s21 + $0x4d] sm:$0x1] %vm22, 0.0
    %v39 = vld [vmem:[%s0] sm:$0xf]
    %v40 = vld [vmem:[%s0 + $0x4] sm:$0xf]
    %v41 = vld [vmem:[%s0 + $0x8] sm:$0xf]
    %v42 = vld [vmem:[%s0 + $0xc] sm:$0xf]
    %v43 = vld [vmem:[%s0 + $0x10] sm:$0xf]
    %v44 = vld [vmem:[%s0 + $0x14] sm:$0xf]
    %v45 = vld [vmem:[%s0 + $0x18] sm:$0xf]
    %v46 = vld [vmem:[%s0 + $0x1c] sm:$0xf]
    %vm47 = vcmask 60416
    %48 = vst.msk [vmem:[%s21 + $0x1] sm:$0xf] %vm47, %v39
    %49 = vst.msk [vmem:[%s21 + $0x9] sm:$0xf] %vm47, %v40
    %50 = vst.msk [vmem:[%s21 + $0x11] sm:$0xf] %vm47, %v41
    %51 = vst.msk [vmem:[%s21 + $0x19] sm:$0xf] %vm47, %v42
    %52 = vst.msk [vmem:[%s21 + $0x31] sm:$0xf] %vm47, %v43
    %53 = vst.msk [vmem:[%s21 + $0x39] sm:$0xf] %vm47, %v44
    %54 = vst.msk [vmem:[%s21 + $0x41] sm:$0xf] %vm47, %v45
    %55 = vst.msk [vmem:[%s21 + $0x49] sm:$0xf] %vm47, %v46
    %v56 = vld [vmem:[#allocation2] sm:$0xf]
    %v57 = vld [vmem:[#allocation2 + $0x8] sm:$0xf]
    %v58 = vld [vmem:[#allocation2 + $0x10] sm:$0xf]
    %v59 = vld [vmem:[#allocation2 + $0x18] sm:$0xf]
    %v60 = vld [vmem:[#allocation2 + $0x30] sm:$0xf]
    %v61 = vld [vmem:[#allocation2 + $0x38] sm:$0xf]
    %v62 = vld [vmem:[#allocation2 + $0x40] sm:$0xf]
    %v63 = vld [vmem:[#allocation2 + $0x48] sm:$0xf]
    %v64 = vld [vmem:[%s1] sm:$0xff]
    %v73 = vcombine.low %v56, %v57
    %v74 = vcombine.low %v58, %v59
    %v75 = vcombine.low %v60, %v61
    %v76 = vcombine.low %v62, %v63
    %vm77 = vcmask 64512
    %v78 = vsel %vm77, %v73, 0
    %v80 = vsel %vm77, %v74, 0
    %v82 = vsel %vm77, %v75, 0
    %v84 = vsel %vm77, %v76, 0
    %86 = vmatprep.subr.mxu0 0.0
    %87 = vmatpush1.msra.mxu0 0.0
    %88 = vmatprep.subr.mxu0 0.0
    %89 = vmatpush1.msra.mxu0 0.0
    %90 = vmatprep.subr.mxu0 0.0
    %91 = vmatpush1.msra.mxu0 0.0
    %92 = vmatprep.subr.mxu0 0.0
    %93 = vmatpush1.msra.mxu0 0.0
    %94 = vmatprep.subr.mxu0 0.0
    %95 = vmatpush1.msra.mxu0 0.0
    %96 = vmatprep.subr.mxu0 0.0
    %97 = vmatpush1.msra.mxu0 0.0
    %98 = vmatprep.subr.mxu0 0.0
    %99 = vmatpush1.msra.mxu0 0.0
    %100 = vmatprep.subr.mxu0 0.0
    %101 = vmatpush1.msra.mxu0 0.0
    %102 = vmatprep.subr.mxu0 0.0
    %103 = vmatpush1.msra.mxu0 0.0
    %104 = vmatprep.subr.mxu0 0.0
    %105 = vmatpush1.msra.mxu0 0.0
    %106 = vmatprep.subr.mxu0 0.0
    %107 = vmatpush1.msra.mxu0 0.0
    %108 = vmatprep.subr.mxu0 0.0
    %109 = vmatpush1.msra.mxu0 0.0
    %110 = vmatprep.subr.mxu0 0.0
    %111 = vmatpush1.msra.mxu0 0.0
    %112 = vmatprep.subr.mxu0 0.0
    %113 = vmatpush1.msra.mxu0 0.0
    %114 = vmatprep.subr.mxu0 0.0
    %115 = vmatpush1.msra.mxu0 0.0
    %116 = vmatprep.subr.mxu0 0.0
    %117 = vmatpush1.msra.mxu0 %v64
    %118 = vmatprep.subr.mxu0 0.0
    %119 = vmatpush2.msra.mxu0 0.0
    %120 = vmatprep.subr.mxu0 0.0
    %121 = vmatpush2.msra.mxu0 0.0
    %122 = vmatprep.subr.mxu0 0.0
    %123 = vmatpush2.msra.mxu0 0.0
    %124 = vmatprep.subr.mxu0 0.0
    %125 = vmatpush2.msra.mxu0 0.0
    %126 = vmatprep.subr.mxu0 0.0
    %127 = vmatpush2.msra.mxu0 0.0
    %128 = vmatprep.subr.mxu0 0.0
    %129 = vmatpush2.msra.mxu0 0.0
    %130 = vmatprep.subr.mxu0 0.0
    %131 = vmatpush2.msra.mxu0 0.0
    %132 = vmatprep.subr.mxu0 0.0
    %133 = vmatpush2.msra.mxu0 0.0
    %134 = vmatprep.subr.mxu0 0.0
    %135 = vmatpush2.msra.mxu0 0.0
    %136 = vmatprep.subr.mxu0 0.0
    %137 = vmatpush2.msra.mxu0 0.0
    %138 = vmatprep.subr.mxu0 0.0
    %139 = vmatpush2.msra.mxu0 0.0
    %140 = vmatprep.subr.mxu0 0.0
    %141 = vmatpush2.msra.mxu0 0.0
    %142 = vmatprep.subr.mxu0 0.0
    %143 = vmatpush2.msra.mxu0 0.0
    %144 = vmatprep.subr.mxu0 0.0
    %145 = vmatpush2.msra.mxu0 0.0
    %146 = vmatprep.subr.mxu0 0.0
    %147 = vmatpush2.msra.mxu0 0.0
    %148 = vmatprep.subr.mxu0 0.0
    %149 = vmatpush2.msra.mxu0 0.0
    %150 = vmatprep.mubr.f32.mxu0 0.0
    %151 = vmatmul.mubr.f32.gmra.mxu0 %v78
    %v152 = vpop.f32.mrf.mxu0
    %v153 = vadd.f32 0.0, %v152
    %v154 = vpop.f32.mrf.mxu0
    %155 = vmatprep.mubr.f32.mxu0 0.0
    %156 = vmatmul.mubr.f32.gmra.mxu0 %v80
    %v157 = vpop.f32.mrf.mxu0
    %v158 = vadd.f32 0.0, %v157
    %v159 = vpop.f32.mrf.mxu0
    %160 = vmatprep.mubr.f32.mxu0 0.0
    %161 = vmatmul.mubr.f32.gmra.mxu0 %v82
    %v162 = vpop.f32.mrf.mxu0
    %v163 = vadd.f32 0.0, %v162
    %v164 = vpop.f32.mrf.mxu0
    %165 = vmatprep.mubr.f32.mxu0 0.0
    %166 = vmatmul.mubr.f32.gmra.mxu0 %v84
    %v167 = vpop.f32.mrf.mxu0
    %v168 = vadd.f32 0.0, %v167
    %v169 = vpop.f32.mrf.mxu0
    %170 = vdwg.mxu0
    %171 = vst.msk [vmem:[#allocation3] sm:$0xff] %vm77, %v153
    %172 = vst.msk [vmem:[#allocation3 + $0x8] sm:$0xff] %vm77, %v158
    %173 = vst.msk [vmem:[#allocation3 + $0x10] sm:$0xff] %vm77, %v163
    %174 = vst.msk [vmem:[#allocation3 + $0x18] sm:$0xff] %vm77, %v168
    %v175 = vld [vmem:[#allocation2 + $0x1] sm:$0xf]
    %v176 = vld [vmem:[#allocation2 + $0x9] sm:$0xf]
    %v177 = vld [vmem:[#allocation2 + $0x11] sm:$0xf]
    %v178 = vld [vmem:[#allocation2 + $0x19] sm:$0xf]
    %v179 = vld [vmem:[#allocation2 + $0x31] sm:$0xf]
    %v180 = vld [vmem:[#allocation2 + $0x39] sm:$0xf]
    %v181 = vld [vmem:[#allocation2 + $0x41] sm:$0xf]
    %v182 = vld [vmem:[#allocation2 + $0x49] sm:$0xf]
    %s183 = scalar_lea.vmem %s1, 8
    %v184 = vld [vmem:[%s183] sm:$0xff]
    %v193 = vcombine.low %v175, %v176
    %v194 = vcombine.low %v177, %v178
    %v195 = vcombine.low %v179, %v180
    %v196 = vcombine.low %v181, %v182
    %v197 = vsel %vm77, %v193, 0
    %v199 = vsel %vm77, %v194, 0
    %v201 = vsel %vm77, %v195, 0
    %v203 = vsel %vm77, %v196, 0
    %205 = vmatprep.subr.mxu0 0.0
    %206 = vmatpush1.msra.mxu0 0.0
    %207 = vmatprep.subr.mxu0 0.0
    %208 = vmatpush1.msra.mxu0 0.0
    %209 = vmatprep.subr.mxu0 0.0
    %210 = vmatpush1.msra.mxu0 0.0
    %211 = vmatprep.subr.mxu0 0.0
    %212 = vmatpush1.msra.mxu0 0.0
    %213 = vmatprep.subr.mxu0 0.0
    %214 = vmatpush1.msra.mxu0 0.0
    %215 = vmatprep.subr.mxu0 0.0
    %216 = vmatpush1.msra.mxu0 0.0
    %217 = vmatprep.subr.mxu0 0.0
    %218 = vmatpush1.msra.mxu0 0.0
    %219 = vmatprep.subr.mxu0 0.0
    %220 = vmatpush1.msra.mxu0 0.0
    %221 = vmatprep.subr.mxu0 0.0
    %222 = vmatpush1.msra.mxu0 0.0
    %223 = vmatprep.subr.mxu0 0.0
    %224 = vmatpush1.msra.mxu0 0.0
    %225 = vmatprep.subr.mxu0 0.0
    %226 = vmatpush1.msra.mxu0 0.0
    %227 = vmatprep.subr.mxu0 0.0
    %228 = vmatpush1.msra.mxu0 0.0
    %229 = vmatprep.subr.mxu0 0.0
    %230 = vmatpush1.msra.mxu0 0.0
    %231 = vmatprep.subr.mxu0 0.0
    %232 = vmatpush1.msra.mxu0 0.0
    %233 = vmatprep.subr.mxu0 0.0
    %234 = vmatpush1.msra.mxu0 0.0
    %235 = vmatprep.subr.mxu0 0.0
    %236 = vmatpush1.msra.mxu0 %v184
    %237 = vmatprep.subr.mxu0 0.0
    %238 = vmatpush2.msra.mxu0 0.0
    %239 = vmatprep.subr.mxu0 0.0
    %240 = vmatpush2.msra.mxu0 0.0
    %241 = vmatprep.subr.mxu0 0.0
    %242 = vmatpush2.msra.mxu0 0.0
    %243 = vmatprep.subr.mxu0 0.0
    %244 = vmatpush2.msra.mxu0 0.0
    %245 = vmatprep.subr.mxu0 0.0
    %246 = vmatpush2.msra.mxu0 0.0
    %247 = vmatprep.subr.mxu0 0.0
    %248 = vmatpush2.msra.mxu0 0.0
    %249 = vmatprep.subr.mxu0 0.0
    %250 = vmatpush2.msra.mxu0 0.0
    %251 = vmatprep.subr.mxu0 0.0
    %252 = vmatpush2.msra.mxu0 0.0
    %253 = vmatprep.subr.mxu0 0.0
    %254 = vmatpush2.msra.mxu0 0.0
    %255 = vmatprep.subr.mxu0 0.0
    %256 = vmatpush2.msra.mxu0 0.0
    %257 = vmatprep.subr.mxu0 0.0
    %258 = vmatpush2.msra.mxu0 0.0
    %259 = vmatprep.subr.mxu0 0.0
    %260 = vmatpush2.msra.mxu0 0.0
    %261 = vmatprep.subr.mxu0 0.0
    %262 = vmatpush2.msra.mxu0 0.0
    %263 = vmatprep.subr.mxu0 0.0
    %264 = vmatpush2.msra.mxu0 0.0
    %265 = vmatprep.subr.mxu0 0.0
    %266 = vmatpush2.msra.mxu0 0.0
    %267 = vmatprep.subr.mxu0 0.0
    %268 = vmatpush2.msra.mxu0 0.0
    %269 = vmatprep.mubr.f32.mxu0 0.0
    %270 = vmatmul.mubr.f32.gmra.mxu0 %v197
    %v271 = vpop.f32.mrf.mxu0
    %v272 = vadd.f32 0.0, %v271
    %v273 = vpop.f32.mrf.mxu0
    %274 = vmatprep.mubr.f32.mxu0 0.0
    %275 = vmatmul.mubr.f32.gmra.mxu0 %v199
    %v276 = vpop.f32.mrf.mxu0
    %v277 = vadd.f32 0.0, %v276
    %v278 = vpop.f32.mrf.mxu0
    %279 = vmatprep.mubr.f32.mxu0 0.0
    %280 = vmatmul.mubr.f32.gmra.mxu0 %v201
    %v281 = vpop.f32.mrf.mxu0
    %v282 = vadd.f32 0.0, %v281
    %v283 = vpop.f32.mrf.mxu0
    %284 = vmatprep.mubr.f32.mxu0 0.0
    %285 = vmatmul.mubr.f32.gmra.mxu0 %v203
    %v286 = vpop.f32.mrf.mxu0
    %v287 = vadd.f32 0.0, %v286
    %v288 = vpop.f32.mrf.mxu0
    %289 = vdwg.mxu0
    %v290 = vld [vmem:[#allocation3] sm:$0xff]
    %v291 = vld [vmem:[#allocation3 + $0x8] sm:$0xff]
    %v292 = vld [vmem:[#allocation3 + $0x10] sm:$0xff]
    %v293 = vld [vmem:[#allocation3 + $0x18] sm:$0xff]
    %v294 = vadd.f32 %v290, %v272
    %v295 = vadd.f32 %v291, %v277
    %v296 = vadd.f32 %v292, %v282
    %v297 = vadd.f32 %v293, %v287
    %298 = vst.msk [vmem:[#allocation3] sm:$0xff] %vm77, %v294
    %299 = vst.msk [vmem:[#allocation3 + $0x8] sm:$0xff] %vm77, %v295
    %300 = vst.msk [vmem:[#allocation3 + $0x10] sm:$0xff] %vm77, %v296
    %301 = vst.msk [vmem:[#allocation3 + $0x18] sm:$0xff] %vm77, %v297
    %v302 = vld [vmem:[#allocation2 + $0x2] sm:$0xf]
    %v303 = vld [vmem:[#allocation2 + $0xa] sm:$0xf]
    %v304 = vld [vmem:[#allocation2 + $0x12] sm:$0xf]
    %v305 = vld [vmem:[#allocation2 + $0x1a] sm:$0xf]
    %v306 = vld [vmem:[#allocation2 + $0x32] sm:$0xf]
    %v307 = vld [vmem:[#allocation2 + $0x3a] sm:$0xf]
    %v308 = vld [vmem:[#allocation2 + $0x42] sm:$0xf]
    %v309 = vld [vmem:[#allocation2 + $0x4a] sm:$0xf]
    %s310 = scalar_lea.vmem %s1, 16
    %v311 = vld [vmem:[%s310] sm:$0xff]
    %v320 = vcombine.low %v302, %v303
    %v321 = vcombine.low %v304, %v305
    %v322 = vcombine.low %v306, %v307
    %v323 = vcombine.low %v308, %v309
    %v324 = vsel %vm77, %v320, 0
    %v326 = vsel %vm77, %v321, 0
    %v328 = vsel %vm77, %v322, 0
    %v330 = vsel %vm77, %v323, 0
    %332 = vmatprep.subr.mxu0 0.0
    %333 = vmatpush1.msra.mxu0 0.0
    %334 = vmatprep.subr.mxu0 0.0
    %335 = vmatpush1.msra.mxu0 0.0
    %336 = vmatprep.subr.mxu0 0.0
    %337 = vmatpush1.msra.mxu0 0.0
    %338 = vmatprep.subr.mxu0 0.0
    %339 = vmatpush1.msra.mxu0 0.0
    %340 = vmatprep.subr.mxu0 0.0
    %341 = vmatpush1.msra.mxu0 0.0
    %342 = vmatprep.subr.mxu0 0.0
    %343 = vmatpush1.msra.mxu0 0.0
    %344 = vmatprep.subr.mxu0 0.0
    %345 = vmatpush1.msra.mxu0 0.0
    %346 = vmatprep.subr.mxu0 0.0
    %347 = vmatpush1.msra.mxu0 0.0
    %348 = vmatprep.subr.mxu0 0.0
    %349 = vmatpush1.msra.mxu0 0.0
    %350 = vmatprep.subr.mxu0 0.0
    %351 = vmatpush1.msra.mxu0 0.0
    %352 = vmatprep.subr.mxu0 0.0
    %353 = vmatpush1.msra.mxu0 0.0
    %354 = vmatprep.subr.mxu0 0.0
    %355 = vmatpush1.msra.mxu0 0.0
    %356 = vmatprep.subr.mxu0 0.0
    %357 = vmatpush1.msra.mxu0 0.0
    %358 = vmatprep.subr.mxu0 0.0
    %359 = vmatpush1.msra.mxu0 0.0
    %360 = vmatprep.subr.mxu0 0.0
    %361 = vmatpush1.msra.mxu0 0.0
    %362 = vmatprep.subr.mxu0 0.0
    %363 = vmatpush1.msra.mxu0 %v311
    %364 = vmatprep.subr.mxu0 0.0
    %365 = vmatpush2.msra.mxu0 0.0
    %366 = vmatprep.subr.mxu0 0.0
    %367 = vmatpush2.msra.mxu0 0.0
    %368 = vmatprep.subr.mxu0 0.0
    %369 = vmatpush2.msra.mxu0 0.0
    %370 = vmatprep.subr.mxu0 0.0
    %371 = vmatpush2.msra.mxu0 0.0
    %372 = vmatprep.subr.mxu0 0.0
    %373 = vmatpush2.msra.mxu0 0.0
    %374 = vmatprep.subr.mxu0 0.0
    %375 = vmatpush2.msra.mxu0 0.0
    %376 = vmatprep.subr.mxu0 0.0
    %377 = vmatpush2.msra.mxu0 0.0
    %378 = vmatprep.subr.mxu0 0.0
    %379 = vmatpush2.msra.mxu0 0.0
    %380 = vmatprep.subr.mxu0 0.0
    %381 = vmatpush2.msra.mxu0 0.0
    %382 = vmatprep.subr.mxu0 0.0
    %383 = vmatpush2.msra.mxu0 0.0
    %384 = vmatprep.subr.mxu0 0.0
    %385 = vmatpush2.msra.mxu0 0.0
    %386 = vmatprep.subr.mxu0 0.0
    %387 = vmatpush2.msra.mxu0 0.0
    %388 = vmatprep.subr.mxu0 0.0
    %389 = vmatpush2.msra.mxu0 0.0
    %390 = vmatprep.subr.mxu0 0.0
    %391 = vmatpush2.msra.mxu0 0.0
    %392 = vmatprep.subr.mxu0 0.0
    %393 = vmatpush2.msra.mxu0 0.0
    %394 = vmatprep.subr.mxu0 0.0
    %395 = vmatpush2.msra.mxu0 0.0
    %396 = vmatprep.mubr.f32.mxu0 0.0
    %397 = vmatmul.mubr.f32.gmra.mxu0 %v324
    %v398 = vpop.f32.mrf.mxu0
    %v399 = vadd.f32 0.0, %v398
    %v400 = vpop.f32.mrf.mxu0
    %401 = vmatprep.mubr.f32.mxu0 0.0
    %402 = vmatmul.mubr.f32.gmra.mxu0 %v326
    %v403 = vpop.f32.mrf.mxu0
    %v404 = vadd.f32 0.0, %v403
    %v405 = vpop.f32.mrf.mxu0
    %406 = vmatprep.mubr.f32.mxu0 0.0
    %407 = vmatmul.mubr.f32.gmra.mxu0 %v328
    %v408 = vpop.f32.mrf.mxu0
    %v409 = vadd.f32 0.0, %v408
    %v410 = vpop.f32.mrf.mxu0
    %411 = vmatprep.mubr.f32.mxu0 0.0
    %412 = vmatmul.mubr.f32.gmra.mxu0 %v330
    %v413 = vpop.f32.mrf.mxu0
    %v414 = vadd.f32 0.0, %v413
    %v415 = vpop.f32.mrf.mxu0
    %416 = vdwg.mxu0
    %v417 = vld [vmem:[#allocation3] sm:$0xff]
    %v418 = vld [vmem:[#allocation3 + $0x8] sm:$0xff]
    %v419 = vld [vmem:[#allocation3 + $0x10] sm:$0xff]
    %v420 = vld [vmem:[#allocation3 + $0x18] sm:$0xff]
    %v421 = vadd.f32 %v417, %v399
    %v422 = vadd.f32 %v418, %v404
    %v423 = vadd.f32 %v419, %v409
    %v424 = vadd.f32 %v420, %v414
    %425 = vst.msk [vmem:[#allocation3] sm:$0xff] %vm77, %v421
    %426 = vst.msk [vmem:[#allocation3 + $0x8] sm:$0xff] %vm77, %v422
    %427 = vst.msk [vmem:[#allocation3 + $0x10] sm:$0xff] %vm77, %v423
    %428 = vst.msk [vmem:[#allocation3 + $0x18] sm:$0xff] %vm77, %v424
    %v429 = vld [vmem:[%s21] sm:$0xf]
    %v430 = vld [vmem:[%s21 + $0x8] sm:$0xf]
    %v431 = vld [vmem:[%s21 + $0x10] sm:$0xf]
    %v432 = vld [vmem:[%s21 + $0x18] sm:$0xf]
    %v433 = vld [vmem:[%s21 + $0x30] sm:$0xf]
    %v434 = vld [vmem:[%s21 + $0x38] sm:$0xf]
    %v435 = vld [vmem:[%s21 + $0x40] sm:$0xf]
    %v436 = vld [vmem:[%s21 + $0x48] sm:$0xf]
    %s437 = scalar_lea.vmem %s1, 24
    %v438 = vld [vmem:[%s437] sm:$0xff]
    %v447 = vcombine.low %v429, %v430
    %v448 = vcombine.low %v431, %v432
    %v449 = vcombine.low %v433, %v434
    %v450 = vcombine.low %v435, %v436
    %v451 = vsel %vm77, %v447, 0
    %v453 = vsel %vm77, %v448, 0
    %v455 = vsel %vm77, %v449, 0
    %v457 = vsel %vm77, %v450, 0
    %459 = vmatprep.subr.mxu0 0.0
    %460 = vmatpush1.msra.mxu0 0.0
    %461 = vmatprep.subr.mxu0 0.0
    %462 = vmatpush1.msra.mxu0 0.0
    %463 = vmatprep.subr.mxu0 0.0
    %464 = vmatpush1.msra.mxu0 0.0
    %465 = vmatprep.subr.mxu0 0.0
    %466 = vmatpush1.msra.mxu0 0.0
    %467 = vmatprep.subr.mxu0 0.0
    %468 = vmatpush1.msra.mxu0 0.0
    %469 = vmatprep.subr.mxu0 0.0
    %470 = vmatpush1.msra.mxu0 0.0
    %471 = vmatprep.subr.mxu0 0.0
    %472 = vmatpush1.msra.mxu0 0.0
    %473 = vmatprep.subr.mxu0 0.0
    %474 = vmatpush1.msra.mxu0 0.0
    %475 = vmatprep.subr.mxu0 0.0
    %476 = vmatpush1.msra.mxu0 0.0
    %477 = vmatprep.subr.mxu0 0.0
    %478 = vmatpush1.msra.mxu0 0.0
    %479 = vmatprep.subr.mxu0 0.0
    %480 = vmatpush1.msra.mxu0 0.0
    %481 = vmatprep.subr.mxu0 0.0
    %482 = vmatpush1.msra.mxu0 0.0
    %483 = vmatprep.subr.mxu0 0.0
    %484 = vmatpush1.msra.mxu0 0.0
    %485 = vmatprep.subr.mxu0 0.0
    %486 = vmatpush1.msra.mxu0 0.0
    %487 = vmatprep.subr.mxu0 0.0
    %488 = vmatpush1.msra.mxu0 0.0
    %489 = vmatprep.subr.mxu0 0.0
    %490 = vmatpush1.msra.mxu0 %v438
    %491 = vmatprep.subr.mxu0 0.0
    %492 = vmatpush2.msra.mxu0 0.0
    %493 = vmatprep.subr.mxu0 0.0
    %494 = vmatpush2.msra.mxu0 0.0
    %495 = vmatprep.subr.mxu0 0.0
    %496 = vmatpush2.msra.mxu0 0.0
    %497 = vmatprep.subr.mxu0 0.0
    %498 = vmatpush2.msra.mxu0 0.0
    %499 = vmatprep.subr.mxu0 0.0
    %500 = vmatpush2.msra.mxu0 0.0
    %501 = vmatprep.subr.mxu0 0.0
    %502 = vmatpush2.msra.mxu0 0.0
    %503 = vmatprep.subr.mxu0 0.0
    %504 = vmatpush2.msra.mxu0 0.0
    %505 = vmatprep.subr.mxu0 0.0
    %506 = vmatpush2.msra.mxu0 0.0
    %507 = vmatprep.subr.mxu0 0.0
    %508 = vmatpush2.msra.mxu0 0.0
    %509 = vmatprep.subr.mxu0 0.0
    %510 = vmatpush2.msra.mxu0 0.0
    %511 = vmatprep.subr.mxu0 0.0
    %512 = vmatpush2.msra.mxu0 0.0
    %513 = vmatprep.subr.mxu0 0.0
    %514 = vmatpush2.msra.mxu0 0.0
    %515 = vmatprep.subr.mxu0 0.0
    %516 = vmatpush2.msra.mxu0 0.0
    %517 = vmatprep.subr.mxu0 0.0
    %518 = vmatpush2.msra.mxu0 0.0
    %519 = vmatprep.subr.mxu0 0.0
    %520 = vmatpush2.msra.mxu0 0.0
    %521 = vmatprep.subr.mxu0 0.0
    %522 = vmatpush2.msra.mxu0 0.0
    %523 = vmatprep.mubr.f32.mxu0 0.0
    %524 = vmatmul.mubr.f32.gmra.mxu0 %v451
    %v525 = vpop.f32.mrf.mxu0
    %v526 = vadd.f32 0.0, %v525
    %v527 = vpop.f32.mrf.mxu0
    %528 = vmatprep.mubr.f32.mxu0 0.0
    %529 = vmatmul.mubr.f32.gmra.mxu0 %v453
    %v530 = vpop.f32.mrf.mxu0
    %v531 = vadd.f32 0.0, %v530
    %v532 = vpop.f32.mrf.mxu0
    %533 = vmatprep.mubr.f32.mxu0 0.0
    %534 = vmatmul.mubr.f32.gmra.mxu0 %v455
    %v535 = vpop.f32.mrf.mxu0
    %v536 = vadd.f32 0.0, %v535
    %v537 = vpop.f32.mrf.mxu0
    %538 = vmatprep.mubr.f32.mxu0 0.0
    %539 = vmatmul.mubr.f32.gmra.mxu0 %v457
    %v540 = vpop.f32.mrf.mxu0
    %v541 = vadd.f32 0.0, %v540
    %v542 = vpop.f32.mrf.mxu0
    %543 = vdwg.mxu0
    %v544 = vld [vmem:[#allocation3] sm:$0xff]
    %v545 = vld [vmem:[#allocation3 + $0x8] sm:$0xff]
    %v546 = vld [vmem:[#allocation3 + $0x10] sm:$0xff]
    %v547 = vld [vmem:[#allocation3 + $0x18] sm:$0xff]
    %v548 = vadd.f32 %v544, %v526
    %v549 = vadd.f32 %v545, %v531
    %v550 = vadd.f32 %v546, %v536
    %v551 = vadd.f32 %v547, %v541
    %552 = vst.msk [vmem:[#allocation3] sm:$0xff] %vm77, %v548
    %553 = vst.msk [vmem:[#allocation3 + $0x8] sm:$0xff] %vm77, %v549
    %554 = vst.msk [vmem:[#allocation3 + $0x10] sm:$0xff] %vm77, %v550
    %555 = vst.msk [vmem:[#allocation3 + $0x18] sm:$0xff] %vm77, %v551
    %v556 = vld [vmem:[%s21 + $0x1] sm:$0xf]
    %v557 = vld [vmem:[%s21 + $0x9] sm:$0xf]
    %v558 = vld [vmem:[%s21 + $0x11] sm:$0xf]
    %v559 = vld [vmem:[%s21 + $0x19] sm:$0xf]
    %v560 = vld [vmem:[%s21 + $0x31] sm:$0xf]
    %v561 = vld [vmem:[%s21 + $0x39] sm:$0xf]
    %v562 = vld [vmem:[%s21 + $0x41] sm:$0xf]
    %v563 = vld [vmem:[%s21 + $0x49] sm:$0xf]
    %s564 = scalar_lea.vmem %s1, 32
    %v565 = vld [vmem:[%s564] sm:$0xff]
    %v574 = vcombine.low %v556, %v557
    %v575 = vcombine.low %v558, %v559
    %v576 = vcombine.low %v560, %v561
    %v577 = vcombine.low %v562, %v563
    %v578 = vsel %vm77, %v574, 0
    %v580 = vsel %vm77, %v575, 0
    %v582 = vsel %vm77, %v576, 0
    %v584 = vsel %vm77, %v577, 0
    %586 = vmatprep.subr.mxu0 0.0
    %587 = vmatpush1.msra.mxu0 0.0
    %588 = vmatprep.subr.mxu0 0.0
    %589 = vmatpush1.msra.mxu0 0.0
    %590 = vmatprep.subr.mxu0 0.0
    %591 = vmatpush1.msra.mxu0 0.0
    %592 = vmatprep.subr.mxu0 0.0
    %593 = vmatpush1.msra.mxu0 0.0
    %594 = vmatprep.subr.mxu0 0.0
    %595 = vmatpush1.msra.mxu0 0.0
    %596 = vmatprep.subr.mxu0 0.0
    %597 = vmatpush1.msra.mxu0 0.0
    %598 = vmatprep.subr.mxu0 0.0
    %599 = vmatpush1.msra.mxu0 0.0
    %600 = vmatprep.subr.mxu0 0.0
    %601 = vmatpush1.msra.mxu0 0.0
    %602 = vmatprep.subr.mxu0 0.0
    %603 = vmatpush1.msra.mxu0 0.0
    %604 = vmatprep.subr.mxu0 0.0
    %605 = vmatpush1.msra.mxu0 0.0
    %606 = vmatprep.subr.mxu0 0.0
    %607 = vmatpush1.msra.mxu0 0.0
    %608 = vmatprep.subr.mxu0 0.0
    %609 = vmatpush1.msra.mxu0 0.0
    %610 = vmatprep.subr.mxu0 0.0
    %611 = vmatpush1.msra.mxu0 0.0
    %612 = vmatprep.subr.mxu0 0.0
    %613 = vmatpush1.msra.mxu0 0.0
    %614 = vmatprep.subr.mxu0 0.0
    %615 = vmatpush1.msra.mxu0 0.0
    %616 = vmatprep.subr.mxu0 0.0
    %617 = vmatpush1.msra.mxu0 %v565
    %618 = vmatprep.subr.mxu0 0.0
    %619 = vmatpush2.msra.mxu0 0.0
    %620 = vmatprep.subr.mxu0 0.0
    %621 = vmatpush2.msra.mxu0 0.0
    %622 = vmatprep.subr.mxu0 0.0
    %623 = vmatpush2.msra.mxu0 0.0
    %624 = vmatprep.subr.mxu0 0.0
    %625 = vmatpush2.msra.mxu0 0.0
    %626 = vmatprep.subr.mxu0 0.0
    %627 = vmatpush2.msra.mxu0 0.0
    %628 = vmatprep.subr.mxu0 0.0
    %629 = vmatpush2.msra.mxu0 0.0
    %630 = vmatprep.subr.mxu0 0.0
    %631 = vmatpush2.msra.mxu0 0.0
    %632 = vmatprep.subr.mxu0 0.0
    %633 = vmatpush2.msra.mxu0 0.0
    %634 = vmatprep.subr.mxu0 0.0
    %635 = vmatpush2.msra.mxu0 0.0
    %636 = vmatprep.subr.mxu0 0.0
    %637 = vmatpush2.msra.mxu0 0.0
    %638 = vmatprep.subr.mxu0 0.0
    %639 = vmatpush2.msra.mxu0 0.0
    %640 = vmatprep.subr.mxu0 0.0
    %641 = vmatpush2.msra.mxu0 0.0
    %642 = vmatprep.subr.mxu0 0.0
    %643 = vmatpush2.msra.mxu0 0.0
    %644 = vmatprep.subr.mxu0 0.0
    %645 = vmatpush2.msra.mxu0 0.0
    %646 = vmatprep.subr.mxu0 0.0
    %647 = vmatpush2.msra.mxu0 0.0
    %648 = vmatprep.subr.mxu0 0.0
    %649 = vmatpush2.msra.mxu0 0.0
    %650 = vmatprep.mubr.f32.mxu0 0.0
    %651 = vmatmul.mubr.f32.gmra.mxu0 %v578
    %v652 = vpop.f32.mrf.mxu0
    %v653 = vadd.f32 0.0, %v652
    %v654 = vpop.f32.mrf.mxu0
    %655 = vmatprep.mubr.f32.mxu0 0.0
    %656 = vmatmul.mubr.f32.gmra.mxu0 %v580
    %v657 = vpop.f32.mrf.mxu0
    %v658 = vadd.f32 0.0, %v657
    %v659 = vpop.f32.mrf.mxu0
    %660 = vmatprep.mubr.f32.mxu0 0.0
    %661 = vmatmul.mubr.f32.gmra.mxu0 %v582
    %v662 = vpop.f32.mrf.mxu0
    %v663 = vadd.f32 0.0, %v662
    %v664 = vpop.f32.mrf.mxu0
    %665 = vmatprep.mubr.f32.mxu0 0.0
    %666 = vmatmul.mubr.f32.gmra.mxu0 %v584
    %v667 = vpop.f32.mrf.mxu0
    %v668 = vadd.f32 0.0, %v667
    %v669 = vpop.f32.mrf.mxu0
    %670 = vdwg.mxu0
    %v671 = vld [vmem:[#allocation3] sm:$0xff]
    %v672 = vld [vmem:[#allocation3 + $0x8] sm:$0xff]
    %v673 = vld [vmem:[#allocation3 + $0x10] sm:$0xff]
    %v674 = vld [vmem:[#allocation3 + $0x18] sm:$0xff]
    %v675 = vadd.f32 %v671, %v653
    %v676 = vadd.f32 %v672, %v658
    %v677 = vadd.f32 %v673, %v663
    %v678 = vadd.f32 %v674, %v668
    %679 = vst.msk [vmem:[#allocation3] sm:$0xff] %vm77, %v675
    %680 = vst.msk [vmem:[#allocation3 + $0x8] sm:$0xff] %vm77, %v676
    %681 = vst.msk [vmem:[#allocation3 + $0x10] sm:$0xff] %vm77, %v677
    %682 = vst.msk [vmem:[#allocation3 + $0x18] sm:$0xff] %vm77, %v678
    %v683 = vld [vmem:[%s21 + $0x2] sm:$0xf]
    %v684 = vld [vmem:[%s21 + $0xa] sm:$0xf]
    %v685 = vld [vmem:[%s21 + $0x12] sm:$0xf]
    %v686 = vld [vmem:[%s21 + $0x1a] sm:$0xf]
    %v687 = vld [vmem:[%s21 + $0x32] sm:$0xf]
    %v688 = vld [vmem:[%s21 + $0x3a] sm:$0xf]
    %v689 = vld [vmem:[%s21 + $0x42] sm:$0xf]
    %v690 = vld [vmem:[%s21 + $0x4a] sm:$0xf]
    %s691 = scalar_lea.vmem %s1, 40
    %v692 = vld [vmem:[%s691] sm:$0xff]
    %v701 = vcombine.low %v683, %v684
    %v702 = vcombine.low %v685, %v686
    %v703 = vcombine.low %v687, %v688
    %v704 = vcombine.low %v689, %v690
    %v705 = vsel %vm77, %v701, 0
    %v707 = vsel %vm77, %v702, 0
    %v709 = vsel %vm77, %v703, 0
    %v711 = vsel %vm77, %v704, 0
    %713 = vmatprep.subr.mxu0 0.0
    %714 = vmatpush1.msra.mxu0 0.0
    %715 = vmatprep.subr.mxu0 0.0
    %716 = vmatpush1.msra.mxu0 0.0
    %717 = vmatprep.subr.mxu0 0.0
    %718 = vmatpush1.msra.mxu0 0.0
    %719 = vmatprep.subr.mxu0 0.0
    %720 = vmatpush1.msra.mxu0 0.0
    %721 = vmatprep.subr.mxu0 0.0
    %722 = vmatpush1.msra.mxu0 0.0
    %723 = vmatprep.subr.mxu0 0.0
    %724 = vmatpush1.msra.mxu0 0.0
    %725 = vmatprep.subr.mxu0 0.0
    %726 = vmatpush1.msra.mxu0 0.0
    %727 = vmatprep.subr.mxu0 0.0
    %728 = vmatpush1.msra.mxu0 0.0
    %729 = vmatprep.subr.mxu0 0.0
    %730 = vmatpush1.msra.mxu0 0.0
    %731 = vmatprep.subr.mxu0 0.0
    %732 = vmatpush1.msra.mxu0 0.0
    %733 = vmatprep.subr.mxu0 0.0
    %734 = vmatpush1.msra.mxu0 0.0
    %735 = vmatprep.subr.mxu0 0.0
    %736 = vmatpush1.msra.mxu0 0.0
    %737 = vmatprep.subr.mxu0 0.0
    %738 = vmatpush1.msra.mxu0 0.0
    %739 = vmatprep.subr.mxu0 0.0
    %740 = vmatpush1.msra.mxu0 0.0
    %741 = vmatprep.subr.mxu0 0.0
    %742 = vmatpush1.msra.mxu0 0.0
    %743 = vmatprep.subr.mxu0 0.0
    %744 = vmatpush1.msra.mxu0 %v692
    %745 = vmatprep.subr.mxu0 0.0
    %746 = vmatpush2.msra.mxu0 0.0
    %747 = vmatprep.subr.mxu0 0.0
    %748 = vmatpush2.msra.mxu0 0.0
    %749 = vmatprep.subr.mxu0 0.0
    %750 = vmatpush2.msra.mxu0 0.0
    %751 = vmatprep.subr.mxu0 0.0
    %752 = vmatpush2.msra.mxu0 0.0
    %753 = vmatprep.subr.mxu0 0.0
    %754 = vmatpush2.msra.mxu0 0.0
    %755 = vmatprep.subr.mxu0 0.0
    %756 = vmatpush2.msra.mxu0 0.0
    %757 = vmatprep.subr.mxu0 0.0
    %758 = vmatpush2.msra.mxu0 0.0
    %759 = vmatprep.subr.mxu0 0.0
    %760 = vmatpush2.msra.mxu0 0.0
    %761 = vmatprep.subr.mxu0 0.0
    %762 = vmatpush2.msra.mxu0 0.0
    %763 = vmatprep.subr.mxu0 0.0
    %764 = vmatpush2.msra.mxu0 0.0
    %765 = vmatprep.subr.mxu0 0.0
    %766 = vmatpush2.msra.mxu0 0.0
    %767 = vmatprep.subr.mxu0 0.0
    %768 = vmatpush2.msra.mxu0 0.0
    %769 = vmatprep.subr.mxu0 0.0
    %770 = vmatpush2.msra.mxu0 0.0
    %771 = vmatprep.subr.mxu0 0.0
    %772 = vmatpush2.msra.mxu0 0.0
    %773 = vmatprep.subr.mxu0 0.0
    %774 = vmatpush2.msra.mxu0 0.0
    %775 = vmatprep.subr.mxu0 0.0
    %776 = vmatpush2.msra.mxu0 0.0
    %777 = vmatprep.mubr.f32.mxu0 0.0
    %778 = vmatmul.mubr.f32.gmra.mxu0 %v705
    %v779 = vpop.f32.mrf.mxu0
    %v780 = vadd.f32 0.0, %v779
    %v781 = vpop.f32.mrf.mxu0
    %782 = vmatprep.mubr.f32.mxu0 0.0
    %783 = vmatmul.mubr.f32.gmra.mxu0 %v707
    %v784 = vpop.f32.mrf.mxu0
    %v785 = vadd.f32 0.0, %v784
    %v786 = vpop.f32.mrf.mxu0
    %787 = vmatprep.mubr.f32.mxu0 0.0
    %788 = vmatmul.mubr.f32.gmra.mxu0 %v709
    %v789 = vpop.f32.mrf.mxu0
    %v790 = vadd.f32 0.0, %v789
    %v791 = vpop.f32.mrf.mxu0
    %792 = vmatprep.mubr.f32.mxu0 0.0
    %793 = vmatmul.mubr.f32.gmra.mxu0 %v711
    %v794 = vpop.f32.mrf.mxu0
    %v795 = vadd.f32 0.0, %v794
    %v796 = vpop.f32.mrf.mxu0
    %797 = vdwg.mxu0
    %v798 = vld [vmem:[#allocation3] sm:$0xff]
    %v799 = vld [vmem:[#allocation3 + $0x8] sm:$0xff]
    %v800 = vld [vmem:[#allocation3 + $0x10] sm:$0xff]
    %v801 = vld [vmem:[#allocation3 + $0x18] sm:$0xff]
    %v802 = vadd.f32 %v798, %v780
    %v803 = vadd.f32 %v799, %v785
    %v804 = vadd.f32 %v800, %v790
    %v805 = vadd.f32 %v801, %v795
    %806 = vst.msk [vmem:[#allocation3] sm:$0xff] %vm77, %v802
    %807 = vst.msk [vmem:[#allocation3 + $0x8] sm:$0xff] %vm77, %v803
    %808 = vst.msk [vmem:[#allocation3 + $0x10] sm:$0xff] %vm77, %v804
    %809 = vst.msk [vmem:[#allocation3 + $0x18] sm:$0xff] %vm77, %v805
    %s810 = scalar_lea.vmem [#allocation2], 16
    %v811 = vld [vmem:[%s810] sm:$0xf]
    %v812 = vld [vmem:[%s810 + $0x8] sm:$0xf]
    %v813 = vld [vmem:[%s810 + $0x10] sm:$0xf]
    %v814 = vld [vmem:[%s810 + $0x18] sm:$0xf]
    %v815 = vld [vmem:[%s810 + $0x30] sm:$0xf]
    %v816 = vld [vmem:[%s810 + $0x38] sm:$0xf]
    %v817 = vld [vmem:[%s810 + $0x40] sm:$0xf]
    %v818 = vld [vmem:[%s810 + $0x48] sm:$0xf]
    %s819 = scalar_lea.vmem %s1, 48
    %v820 = vld [vmem:[%s819] sm:$0xff]
    %v829 = vcombine.low %v811, %v812
    %v830 = vcombine.low %v813, %v814
    %v831 = vcombine.low %v815, %v816
    %v832 = vcombine.low %v817, %v818
    %v833 = vsel %vm77, %v829, 0
    %v835 = vsel %vm77, %v830, 0
    %v837 = vsel %vm77, %v831, 0
    %v839 = vsel %vm77, %v832, 0
    %841 = vmatprep.subr.mxu0 0.0
    %842 = vmatpush1.msra.mxu0 0.0
    %843 = vmatprep.subr.mxu0 0.0
    %844 = vmatpush1.msra.mxu0 0.0
    %845 = vmatprep.subr.mxu0 0.0
    %846 = vmatpush1.msra.mxu0 0.0
    %847 = vmatprep.subr.mxu0 0.0
    %848 = vmatpush1.msra.mxu0 0.0
    %849 = vmatprep.subr.mxu0 0.0
    %850 = vmatpush1.msra.mxu0 0.0
    %851 = vmatprep.subr.mxu0 0.0
    %852 = vmatpush1.msra.mxu0 0.0
    %853 = vmatprep.subr.mxu0 0.0
    %854 = vmatpush1.msra.mxu0 0.0
    %855 = vmatprep.subr.mxu0 0.0
    %856 = vmatpush1.msra.mxu0 0.0
    %857 = vmatprep.subr.mxu0 0.0
    %858 = vmatpush1.msra.mxu0 0.0
    %859 = vmatprep.subr.mxu0 0.0
    %860 = vmatpush1.msra.mxu0 0.0
    %861 = vmatprep.subr.mxu0 0.0
    %862 = vmatpush1.msra.mxu0 0.0
    %863 = vmatprep.subr.mxu0 0.0
    %864 = vmatpush1.msra.mxu0 0.0
    %865 = vmatprep.subr.mxu0 0.0
    %866 = vmatpush1.msra.mxu0 0.0
    %867 = vmatprep.subr.mxu0 0.0
    %868 = vmatpush1.msra.mxu0 0.0
    %869 = vmatprep.subr.mxu0 0.0
    %870 = vmatpush1.msra.mxu0 0.0
    %871 = vmatprep.subr.mxu0 0.0
    %872 = vmatpush1.msra.mxu0 %v820
    %873 = vmatprep.subr.mxu0 0.0
    %874 = vmatpush2.msra.mxu0 0.0
    %875 = vmatprep.subr.mxu0 0.0
    %876 = vmatpush2.msra.mxu0 0.0
    %877 = vmatprep.subr.mxu0 0.0
    %878 = vmatpush2.msra.mxu0 0.0
    %879 = vmatprep.subr.mxu0 0.0
    %880 = vmatpush2.msra.mxu0 0.0
    %881 = vmatprep.subr.mxu0 0.0
    %882 = vmatpush2.msra.mxu0 0.0
    %883 = vmatprep.subr.mxu0 0.0
    %884 = vmatpush2.msra.mxu0 0.0
    %885 = vmatprep.subr.mxu0 0.0
    %886 = vmatpush2.msra.mxu0 0.0
    %887 = vmatprep.subr.mxu0 0.0
    %888 = vmatpush2.msra.mxu0 0.0
    %889 = vmatprep.subr.mxu0 0.0
    %890 = vmatpush2.msra.mxu0 0.0
    %891 = vmatprep.subr.mxu0 0.0
    %892 = vmatpush2.msra.mxu0 0.0
    %893 = vmatprep.subr.mxu0 0.0
    %894 = vmatpush2.msra.mxu0 0.0
    %895 = vmatprep.subr.mxu0 0.0
    %896 = vmatpush2.msra.mxu0 0.0
    %897 = vmatprep.subr.mxu0 0.0
    %898 = vmatpush2.msra.mxu0 0.0
    %899 = vmatprep.subr.mxu0 0.0
    %900 = vmatpush2.msra.mxu0 0.0
    %901 = vmatprep.subr.mxu0 0.0
    %902 = vmatpush2.msra.mxu0 0.0
    %903 = vmatprep.subr.mxu0 0.0
    %904 = vmatpush2.msra.mxu0 0.0
    %905 = vmatprep.mubr.f32.mxu0 0.0
    %906 = vmatmul.mubr.f32.gmra.mxu0 %v833
    %v907 = vpop.f32.mrf.mxu0
    %v908 = vadd.f32 0.0, %v907
    %v909 = vpop.f32.mrf.mxu0
    %910 = vmatprep.mubr.f32.mxu0 0.0
    %911 = vmatmul.mubr.f32.gmra.mxu0 %v835
    %v912 = vpop.f32.mrf.mxu0
    %v913 = vadd.f32 0.0, %v912
    %v914 = vpop.f32.mrf.mxu0
    %915 = vmatprep.mubr.f32.mxu0 0.0
    %916 = vmatmul.mubr.f32.gmra.mxu0 %v837
    %v917 = vpop.f32.mrf.mxu0
    %v918 = vadd.f32 0.0, %v917
    %v919 = vpop.f32.mrf.mxu0
    %920 = vmatprep.mubr.f32.mxu0 0.0
    %921 = vmatmul.mubr.f32.gmra.mxu0 %v839
    %v922 = vpop.f32.mrf.mxu0
    %v923 = vadd.f32 0.0, %v922
    %v924 = vpop.f32.mrf.mxu0
    %925 = vdwg.mxu0
    %v926 = vld [vmem:[#allocation3] sm:$0xff]
    %v927 = vld [vmem:[#allocation3 + $0x8] sm:$0xff]
    %v928 = vld [vmem:[#allocation3 + $0x10] sm:$0xff]
    %v929 = vld [vmem:[#allocation3 + $0x18] sm:$0xff]
    %v930 = vadd.f32 %v926, %v908
    %v931 = vadd.f32 %v927, %v913
    %v932 = vadd.f32 %v928, %v918
    %v933 = vadd.f32 %v929, %v923
    %934 = vst.msk [vmem:[#allocation3] sm:$0xff] %vm77, %v930
    %935 = vst.msk [vmem:[#allocation3 + $0x8] sm:$0xff] %vm77, %v931
    %936 = vst.msk [vmem:[#allocation3 + $0x10] sm:$0xff] %vm77, %v932
    %937 = vst.msk [vmem:[#allocation3 + $0x18] sm:$0xff] %vm77, %v933
    %v938 = vld [vmem:[%s810 + $0x1] sm:$0xf]
    %v939 = vld [vmem:[%s810 + $0x9] sm:$0xf]
    %v940 = vld [vmem:[%s810 + $0x11] sm:$0xf]
    %v941 = vld [vmem:[%s810 + $0x19] sm:$0xf]
    %v942 = vld [vmem:[%s810 + $0x31] sm:$0xf]
    %v943 = vld [vmem:[%s810 + $0x39] sm:$0xf]
    %v944 = vld [vmem:[%s810 + $0x41] sm:$0xf]
    %v945 = vld [vmem:[%s810 + $0x49] sm:$0xf]
    %s946 = scalar_lea.vmem %s1, 56
    %v947 = vld [vmem:[%s946] sm:$0xff]
    %v956 = vcombine.low %v938, %v939
    %v957 = vcombine.low %v940, %v941
    %v958 = vcombine.low %v942, %v943
    %v959 = vcombine.low %v944, %v945
    %v960 = vsel %vm77, %v956, 0
    %v962 = vsel %vm77, %v957, 0
    %v964 = vsel %vm77, %v958, 0
    %v966 = vsel %vm77, %v959, 0
    %968 = vmatprep.subr.mxu0 0.0
    %969 = vmatpush1.msra.mxu0 0.0
    %970 = vmatprep.subr.mxu0 0.0
    %971 = vmatpush1.msra.mxu0 0.0
    %972 = vmatprep.subr.mxu0 0.0
    %973 = vmatpush1.msra.mxu0 0.0
    %974 = vmatprep.subr.mxu0 0.0
    %975 = vmatpush1.msra.mxu0 0.0
    %976 = vmatprep.subr.mxu0 0.0
    %977 = vmatpush1.msra.mxu0 0.0
    %978 = vmatprep.subr.mxu0 0.0
    %979 = vmatpush1.msra.mxu0 0.0
    %980 = vmatprep.subr.mxu0 0.0
    %981 = vmatpush1.msra.mxu0 0.0
    %982 = vmatprep.subr.mxu0 0.0
    %983 = vmatpush1.msra.mxu0 0.0
    %984 = vmatprep.subr.mxu0 0.0
    %985 = vmatpush1.msra.mxu0 0.0
    %986 = vmatprep.subr.mxu0 0.0
    %987 = vmatpush1.msra.mxu0 0.0
    %988 = vmatprep.subr.mxu0 0.0
    %989 = vmatpush1.msra.mxu0 0.0
    %990 = vmatprep.subr.mxu0 0.0
    %991 = vmatpush1.msra.mxu0 0.0
    %992 = vmatprep.subr.mxu0 0.0
    %993 = vmatpush1.msra.mxu0 0.0
    %994 = vmatprep.subr.mxu0 0.0
    %995 = vmatpush1.msra.mxu0 0.0
    %996 = vmatprep.subr.mxu0 0.0
    %997 = vmatpush1.msra.mxu0 0.0
    %998 = vmatprep.subr.mxu0 0.0
    %999 = vmatpush1.msra.mxu0 %v947
    %1000 = vmatprep.subr.mxu0 0.0
    %1001 = vmatpush2.msra.mxu0 0.0
    %1002 = vmatprep.subr.mxu0 0.0
    %1003 = vmatpush2.msra.mxu0 0.0
    %1004 = vmatprep.subr.mxu0 0.0
    %1005 = vmatpush2.msra.mxu0 0.0
    %1006 = vmatprep.subr.mxu0 0.0
    %1007 = vmatpush2.msra.mxu0 0.0
    %1008 = vmatprep.subr.mxu0 0.0
    %1009 = vmatpush2.msra.mxu0 0.0
    %1010 = vmatprep.subr.mxu0 0.0
    %1011 = vmatpush2.msra.mxu0 0.0
    %1012 = vmatprep.subr.mxu0 0.0
    %1013 = vmatpush2.msra.mxu0 0.0
    %1014 = vmatprep.subr.mxu0 0.0
    %1015 = vmatpush2.msra.mxu0 0.0
    %1016 = vmatprep.subr.mxu0 0.0
    %1017 = vmatpush2.msra.mxu0 0.0
    %1018 = vmatprep.subr.mxu0 0.0
    %1019 = vmatpush2.msra.mxu0 0.0
    %1020 = vmatprep.subr.mxu0 0.0
    %1021 = vmatpush2.msra.mxu0 0.0
    %1022 = vmatprep.subr.mxu0 0.0
    %1023 = vmatpush2.msra.mxu0 0.0
    %1024 = vmatprep.subr.mxu0 0.0
    %1025 = vmatpush2.msra.mxu0 0.0
    %1026 = vmatprep.subr.mxu0 0.0
    %1027 = vmatpush2.msra.mxu0 0.0
    %1028 = vmatprep.subr.mxu0 0.0
    %1029 = vmatpush2.msra.mxu0 0.0
    %1030 = vmatprep.subr.mxu0 0.0
    %1031 = vmatpush2.msra.mxu0 0.0
    %1032 = vmatprep.mubr.f32.mxu0 0.0
    %1033 = vmatmul.mubr.f32.gmra.mxu0 %v960
    %v1034 = vpop.f32.mrf.mxu0
    %v1035 = vadd.f32 0.0, %v1034
    %v1036 = vpop.f32.mrf.mxu0
    %1037 = vmatprep.mubr.f32.mxu0 0.0
    %1038 = vmatmul.mubr.f32.gmra.mxu0 %v962
    %v1039 = vpop.f32.mrf.mxu0
    %v1040 = vadd.f32 0.0, %v1039
    %v1041 = vpop.f32.mrf.mxu0
    %1042 = vmatprep.mubr.f32.mxu0 0.0
    %1043 = vmatmul.mubr.f32.gmra.mxu0 %v964
    %v1044 = vpop.f32.mrf.mxu0
    %v1045 = vadd.f32 0.0, %v1044
    %v1046 = vpop.f32.mrf.mxu0
    %1047 = vmatprep.mubr.f32.mxu0 0.0
    %1048 = vmatmul.mubr.f32.gmra.mxu0 %v966
    %v1049 = vpop.f32.mrf.mxu0
    %v1050 = vadd.f32 0.0, %v1049
    %v1051 = vpop.f32.mrf.mxu0
    %1052 = vdwg.mxu0
    %v1053 = vld [vmem:[#allocation3] sm:$0xff]
    %v1054 = vld [vmem:[#allocation3 + $0x8] sm:$0xff]
    %v1055 = vld [vmem:[#allocation3 + $0x10] sm:$0xff]
    %v1056 = vld [vmem:[#allocation3 + $0x18] sm:$0xff]
    %v1057 = vadd.f32 %v1053, %v1035
    %v1058 = vadd.f32 %v1054, %v1040
    %v1059 = vadd.f32 %v1055, %v1045
    %v1060 = vadd.f32 %v1056, %v1050
    %1061 = vst.msk [vmem:[#allocation3] sm:$0xff] %vm77, %v1057
    %1062 = vst.msk [vmem:[#allocation3 + $0x8] sm:$0xff] %vm77, %v1058
    %1063 = vst.msk [vmem:[#allocation3 + $0x10] sm:$0xff] %vm77, %v1059
    %1064 = vst.msk [vmem:[#allocation3 + $0x18] sm:$0xff] %vm77, %v1060
    %v1065 = vld [vmem:[%s810 + $0x2] sm:$0xf]
    %v1066 = vld [vmem:[%s810 + $0xa] sm:$0xf]
    %v1067 = vld [vmem:[%s810 + $0x12] sm:$0xf]
    %v1068 = vld [vmem:[%s810 + $0x1a] sm:$0xf]
    %v1069 = vld [vmem:[%s810 + $0x32] sm:$0xf]
    %v1070 = vld [vmem:[%s810 + $0x3a] sm:$0xf]
    %v1071 = vld [vmem:[%s810 + $0x42] sm:$0xf]
    %v1072 = vld [vmem:[%s810 + $0x4a] sm:$0xf]
    %s1073 = scalar_lea.vmem %s1, 64
    %v1074 = vld [vmem:[%s1073] sm:$0xff]
    %v1083 = vcombine.low %v1065, %v1066
    %v1084 = vcombine.low %v1067, %v1068
    %v1085 = vcombine.low %v1069, %v1070
    %v1086 = vcombine.low %v1071, %v1072
    %v1087 = vsel %vm77, %v1083, 0
    %v1089 = vsel %vm77, %v1084, 0
    %v1091 = vsel %vm77, %v1085, 0
    %v1093 = vsel %vm77, %v1086, 0
    %1095 = vmatprep.subr.mxu0 0.0
    %1096 = vmatpush1.msra.mxu0 0.0
    %1097 = vmatprep.subr.mxu0 0.0
    %1098 = vmatpush1.msra.mxu0 0.0
    %1099 = vmatprep.subr.mxu0 0.0
    %1100 = vmatpush1.msra.mxu0 0.0
    %1101 = vmatprep.subr.mxu0 0.0
    %1102 = vmatpush1.msra.mxu0 0.0
    %1103 = vmatprep.subr.mxu0 0.0
    %1104 = vmatpush1.msra.mxu0 0.0
    %1105 = vmatprep.subr.mxu0 0.0
    %1106 = vmatpush1.msra.mxu0 0.0
    %1107 = vmatprep.subr.mxu0 0.0
    %1108 = vmatpush1.msra.mxu0 0.0
    %1109 = vmatprep.subr.mxu0 0.0
    %1110 = vmatpush1.msra.mxu0 0.0
    %1111 = vmatprep.subr.mxu0 0.0
    %1112 = vmatpush1.msra.mxu0 0.0
    %1113 = vmatprep.subr.mxu0 0.0
    %1114 = vmatpush1.msra.mxu0 0.0
    %1115 = vmatprep.subr.mxu0 0.0
    %1116 = vmatpush1.msra.mxu0 0.0
    %1117 = vmatprep.subr.mxu0 0.0
    %1118 = vmatpush1.msra.mxu0 0.0
    %1119 = vmatprep.subr.mxu0 0.0
    %1120 = vmatpush1.msra.mxu0 0.0
    %1121 = vmatprep.subr.mxu0 0.0
    %1122 = vmatpush1.msra.mxu0 0.0
    %1123 = vmatprep.subr.mxu0 0.0
    %1124 = vmatpush1.msra.mxu0 0.0
    %1125 = vmatprep.subr.mxu0 0.0
    %1126 = vmatpush1.msra.mxu0 %v1074
    %1127 = vmatprep.subr.mxu0 0.0
    %1128 = vmatpush2.msra.mxu0 0.0
    %1129 = vmatprep.subr.mxu0 0.0
    %1130 = vmatpush2.msra.mxu0 0.0
    %1131 = vmatprep.subr.mxu0 0.0
    %1132 = vmatpush2.msra.mxu0 0.0
    %1133 = vmatprep.subr.mxu0 0.0
    %1134 = vmatpush2.msra.mxu0 0.0
    %1135 = vmatprep.subr.mxu0 0.0
    %1136 = vmatpush2.msra.mxu0 0.0
    %1137 = vmatprep.subr.mxu0 0.0
    %1138 = vmatpush2.msra.mxu0 0.0
    %1139 = vmatprep.subr.mxu0 0.0
    %1140 = vmatpush2.msra.mxu0 0.0
    %1141 = vmatprep.subr.mxu0 0.0
    %1142 = vmatpush2.msra.mxu0 0.0
    %1143 = vmatprep.subr.mxu0 0.0
    %1144 = vmatpush2.msra.mxu0 0.0
    %1145 = vmatprep.subr.mxu0 0.0
    %1146 = vmatpush2.msra.mxu0 0.0
    %1147 = vmatprep.subr.mxu0 0.0
    %1148 = vmatpush2.msra.mxu0 0.0
    %1149 = vmatprep.subr.mxu0 0.0
    %1150 = vmatpush2.msra.mxu0 0.0
    %1151 = vmatprep.subr.mxu0 0.0
    %1152 = vmatpush2.msra.mxu0 0.0
    %1153 = vmatprep.subr.mxu0 0.0
    %1154 = vmatpush2.msra.mxu0 0.0
    %1155 = vmatprep.subr.mxu0 0.0
    %1156 = vmatpush2.msra.mxu0 0.0
    %1157 = vmatprep.subr.mxu0 0.0
    %1158 = vmatpush2.msra.mxu0 0.0
    %1159 = vmatprep.mubr.f32.mxu0 0.0
    %1160 = vmatmul.mubr.f32.gmra.mxu0 %v1087
    %v1161 = vpop.f32.mrf.mxu0
    %v1162 = vadd.f32 0.0, %v1161
    %v1163 = vpop.f32.mrf.mxu0
    %1164 = vmatprep.mubr.f32.mxu0 0.0
    %1165 = vmatmul.mubr.f32.gmra.mxu0 %v1089
    %v1166 = vpop.f32.mrf.mxu0
    %v1167 = vadd.f32 0.0, %v1166
    %v1168 = vpop.f32.mrf.mxu0
    %1169 = vmatprep.mubr.f32.mxu0 0.0
    %1170 = vmatmul.mubr.f32.gmra.mxu0 %v1091
    %v1171 = vpop.f32.mrf.mxu0
    %v1172 = vadd.f32 0.0, %v1171
    %v1173 = vpop.f32.mrf.mxu0
    %1174 = vmatprep.mubr.f32.mxu0 0.0
    %1175 = vmatmul.mubr.f32.gmra.mxu0 %v1093
    %v1176 = vpop.f32.mrf.mxu0
    %v1177 = vadd.f32 0.0, %v1176
    %v1178 = vpop.f32.mrf.mxu0
    %1179 = vdwg.mxu0
    %v1180 = vld [vmem:[#allocation3] sm:$0xff]
    %v1181 = vld [vmem:[#allocation3 + $0x8] sm:$0xff]
    %v1182 = vld [vmem:[#allocation3 + $0x10] sm:$0xff]
    %v1183 = vld [vmem:[#allocation3 + $0x18] sm:$0xff]
    %v1184 = vadd.f32 %v1180, %v1162
    %v1185 = vadd.f32 %v1181, %v1167
    %v1186 = vadd.f32 %v1182, %v1172
    %v1187 = vadd.f32 %v1183, %v1177
    %1188 = vst.msk [vmem:[#allocation3] sm:$0xff] %vm77, %v1184
    %1189 = vst.msk [vmem:[#allocation3 + $0x8] sm:$0xff] %vm77, %v1185
    %1190 = vst.msk [vmem:[#allocation3 + $0x10] sm:$0xff] %vm77, %v1186
    %1191 = vst.msk [vmem:[#allocation3 + $0x18] sm:$0xff] %vm77, %v1187
    %v1192 = vld [vmem:[#allocation3] sm:$0xff]
    %v1193 = vld [vmem:[#allocation3 + $0x8] sm:$0xff]
    %v1194 = vld [vmem:[#allocation3 + $0x10] sm:$0xff]
    %v1195 = vld [vmem:[#allocation3 + $0x18] sm:$0xff]
    %v1196 = vld [vmem:[%s2] sm:$0x1]
    %v1198 = vlaneseq
    %v1199 = vshrl.u32 %v1198, 7
    %v1200 = vsub.s32 0, %v1199
    %v1201 = vrot.slane %v1196, %v1200
    %v1203 = vadd.f32 %v1192, %v1201
    %v1204 = vadd.f32 %v1193, %v1201
    %v1205 = vadd.f32 %v1194, %v1201
    %v1206 = vadd.f32 %v1195, %v1201
    %v1207 = vmax.f32 %v1203, 0.0
    %v1208 = vmax.f32 %v1204, 0.0
    %v1209 = vmax.f32 %v1205, 0.0
    %v1210 = vmax.f32 %v1206, 0.0
    %v1215 = vcombine.high %v1207, %v1207
    %v1216 = vcombine.high %v1208, %v1208
    %v1217 = vcombine.high %v1209, %v1209
    %v1218 = vcombine.high %v1210, %v1210
    %1223 = vst.msk [vmem:[%s21 + $0x1] sm:$0xf] %vm47, %v1207
    %1224 = vst.msk [vmem:[%s21 + $0x9] sm:$0xf] %vm47, %v1215
    %1225 = vst.msk [vmem:[%s21 + $0x11] sm:$0xf] %vm47, %v1208
    %1226 = vst.msk [vmem:[%s21 + $0x19] sm:$0xf] %vm47, %v1216
    %1227 = vst.msk [vmem:[%s21 + $0x31] sm:$0xf] %vm47, %v1209
    %1228 = vst.msk [vmem:[%s21 + $0x39] sm:$0xf] %vm47, %v1217
    %1229 = vst.msk [vmem:[%s21 + $0x41] sm:$0xf] %vm47, %v1210
    %1230 = vst.msk [vmem:[%s21 + $0x49] sm:$0xf] %vm47, %v1218
    %v1231 = vld [vmem:[#allocation2] sm:$0xf]
    %v1232 = vld [vmem:[#allocation2 + $0x8] sm:$0xf]
    %v1233 = vld [vmem:[#allocation2 + $0x10] sm:$0xf]
    %v1234 = vld [vmem:[#allocation2 + $0x18] sm:$0xf]
    %v1235 = vld [vmem:[#allocation2 + $0x30] sm:$0xf]
    %v1236 = vld [vmem:[#allocation2 + $0x38] sm:$0xf]
    %v1237 = vld [vmem:[#allocation2 + $0x40] sm:$0xf]
    %v1238 = vld [vmem:[#allocation2 + $0x48] sm:$0xf]
    %s1239 = scalar_lea.vmem %s1, 72
    %v1240 = vld [vmem:[%s1239] sm:$0xff]
    %v1249 = vcombine.low %v1231, %v1232
    %v1250 = vcombine.low %v1233, %v1234
    %v1251 = vcombine.low %v1235, %v1236
    %v1252 = vcombine.low %v1237, %v1238
    %v1253 = vsel %vm77, %v1249, 0
    %v1255 = vsel %vm77, %v1250, 0
    %v1257 = vsel %vm77, %v1251, 0
    %v1259 = vsel %vm77, %v1252, 0
    %1261 = vmatprep.subr.mxu0 0.0
    %1262 = vmatpush1.msra.mxu0 0.0
    %1263 = vmatprep.subr.mxu0 0.0
    %1264 = vmatpush1.msra.mxu0 0.0
    %1265 = vmatprep.subr.mxu0 0.0
    %1266 = vmatpush1.msra.mxu0 0.0
    %1267 = vmatprep.subr.mxu0 0.0
    %1268 = vmatpush1.msra.mxu0 0.0
    %1269 = vmatprep.subr.mxu0 0.0
    %1270 = vmatpush1.msra.mxu0 0.0
    %1271 = vmatprep.subr.mxu0 0.0
    %1272 = vmatpush1.msra.mxu0 0.0
    %1273 = vmatprep.subr.mxu0 0.0
    %1274 = vmatpush1.msra.mxu0 0.0
    %1275 = vmatprep.subr.mxu0 0.0
    %1276 = vmatpush1.msra.mxu0 0.0
    %1277 = vmatprep.subr.mxu0 0.0
    %1278 = vmatpush1.msra.mxu0 0.0
    %1279 = vmatprep.subr.mxu0 0.0
    %1280 = vmatpush1.msra.mxu0 0.0
    %1281 = vmatprep.subr.mxu0 0.0
    %1282 = vmatpush1.msra.mxu0 0.0
    %1283 = vmatprep.subr.mxu0 0.0
    %1284 = vmatpush1.msra.mxu0 0.0
    %1285 = vmatprep.subr.mxu0 0.0
    %1286 = vmatpush1.msra.mxu0 0.0
    %1287 = vmatprep.subr.mxu0 0.0
    %1288 = vmatpush1.msra.mxu0 0.0
    %1289 = vmatprep.subr.mxu0 0.0
    %1290 = vmatpush1.msra.mxu0 0.0
    %1291 = vmatprep.subr.mxu0 0.0
    %1292 = vmatpush1.msra.mxu0 %v1240
    %1293 = vmatprep.subr.mxu0 0.0
    %1294 = vmatpush2.msra.mxu0 0.0
    %1295 = vmatprep.subr.mxu0 0.0
    %1296 = vmatpush2.msra.mxu0 0.0
    %1297 = vmatprep.subr.mxu0 0.0
    %1298 = vmatpush2.msra.mxu0 0.0
    %1299 = vmatprep.subr.mxu0 0.0
    %1300 = vmatpush2.msra.mxu0 0.0
    %1301 = vmatprep.subr.mxu0 0.0
    %1302 = vmatpush2.msra.mxu0 0.0
    %1303 = vmatprep.subr.mxu0 0.0
    %1304 = vmatpush2.msra.mxu0 0.0
    %1305 = vmatprep.subr.mxu0 0.0
    %1306 = vmatpush2.msra.mxu0 0.0
    %1307 = vmatprep.subr.mxu0 0.0
    %1308 = vmatpush2.msra.mxu0 0.0
    %1309 = vmatprep.subr.mxu0 0.0
    %1310 = vmatpush2.msra.mxu0 0.0
    %1311 = vmatprep.subr.mxu0 0.0
    %1312 = vmatpush2.msra.mxu0 0.0
    %1313 = vmatprep.subr.mxu0 0.0
    %1314 = vmatpush2.msra.mxu0 0.0
    %1315 = vmatprep.subr.mxu0 0.0
    %1316 = vmatpush2.msra.mxu0 0.0
    %1317 = vmatprep.subr.mxu0 0.0
    %1318 = vmatpush2.msra.mxu0 0.0
    %1319 = vmatprep.subr.mxu0 0.0
    %1320 = vmatpush2.msra.mxu0 0.0
    %1321 = vmatprep.subr.mxu0 0.0
    %1322 = vmatpush2.msra.mxu0 0.0
    %1323 = vmatprep.subr.mxu0 0.0
    %1324 = vmatpush2.msra.mxu0 0.0
    %1325 = vmatprep.mubr.f32.mxu0 0.0
    %1326 = vmatmul.mubr.f32.gmra.mxu0 %v1253
    %v1327 = vpop.f32.mrf.mxu0
    %v1328 = vadd.f32 0.0, %v1327
    %v1329 = vpop.f32.mrf.mxu0
    %1330 = vmatprep.mubr.f32.mxu0 0.0
    %1331 = vmatmul.mubr.f32.gmra.mxu0 %v1255
    %v1332 = vpop.f32.mrf.mxu0
    %v1333 = vadd.f32 0.0, %v1332
    %v1334 = vpop.f32.mrf.mxu0
    %1335 = vmatprep.mubr.f32.mxu0 0.0
    %1336 = vmatmul.mubr.f32.gmra.mxu0 %v1257
    %v1337 = vpop.f32.mrf.mxu0
    %v1338 = vadd.f32 0.0, %v1337
    %v1339 = vpop.f32.mrf.mxu0
    %1340 = vmatprep.mubr.f32.mxu0 0.0
    %1341 = vmatmul.mubr.f32.gmra.mxu0 %v1259
    %v1342 = vpop.f32.mrf.mxu0
    %v1343 = vadd.f32 0.0, %v1342
    %v1344 = vpop.f32.mrf.mxu0
    %1345 = vdwg.mxu0
    %1346 = vst.msk [vmem:[#allocation3] sm:$0xff] %vm77, %v1328
    %1347 = vst.msk [vmem:[#allocation3 + $0x8] sm:$0xff] %vm77, %v1333
    %1348 = vst.msk [vmem:[#allocation3 + $0x10] sm:$0xff] %vm77, %v1338
    %1349 = vst.msk [vmem:[#allocation3 + $0x18] sm:$0xff] %vm77, %v1343
    %v1350 = vld [vmem:[#allocation2 + $0x1] sm:$0xf]
    %v1351 = vld [vmem:[#allocation2 + $0x9] sm:$0xf]
    %v1352 = vld [vmem:[#allocation2 + $0x11] sm:$0xf]
    %v1353 = vld [vmem:[#allocation2 + $0x19] sm:$0xf]
    %v1354 = vld [vmem:[#allocation2 + $0x31] sm:$0xf]
    %v1355 = vld [vmem:[#allocation2 + $0x39] sm:$0xf]
    %v1356 = vld [vmem:[#allocation2 + $0x41] sm:$0xf]
    %v1357 = vld [vmem:[#allocation2 + $0x49] sm:$0xf]
    %s1358 = scalar_lea.vmem %s1, 80
    %v1359 = vld [vmem:[%s1358] sm:$0xff]
    %v1368 = vcombine.low %v1350, %v1351
    %v1369 = vcombine.low %v1352, %v1353
    %v1370 = vcombine.low %v1354, %v1355
    %v1371 = vcombine.low %v1356, %v1357
    %v1372 = vsel %vm77, %v1368, 0
    %v1374 = vsel %vm77, %v1369, 0
    %v1376 = vsel %vm77, %v1370, 0
    %v1378 = vsel %vm77, %v1371, 0
    %1380 = vmatprep.subr.mxu0 0.0
    %1381 = vmatpush1.msra.mxu0 0.0
    %1382 = vmatprep.subr.mxu0 0.0
    %1383 = vmatpush1.msra.mxu0 0.0
    %1384 = vmatprep.subr.mxu0 0.0
    %1385 = vmatpush1.msra.mxu0 0.0
    %1386 = vmatprep.subr.mxu0 0.0
    %1387 = vmatpush1.msra.mxu0 0.0
    %1388 = vmatprep.subr.mxu0 0.0
    %1389 = vmatpush1.msra.mxu0 0.0
    %1390 = vmatprep.subr.mxu0 0.0
    %1391 = vmatpush1.msra.mxu0 0.0
    %1392 = vmatprep.subr.mxu0 0.0
    %1393 = vmatpush1.msra.mxu0 0.0
    %1394 = vmatprep.subr.mxu0 0.0
    %1395 = vmatpush1.msra.mxu0 0.0
    %1396 = vmatprep.subr.mxu0 0.0
    %1397 = vmatpush1.msra.mxu0 0.0
    %1398 = vmatprep.subr.mxu0 0.0
    %1399 = vmatpush1.msra.mxu0 0.0
    %1400 = vmatprep.subr.mxu0 0.0
    %1401 = vmatpush1.msra.mxu0 0.0
    %1402 = vmatprep.subr.mxu0 0.0
    %1403 = vmatpush1.msra.mxu0 0.0
    %1404 = vmatprep.subr.mxu0 0.0
    %1405 = vmatpush1.msra.mxu0 0.0
    %1406 = vmatprep.subr.mxu0 0.0
    %1407 = vmatpush1.msra.mxu0 0.0
    %1408 = vmatprep.subr.mxu0 0.0
    %1409 = vmatpush1.msra.mxu0 0.0
    %1410 = vmatprep.subr.mxu0 0.0
    %1411 = vmatpush1.msra.mxu0 %v1359
    %1412 = vmatprep.subr.mxu0 0.0
    %1413 = vmatpush2.msra.mxu0 0.0
    %1414 = vmatprep.subr.mxu0 0.0
    %1415 = vmatpush2.msra.mxu0 0.0
    %1416 = vmatprep.subr.mxu0 0.0
    %1417 = vmatpush2.msra.mxu0 0.0
    %1418 = vmatprep.subr.mxu0 0.0
    %1419 = vmatpush2.msra.mxu0 0.0
    %1420 = vmatprep.subr.mxu0 0.0
    %1421 = vmatpush2.msra.mxu0 0.0
    %1422 = vmatprep.subr.mxu0 0.0
    %1423 = vmatpush2.msra.mxu0 0.0
    %1424 = vmatprep.subr.mxu0 0.0
    %1425 = vmatpush2.msra.mxu0 0.0
    %1426 = vmatprep.subr.mxu0 0.0
    %1427 = vmatpush2.msra.mxu0 0.0
    %1428 = vmatprep.subr.mxu0 0.0
    %1429 = vmatpush2.msra.mxu0 0.0
    %1430 = vmatprep.subr.mxu0 0.0
    %1431 = vmatpush2.msra.mxu0 0.0
    %1432 = vmatprep.subr.mxu0 0.0
    %1433 = vmatpush2.msra.mxu0 0.0
    %1434 = vmatprep.subr.mxu0 0.0
    %1435 = vmatpush2.msra.mxu0 0.0
    %1436 = vmatprep.subr.mxu0 0.0
    %1437 = vmatpush2.msra.mxu0 0.0
    %1438 = vmatprep.subr.mxu0 0.0
    %1439 = vmatpush2.msra.mxu0 0.0
    %1440 = vmatprep.subr.mxu0 0.0
    %1441 = vmatpush2.msra.mxu0 0.0
    %1442 = vmatprep.subr.mxu0 0.0
    %1443 = vmatpush2.msra.mxu0 0.0
    %1444 = vmatprep.mubr.f32.mxu0 0.0
    %1445 = vmatmul.mubr.f32.gmra.mxu0 %v1372
    %v1446 = vpop.f32.mrf.mxu0
    %v1447 = vadd.f32 0.0, %v1446
    %v1448 = vpop.f32.mrf.mxu0
    %1449 = vmatprep.mubr.f32.mxu0 0.0
    %1450 = vmatmul.mubr.f32.gmra.mxu0 %v1374
    %v1451 = vpop.f32.mrf.mxu0
    %v1452 = vadd.f32 0.0, %v1451
    %v1453 = vpop.f32.mrf.mxu0
    %1454 = vmatprep.mubr.f32.mxu0 0.0
    %1455 = vmatmul.mubr.f32.gmra.mxu0 %v1376
    %v1456 = vpop.f32.mrf.mxu0
    %v1457 = vadd.f32 0.0, %v1456
    %v1458 = vpop.f32.mrf.mxu0
    %1459 = vmatprep.mubr.f32.mxu0 0.0
    %1460 = vmatmul.mubr.f32.gmra.mxu0 %v1378
    %v1461 = vpop.f32.mrf.mxu0
    %v1462 = vadd.f32 0.0, %v1461
    %v1463 = vpop.f32.mrf.mxu0
    %1464 = vdwg.mxu0
    %v1465 = vld [vmem:[#allocation3] sm:$0xff]
    %v1466 = vld [vmem:[#allocation3 + $0x8] sm:$0xff]
    %v1467 = vld [vmem:[#allocation3 + $0x10] sm:$0xff]
    %v1468 = vld [vmem:[#allocation3 + $0x18] sm:$0xff]
    %v1469 = vadd.f32 %v1465, %v1447
    %v1470 = vadd.f32 %v1466, %v1452
    %v1471 = vadd.f32 %v1467, %v1457
    %v1472 = vadd.f32 %v1468, %v1462
    %1473 = vst.msk [vmem:[#allocation3] sm:$0xff] %vm77, %v1469
    %1474 = vst.msk [vmem:[#allocation3 + $0x8] sm:$0xff] %vm77, %v1470
    %1475 = vst.msk [vmem:[#allocation3 + $0x10] sm:$0xff] %vm77, %v1471
    %1476 = vst.msk [vmem:[#allocation3 + $0x18] sm:$0xff] %vm77, %v1472
    %v1477 = vld [vmem:[#allocation2 + $0x2] sm:$0xf]
    %v1478 = vld [vmem:[#allocation2 + $0xa] sm:$0xf]
    %v1479 = vld [vmem:[#allocation2 + $0x12] sm:$0xf]
    %v1480 = vld [vmem:[#allocation2 + $0x1a] sm:$0xf]
    %v1481 = vld [vmem:[#allocation2 + $0x32] sm:$0xf]
    %v1482 = vld [vmem:[#allocation2 + $0x3a] sm:$0xf]
    %v1483 = vld [vmem:[#allocation2 + $0x42] sm:$0xf]
    %v1484 = vld [vmem:[#allocation2 + $0x4a] sm:$0xf]
    %s1485 = scalar_lea.vmem %s1, 88
    %v1486 = vld [vmem:[%s1485] sm:$0xff]
    %v1495 = vcombine.low %v1477, %v1478
    %v1496 = vcombine.low %v1479, %v1480
    %v1497 = vcombine.low %v1481, %v1482
    %v1498 = vcombine.low %v1483, %v1484
    %v1499 = vsel %vm77, %v1495, 0
    %v1501 = vsel %vm77, %v1496, 0
    %v1503 = vsel %vm77, %v1497, 0
    %v1505 = vsel %vm77, %v1498, 0
    %1507 = vmatprep.subr.mxu0 0.0
    %1508 = vmatpush1.msra.mxu0 0.0
    %1509 = vmatprep.subr.mxu0 0.0
    %1510 = vmatpush1.msra.mxu0 0.0
    %1511 = vmatprep.subr.mxu0 0.0
    %1512 = vmatpush1.msra.mxu0 0.0
    %1513 = vmatprep.subr.mxu0 0.0
    %1514 = vmatpush1.msra.mxu0 0.0
    %1515 = vmatprep.subr.mxu0 0.0
    %1516 = vmatpush1.msra.mxu0 0.0
    %1517 = vmatprep.subr.mxu0 0.0
    %1518 = vmatpush1.msra.mxu0 0.0
    %1519 = vmatprep.subr.mxu0 0.0
    %1520 = vmatpush1.msra.mxu0 0.0
    %1521 = vmatprep.subr.mxu0 0.0
    %1522 = vmatpush1.msra.mxu0 0.0
    %1523 = vmatprep.subr.mxu0 0.0
    %1524 = vmatpush1.msra.mxu0 0.0
    %1525 = vmatprep.subr.mxu0 0.0
    %1526 = vmatpush1.msra.mxu0 0.0
    %1527 = vmatprep.subr.mxu0 0.0
    %1528 = vmatpush1.msra.mxu0 0.0
    %1529 = vmatprep.subr.mxu0 0.0
    %1530 = vmatpush1.msra.mxu0 0.0
    %1531 = vmatprep.subr.mxu0 0.0
    %1532 = vmatpush1.msra.mxu0 0.0
    %1533 = vmatprep.subr.mxu0 0.0
    %1534 = vmatpush1.msra.mxu0 0.0
    %1535 = vmatprep.subr.mxu0 0.0
    %1536 = vmatpush1.msra.mxu0 0.0
    %1537 = vmatprep.subr.mxu0 0.0
    %1538 = vmatpush1.msra.mxu0 %v1486
    %1539 = vmatprep.subr.mxu0 0.0
    %1540 = vmatpush2.msra.mxu0 0.0
    %1541 = vmatprep.subr.mxu0 0.0
    %1542 = vmatpush2.msra.mxu0 0.0
    %1543 = vmatprep.subr.mxu0 0.0
    %1544 = vmatpush2.msra.mxu0 0.0
    %1545 = vmatprep.subr.mxu0 0.0
    %1546 = vmatpush2.msra.mxu0 0.0
    %1547 = vmatprep.subr.mxu0 0.0
    %1548 = vmatpush2.msra.mxu0 0.0
    %1549 = vmatprep.subr.mxu0 0.0
    %1550 = vmatpush2.msra.mxu0 0.0
    %1551 = vmatprep.subr.mxu0 0.0
    %1552 = vmatpush2.msra.mxu0 0.0
    %1553 = vmatprep.subr.mxu0 0.0
    %1554 = vmatpush2.msra.mxu0 0.0
    %1555 = vmatprep.subr.mxu0 0.0
    %1556 = vmatpush2.msra.mxu0 0.0
    %1557 = vmatprep.subr.mxu0 0.0
    %1558 = vmatpush2.msra.mxu0 0.0
    %1559 = vmatprep.subr.mxu0 0.0
    %1560 = vmatpush2.msra.mxu0 0.0
    %1561 = vmatprep.subr.mxu0 0.0
    %1562 = vmatpush2.msra.mxu0 0.0
    %1563 = vmatprep.subr.mxu0 0.0
    %1564 = vmatpush2.msra.mxu0 0.0
    %1565 = vmatprep.subr.mxu0 0.0
    %1566 = vmatpush2.msra.mxu0 0.0
    %1567 = vmatprep.subr.mxu0 0.0
    %1568 = vmatpush2.msra.mxu0 0.0
    %1569 = vmatprep.subr.mxu0 0.0
    %1570 = vmatpush2.msra.mxu0 0.0
    %1571 = vmatprep.mubr.f32.mxu0 0.0
    %1572 = vmatmul.mubr.f32.gmra.mxu0 %v1499
    %v1573 = vpop.f32.mrf.mxu0
    %v1574 = vadd.f32 0.0, %v1573
    %v1575 = vpop.f32.mrf.mxu0
    %1576 = vmatprep.mubr.f32.mxu0 0.0
    %1577 = vmatmul.mubr.f32.gmra.mxu0 %v1501
    %v1578 = vpop.f32.mrf.mxu0
    %v1579 = vadd.f32 0.0, %v1578
    %v1580 = vpop.f32.mrf.mxu0
    %1581 = vmatprep.mubr.f32.mxu0 0.0
    %1582 = vmatmul.mubr.f32.gmra.mxu0 %v1503
    %v1583 = vpop.f32.mrf.mxu0
    %v1584 = vadd.f32 0.0, %v1583
    %v1585 = vpop.f32.mrf.mxu0
    %1586 = vmatprep.mubr.f32.mxu0 0.0
    %1587 = vmatmul.mubr.f32.gmra.mxu0 %v1505
    %v1588 = vpop.f32.mrf.mxu0
    %v1589 = vadd.f32 0.0, %v1588
    %v1590 = vpop.f32.mrf.mxu0
    %1591 = vdwg.mxu0
    %v1592 = vld [vmem:[#allocation3] sm:$0xff]
    %v1593 = vld [vmem:[#allocation3 + $0x8] sm:$0xff]
    %v1594 = vld [vmem:[#allocation3 + $0x10] sm:$0xff]
    %v1595 = vld [vmem:[#allocation3 + $0x18] sm:$0xff]
    %v1596 = vadd.f32 %v1592, %v1574
    %v1597 = vadd.f32 %v1593, %v1579
    %v1598 = vadd.f32 %v1594, %v1584
    %v1599 = vadd.f32 %v1595, %v1589
    %1600 = vst.msk [vmem:[#allocation3] sm:$0xff] %vm77, %v1596
    %1601 = vst.msk [vmem:[#allocation3 + $0x8] sm:$0xff] %vm77, %v1597
    %1602 = vst.msk [vmem:[#allocation3 + $0x10] sm:$0xff] %vm77, %v1598
    %1603 = vst.msk [vmem:[#allocation3 + $0x18] sm:$0xff] %vm77, %v1599
    %v1604 = vld [vmem:[%s21] sm:$0xf]
    %v1605 = vld [vmem:[%s21 + $0x8] sm:$0xf]
    %v1606 = vld [vmem:[%s21 + $0x10] sm:$0xf]
    %v1607 = vld [vmem:[%s21 + $0x18] sm:$0xf]
    %v1608 = vld [vmem:[%s21 + $0x30] sm:$0xf]
    %v1609 = vld [vmem:[%s21 + $0x38] sm:$0xf]
    %v1610 = vld [vmem:[%s21 + $0x40] sm:$0xf]
    %v1611 = vld [vmem:[%s21 + $0x48] sm:$0xf]
    %s1612 = scalar_lea.vmem %s1, 96
    %v1613 = vld [vmem:[%s1612] sm:$0xff]
    %v1622 = vcombine.low %v1604, %v1605
    %v1623 = vcombine.low %v1606, %v1607
    %v1624 = vcombine.low %v1608, %v1609
    %v1625 = vcombine.low %v1610, %v1611
    %v1626 = vsel %vm77, %v1622, 0
    %v1628 = vsel %vm77, %v1623, 0
    %v1630 = vsel %vm77, %v1624, 0
    %v1632 = vsel %vm77, %v1625, 0
    %1634 = vmatprep.subr.mxu0 0.0
    %1635 = vmatpush1.msra.mxu0 0.0
    %1636 = vmatprep.subr.mxu0 0.0
    %1637 = vmatpush1.msra.mxu0 0.0
    %1638 = vmatprep.subr.mxu0 0.0
    %1639 = vmatpush1.msra.mxu0 0.0
    %1640 = vmatprep.subr.mxu0 0.0
    %1641 = vmatpush1.msra.mxu0 0.0
    %1642 = vmatprep.subr.mxu0 0.0
    %1643 = vmatpush1.msra.mxu0 0.0
    %1644 = vmatprep.subr.mxu0 0.0
    %1645 = vmatpush1.msra.mxu0 0.0
    %1646 = vmatprep.subr.mxu0 0.0
    %1647 = vmatpush1.msra.mxu0 0.0
    %1648 = vmatprep.subr.mxu0 0.0
    %1649 = vmatpush1.msra.mxu0 0.0
    %1650 = vmatprep.subr.mxu0 0.0
    %1651 = vmatpush1.msra.mxu0 0.0
    %1652 = vmatprep.subr.mxu0 0.0
    %1653 = vmatpush1.msra.mxu0 0.0
    %1654 = vmatprep.subr.mxu0 0.0
    %1655 = vmatpush1.msra.mxu0 0.0
    %1656 = vmatprep.subr.mxu0 0.0
    %1657 = vmatpush1.msra.mxu0 0.0
    %1658 = vmatprep.subr.mxu0 0.0
    %1659 = vmatpush1.msra.mxu0 0.0
    %1660 = vmatprep.subr.mxu0 0.0
    %1661 = vmatpush1.msra.mxu0 0.0
    %1662 = vmatprep.subr.mxu0 0.0
    %1663 = vmatpush1.msra.mxu0 0.0
    %1664 = vmatprep.subr.mxu0 0.0
    %1665 = vmatpush1.msra.mxu0 %v1613
    %1666 = vmatprep.subr.mxu0 0.0
    %1667 = vmatpush2.msra.mxu0 0.0
    %1668 = vmatprep.subr.mxu0 0.0
    %1669 = vmatpush2.msra.mxu0 0.0
    %1670 = vmatprep.subr.mxu0 0.0
    %1671 = vmatpush2.msra.mxu0 0.0
    %1672 = vmatprep.subr.mxu0 0.0
    %1673 = vmatpush2.msra.mxu0 0.0
    %1674 = vmatprep.subr.mxu0 0.0
    %1675 = vmatpush2.msra.mxu0 0.0
    %1676 = vmatprep.subr.mxu0 0.0
    %1677 = vmatpush2.msra.mxu0 0.0
    %1678 = vmatprep.subr.mxu0 0.0
    %1679 = vmatpush2.msra.mxu0 0.0
    %1680 = vmatprep.subr.mxu0 0.0
    %1681 = vmatpush2.msra.mxu0 0.0
    %1682 = vmatprep.subr.mxu0 0.0
    %1683 = vmatpush2.msra.mxu0 0.0
    %1684 = vmatprep.subr.mxu0 0.0
    %1685 = vmatpush2.msra.mxu0 0.0
    %1686 = vmatprep.subr.mxu0 0.0
    %1687 = vmatpush2.msra.mxu0 0.0
    %1688 = vmatprep.subr.mxu0 0.0
    %1689 = vmatpush2.msra.mxu0 0.0
    %1690 = vmatprep.subr.mxu0 0.0
    %1691 = vmatpush2.msra.mxu0 0.0
    %1692 = vmatprep.subr.mxu0 0.0
    %1693 = vmatpush2.msra.mxu0 0.0
    %1694 = vmatprep.subr.mxu0 0.0
    %1695 = vmatpush2.msra.mxu0 0.0
    %1696 = vmatprep.subr.mxu0 0.0
    %1697 = vmatpush2.msra.mxu0 0.0
    %1698 = vmatprep.mubr.f32.mxu0 0.0
    %1699 = vmatmul.mubr.f32.gmra.mxu0 %v1626
    %v1700 = vpop.f32.mrf.mxu0
    %v1701 = vadd.f32 0.0, %v1700
    %v1702 = vpop.f32.mrf.mxu0
    %1703 = vmatprep.mubr.f32.mxu0 0.0
    %1704 = vmatmul.mubr.f32.gmra.mxu0 %v1628
    %v1705 = vpop.f32.mrf.mxu0
    %v1706 = vadd.f32 0.0, %v1705
    %v1707 = vpop.f32.mrf.mxu0
    %1708 = vmatprep.mubr.f32.mxu0 0.0
    %1709 = vmatmul.mubr.f32.gmra.mxu0 %v1630
    %v1710 = vpop.f32.mrf.mxu0
    %v1711 = vadd.f32 0.0, %v1710
    %v1712 = vpop.f32.mrf.mxu0
    %1713 = vmatprep.mubr.f32.mxu0 0.0
    %1714 = vmatmul.mubr.f32.gmra.mxu0 %v1632
    %v1715 = vpop.f32.mrf.mxu0
    %v1716 = vadd.f32 0.0, %v1715
    %v1717 = vpop.f32.mrf.mxu0
    %1718 = vdwg.mxu0
    %v1719 = vld [vmem:[#allocation3] sm:$0xff]
    %v1720 = vld [vmem:[#allocation3 + $0x8] sm:$0xff]
    %v1721 = vld [vmem:[#allocation3 + $0x10] sm:$0xff]
    %v1722 = vld [vmem:[#allocation3 + $0x18] sm:$0xff]
    %v1723 = vadd.f32 %v1719, %v1701
    %v1724 = vadd.f32 %v1720, %v1706
    %v1725 = vadd.f32 %v1721, %v1711
    %v1726 = vadd.f32 %v1722, %v1716
    %1727 = vst.msk [vmem:[#allocation3] sm:$0xff] %vm77, %v1723
    %1728 = vst.msk [vmem:[#allocation3 + $0x8] sm:$0xff] %vm77, %v1724
    %1729 = vst.msk [vmem:[#allocation3 + $0x10] sm:$0xff] %vm77, %v1725
    %1730 = vst.msk [vmem:[#allocation3 + $0x18] sm:$0xff] %vm77, %v1726
    %v1731 = vld [vmem:[%s21 + $0x1] sm:$0xf]
    %v1732 = vld [vmem:[%s21 + $0x9] sm:$0xf]
    %v1733 = vld [vmem:[%s21 + $0x11] sm:$0xf]
    %v1734 = vld [vmem:[%s21 + $0x19] sm:$0xf]
    %v1735 = vld [vmem:[%s21 + $0x31] sm:$0xf]
    %v1736 = vld [vmem:[%s21 + $0x39] sm:$0xf]
    %v1737 = vld [vmem:[%s21 + $0x41] sm:$0xf]
    %v1738 = vld [vmem:[%s21 + $0x49] sm:$0xf]
    %s1739 = scalar_lea.vmem %s1, 104
    %v1740 = vld [vmem:[%s1739] sm:$0xff]
    %v1749 = vcombine.low %v1731, %v1732
    %v1750 = vcombine.low %v1733, %v1734
    %v1751 = vcombine.low %v1735, %v1736
    %v1752 = vcombine.low %v1737, %v1738
    %v1753 = vsel %vm77, %v1749, 0
    %v1755 = vsel %vm77, %v1750, 0
    %v1757 = vsel %vm77, %v1751, 0
    %v1759 = vsel %vm77, %v1752, 0
    %1761 = vmatprep.subr.mxu0 0.0
    %1762 = vmatpush1.msra.mxu0 0.0
    %1763 = vmatprep.subr.mxu0 0.0
    %1764 = vmatpush1.msra.mxu0 0.0
    %1765 = vmatprep.subr.mxu0 0.0
    %1766 = vmatpush1.msra.mxu0 0.0
    %1767 = vmatprep.subr.mxu0 0.0
    %1768 = vmatpush1.msra.mxu0 0.0
    %1769 = vmatprep.subr.mxu0 0.0
    %1770 = vmatpush1.msra.mxu0 0.0
    %1771 = vmatprep.subr.mxu0 0.0
    %1772 = vmatpush1.msra.mxu0 0.0
    %1773 = vmatprep.subr.mxu0 0.0
    %1774 = vmatpush1.msra.mxu0 0.0
    %1775 = vmatprep.subr.mxu0 0.0
    %1776 = vmatpush1.msra.mxu0 0.0
    %1777 = vmatprep.subr.mxu0 0.0
    %1778 = vmatpush1.msra.mxu0 0.0
    %1779 = vmatprep.subr.mxu0 0.0
    %1780 = vmatpush1.msra.mxu0 0.0
    %1781 = vmatprep.subr.mxu0 0.0
    %1782 = vmatpush1.msra.mxu0 0.0
    %1783 = vmatprep.subr.mxu0 0.0
    %1784 = vmatpush1.msra.mxu0 0.0
    %1785 = vmatprep.subr.mxu0 0.0
    %1786 = vmatpush1.msra.mxu0 0.0
    %1787 = vmatprep.subr.mxu0 0.0
    %1788 = vmatpush1.msra.mxu0 0.0
    %1789 = vmatprep.subr.mxu0 0.0
    %1790 = vmatpush1.msra.mxu0 0.0
    %1791 = vmatprep.subr.mxu0 0.0
    %1792 = vmatpush1.msra.mxu0 %v1740
    %1793 = vmatprep.subr.mxu0 0.0
    %1794 = vmatpush2.msra.mxu0 0.0
    %1795 = vmatprep.subr.mxu0 0.0
    %1796 = vmatpush2.msra.mxu0 0.0
    %1797 = vmatprep.subr.mxu0 0.0
    %1798 = vmatpush2.msra.mxu0 0.0
    %1799 = vmatprep.subr.mxu0 0.0
    %1800 = vmatpush2.msra.mxu0 0.0
    %1801 = vmatprep.subr.mxu0 0.0
    %1802 = vmatpush2.msra.mxu0 0.0
    %1803 = vmatprep.subr.mxu0 0.0
    %1804 = vmatpush2.msra.mxu0 0.0
    %1805 = vmatprep.subr.mxu0 0.0
    %1806 = vmatpush2.msra.mxu0 0.0
    %1807 = vmatprep.subr.mxu0 0.0
    %1808 = vmatpush2.msra.mxu0 0.0
    %1809 = vmatprep.subr.mxu0 0.0
    %1810 = vmatpush2.msra.mxu0 0.0
    %1811 = vmatprep.subr.mxu0 0.0
    %1812 = vmatpush2.msra.mxu0 0.0
    %1813 = vmatprep.subr.mxu0 0.0
    %1814 = vmatpush2.msra.mxu0 0.0
    %1815 = vmatprep.subr.mxu0 0.0
    %1816 = vmatpush2.msra.mxu0 0.0
    %1817 = vmatprep.subr.mxu0 0.0
    %1818 = vmatpush2.msra.mxu0 0.0
    %1819 = vmatprep.subr.mxu0 0.0
    %1820 = vmatpush2.msra.mxu0 0.0
    %1821 = vmatprep.subr.mxu0 0.0
    %1822 = vmatpush2.msra.mxu0 0.0
    %1823 = vmatprep.subr.mxu0 0.0
    %1824 = vmatpush2.msra.mxu0 0.0
    %1825 = vmatprep.mubr.f32.mxu0 0.0
    %1826 = vmatmul.mubr.f32.gmra.mxu0 %v1753
    %v1827 = vpop.f32.mrf.mxu0
    %v1828 = vadd.f32 0.0, %v1827
    %v1829 = vpop.f32.mrf.mxu0
    %1830 = vmatprep.mubr.f32.mxu0 0.0
    %1831 = vmatmul.mubr.f32.gmra.mxu0 %v1755
    %v1832 = vpop.f32.mrf.mxu0
    %v1833 = vadd.f32 0.0, %v1832
    %v1834 = vpop.f32.mrf.mxu0
    %1835 = vmatprep.mubr.f32.mxu0 0.0
    %1836 = vmatmul.mubr.f32.gmra.mxu0 %v1757
    %v1837 = vpop.f32.mrf.mxu0
    %v1838 = vadd.f32 0.0, %v1837
    %v1839 = vpop.f32.mrf.mxu0
    %1840 = vmatprep.mubr.f32.mxu0 0.0
    %1841 = vmatmul.mubr.f32.gmra.mxu0 %v1759
    %v1842 = vpop.f32.mrf.mxu0
    %v1843 = vadd.f32 0.0, %v1842
    %v1844 = vpop.f32.mrf.mxu0
    %1845 = vdwg.mxu0
    %v1846 = vld [vmem:[#allocation3] sm:$0xff]
    %v1847 = vld [vmem:[#allocation3 + $0x8] sm:$0xff]
    %v1848 = vld [vmem:[#allocation3 + $0x10] sm:$0xff]
    %v1849 = vld [vmem:[#allocation3 + $0x18] sm:$0xff]
    %v1850 = vadd.f32 %v1846, %v1828
    %v1851 = vadd.f32 %v1847, %v1833
    %v1852 = vadd.f32 %v1848, %v1838
    %v1853 = vadd.f32 %v1849, %v1843
    %1854 = vst.msk [vmem:[#allocation3] sm:$0xff] %vm77, %v1850
    %1855 = vst.msk [vmem:[#allocation3 + $0x8] sm:$0xff] %vm77, %v1851
    %1856 = vst.msk [vmem:[#allocation3 + $0x10] sm:$0xff] %vm77, %v1852
    %1857 = vst.msk [vmem:[#allocation3 + $0x18] sm:$0xff] %vm77, %v1853
    %v1858 = vld [vmem:[%s21 + $0x2] sm:$0xf]
    %v1859 = vld [vmem:[%s21 + $0xa] sm:$0xf]
    %v1860 = vld [vmem:[%s21 + $0x12] sm:$0xf]
    %v1861 = vld [vmem:[%s21 + $0x1a] sm:$0xf]
    %v1862 = vld [vmem:[%s21 + $0x32] sm:$0xf]
    %v1863 = vld [vmem:[%s21 + $0x3a] sm:$0xf]
    %v1864 = vld [vmem:[%s21 + $0x42] sm:$0xf]
    %v1865 = vld [vmem:[%s21 + $0x4a] sm:$0xf]
    %s1866 = scalar_lea.vmem %s1, 112
    %v1867 = vld [vmem:[%s1866] sm:$0xff]
    %v1876 = vcombine.low %v1858, %v1859
    %v1877 = vcombine.low %v1860, %v1861
    %v1878 = vcombine.low %v1862, %v1863
    %v1879 = vcombine.low %v1864, %v1865
    %v1880 = vsel %vm77, %v1876, 0
    %v1882 = vsel %vm77, %v1877, 0
    %v1884 = vsel %vm77, %v1878, 0
    %v1886 = vsel %vm77, %v1879, 0
    %1888 = vmatprep.subr.mxu0 0.0
    %1889 = vmatpush1.msra.mxu0 0.0
    %1890 = vmatprep.subr.mxu0 0.0
    %1891 = vmatpush1.msra.mxu0 0.0
    %1892 = vmatprep.subr.mxu0 0.0
    %1893 = vmatpush1.msra.mxu0 0.0
    %1894 = vmatprep.subr.mxu0 0.0
    %1895 = vmatpush1.msra.mxu0 0.0
    %1896 = vmatprep.subr.mxu0 0.0
    %1897 = vmatpush1.msra.mxu0 0.0
    %1898 = vmatprep.subr.mxu0 0.0
    %1899 = vmatpush1.msra.mxu0 0.0
    %1900 = vmatprep.subr.mxu0 0.0
    %1901 = vmatpush1.msra.mxu0 0.0
    %1902 = vmatprep.subr.mxu0 0.0
    %1903 = vmatpush1.msra.mxu0 0.0
    %1904 = vmatprep.subr.mxu0 0.0
    %1905 = vmatpush1.msra.mxu0 0.0
    %1906 = vmatprep.subr.mxu0 0.0
    %1907 = vmatpush1.msra.mxu0 0.0
    %1908 = vmatprep.subr.mxu0 0.0
    %1909 = vmatpush1.msra.mxu0 0.0
    %1910 = vmatprep.subr.mxu0 0.0
    %1911 = vmatpush1.msra.mxu0 0.0
    %1912 = vmatprep.subr.mxu0 0.0
    %1913 = vmatpush1.msra.mxu0 0.0
    %1914 = vmatprep.subr.mxu0 0.0
    %1915 = vmatpush1.msra.mxu0 0.0
    %1916 = vmatprep.subr.mxu0 0.0
    %1917 = vmatpush1.msra.mxu0 0.0
    %1918 = vmatprep.subr.mxu0 0.0
    %1919 = vmatpush1.msra.mxu0 %v1867
    %1920 = vmatprep.subr.mxu0 0.0
    %1921 = vmatpush2.msra.mxu0 0.0
    %1922 = vmatprep.subr.mxu0 0.0
    %1923 = vmatpush2.msra.mxu0 0.0
    %1924 = vmatprep.subr.mxu0 0.0
    %1925 = vmatpush2.msra.mxu0 0.0
    %1926 = vmatprep.subr.mxu0 0.0
    %1927 = vmatpush2.msra.mxu0 0.0
    %1928 = vmatprep.subr.mxu0 0.0
    %1929 = vmatpush2.msra.mxu0 0.0
    %1930 = vmatprep.subr.mxu0 0.0
    %1931 = vmatpush2.msra.mxu0 0.0
    %1932 = vmatprep.subr.mxu0 0.0
    %1933 = vmatpush2.msra.mxu0 0.0
    %1934 = vmatprep.subr.mxu0 0.0
    %1935 = vmatpush2.msra.mxu0 0.0
    %1936 = vmatprep.subr.mxu0 0.0
    %1937 = vmatpush2.msra.mxu0 0.0
    %1938 = vmatprep.subr.mxu0 0.0
    %1939 = vmatpush2.msra.mxu0 0.0
    %1940 = vmatprep.subr.mxu0 0.0
    %1941 = vmatpush2.msra.mxu0 0.0
    %1942 = vmatprep.subr.mxu0 0.0
    %1943 = vmatpush2.msra.mxu0 0.0
    %1944 = vmatprep.subr.mxu0 0.0
    %1945 = vmatpush2.msra.mxu0 0.0
    %1946 = vmatprep.subr.mxu0 0.0
    %1947 = vmatpush2.msra.mxu0 0.0
    %1948 = vmatprep.subr.mxu0 0.0
    %1949 = vmatpush2.msra.mxu0 0.0
    %1950 = vmatprep.subr.mxu0 0.0
    %1951 = vmatpush2.msra.mxu0 0.0
    %1952 = vmatprep.mubr.f32.mxu0 0.0
    %1953 = vmatmul.mubr.f32.gmra.mxu0 %v1880
    %v1954 = vpop.f32.mrf.mxu0
    %v1955 = vadd.f32 0.0, %v1954
    %v1956 = vpop.f32.mrf.mxu0
    %1957 = vmatprep.mubr.f32.mxu0 0.0
    %1958 = vmatmul.mubr.f32.gmra.mxu0 %v1882
    %v1959 = vpop.f32.mrf.mxu0
    %v1960 = vadd.f32 0.0, %v1959
    %v1961 = vpop.f32.mrf.mxu0
    %1962 = vmatprep.mubr.f32.mxu0 0.0
    %1963 = vmatmul.mubr.f32.gmra.mxu0 %v1884
    %v1964 = vpop.f32.mrf.mxu0
    %v1965 = vadd.f32 0.0, %v1964
    %v1966 = vpop.f32.mrf.mxu0
    %1967 = vmatprep.mubr.f32.mxu0 0.0
    %1968 = vmatmul.mubr.f32.gmra.mxu0 %v1886
    %v1969 = vpop.f32.mrf.mxu0
    %v1970 = vadd.f32 0.0, %v1969
    %v1971 = vpop.f32.mrf.mxu0
    %1972 = vdwg.mxu0
    %v1973 = vld [vmem:[#allocation3] sm:$0xff]
    %v1974 = vld [vmem:[#allocation3 + $0x8] sm:$0xff]
    %v1975 = vld [vmem:[#allocation3 + $0x10] sm:$0xff]
    %v1976 = vld [vmem:[#allocation3 + $0x18] sm:$0xff]
    %v1977 = vadd.f32 %v1973, %v1955
    %v1978 = vadd.f32 %v1974, %v1960
    %v1979 = vadd.f32 %v1975, %v1965
    %v1980 = vadd.f32 %v1976, %v1970
    %1981 = vst.msk [vmem:[#allocation3] sm:$0xff] %vm77, %v1977
    %1982 = vst.msk [vmem:[#allocation3 + $0x8] sm:$0xff] %vm77, %v1978
    %1983 = vst.msk [vmem:[#allocation3 + $0x10] sm:$0xff] %vm77, %v1979
    %1984 = vst.msk [vmem:[#allocation3 + $0x18] sm:$0xff] %vm77, %v1980
    %v1985 = vld [vmem:[%s810] sm:$0xf]
    %v1986 = vld [vmem:[%s810 + $0x8] sm:$0xf]
    %v1987 = vld [vmem:[%s810 + $0x10] sm:$0xf]
    %v1988 = vld [vmem:[%s810 + $0x18] sm:$0xf]
    %v1989 = vld [vmem:[%s810 + $0x30] sm:$0xf]
    %v1990 = vld [vmem:[%s810 + $0x38] sm:$0xf]
    %v1991 = vld [vmem:[%s810 + $0x40] sm:$0xf]
    %v1992 = vld [vmem:[%s810 + $0x48] sm:$0xf]
    %s1993 = scalar_lea.vmem %s1, 120
    %v1994 = vld [vmem:[%s1993] sm:$0xff]
    %v2003 = vcombine.low %v1985, %v1986
    %v2004 = vcombine.low %v1987, %v1988
    %v2005 = vcombine.low %v1989, %v1990
    %v2006 = vcombine.low %v1991, %v1992
    %v2007 = vsel %vm77, %v2003, 0
    %v2009 = vsel %vm77, %v2004, 0
    %v2011 = vsel %vm77, %v2005, 0
    %v2013 = vsel %vm77, %v2006, 0
    %2015 = vmatprep.subr.mxu0 0.0
    %2016 = vmatpush1.msra.mxu0 0.0
    %2017 = vmatprep.subr.mxu0 0.0
    %2018 = vmatpush1.msra.mxu0 0.0
    %2019 = vmatprep.subr.mxu0 0.0
    %2020 = vmatpush1.msra.mxu0 0.0
    %2021 = vmatprep.subr.mxu0 0.0
    %2022 = vmatpush1.msra.mxu0 0.0
    %2023 = vmatprep.subr.mxu0 0.0
    %2024 = vmatpush1.msra.mxu0 0.0
    %2025 = vmatprep.subr.mxu0 0.0
    %2026 = vmatpush1.msra.mxu0 0.0
    %2027 = vmatprep.subr.mxu0 0.0
    %2028 = vmatpush1.msra.mxu0 0.0
    %2029 = vmatprep.subr.mxu0 0.0
    %2030 = vmatpush1.msra.mxu0 0.0
    %2031 = vmatprep.subr.mxu0 0.0
    %2032 = vmatpush1.msra.mxu0 0.0
    %2033 = vmatprep.subr.mxu0 0.0
    %2034 = vmatpush1.msra.mxu0 0.0
    %2035 = vmatprep.subr.mxu0 0.0
    %2036 = vmatpush1.msra.mxu0 0.0
    %2037 = vmatprep.subr.mxu0 0.0
    %2038 = vmatpush1.msra.mxu0 0.0
    %2039 = vmatprep.subr.mxu0 0.0
    %2040 = vmatpush1.msra.mxu0 0.0
    %2041 = vmatprep.subr.mxu0 0.0
    %2042 = vmatpush1.msra.mxu0 0.0
    %2043 = vmatprep.subr.mxu0 0.0
    %2044 = vmatpush1.msra.mxu0 0.0
    %2045 = vmatprep.subr.mxu0 0.0
    %2046 = vmatpush1.msra.mxu0 %v1994
    %2047 = vmatprep.subr.mxu0 0.0
    %2048 = vmatpush2.msra.mxu0 0.0
    %2049 = vmatprep.subr.mxu0 0.0
    %2050 = vmatpush2.msra.mxu0 0.0
    %2051 = vmatprep.subr.mxu0 0.0
    %2052 = vmatpush2.msra.mxu0 0.0
    %2053 = vmatprep.subr.mxu0 0.0
    %2054 = vmatpush2.msra.mxu0 0.0
    %2055 = vmatprep.subr.mxu0 0.0
    %2056 = vmatpush2.msra.mxu0 0.0
    %2057 = vmatprep.subr.mxu0 0.0
    %2058 = vmatpush2.msra.mxu0 0.0
    %2059 = vmatprep.subr.mxu0 0.0
    %2060 = vmatpush2.msra.mxu0 0.0
    %2061 = vmatprep.subr.mxu0 0.0
    %2062 = vmatpush2.msra.mxu0 0.0
    %2063 = vmatprep.subr.mxu0 0.0
    %2064 = vmatpush2.msra.mxu0 0.0
    %2065 = vmatprep.subr.mxu0 0.0
    %2066 = vmatpush2.msra.mxu0 0.0
    %2067 = vmatprep.subr.mxu0 0.0
    %2068 = vmatpush2.msra.mxu0 0.0
    %2069 = vmatprep.subr.mxu0 0.0
    %2070 = vmatpush2.msra.mxu0 0.0
    %2071 = vmatprep.subr.mxu0 0.0
    %2072 = vmatpush2.msra.mxu0 0.0
    %2073 = vmatprep.subr.mxu0 0.0
    %2074 = vmatpush2.msra.mxu0 0.0
    %2075 = vmatprep.subr.mxu0 0.0
    %2076 = vmatpush2.msra.mxu0 0.0
    %2077 = vmatprep.subr.mxu0 0.0
    %2078 = vmatpush2.msra.mxu0 0.0
    %2079 = vmatprep.mubr.f32.mxu0 0.0
    %2080 = vmatmul.mubr.f32.gmra.mxu0 %v2007
    %v2081 = vpop.f32.mrf.mxu0
    %v2082 = vadd.f32 0.0, %v2081
    %v2083 = vpop.f32.mrf.mxu0
    %2084 = vmatprep.mubr.f32.mxu0 0.0
    %2085 = vmatmul.mubr.f32.gmra.mxu0 %v2009
    %v2086 = vpop.f32.mrf.mxu0
    %v2087 = vadd.f32 0.0, %v2086
    %v2088 = vpop.f32.mrf.mxu0
    %2089 = vmatprep.mubr.f32.mxu0 0.0
    %2090 = vmatmul.mubr.f32.gmra.mxu0 %v2011
    %v2091 = vpop.f32.mrf.mxu0
    %v2092 = vadd.f32 0.0, %v2091
    %v2093 = vpop.f32.mrf.mxu0
    %2094 = vmatprep.mubr.f32.mxu0 0.0
    %2095 = vmatmul.mubr.f32.gmra.mxu0 %v2013
    %v2096 = vpop.f32.mrf.mxu0
    %v2097 = vadd.f32 0.0, %v2096
    %v2098 = vpop.f32.mrf.mxu0
    %2099 = vdwg.mxu0
    %v2100 = vld [vmem:[#allocation3] sm:$0xff]
    %v2101 = vld [vmem:[#allocation3 + $0x8] sm:$0xff]
    %v2102 = vld [vmem:[#allocation3 + $0x10] sm:$0xff]
    %v2103 = vld [vmem:[#allocation3 + $0x18] sm:$0xff]
    %v2104 = vadd.f32 %v2100, %v2082
    %v2105 = vadd.f32 %v2101, %v2087
    %v2106 = vadd.f32 %v2102, %v2092
    %v2107 = vadd.f32 %v2103, %v2097
    %2108 = vst.msk [vmem:[#allocation3] sm:$0xff] %vm77, %v2104
    %2109 = vst.msk [vmem:[#allocation3 + $0x8] sm:$0xff] %vm77, %v2105
    %2110 = vst.msk [vmem:[#allocation3 + $0x10] sm:$0xff] %vm77, %v2106
    %2111 = vst.msk [vmem:[#allocation3 + $0x18] sm:$0xff] %vm77, %v2107
    %v2112 = vld [vmem:[%s810 + $0x1] sm:$0xf]
    %v2113 = vld [vmem:[%s810 + $0x9] sm:$0xf]
    %v2114 = vld [vmem:[%s810 + $0x11] sm:$0xf]
    %v2115 = vld [vmem:[%s810 + $0x19] sm:$0xf]
    %v2116 = vld [vmem:[%s810 + $0x31] sm:$0xf]
    %v2117 = vld [vmem:[%s810 + $0x39] sm:$0xf]
    %v2118 = vld [vmem:[%s810 + $0x41] sm:$0xf]
    %v2119 = vld [vmem:[%s810 + $0x49] sm:$0xf]
    %s2120 = scalar_lea.vmem %s1, 128
    %v2121 = vld [vmem:[%s2120] sm:$0xff]
    %v2130 = vcombine.low %v2112, %v2113
    %v2131 = vcombine.low %v2114, %v2115
    %v2132 = vcombine.low %v2116, %v2117
    %v2133 = vcombine.low %v2118, %v2119
    %v2134 = vsel %vm77, %v2130, 0
    %v2136 = vsel %vm77, %v2131, 0
    %v2138 = vsel %vm77, %v2132, 0
    %v2140 = vsel %vm77, %v2133, 0
    %2142 = vmatprep.subr.mxu0 0.0
    %2143 = vmatpush1.msra.mxu0 0.0
    %2144 = vmatprep.subr.mxu0 0.0
    %2145 = vmatpush1.msra.mxu0 0.0
    %2146 = vmatprep.subr.mxu0 0.0
    %2147 = vmatpush1.msra.mxu0 0.0
    %2148 = vmatprep.subr.mxu0 0.0
    %2149 = vmatpush1.msra.mxu0 0.0
    %2150 = vmatprep.subr.mxu0 0.0
    %2151 = vmatpush1.msra.mxu0 0.0
    %2152 = vmatprep.subr.mxu0 0.0
    %2153 = vmatpush1.msra.mxu0 0.0
    %2154 = vmatprep.subr.mxu0 0.0
    %2155 = vmatpush1.msra.mxu0 0.0
    %2156 = vmatprep.subr.mxu0 0.0
    %2157 = vmatpush1.msra.mxu0 0.0
    %2158 = vmatprep.subr.mxu0 0.0
    %2159 = vmatpush1.msra.mxu0 0.0
    %2160 = vmatprep.subr.mxu0 0.0
    %2161 = vmatpush1.msra.mxu0 0.0
    %2162 = vmatprep.subr.mxu0 0.0
    %2163 = vmatpush1.msra.mxu0 0.0
    %2164 = vmatprep.subr.mxu0 0.0
    %2165 = vmatpush1.msra.mxu0 0.0
    %2166 = vmatprep.subr.mxu0 0.0
    %2167 = vmatpush1.msra.mxu0 0.0
    %2168 = vmatprep.subr.mxu0 0.0
    %2169 = vmatpush1.msra.mxu0 0.0
    %2170 = vmatprep.subr.mxu0 0.0
    %2171 = vmatpush1.msra.mxu0 0.0
    %2172 = vmatprep.subr.mxu0 0.0
    %2173 = vmatpush1.msra.mxu0 %v2121
    %2174 = vmatprep.subr.mxu0 0.0
    %2175 = vmatpush2.msra.mxu0 0.0
    %2176 = vmatprep.subr.mxu0 0.0
    %2177 = vmatpush2.msra.mxu0 0.0
    %2178 = vmatprep.subr.mxu0 0.0
    %2179 = vmatpush2.msra.mxu0 0.0
    %2180 = vmatprep.subr.mxu0 0.0
    %2181 = vmatpush2.msra.mxu0 0.0
    %2182 = vmatprep.subr.mxu0 0.0
    %2183 = vmatpush2.msra.mxu0 0.0
    %2184 = vmatprep.subr.mxu0 0.0
    %2185 = vmatpush2.msra.mxu0 0.0
    %2186 = vmatprep.subr.mxu0 0.0
    %2187 = vmatpush2.msra.mxu0 0.0
    %2188 = vmatprep.subr.mxu0 0.0
    %2189 = vmatpush2.msra.mxu0 0.0
    %2190 = vmatprep.subr.mxu0 0.0
    %2191 = vmatpush2.msra.mxu0 0.0
    %2192 = vmatprep.subr.mxu0 0.0
    %2193 = vmatpush2.msra.mxu0 0.0
    %2194 = vmatprep.subr.mxu0 0.0
    %2195 = vmatpush2.msra.mxu0 0.0
    %2196 = vmatprep.subr.mxu0 0.0
    %2197 = vmatpush2.msra.mxu0 0.0
    %2198 = vmatprep.subr.mxu0 0.0
    %2199 = vmatpush2.msra.mxu0 0.0
    %2200 = vmatprep.subr.mxu0 0.0
    %2201 = vmatpush2.msra.mxu0 0.0
    %2202 = vmatprep.subr.mxu0 0.0
    %2203 = vmatpush2.msra.mxu0 0.0
    %2204 = vmatprep.subr.mxu0 0.0
    %2205 = vmatpush2.msra.mxu0 0.0
    %2206 = vmatprep.mubr.f32.mxu0 0.0
    %2207 = vmatmul.mubr.f32.gmra.mxu0 %v2134
    %v2208 = vpop.f32.mrf.mxu0
    %v2209 = vadd.f32 0.0, %v2208
    %v2210 = vpop.f32.mrf.mxu0
    %2211 = vmatprep.mubr.f32.mxu0 0.0
    %2212 = vmatmul.mubr.f32.gmra.mxu0 %v2136
    %v2213 = vpop.f32.mrf.mxu0
    %v2214 = vadd.f32 0.0, %v2213
    %v2215 = vpop.f32.mrf.mxu0
    %2216 = vmatprep.mubr.f32.mxu0 0.0
    %2217 = vmatmul.mubr.f32.gmra.mxu0 %v2138
    %v2218 = vpop.f32.mrf.mxu0
    %v2219 = vadd.f32 0.0, %v2218
    %v2220 = vpop.f32.mrf.mxu0
    %2221 = vmatprep.mubr.f32.mxu0 0.0
    %2222 = vmatmul.mubr.f32.gmra.mxu0 %v2140
    %v2223 = vpop.f32.mrf.mxu0
    %v2224 = vadd.f32 0.0, %v2223
    %v2225 = vpop.f32.mrf.mxu0
    %2226 = vdwg.mxu0
    %v2227 = vld [vmem:[#allocation3] sm:$0xff]
    %v2228 = vld [vmem:[#allocation3 + $0x8] sm:$0xff]
    %v2229 = vld [vmem:[#allocation3 + $0x10] sm:$0xff]
    %v2230 = vld [vmem:[#allocation3 + $0x18] sm:$0xff]
    %v2231 = vadd.f32 %v2227, %v2209
    %v2232 = vadd.f32 %v2228, %v2214
    %v2233 = vadd.f32 %v2229, %v2219
    %v2234 = vadd.f32 %v2230, %v2224
    %2235 = vst.msk [vmem:[#allocation3] sm:$0xff] %vm77, %v2231
    %2236 = vst.msk [vmem:[#allocation3 + $0x8] sm:$0xff] %vm77, %v2232
    %2237 = vst.msk [vmem:[#allocation3 + $0x10] sm:$0xff] %vm77, %v2233
    %2238 = vst.msk [vmem:[#allocation3 + $0x18] sm:$0xff] %vm77, %v2234
    %v2239 = vld [vmem:[%s810 + $0x2] sm:$0xf]
    %v2240 = vld [vmem:[%s810 + $0xa] sm:$0xf]
    %v2241 = vld [vmem:[%s810 + $0x12] sm:$0xf]
    %v2242 = vld [vmem:[%s810 + $0x1a] sm:$0xf]
    %v2243 = vld [vmem:[%s810 + $0x32] sm:$0xf]
    %v2244 = vld [vmem:[%s810 + $0x3a] sm:$0xf]
    %v2245 = vld [vmem:[%s810 + $0x42] sm:$0xf]
    %v2246 = vld [vmem:[%s810 + $0x4a] sm:$0xf]
    %s2247 = scalar_lea.vmem %s1, 136
    %v2248 = vld [vmem:[%s2247] sm:$0xff]
    %v2257 = vcombine.low %v2239, %v2240
    %v2258 = vcombine.low %v2241, %v2242
    %v2259 = vcombine.low %v2243, %v2244
    %v2260 = vcombine.low %v2245, %v2246
    %v2261 = vsel %vm77, %v2257, 0
    %v2263 = vsel %vm77, %v2258, 0
    %v2265 = vsel %vm77, %v2259, 0
    %v2267 = vsel %vm77, %v2260, 0
    %2269 = vmatprep.subr.mxu0 0.0
    %2270 = vmatpush1.msra.mxu0 0.0
    %2271 = vmatprep.subr.mxu0 0.0
    %2272 = vmatpush1.msra.mxu0 0.0
    %2273 = vmatprep.subr.mxu0 0.0
    %2274 = vmatpush1.msra.mxu0 0.0
    %2275 = vmatprep.subr.mxu0 0.0
    %2276 = vmatpush1.msra.mxu0 0.0
    %2277 = vmatprep.subr.mxu0 0.0
    %2278 = vmatpush1.msra.mxu0 0.0
    %2279 = vmatprep.subr.mxu0 0.0
    %2280 = vmatpush1.msra.mxu0 0.0
    %2281 = vmatprep.subr.mxu0 0.0
    %2282 = vmatpush1.msra.mxu0 0.0
    %2283 = vmatprep.subr.mxu0 0.0
    %2284 = vmatpush1.msra.mxu0 0.0
    %2285 = vmatprep.subr.mxu0 0.0
    %2286 = vmatpush1.msra.mxu0 0.0
    %2287 = vmatprep.subr.mxu0 0.0
    %2288 = vmatpush1.msra.mxu0 0.0
    %2289 = vmatprep.subr.mxu0 0.0
    %2290 = vmatpush1.msra.mxu0 0.0
    %2291 = vmatprep.subr.mxu0 0.0
    %2292 = vmatpush1.msra.mxu0 0.0
    %2293 = vmatprep.subr.mxu0 0.0
    %2294 = vmatpush1.msra.mxu0 0.0
    %2295 = vmatprep.subr.mxu0 0.0
    %2296 = vmatpush1.msra.mxu0 0.0
    %2297 = vmatprep.subr.mxu0 0.0
    %2298 = vmatpush1.msra.mxu0 0.0
    %2299 = vmatprep.subr.mxu0 0.0
    %2300 = vmatpush1.msra.mxu0 %v2248
    %2301 = vmatprep.subr.mxu0 0.0
    %2302 = vmatpush2.msra.mxu0 0.0
    %2303 = vmatprep.subr.mxu0 0.0
    %2304 = vmatpush2.msra.mxu0 0.0
    %2305 = vmatprep.subr.mxu0 0.0
    %2306 = vmatpush2.msra.mxu0 0.0
    %2307 = vmatprep.subr.mxu0 0.0
    %2308 = vmatpush2.msra.mxu0 0.0
    %2309 = vmatprep.subr.mxu0 0.0
    %2310 = vmatpush2.msra.mxu0 0.0
    %2311 = vmatprep.subr.mxu0 0.0
    %2312 = vmatpush2.msra.mxu0 0.0
    %2313 = vmatprep.subr.mxu0 0.0
    %2314 = vmatpush2.msra.mxu0 0.0
    %2315 = vmatprep.subr.mxu0 0.0
    %2316 = vmatpush2.msra.mxu0 0.0
    %2317 = vmatprep.subr.mxu0 0.0
    %2318 = vmatpush2.msra.mxu0 0.0
    %2319 = vmatprep.subr.mxu0 0.0
    %2320 = vmatpush2.msra.mxu0 0.0
    %2321 = vmatprep.subr.mxu0 0.0
    %2322 = vmatpush2.msra.mxu0 0.0
    %2323 = vmatprep.subr.mxu0 0.0
    %2324 = vmatpush2.msra.mxu0 0.0
    %2325 = vmatprep.subr.mxu0 0.0
    %2326 = vmatpush2.msra.mxu0 0.0
    %2327 = vmatprep.subr.mxu0 0.0
    %2328 = vmatpush2.msra.mxu0 0.0
    %2329 = vmatprep.subr.mxu0 0.0
    %2330 = vmatpush2.msra.mxu0 0.0
    %2331 = vmatprep.subr.mxu0 0.0
    %2332 = vmatpush2.msra.mxu0 0.0
    %2333 = vmatprep.mubr.f32.mxu0 0.0
    %2334 = vmatmul.mubr.f32.gmra.mxu0 %v2261
    %v2335 = vpop.f32.mrf.mxu0
    %v2336 = vadd.f32 0.0, %v2335
    %v2337 = vpop.f32.mrf.mxu0
    %2338 = vmatprep.mubr.f32.mxu0 0.0
    %2339 = vmatmul.mubr.f32.gmra.mxu0 %v2263
    %v2340 = vpop.f32.mrf.mxu0
    %v2341 = vadd.f32 0.0, %v2340
    %v2342 = vpop.f32.mrf.mxu0
    %2343 = vmatprep.mubr.f32.mxu0 0.0
    %2344 = vmatmul.mubr.f32.gmra.mxu0 %v2265
    %v2345 = vpop.f32.mrf.mxu0
    %v2346 = vadd.f32 0.0, %v2345
    %v2347 = vpop.f32.mrf.mxu0
    %2348 = vmatprep.mubr.f32.mxu0 0.0
    %2349 = vmatmul.mubr.f32.gmra.mxu0 %v2267
    %v2350 = vpop.f32.mrf.mxu0
    %v2351 = vadd.f32 0.0, %v2350
    %v2352 = vpop.f32.mrf.mxu0
    %2353 = vdwg.mxu0
    %v2354 = vld [vmem:[#allocation3] sm:$0xff]
    %v2355 = vld [vmem:[#allocation3 + $0x8] sm:$0xff]
    %v2356 = vld [vmem:[#allocation3 + $0x10] sm:$0xff]
    %v2357 = vld [vmem:[#allocation3 + $0x18] sm:$0xff]
    %v2358 = vadd.f32 %v2354, %v2336
    %v2359 = vadd.f32 %v2355, %v2341
    %v2360 = vadd.f32 %v2356, %v2346
    %v2361 = vadd.f32 %v2357, %v2351
    %2362 = vst.msk [vmem:[#allocation3] sm:$0xff] %vm77, %v2358
    %2363 = vst.msk [vmem:[#allocation3 + $0x8] sm:$0xff] %vm77, %v2359
    %2364 = vst.msk [vmem:[#allocation3 + $0x10] sm:$0xff] %vm77, %v2360
    %2365 = vst.msk [vmem:[#allocation3 + $0x18] sm:$0xff] %vm77, %v2361
    %v2366 = vld [vmem:[#allocation3] sm:$0xff]
    %v2367 = vld [vmem:[#allocation3 + $0x8] sm:$0xff]
    %v2368 = vld [vmem:[#allocation3 + $0x10] sm:$0xff]
    %v2369 = vld [vmem:[#allocation3 + $0x18] sm:$0xff]
    %s2370 = scalar_lea.vmem %s2, 1
    %v2371 = vld [vmem:[%s2370] sm:$0x1]
    %v2373 = vlaneseq
    %v2374 = vshrl.u32 %v2373, 7
    %v2375 = vsub.s32 0, %v2374
    %v2376 = vrot.slane %v2371, %v2375
    %v2378 = vadd.f32 %v2366, %v2376
    %v2379 = vadd.f32 %v2367, %v2376
    %v2380 = vadd.f32 %v2368, %v2376
    %v2381 = vadd.f32 %v2369, %v2376
    %v2382 = vmax.f32 %v2378, 0.0
    %v2383 = vmax.f32 %v2379, 0.0
    %v2384 = vmax.f32 %v2380, 0.0
    %v2385 = vmax.f32 %v2381, 0.0
    %v2390 = vcombine.high %v2382, %v2382
    %v2391 = vcombine.high %v2383, %v2383
    %v2392 = vcombine.high %v2384, %v2384
    %v2393 = vcombine.high %v2385, %v2385
    %2398 = vst.msk [vmem:[%s21 + $0x1] sm:$0xf] %vm47, %v2382
    %2399 = vst.msk [vmem:[%s21 + $0x9] sm:$0xf] %vm47, %v2390
    %2400 = vst.msk [vmem:[%s21 + $0x11] sm:$0xf] %vm47, %v2383
    %2401 = vst.msk [vmem:[%s21 + $0x19] sm:$0xf] %vm47, %v2391
    %2402 = vst.msk [vmem:[%s21 + $0x31] sm:$0xf] %vm47, %v2384
    %2403 = vst.msk [vmem:[%s21 + $0x39] sm:$0xf] %vm47, %v2392
    %2404 = vst.msk [vmem:[%s21 + $0x41] sm:$0xf] %vm47, %v2385
    %2405 = vst.msk [vmem:[%s21 + $0x49] sm:$0xf] %vm47, %v2393
    %v2406 = vld [vmem:[#allocation2] sm:$0xf]
    %v2407 = vld [vmem:[#allocation2 + $0x8] sm:$0xf]
    %v2408 = vld [vmem:[#allocation2 + $0x10] sm:$0xf]
    %v2409 = vld [vmem:[#allocation2 + $0x18] sm:$0xf]
    %v2410 = vld [vmem:[#allocation2 + $0x30] sm:$0xf]
    %v2411 = vld [vmem:[#allocation2 + $0x38] sm:$0xf]
    %v2412 = vld [vmem:[#allocation2 + $0x40] sm:$0xf]
    %v2413 = vld [vmem:[#allocation2 + $0x48] sm:$0xf]
    %s2414 = scalar_lea.vmem %s1, 144
    %v2415 = vld [vmem:[%s2414] sm:$0xff]
    %v2424 = vcombine.low %v2406, %v2407
    %v2425 = vcombine.low %v2408, %v2409
    %v2426 = vcombine.low %v2410, %v2411
    %v2427 = vcombine.low %v2412, %v2413
    %v2428 = vsel %vm77, %v2424, 0
    %v2430 = vsel %vm77, %v2425, 0
    %v2432 = vsel %vm77, %v2426, 0
    %v2434 = vsel %vm77, %v2427, 0
    %2436 = vmatprep.subr.mxu0 0.0
    %2437 = vmatpush1.msra.mxu0 0.0
    %2438 = vmatprep.subr.mxu0 0.0
    %2439 = vmatpush1.msra.mxu0 0.0
    %2440 = vmatprep.subr.mxu0 0.0
    %2441 = vmatpush1.msra.mxu0 0.0
    %2442 = vmatprep.subr.mxu0 0.0
    %2443 = vmatpush1.msra.mxu0 0.0
    %2444 = vmatprep.subr.mxu0 0.0
    %2445 = vmatpush1.msra.mxu0 0.0
    %2446 = vmatprep.subr.mxu0 0.0
    %2447 = vmatpush1.msra.mxu0 0.0
    %2448 = vmatprep.subr.mxu0 0.0
    %2449 = vmatpush1.msra.mxu0 0.0
    %2450 = vmatprep.subr.mxu0 0.0
    %2451 = vmatpush1.msra.mxu0 0.0
    %2452 = vmatprep.subr.mxu0 0.0
    %2453 = vmatpush1.msra.mxu0 0.0
    %2454 = vmatprep.subr.mxu0 0.0
    %2455 = vmatpush1.msra.mxu0 0.0
    %2456 = vmatprep.subr.mxu0 0.0
    %2457 = vmatpush1.msra.mxu0 0.0
    %2458 = vmatprep.subr.mxu0 0.0
    %2459 = vmatpush1.msra.mxu0 0.0
    %2460 = vmatprep.subr.mxu0 0.0
    %2461 = vmatpush1.msra.mxu0 0.0
    %2462 = vmatprep.subr.mxu0 0.0
    %2463 = vmatpush1.msra.mxu0 0.0
    %2464 = vmatprep.subr.mxu0 0.0
    %2465 = vmatpush1.msra.mxu0 0.0
    %2466 = vmatprep.subr.mxu0 0.0
    %2467 = vmatpush1.msra.mxu0 %v2415
    %2468 = vmatprep.subr.mxu0 0.0
    %2469 = vmatpush2.msra.mxu0 0.0
    %2470 = vmatprep.subr.mxu0 0.0
    %2471 = vmatpush2.msra.mxu0 0.0
    %2472 = vmatprep.subr.mxu0 0.0
    %2473 = vmatpush2.msra.mxu0 0.0
    %2474 = vmatprep.subr.mxu0 0.0
    %2475 = vmatpush2.msra.mxu0 0.0
    %2476 = vmatprep.subr.mxu0 0.0
    %2477 = vmatpush2.msra.mxu0 0.0
    %2478 = vmatprep.subr.mxu0 0.0
    %2479 = vmatpush2.msra.mxu0 0.0
    %2480 = vmatprep.subr.mxu0 0.0
    %2481 = vmatpush2.msra.mxu0 0.0
    %2482 = vmatprep.subr.mxu0 0.0
    %2483 = vmatpush2.msra.mxu0 0.0
    %2484 = vmatprep.subr.mxu0 0.0
    %2485 = vmatpush2.msra.mxu0 0.0
    %2486 = vmatprep.subr.mxu0 0.0
    %2487 = vmatpush2.msra.mxu0 0.0
    %2488 = vmatprep.subr.mxu0 0.0
    %2489 = vmatpush2.msra.mxu0 0.0
    %2490 = vmatprep.subr.mxu0 0.0
    %2491 = vmatpush2.msra.mxu0 0.0
    %2492 = vmatprep.subr.mxu0 0.0
    %2493 = vmatpush2.msra.mxu0 0.0
    %2494 = vmatprep.subr.mxu0 0.0
    %2495 = vmatpush2.msra.mxu0 0.0
    %2496 = vmatprep.subr.mxu0 0.0
    %2497 = vmatpush2.msra.mxu0 0.0
    %2498 = vmatprep.subr.mxu0 0.0
    %2499 = vmatpush2.msra.mxu0 0.0
    %2500 = vmatprep.mubr.f32.mxu0 0.0
    %2501 = vmatmul.mubr.f32.gmra.mxu0 %v2428
    %v2502 = vpop.f32.mrf.mxu0
    %v2503 = vadd.f32 0.0, %v2502
    %v2504 = vpop.f32.mrf.mxu0
    %2505 = vmatprep.mubr.f32.mxu0 0.0
    %2506 = vmatmul.mubr.f32.gmra.mxu0 %v2430
    %v2507 = vpop.f32.mrf.mxu0
    %v2508 = vadd.f32 0.0, %v2507
    %v2509 = vpop.f32.mrf.mxu0
    %2510 = vmatprep.mubr.f32.mxu0 0.0
    %2511 = vmatmul.mubr.f32.gmra.mxu0 %v2432
    %v2512 = vpop.f32.mrf.mxu0
    %v2513 = vadd.f32 0.0, %v2512
    %v2514 = vpop.f32.mrf.mxu0
    %2515 = vmatprep.mubr.f32.mxu0 0.0
    %2516 = vmatmul.mubr.f32.gmra.mxu0 %v2434
    %v2517 = vpop.f32.mrf.mxu0
    %v2518 = vadd.f32 0.0, %v2517
    %v2519 = vpop.f32.mrf.mxu0
    %2520 = vdwg.mxu0
    %2521 = vst.msk [vmem:[#allocation3] sm:$0xff] %vm77, %v2503
    %2522 = vst.msk [vmem:[#allocation3 + $0x8] sm:$0xff] %vm77, %v2508
    %2523 = vst.msk [vmem:[#allocation3 + $0x10] sm:$0xff] %vm77, %v2513
    %2524 = vst.msk [vmem:[#allocation3 + $0x18] sm:$0xff] %vm77, %v2518
    %v2525 = vld [vmem:[#allocation2 + $0x1] sm:$0xf]
    %v2526 = vld [vmem:[#allocation2 + $0x9] sm:$0xf]
    %v2527 = vld [vmem:[#allocation2 + $0x11] sm:$0xf]
    %v2528 = vld [vmem:[#allocation2 + $0x19] sm:$0xf]
    %v2529 = vld [vmem:[#allocation2 + $0x31] sm:$0xf]
    %v2530 = vld [vmem:[#allocation2 + $0x39] sm:$0xf]
    %v2531 = vld [vmem:[#allocation2 + $0x41] sm:$0xf]
    %v2532 = vld [vmem:[#allocation2 + $0x49] sm:$0xf]
    %s2533 = scalar_lea.vmem %s1, 152
    %v2534 = vld [vmem:[%s2533] sm:$0xff]
    %v2543 = vcombine.low %v2525, %v2526
    %v2544 = vcombine.low %v2527, %v2528
    %v2545 = vcombine.low %v2529, %v2530
    %v2546 = vcombine.low %v2531, %v2532
    %v2547 = vsel %vm77, %v2543, 0
    %v2549 = vsel %vm77, %v2544, 0
    %v2551 = vsel %vm77, %v2545, 0
    %v2553 = vsel %vm77, %v2546, 0
    %2555 = vmatprep.subr.mxu0 0.0
    %2556 = vmatpush1.msra.mxu0 0.0
    %2557 = vmatprep.subr.mxu0 0.0
    %2558 = vmatpush1.msra.mxu0 0.0
    %2559 = vmatprep.subr.mxu0 0.0
    %2560 = vmatpush1.msra.mxu0 0.0
    %2561 = vmatprep.subr.mxu0 0.0
    %2562 = vmatpush1.msra.mxu0 0.0
    %2563 = vmatprep.subr.mxu0 0.0
    %2564 = vmatpush1.msra.mxu0 0.0
    %2565 = vmatprep.subr.mxu0 0.0
    %2566 = vmatpush1.msra.mxu0 0.0
    %2567 = vmatprep.subr.mxu0 0.0
    %2568 = vmatpush1.msra.mxu0 0.0
    %2569 = vmatprep.subr.mxu0 0.0
    %2570 = vmatpush1.msra.mxu0 0.0
    %2571 = vmatprep.subr.mxu0 0.0
    %2572 = vmatpush1.msra.mxu0 0.0
    %2573 = vmatprep.subr.mxu0 0.0
    %2574 = vmatpush1.msra.mxu0 0.0
    %2575 = vmatprep.subr.mxu0 0.0
    %2576 = vmatpush1.msra.mxu0 0.0
    %2577 = vmatprep.subr.mxu0 0.0
    %2578 = vmatpush1.msra.mxu0 0.0
    %2579 = vmatprep.subr.mxu0 0.0
    %2580 = vmatpush1.msra.mxu0 0.0
    %2581 = vmatprep.subr.mxu0 0.0
    %2582 = vmatpush1.msra.mxu0 0.0
    %2583 = vmatprep.subr.mxu0 0.0
    %2584 = vmatpush1.msra.mxu0 0.0
    %2585 = vmatprep.subr.mxu0 0.0
    %2586 = vmatpush1.msra.mxu0 %v2534
    %2587 = vmatprep.subr.mxu0 0.0
    %2588 = vmatpush2.msra.mxu0 0.0
    %2589 = vmatprep.subr.mxu0 0.0
    %2590 = vmatpush2.msra.mxu0 0.0
    %2591 = vmatprep.subr.mxu0 0.0
    %2592 = vmatpush2.msra.mxu0 0.0
    %2593 = vmatprep.subr.mxu0 0.0
    %2594 = vmatpush2.msra.mxu0 0.0
    %2595 = vmatprep.subr.mxu0 0.0
    %2596 = vmatpush2.msra.mxu0 0.0
    %2597 = vmatprep.subr.mxu0 0.0
    %2598 = vmatpush2.msra.mxu0 0.0
    %2599 = vmatprep.subr.mxu0 0.0
    %2600 = vmatpush2.msra.mxu0 0.0
    %2601 = vmatprep.subr.mxu0 0.0
    %2602 = vmatpush2.msra.mxu0 0.0
    %2603 = vmatprep.subr.mxu0 0.0
    %2604 = vmatpush2.msra.mxu0 0.0
    %2605 = vmatprep.subr.mxu0 0.0
    %2606 = vmatpush2.msra.mxu0 0.0
    %2607 = vmatprep.subr.mxu0 0.0
    %2608 = vmatpush2.msra.mxu0 0.0
    %2609 = vmatprep.subr.mxu0 0.0
    %2610 = vmatpush2.msra.mxu0 0.0
    %2611 = vmatprep.subr.mxu0 0.0
    %2612 = vmatpush2.msra.mxu0 0.0
    %2613 = vmatprep.subr.mxu0 0.0
    %2614 = vmatpush2.msra.mxu0 0.0
    %2615 = vmatprep.subr.mxu0 0.0
    %2616 = vmatpush2.msra.mxu0 0.0
    %2617 = vmatprep.subr.mxu0 0.0
    %2618 = vmatpush2.msra.mxu0 0.0
    %2619 = vmatprep.mubr.f32.mxu0 0.0
    %2620 = vmatmul.mubr.f32.gmra.mxu0 %v2547
    %v2621 = vpop.f32.mrf.mxu0
    %v2622 = vadd.f32 0.0, %v2621
    %v2623 = vpop.f32.mrf.mxu0
    %2624 = vmatprep.mubr.f32.mxu0 0.0
    %2625 = vmatmul.mubr.f32.gmra.mxu0 %v2549
    %v2626 = vpop.f32.mrf.mxu0
    %v2627 = vadd.f32 0.0, %v2626
    %v2628 = vpop.f32.mrf.mxu0
    %2629 = vmatprep.mubr.f32.mxu0 0.0
    %2630 = vmatmul.mubr.f32.gmra.mxu0 %v2551
    %v2631 = vpop.f32.mrf.mxu0
    %v2632 = vadd.f32 0.0, %v2631
    %v2633 = vpop.f32.mrf.mxu0
    %2634 = vmatprep.mubr.f32.mxu0 0.0
    %2635 = vmatmul.mubr.f32.gmra.mxu0 %v2553
    %v2636 = vpop.f32.mrf.mxu0
    %v2637 = vadd.f32 0.0, %v2636
    %v2638 = vpop.f32.mrf.mxu0
    %2639 = vdwg.mxu0
    %v2640 = vld [vmem:[#allocation3] sm:$0xff]
    %v2641 = vld [vmem:[#allocation3 + $0x8] sm:$0xff]
    %v2642 = vld [vmem:[#allocation3 + $0x10] sm:$0xff]
    %v2643 = vld [vmem:[#allocation3 + $0x18] sm:$0xff]
    %v2644 = vadd.f32 %v2640, %v2622
    %v2645 = vadd.f32 %v2641, %v2627
    %v2646 = vadd.f32 %v2642, %v2632
    %v2647 = vadd.f32 %v2643, %v2637
    %2648 = vst.msk [vmem:[#allocation3] sm:$0xff] %vm77, %v2644
    %2649 = vst.msk [vmem:[#allocation3 + $0x8] sm:$0xff] %vm77, %v2645
    %2650 = vst.msk [vmem:[#allocation3 + $0x10] sm:$0xff] %vm77, %v2646
    %2651 = vst.msk [vmem:[#allocation3 + $0x18] sm:$0xff] %vm77, %v2647
    %v2652 = vld [vmem:[#allocation2 + $0x2] sm:$0xf]
    %v2653 = vld [vmem:[#allocation2 + $0xa] sm:$0xf]
    %v2654 = vld [vmem:[#allocation2 + $0x12] sm:$0xf]
    %v2655 = vld [vmem:[#allocation2 + $0x1a] sm:$0xf]
    %v2656 = vld [vmem:[#allocation2 + $0x32] sm:$0xf]
    %v2657 = vld [vmem:[#allocation2 + $0x3a] sm:$0xf]
    %v2658 = vld [vmem:[#allocation2 + $0x42] sm:$0xf]
    %v2659 = vld [vmem:[#allocation2 + $0x4a] sm:$0xf]
    %s2660 = scalar_lea.vmem %s1, 160
    %v2661 = vld [vmem:[%s2660] sm:$0xff]
    %v2670 = vcombine.low %v2652, %v2653
    %v2671 = vcombine.low %v2654, %v2655
    %v2672 = vcombine.low %v2656, %v2657
    %v2673 = vcombine.low %v2658, %v2659
    %v2674 = vsel %vm77, %v2670, 0
    %v2676 = vsel %vm77, %v2671, 0
    %v2678 = vsel %vm77, %v2672, 0
    %v2680 = vsel %vm77, %v2673, 0
    %2682 = vmatprep.subr.mxu0 0.0
    %2683 = vmatpush1.msra.mxu0 0.0
    %2684 = vmatprep.subr.mxu0 0.0
    %2685 = vmatpush1.msra.mxu0 0.0
    %2686 = vmatprep.subr.mxu0 0.0
    %2687 = vmatpush1.msra.mxu0 0.0
    %2688 = vmatprep.subr.mxu0 0.0
    %2689 = vmatpush1.msra.mxu0 0.0
    %2690 = vmatprep.subr.mxu0 0.0
    %2691 = vmatpush1.msra.mxu0 0.0
    %2692 = vmatprep.subr.mxu0 0.0
    %2693 = vmatpush1.msra.mxu0 0.0
    %2694 = vmatprep.subr.mxu0 0.0
    %2695 = vmatpush1.msra.mxu0 0.0
    %2696 = vmatprep.subr.mxu0 0.0
    %2697 = vmatpush1.msra.mxu0 0.0
    %2698 = vmatprep.subr.mxu0 0.0
    %2699 = vmatpush1.msra.mxu0 0.0
    %2700 = vmatprep.subr.mxu0 0.0
    %2701 = vmatpush1.msra.mxu0 0.0
    %2702 = vmatprep.subr.mxu0 0.0
    %2703 = vmatpush1.msra.mxu0 0.0
    %2704 = vmatprep.subr.mxu0 0.0
    %2705 = vmatpush1.msra.mxu0 0.0
    %2706 = vmatprep.subr.mxu0 0.0
    %2707 = vmatpush1.msra.mxu0 0.0
    %2708 = vmatprep.subr.mxu0 0.0
    %2709 = vmatpush1.msra.mxu0 0.0
    %2710 = vmatprep.subr.mxu0 0.0
    %2711 = vmatpush1.msra.mxu0 0.0
    %2712 = vmatprep.subr.mxu0 0.0
    %2713 = vmatpush1.msra.mxu0 %v2661
    %2714 = vmatprep.subr.mxu0 0.0
    %2715 = vmatpush2.msra.mxu0 0.0
    %2716 = vmatprep.subr.mxu0 0.0
    %2717 = vmatpush2.msra.mxu0 0.0
    %2718 = vmatprep.subr.mxu0 0.0
    %2719 = vmatpush2.msra.mxu0 0.0
    %2720 = vmatprep.subr.mxu0 0.0
    %2721 = vmatpush2.msra.mxu0 0.0
    %2722 = vmatprep.subr.mxu0 0.0
    %2723 = vmatpush2.msra.mxu0 0.0
    %2724 = vmatprep.subr.mxu0 0.0
    %2725 = vmatpush2.msra.mxu0 0.0
    %2726 = vmatprep.subr.mxu0 0.0
    %2727 = vmatpush2.msra.mxu0 0.0
    %2728 = vmatprep.subr.mxu0 0.0
    %2729 = vmatpush2.msra.mxu0 0.0
    %2730 = vmatprep.subr.mxu0 0.0
    %2731 = vmatpush2.msra.mxu0 0.0
    %2732 = vmatprep.subr.mxu0 0.0
    %2733 = vmatpush2.msra.mxu0 0.0
    %2734 = vmatprep.subr.mxu0 0.0
    %2735 = vmatpush2.msra.mxu0 0.0
    %2736 = vmatprep.subr.mxu0 0.0
    %2737 = vmatpush2.msra.mxu0 0.0
    %2738 = vmatprep.subr.mxu0 0.0
    %2739 = vmatpush2.msra.mxu0 0.0
    %2740 = vmatprep.subr.mxu0 0.0
    %2741 = vmatpush2.msra.mxu0 0.0
    %2742 = vmatprep.subr.mxu0 0.0
    %2743 = vmatpush2.msra.mxu0 0.0
    %2744 = vmatprep.subr.mxu0 0.0
    %2745 = vmatpush2.msra.mxu0 0.0
    %2746 = vmatprep.mubr.f32.mxu0 0.0
    %2747 = vmatmul.mubr.f32.gmra.mxu0 %v2674
    %v2748 = vpop.f32.mrf.mxu0
    %v2749 = vadd.f32 0.0, %v2748
    %v2750 = vpop.f32.mrf.mxu0
    %2751 = vmatprep.mubr.f32.mxu0 0.0
    %2752 = vmatmul.mubr.f32.gmra.mxu0 %v2676
    %v2753 = vpop.f32.mrf.mxu0
    %v2754 = vadd.f32 0.0, %v2753
    %v2755 = vpop.f32.mrf.mxu0
    %2756 = vmatprep.mubr.f32.mxu0 0.0
    %2757 = vmatmul.mubr.f32.gmra.mxu0 %v2678
    %v2758 = vpop.f32.mrf.mxu0
    %v2759 = vadd.f32 0.0, %v2758
    %v2760 = vpop.f32.mrf.mxu0
    %2761 = vmatprep.mubr.f32.mxu0 0.0
    %2762 = vmatmul.mubr.f32.gmra.mxu0 %v2680
    %v2763 = vpop.f32.mrf.mxu0
    %v2764 = vadd.f32 0.0, %v2763
    %v2765 = vpop.f32.mrf.mxu0
    %2766 = vdwg.mxu0
    %v2767 = vld [vmem:[#allocation3] sm:$0xff]
    %v2768 = vld [vmem:[#allocation3 + $0x8] sm:$0xff]
    %v2769 = vld [vmem:[#allocation3 + $0x10] sm:$0xff]
    %v2770 = vld [vmem:[#allocation3 + $0x18] sm:$0xff]
    %v2771 = vadd.f32 %v2767, %v2749
    %v2772 = vadd.f32 %v2768, %v2754
    %v2773 = vadd.f32 %v2769, %v2759
    %v2774 = vadd.f32 %v2770, %v2764
    %2775 = vst.msk [vmem:[#allocation3] sm:$0xff] %vm77, %v2771
    %2776 = vst.msk [vmem:[#allocation3 + $0x8] sm:$0xff] %vm77, %v2772
    %2777 = vst.msk [vmem:[#allocation3 + $0x10] sm:$0xff] %vm77, %v2773
    %2778 = vst.msk [vmem:[#allocation3 + $0x18] sm:$0xff] %vm77, %v2774
    %v2779 = vld [vmem:[%s21] sm:$0xf]
    %v2780 = vld [vmem:[%s21 + $0x8] sm:$0xf]
    %v2781 = vld [vmem:[%s21 + $0x10] sm:$0xf]
    %v2782 = vld [vmem:[%s21 + $0x18] sm:$0xf]
    %v2783 = vld [vmem:[%s21 + $0x30] sm:$0xf]
    %v2784 = vld [vmem:[%s21 + $0x38] sm:$0xf]
    %v2785 = vld [vmem:[%s21 + $0x40] sm:$0xf]
    %v2786 = vld [vmem:[%s21 + $0x48] sm:$0xf]
    %s2787 = scalar_lea.vmem %s1, 168
    %v2788 = vld [vmem:[%s2787] sm:$0xff]
    %v2797 = vcombine.low %v2779, %v2780
    %v2798 = vcombine.low %v2781, %v2782
    %v2799 = vcombine.low %v2783, %v2784
    %v2800 = vcombine.low %v2785, %v2786
    %v2801 = vsel %vm77, %v2797, 0
    %v2803 = vsel %vm77, %v2798, 0
    %v2805 = vsel %vm77, %v2799, 0
    %v2807 = vsel %vm77, %v2800, 0
    %2809 = vmatprep.subr.mxu0 0.0
    %2810 = vmatpush1.msra.mxu0 0.0
    %2811 = vmatprep.subr.mxu0 0.0
    %2812 = vmatpush1.msra.mxu0 0.0
    %2813 = vmatprep.subr.mxu0 0.0
    %2814 = vmatpush1.msra.mxu0 0.0
    %2815 = vmatprep.subr.mxu0 0.0
    %2816 = vmatpush1.msra.mxu0 0.0
    %2817 = vmatprep.subr.mxu0 0.0
    %2818 = vmatpush1.msra.mxu0 0.0
    %2819 = vmatprep.subr.mxu0 0.0
    %2820 = vmatpush1.msra.mxu0 0.0
    %2821 = vmatprep.subr.mxu0 0.0
    %2822 = vmatpush1.msra.mxu0 0.0
    %2823 = vmatprep.subr.mxu0 0.0
    %2824 = vmatpush1.msra.mxu0 0.0
    %2825 = vmatprep.subr.mxu0 0.0
    %2826 = vmatpush1.msra.mxu0 0.0
    %2827 = vmatprep.subr.mxu0 0.0
    %2828 = vmatpush1.msra.mxu0 0.0
    %2829 = vmatprep.subr.mxu0 0.0
    %2830 = vmatpush1.msra.mxu0 0.0
    %2831 = vmatprep.subr.mxu0 0.0
    %2832 = vmatpush1.msra.mxu0 0.0
    %2833 = vmatprep.subr.mxu0 0.0
    %2834 = vmatpush1.msra.mxu0 0.0
    %2835 = vmatprep.subr.mxu0 0.0
    %2836 = vmatpush1.msra.mxu0 0.0
    %2837 = vmatprep.subr.mxu0 0.0
    %2838 = vmatpush1.msra.mxu0 0.0
    %2839 = vmatprep.subr.mxu0 0.0
    %2840 = vmatpush1.msra.mxu0 %v2788
    %2841 = vmatprep.subr.mxu0 0.0
    %2842 = vmatpush2.msra.mxu0 0.0
    %2843 = vmatprep.subr.mxu0 0.0
    %2844 = vmatpush2.msra.mxu0 0.0
    %2845 = vmatprep.subr.mxu0 0.0
    %2846 = vmatpush2.msra.mxu0 0.0
    %2847 = vmatprep.subr.mxu0 0.0
    %2848 = vmatpush2.msra.mxu0 0.0
    %2849 = vmatprep.subr.mxu0 0.0
    %2850 = vmatpush2.msra.mxu0 0.0
    %2851 = vmatprep.subr.mxu0 0.0
    %2852 = vmatpush2.msra.mxu0 0.0
    %2853 = vmatprep.subr.mxu0 0.0
    %2854 = vmatpush2.msra.mxu0 0.0
    %2855 = vmatprep.subr.mxu0 0.0
    %2856 = vmatpush2.msra.mxu0 0.0
    %2857 = vmatprep.subr.mxu0 0.0
    %2858 = vmatpush2.msra.mxu0 0.0
    %2859 = vmatprep.subr.mxu0 0.0
    %2860 = vmatpush2.msra.mxu0 0.0
    %2861 = vmatprep.subr.mxu0 0.0
    %2862 = vmatpush2.msra.mxu0 0.0
    %2863 = vmatprep.subr.mxu0 0.0
    %2864 = vmatpush2.msra.mxu0 0.0
    %2865 = vmatprep.subr.mxu0 0.0
    %2866 = vmatpush2.msra.mxu0 0.0
    %2867 = vmatprep.subr.mxu0 0.0
    %2868 = vmatpush2.msra.mxu0 0.0
    %2869 = vmatprep.subr.mxu0 0.0
    %2870 = vmatpush2.msra.mxu0 0.0
    %2871 = vmatprep.subr.mxu0 0.0
    %2872 = vmatpush2.msra.mxu0 0.0
    %2873 = vmatprep.mubr.f32.mxu0 0.0
    %2874 = vmatmul.mubr.f32.gmra.mxu0 %v2801
    %v2875 = vpop.f32.mrf.mxu0
    %v2876 = vadd.f32 0.0, %v2875
    %v2877 = vpop.f32.mrf.mxu0
    %2878 = vmatprep.mubr.f32.mxu0 0.0
    %2879 = vmatmul.mubr.f32.gmra.mxu0 %v2803
    %v2880 = vpop.f32.mrf.mxu0
    %v2881 = vadd.f32 0.0, %v2880
    %v2882 = vpop.f32.mrf.mxu0
    %2883 = vmatprep.mubr.f32.mxu0 0.0
    %2884 = vmatmul.mubr.f32.gmra.mxu0 %v2805
    %v2885 = vpop.f32.mrf.mxu0
    %v2886 = vadd.f32 0.0, %v2885
    %v2887 = vpop.f32.mrf.mxu0
    %2888 = vmatprep.mubr.f32.mxu0 0.0
    %2889 = vmatmul.mubr.f32.gmra.mxu0 %v2807
    %v2890 = vpop.f32.mrf.mxu0
    %v2891 = vadd.f32 0.0, %v2890
    %v2892 = vpop.f32.mrf.mxu0
    %2893 = vdwg.mxu0
    %v2894 = vld [vmem:[#allocation3] sm:$0xff]
    %v2895 = vld [vmem:[#allocation3 + $0x8] sm:$0xff]
    %v2896 = vld [vmem:[#allocation3 + $0x10] sm:$0xff]
    %v2897 = vld [vmem:[#allocation3 + $0x18] sm:$0xff]
    %v2898 = vadd.f32 %v2894, %v2876
    %v2899 = vadd.f32 %v2895, %v2881
    %v2900 = vadd.f32 %v2896, %v2886
    %v2901 = vadd.f32 %v2897, %v2891
    %2902 = vst.msk [vmem:[#allocation3] sm:$0xff] %vm77, %v2898
    %2903 = vst.msk [vmem:[#allocation3 + $0x8] sm:$0xff] %vm77, %v2899
    %2904 = vst.msk [vmem:[#allocation3 + $0x10] sm:$0xff] %vm77, %v2900
    %2905 = vst.msk [vmem:[#allocation3 + $0x18] sm:$0xff] %vm77, %v2901
    %v2906 = vld [vmem:[%s21 + $0x1] sm:$0xf]
    %v2907 = vld [vmem:[%s21 + $0x9] sm:$0xf]
    %v2908 = vld [vmem:[%s21 + $0x11] sm:$0xf]
    %v2909 = vld [vmem:[%s21 + $0x19] sm:$0xf]
    %v2910 = vld [vmem:[%s21 + $0x31] sm:$0xf]
    %v2911 = vld [vmem:[%s21 + $0x39] sm:$0xf]
    %v2912 = vld [vmem:[%s21 + $0x41] sm:$0xf]
    %v2913 = vld [vmem:[%s21 + $0x49] sm:$0xf]
    %s2914 = scalar_lea.vmem %s1, 176
    %v2915 = vld [vmem:[%s2914] sm:$0xff]
    %v2924 = vcombine.low %v2906, %v2907
    %v2925 = vcombine.low %v2908, %v2909
    %v2926 = vcombine.low %v2910, %v2911
    %v2927 = vcombine.low %v2912, %v2913
    %v2928 = vsel %vm77, %v2924, 0
    %v2930 = vsel %vm77, %v2925, 0
    %v2932 = vsel %vm77, %v2926, 0
    %v2934 = vsel %vm77, %v2927, 0
    %2936 = vmatprep.subr.mxu0 0.0
    %2937 = vmatpush1.msra.mxu0 0.0
    %2938 = vmatprep.subr.mxu0 0.0
    %2939 = vmatpush1.msra.mxu0 0.0
    %2940 = vmatprep.subr.mxu0 0.0
    %2941 = vmatpush1.msra.mxu0 0.0
    %2942 = vmatprep.subr.mxu0 0.0
    %2943 = vmatpush1.msra.mxu0 0.0
    %2944 = vmatprep.subr.mxu0 0.0
    %2945 = vmatpush1.msra.mxu0 0.0
    %2946 = vmatprep.subr.mxu0 0.0
    %2947 = vmatpush1.msra.mxu0 0.0
    %2948 = vmatprep.subr.mxu0 0.0
    %2949 = vmatpush1.msra.mxu0 0.0
    %2950 = vmatprep.subr.mxu0 0.0
    %2951 = vmatpush1.msra.mxu0 0.0
    %2952 = vmatprep.subr.mxu0 0.0
    %2953 = vmatpush1.msra.mxu0 0.0
    %2954 = vmatprep.subr.mxu0 0.0
    %2955 = vmatpush1.msra.mxu0 0.0
    %2956 = vmatprep.subr.mxu0 0.0
    %2957 = vmatpush1.msra.mxu0 0.0
    %2958 = vmatprep.subr.mxu0 0.0
    %2959 = vmatpush1.msra.mxu0 0.0
    %2960 = vmatprep.subr.mxu0 0.0
    %2961 = vmatpush1.msra.mxu0 0.0
    %2962 = vmatprep.subr.mxu0 0.0
    %2963 = vmatpush1.msra.mxu0 0.0
    %2964 = vmatprep.subr.mxu0 0.0
    %2965 = vmatpush1.msra.mxu0 0.0
    %2966 = vmatprep.subr.mxu0 0.0
    %2967 = vmatpush1.msra.mxu0 %v2915
    %2968 = vmatprep.subr.mxu0 0.0
    %2969 = vmatpush2.msra.mxu0 0.0
    %2970 = vmatprep.subr.mxu0 0.0
    %2971 = vmatpush2.msra.mxu0 0.0
    %2972 = vmatprep.subr.mxu0 0.0
    %2973 = vmatpush2.msra.mxu0 0.0
    %2974 = vmatprep.subr.mxu0 0.0
    %2975 = vmatpush2.msra.mxu0 0.0
    %2976 = vmatprep.subr.mxu0 0.0
    %2977 = vmatpush2.msra.mxu0 0.0
    %2978 = vmatprep.subr.mxu0 0.0
    %2979 = vmatpush2.msra.mxu0 0.0
    %2980 = vmatprep.subr.mxu0 0.0
    %2981 = vmatpush2.msra.mxu0 0.0
    %2982 = vmatprep.subr.mxu0 0.0
    %2983 = vmatpush2.msra.mxu0 0.0
    %2984 = vmatprep.subr.mxu0 0.0
    %2985 = vmatpush2.msra.mxu0 0.0
    %2986 = vmatprep.subr.mxu0 0.0
    %2987 = vmatpush2.msra.mxu0 0.0
    %2988 = vmatprep.subr.mxu0 0.0
    %2989 = vmatpush2.msra.mxu0 0.0
    %2990 = vmatprep.subr.mxu0 0.0
    %2991 = vmatpush2.msra.mxu0 0.0
    %2992 = vmatprep.subr.mxu0 0.0
    %2993 = vmatpush2.msra.mxu0 0.0
    %2994 = vmatprep.subr.mxu0 0.0
    %2995 = vmatpush2.msra.mxu0 0.0
    %2996 = vmatprep.subr.mxu0 0.0
    %2997 = vmatpush2.msra.mxu0 0.0
    %2998 = vmatprep.subr.mxu0 0.0
    %2999 = vmatpush2.msra.mxu0 0.0
    %3000 = vmatprep.mubr.f32.mxu0 0.0
    %3001 = vmatmul.mubr.f32.gmra.mxu0 %v2928
    %v3002 = vpop.f32.mrf.mxu0
    %v3003 = vadd.f32 0.0, %v3002
    %v3004 = vpop.f32.mrf.mxu0
    %3005 = vmatprep.mubr.f32.mxu0 0.0
    %3006 = vmatmul.mubr.f32.gmra.mxu0 %v2930
    %v3007 = vpop.f32.mrf.mxu0
    %v3008 = vadd.f32 0.0, %v3007
    %v3009 = vpop.f32.mrf.mxu0
    %3010 = vmatprep.mubr.f32.mxu0 0.0
    %3011 = vmatmul.mubr.f32.gmra.mxu0 %v2932
    %v3012 = vpop.f32.mrf.mxu0
    %v3013 = vadd.f32 0.0, %v3012
    %v3014 = vpop.f32.mrf.mxu0
    %3015 = vmatprep.mubr.f32.mxu0 0.0
    %3016 = vmatmul.mubr.f32.gmra.mxu0 %v2934
    %v3017 = vpop.f32.mrf.mxu0
    %v3018 = vadd.f32 0.0, %v3017
    %v3019 = vpop.f32.mrf.mxu0
    %3020 = vdwg.mxu0
    %v3021 = vld [vmem:[#allocation3] sm:$0xff]
    %v3022 = vld [vmem:[#allocation3 + $0x8] sm:$0xff]
    %v3023 = vld [vmem:[#allocation3 + $0x10] sm:$0xff]
    %v3024 = vld [vmem:[#allocation3 + $0x18] sm:$0xff]
    %v3025 = vadd.f32 %v3021, %v3003
    %v3026 = vadd.f32 %v3022, %v3008
    %v3027 = vadd.f32 %v3023, %v3013
    %v3028 = vadd.f32 %v3024, %v3018
    %3029 = vst.msk [vmem:[#allocation3] sm:$0xff] %vm77, %v3025
    %3030 = vst.msk [vmem:[#allocation3 + $0x8] sm:$0xff] %vm77, %v3026
    %3031 = vst.msk [vmem:[#allocation3 + $0x10] sm:$0xff] %vm77, %v3027
    %3032 = vst.msk [vmem:[#allocation3 + $0x18] sm:$0xff] %vm77, %v3028
    %v3033 = vld [vmem:[%s21 + $0x2] sm:$0xf]
    %v3034 = vld [vmem:[%s21 + $0xa] sm:$0xf]
    %v3035 = vld [vmem:[%s21 + $0x12] sm:$0xf]
    %v3036 = vld [vmem:[%s21 + $0x1a] sm:$0xf]
    %v3037 = vld [vmem:[%s21 + $0x32] sm:$0xf]
    %v3038 = vld [vmem:[%s21 + $0x3a] sm:$0xf]
    %v3039 = vld [vmem:[%s21 + $0x42] sm:$0xf]
    %v3040 = vld [vmem:[%s21 + $0x4a] sm:$0xf]
    %s3041 = scalar_lea.vmem %s1, 184
    %v3042 = vld [vmem:[%s3041] sm:$0xff]
    %v3051 = vcombine.low %v3033, %v3034
    %v3052 = vcombine.low %v3035, %v3036
    %v3053 = vcombine.low %v3037, %v3038
    %v3054 = vcombine.low %v3039, %v3040
    %v3055 = vsel %vm77, %v3051, 0
    %v3057 = vsel %vm77, %v3052, 0
    %v3059 = vsel %vm77, %v3053, 0
    %v3061 = vsel %vm77, %v3054, 0
    %3063 = vmatprep.subr.mxu0 0.0
    %3064 = vmatpush1.msra.mxu0 0.0
    %3065 = vmatprep.subr.mxu0 0.0
    %3066 = vmatpush1.msra.mxu0 0.0
    %3067 = vmatprep.subr.mxu0 0.0
    %3068 = vmatpush1.msra.mxu0 0.0
    %3069 = vmatprep.subr.mxu0 0.0
    %3070 = vmatpush1.msra.mxu0 0.0
    %3071 = vmatprep.subr.mxu0 0.0
    %3072 = vmatpush1.msra.mxu0 0.0
    %3073 = vmatprep.subr.mxu0 0.0
    %3074 = vmatpush1.msra.mxu0 0.0
    %3075 = vmatprep.subr.mxu0 0.0
    %3076 = vmatpush1.msra.mxu0 0.0
    %3077 = vmatprep.subr.mxu0 0.0
    %3078 = vmatpush1.msra.mxu0 0.0
    %3079 = vmatprep.subr.mxu0 0.0
    %3080 = vmatpush1.msra.mxu0 0.0
    %3081 = vmatprep.subr.mxu0 0.0
    %3082 = vmatpush1.msra.mxu0 0.0
    %3083 = vmatprep.subr.mxu0 0.0
    %3084 = vmatpush1.msra.mxu0 0.0
    %3085 = vmatprep.subr.mxu0 0.0
    %3086 = vmatpush1.msra.mxu0 0.0
    %3087 = vmatprep.subr.mxu0 0.0
    %3088 = vmatpush1.msra.mxu0 0.0
    %3089 = vmatprep.subr.mxu0 0.0
    %3090 = vmatpush1.msra.mxu0 0.0
    %3091 = vmatprep.subr.mxu0 0.0
    %3092 = vmatpush1.msra.mxu0 0.0
    %3093 = vmatprep.subr.mxu0 0.0
    %3094 = vmatpush1.msra.mxu0 %v3042
    %3095 = vmatprep.subr.mxu0 0.0
    %3096 = vmatpush2.msra.mxu0 0.0
    %3097 = vmatprep.subr.mxu0 0.0
    %3098 = vmatpush2.msra.mxu0 0.0
    %3099 = vmatprep.subr.mxu0 0.0
    %3100 = vmatpush2.msra.mxu0 0.0
    %3101 = vmatprep.subr.mxu0 0.0
    %3102 = vmatpush2.msra.mxu0 0.0
    %3103 = vmatprep.subr.mxu0 0.0
    %3104 = vmatpush2.msra.mxu0 0.0
    %3105 = vmatprep.subr.mxu0 0.0
    %3106 = vmatpush2.msra.mxu0 0.0
    %3107 = vmatprep.subr.mxu0 0.0
    %3108 = vmatpush2.msra.mxu0 0.0
    %3109 = vmatprep.subr.mxu0 0.0
    %3110 = vmatpush2.msra.mxu0 0.0
    %3111 = vmatprep.subr.mxu0 0.0
    %3112 = vmatpush2.msra.mxu0 0.0
    %3113 = vmatprep.subr.mxu0 0.0
    %3114 = vmatpush2.msra.mxu0 0.0
    %3115 = vmatprep.subr.mxu0 0.0
    %3116 = vmatpush2.msra.mxu0 0.0
    %3117 = vmatprep.subr.mxu0 0.0
    %3118 = vmatpush2.msra.mxu0 0.0
    %3119 = vmatprep.subr.mxu0 0.0
    %3120 = vmatpush2.msra.mxu0 0.0
    %3121 = vmatprep.subr.mxu0 0.0
    %3122 = vmatpush2.msra.mxu0 0.0
    %3123 = vmatprep.subr.mxu0 0.0
    %3124 = vmatpush2.msra.mxu0 0.0
    %3125 = vmatprep.subr.mxu0 0.0
    %3126 = vmatpush2.msra.mxu0 0.0
    %3127 = vmatprep.mubr.f32.mxu0 0.0
    %3128 = vmatmul.mubr.f32.gmra.mxu0 %v3055
    %v3129 = vpop.f32.mrf.mxu0
    %v3130 = vadd.f32 0.0, %v3129
    %v3131 = vpop.f32.mrf.mxu0
    %3132 = vmatprep.mubr.f32.mxu0 0.0
    %3133 = vmatmul.mubr.f32.gmra.mxu0 %v3057
    %v3134 = vpop.f32.mrf.mxu0
    %v3135 = vadd.f32 0.0, %v3134
    %v3136 = vpop.f32.mrf.mxu0
    %3137 = vmatprep.mubr.f32.mxu0 0.0
    %3138 = vmatmul.mubr.f32.gmra.mxu0 %v3059
    %v3139 = vpop.f32.mrf.mxu0
    %v3140 = vadd.f32 0.0, %v3139
    %v3141 = vpop.f32.mrf.mxu0
    %3142 = vmatprep.mubr.f32.mxu0 0.0
    %3143 = vmatmul.mubr.f32.gmra.mxu0 %v3061
    %v3144 = vpop.f32.mrf.mxu0
    %v3145 = vadd.f32 0.0, %v3144
    %v3146 = vpop.f32.mrf.mxu0
    %3147 = vdwg.mxu0
    %v3148 = vld [vmem:[#allocation3] sm:$0xff]
    %v3149 = vld [vmem:[#allocation3 + $0x8] sm:$0xff]
    %v3150 = vld [vmem:[#allocation3 + $0x10] sm:$0xff]
    %v3151 = vld [vmem:[#allocation3 + $0x18] sm:$0xff]
    %v3152 = vadd.f32 %v3148, %v3130
    %v3153 = vadd.f32 %v3149, %v3135
    %v3154 = vadd.f32 %v3150, %v3140
    %v3155 = vadd.f32 %v3151, %v3145
    %3156 = vst.msk [vmem:[#allocation3] sm:$0xff] %vm77, %v3152
    %3157 = vst.msk [vmem:[#allocation3 + $0x8] sm:$0xff] %vm77, %v3153
    %3158 = vst.msk [vmem:[#allocation3 + $0x10] sm:$0xff] %vm77, %v3154
    %3159 = vst.msk [vmem:[#allocation3 + $0x18] sm:$0xff] %vm77, %v3155
    %v3160 = vld [vmem:[%s810] sm:$0xf]
    %v3161 = vld [vmem:[%s810 + $0x8] sm:$0xf]
    %v3162 = vld [vmem:[%s810 + $0x10] sm:$0xf]
    %v3163 = vld [vmem:[%s810 + $0x18] sm:$0xf]
    %v3164 = vld [vmem:[%s810 + $0x30] sm:$0xf]
    %v3165 = vld [vmem:[%s810 + $0x38] sm:$0xf]
    %v3166 = vld [vmem:[%s810 + $0x40] sm:$0xf]
    %v3167 = vld [vmem:[%s810 + $0x48] sm:$0xf]
    %s3168 = scalar_lea.vmem %s1, 192
    %v3169 = vld [vmem:[%s3168] sm:$0xff]
    %v3178 = vcombine.low %v3160, %v3161
    %v3179 = vcombine.low %v3162, %v3163
    %v3180 = vcombine.low %v3164, %v3165
    %v3181 = vcombine.low %v3166, %v3167
    %v3182 = vsel %vm77, %v3178, 0
    %v3184 = vsel %vm77, %v3179, 0
    %v3186 = vsel %vm77, %v3180, 0
    %v3188 = vsel %vm77, %v3181, 0
    %3190 = vmatprep.subr.mxu0 0.0
    %3191 = vmatpush1.msra.mxu0 0.0
    %3192 = vmatprep.subr.mxu0 0.0
    %3193 = vmatpush1.msra.mxu0 0.0
    %3194 = vmatprep.subr.mxu0 0.0
    %3195 = vmatpush1.msra.mxu0 0.0
    %3196 = vmatprep.subr.mxu0 0.0
    %3197 = vmatpush1.msra.mxu0 0.0
    %3198 = vmatprep.subr.mxu0 0.0
    %3199 = vmatpush1.msra.mxu0 0.0
    %3200 = vmatprep.subr.mxu0 0.0
    %3201 = vmatpush1.msra.mxu0 0.0
    %3202 = vmatprep.subr.mxu0 0.0
    %3203 = vmatpush1.msra.mxu0 0.0
    %3204 = vmatprep.subr.mxu0 0.0
    %3205 = vmatpush1.msra.mxu0 0.0
    %3206 = vmatprep.subr.mxu0 0.0
    %3207 = vmatpush1.msra.mxu0 0.0
    %3208 = vmatprep.subr.mxu0 0.0
    %3209 = vmatpush1.msra.mxu0 0.0
    %3210 = vmatprep.subr.mxu0 0.0
    %3211 = vmatpush1.msra.mxu0 0.0
    %3212 = vmatprep.subr.mxu0 0.0
    %3213 = vmatpush1.msra.mxu0 0.0
    %3214 = vmatprep.subr.mxu0 0.0
    %3215 = vmatpush1.msra.mxu0 0.0
    %3216 = vmatprep.subr.mxu0 0.0
    %3217 = vmatpush1.msra.mxu0 0.0
    %3218 = vmatprep.subr.mxu0 0.0
    %3219 = vmatpush1.msra.mxu0 0.0
    %3220 = vmatprep.subr.mxu0 0.0
    %3221 = vmatpush1.msra.mxu0 %v3169
    %3222 = vmatprep.subr.mxu0 0.0
    %3223 = vmatpush2.msra.mxu0 0.0
    %3224 = vmatprep.subr.mxu0 0.0
    %3225 = vmatpush2.msra.mxu0 0.0
    %3226 = vmatprep.subr.mxu0 0.0
    %3227 = vmatpush2.msra.mxu0 0.0
    %3228 = vmatprep.subr.mxu0 0.0
    %3229 = vmatpush2.msra.mxu0 0.0
    %3230 = vmatprep.subr.mxu0 0.0
    %3231 = vmatpush2.msra.mxu0 0.0
    %3232 = vmatprep.subr.mxu0 0.0
    %3233 = vmatpush2.msra.mxu0 0.0
    %3234 = vmatprep.subr.mxu0 0.0
    %3235 = vmatpush2.msra.mxu0 0.0
    %3236 = vmatprep.subr.mxu0 0.0
    %3237 = vmatpush2.msra.mxu0 0.0
    %3238 = vmatprep.subr.mxu0 0.0
    %3239 = vmatpush2.msra.mxu0 0.0
    %3240 = vmatprep.subr.mxu0 0.0
    %3241 = vmatpush2.msra.mxu0 0.0
    %3242 = vmatprep.subr.mxu0 0.0
    %3243 = vmatpush2.msra.mxu0 0.0
    %3244 = vmatprep.subr.mxu0 0.0
    %3245 = vmatpush2.msra.mxu0 0.0
    %3246 = vmatprep.subr.mxu0 0.0
    %3247 = vmatpush2.msra.mxu0 0.0
    %3248 = vmatprep.subr.mxu0 0.0
    %3249 = vmatpush2.msra.mxu0 0.0
    %3250 = vmatprep.subr.mxu0 0.0
    %3251 = vmatpush2.msra.mxu0 0.0
    %3252 = vmatprep.subr.mxu0 0.0
    %3253 = vmatpush2.msra.mxu0 0.0
    %3254 = vmatprep.mubr.f32.mxu0 0.0
    %3255 = vmatmul.mubr.f32.gmra.mxu0 %v3182
    %v3256 = vpop.f32.mrf.mxu0
    %v3257 = vadd.f32 0.0, %v3256
    %v3258 = vpop.f32.mrf.mxu0
    %3259 = vmatprep.mubr.f32.mxu0 0.0
    %3260 = vmatmul.mubr.f32.gmra.mxu0 %v3184
    %v3261 = vpop.f32.mrf.mxu0
    %v3262 = vadd.f32 0.0, %v3261
    %v3263 = vpop.f32.mrf.mxu0
    %3264 = vmatprep.mubr.f32.mxu0 0.0
    %3265 = vmatmul.mubr.f32.gmra.mxu0 %v3186
    %v3266 = vpop.f32.mrf.mxu0
    %v3267 = vadd.f32 0.0, %v3266
    %v3268 = vpop.f32.mrf.mxu0
    %3269 = vmatprep.mubr.f32.mxu0 0.0
    %3270 = vmatmul.mubr.f32.gmra.mxu0 %v3188
    %v3271 = vpop.f32.mrf.mxu0
    %v3272 = vadd.f32 0.0, %v3271
    %v3273 = vpop.f32.mrf.mxu0
    %3274 = vdwg.mxu0
    %v3275 = vld [vmem:[#allocation3] sm:$0xff]
    %v3276 = vld [vmem:[#allocation3 + $0x8] sm:$0xff]
    %v3277 = vld [vmem:[#allocation3 + $0x10] sm:$0xff]
    %v3278 = vld [vmem:[#allocation3 + $0x18] sm:$0xff]
    %v3279 = vadd.f32 %v3275, %v3257
    %v3280 = vadd.f32 %v3276, %v3262
    %v3281 = vadd.f32 %v3277, %v3267
    %v3282 = vadd.f32 %v3278, %v3272
    %3283 = vst.msk [vmem:[#allocation3] sm:$0xff] %vm77, %v3279
    %3284 = vst.msk [vmem:[#allocation3 + $0x8] sm:$0xff] %vm77, %v3280
    %3285 = vst.msk [vmem:[#allocation3 + $0x10] sm:$0xff] %vm77, %v3281
    %3286 = vst.msk [vmem:[#allocation3 + $0x18] sm:$0xff] %vm77, %v3282
    %v3287 = vld [vmem:[%s810 + $0x1] sm:$0xf]
    %v3288 = vld [vmem:[%s810 + $0x9] sm:$0xf]
    %v3289 = vld [vmem:[%s810 + $0x11] sm:$0xf]
    %v3290 = vld [vmem:[%s810 + $0x19] sm:$0xf]
    %v3291 = vld [vmem:[%s810 + $0x31] sm:$0xf]
    %v3292 = vld [vmem:[%s810 + $0x39] sm:$0xf]
    %v3293 = vld [vmem:[%s810 + $0x41] sm:$0xf]
    %v3294 = vld [vmem:[%s810 + $0x49] sm:$0xf]
    %s3295 = scalar_lea.vmem %s1, 200
    %v3296 = vld [vmem:[%s3295] sm:$0xff]
    %v3305 = vcombine.low %v3287, %v3288
    %v3306 = vcombine.low %v3289, %v3290
    %v3307 = vcombine.low %v3291, %v3292
    %v3308 = vcombine.low %v3293, %v3294
    %v3309 = vsel %vm77, %v3305, 0
    %v3311 = vsel %vm77, %v3306, 0
    %v3313 = vsel %vm77, %v3307, 0
    %v3315 = vsel %vm77, %v3308, 0
    %3317 = vmatprep.subr.mxu0 0.0
    %3318 = vmatpush1.msra.mxu0 0.0
    %3319 = vmatprep.subr.mxu0 0.0
    %3320 = vmatpush1.msra.mxu0 0.0
    %3321 = vmatprep.subr.mxu0 0.0
    %3322 = vmatpush1.msra.mxu0 0.0
    %3323 = vmatprep.subr.mxu0 0.0
    %3324 = vmatpush1.msra.mxu0 0.0
    %3325 = vmatprep.subr.mxu0 0.0
    %3326 = vmatpush1.msra.mxu0 0.0
    %3327 = vmatprep.subr.mxu0 0.0
    %3328 = vmatpush1.msra.mxu0 0.0
    %3329 = vmatprep.subr.mxu0 0.0
    %3330 = vmatpush1.msra.mxu0 0.0
    %3331 = vmatprep.subr.mxu0 0.0
    %3332 = vmatpush1.msra.mxu0 0.0
    %3333 = vmatprep.subr.mxu0 0.0
    %3334 = vmatpush1.msra.mxu0 0.0
    %3335 = vmatprep.subr.mxu0 0.0
    %3336 = vmatpush1.msra.mxu0 0.0
    %3337 = vmatprep.subr.mxu0 0.0
    %3338 = vmatpush1.msra.mxu0 0.0
    %3339 = vmatprep.subr.mxu0 0.0
    %3340 = vmatpush1.msra.mxu0 0.0
    %3341 = vmatprep.subr.mxu0 0.0
    %3342 = vmatpush1.msra.mxu0 0.0
    %3343 = vmatprep.subr.mxu0 0.0
    %3344 = vmatpush1.msra.mxu0 0.0
    %3345 = vmatprep.subr.mxu0 0.0
    %3346 = vmatpush1.msra.mxu0 0.0
    %3347 = vmatprep.subr.mxu0 0.0
    %3348 = vmatpush1.msra.mxu0 %v3296
    %3349 = vmatprep.subr.mxu0 0.0
    %3350 = vmatpush2.msra.mxu0 0.0
    %3351 = vmatprep.subr.mxu0 0.0
    %3352 = vmatpush2.msra.mxu0 0.0
    %3353 = vmatprep.subr.mxu0 0.0
    %3354 = vmatpush2.msra.mxu0 0.0
    %3355 = vmatprep.subr.mxu0 0.0
    %3356 = vmatpush2.msra.mxu0 0.0
    %3357 = vmatprep.subr.mxu0 0.0
    %3358 = vmatpush2.msra.mxu0 0.0
    %3359 = vmatprep.subr.mxu0 0.0
    %3360 = vmatpush2.msra.mxu0 0.0
    %3361 = vmatprep.subr.mxu0 0.0
    %3362 = vmatpush2.msra.mxu0 0.0
    %3363 = vmatprep.subr.mxu0 0.0
    %3364 = vmatpush2.msra.mxu0 0.0
    %3365 = vmatprep.subr.mxu0 0.0
    %3366 = vmatpush2.msra.mxu0 0.0
    %3367 = vmatprep.subr.mxu0 0.0
    %3368 = vmatpush2.msra.mxu0 0.0
    %3369 = vmatprep.subr.mxu0 0.0
    %3370 = vmatpush2.msra.mxu0 0.0
    %3371 = vmatprep.subr.mxu0 0.0
    %3372 = vmatpush2.msra.mxu0 0.0
    %3373 = vmatprep.subr.mxu0 0.0
    %3374 = vmatpush2.msra.mxu0 0.0
    %3375 = vmatprep.subr.mxu0 0.0
    %3376 = vmatpush2.msra.mxu0 0.0
    %3377 = vmatprep.subr.mxu0 0.0
    %3378 = vmatpush2.msra.mxu0 0.0
    %3379 = vmatprep.subr.mxu0 0.0
    %3380 = vmatpush2.msra.mxu0 0.0
    %3381 = vmatprep.mubr.f32.mxu0 0.0
    %3382 = vmatmul.mubr.f32.gmra.mxu0 %v3309
    %v3383 = vpop.f32.mrf.mxu0
    %v3384 = vadd.f32 0.0, %v3383
    %v3385 = vpop.f32.mrf.mxu0
    %3386 = vmatprep.mubr.f32.mxu0 0.0
    %3387 = vmatmul.mubr.f32.gmra.mxu0 %v3311
    %v3388 = vpop.f32.mrf.mxu0
    %v3389 = vadd.f32 0.0, %v3388
    %v3390 = vpop.f32.mrf.mxu0
    %3391 = vmatprep.mubr.f32.mxu0 0.0
    %3392 = vmatmul.mubr.f32.gmra.mxu0 %v3313
    %v3393 = vpop.f32.mrf.mxu0
    %v3394 = vadd.f32 0.0, %v3393
    %v3395 = vpop.f32.mrf.mxu0
    %3396 = vmatprep.mubr.f32.mxu0 0.0
    %3397 = vmatmul.mubr.f32.gmra.mxu0 %v3315
    %v3398 = vpop.f32.mrf.mxu0
    %v3399 = vadd.f32 0.0, %v3398
    %v3400 = vpop.f32.mrf.mxu0
    %3401 = vdwg.mxu0
    %v3402 = vld [vmem:[#allocation3] sm:$0xff]
    %v3403 = vld [vmem:[#allocation3 + $0x8] sm:$0xff]
    %v3404 = vld [vmem:[#allocation3 + $0x10] sm:$0xff]
    %v3405 = vld [vmem:[#allocation3 + $0x18] sm:$0xff]
    %v3406 = vadd.f32 %v3402, %v3384
    %v3407 = vadd.f32 %v3403, %v3389
    %v3408 = vadd.f32 %v3404, %v3394
    %v3409 = vadd.f32 %v3405, %v3399
    %3410 = vst.msk [vmem:[#allocation3] sm:$0xff] %vm77, %v3406
    %3411 = vst.msk [vmem:[#allocation3 + $0x8] sm:$0xff] %vm77, %v3407
    %3412 = vst.msk [vmem:[#allocation3 + $0x10] sm:$0xff] %vm77, %v3408
    %3413 = vst.msk [vmem:[#allocation3 + $0x18] sm:$0xff] %vm77, %v3409
    %v3414 = vld [vmem:[%s810 + $0x2] sm:$0xf]
    %v3415 = vld [vmem:[%s810 + $0xa] sm:$0xf]
    %v3416 = vld [vmem:[%s810 + $0x12] sm:$0xf]
    %v3417 = vld [vmem:[%s810 + $0x1a] sm:$0xf]
    %v3418 = vld [vmem:[%s810 + $0x32] sm:$0xf]
    %v3419 = vld [vmem:[%s810 + $0x3a] sm:$0xf]
    %v3420 = vld [vmem:[%s810 + $0x42] sm:$0xf]
    %v3421 = vld [vmem:[%s810 + $0x4a] sm:$0xf]
    %s3422 = scalar_lea.vmem %s1, 208
    %v3423 = vld [vmem:[%s3422] sm:$0xff]
    %v3432 = vcombine.low %v3414, %v3415
    %v3433 = vcombine.low %v3416, %v3417
    %v3434 = vcombine.low %v3418, %v3419
    %v3435 = vcombine.low %v3420, %v3421
    %v3436 = vsel %vm77, %v3432, 0
    %v3438 = vsel %vm77, %v3433, 0
    %v3440 = vsel %vm77, %v3434, 0
    %v3442 = vsel %vm77, %v3435, 0
    %3444 = vmatprep.subr.mxu0 0.0
    %3445 = vmatpush1.msra.mxu0 0.0
    %3446 = vmatprep.subr.mxu0 0.0
    %3447 = vmatpush1.msra.mxu0 0.0
    %3448 = vmatprep.subr.mxu0 0.0
    %3449 = vmatpush1.msra.mxu0 0.0
    %3450 = vmatprep.subr.mxu0 0.0
    %3451 = vmatpush1.msra.mxu0 0.0
    %3452 = vmatprep.subr.mxu0 0.0
    %3453 = vmatpush1.msra.mxu0 0.0
    %3454 = vmatprep.subr.mxu0 0.0
    %3455 = vmatpush1.msra.mxu0 0.0
    %3456 = vmatprep.subr.mxu0 0.0
    %3457 = vmatpush1.msra.mxu0 0.0
    %3458 = vmatprep.subr.mxu0 0.0
    %3459 = vmatpush1.msra.mxu0 0.0
    %3460 = vmatprep.subr.mxu0 0.0
    %3461 = vmatpush1.msra.mxu0 0.0
    %3462 = vmatprep.subr.mxu0 0.0
    %3463 = vmatpush1.msra.mxu0 0.0
    %3464 = vmatprep.subr.mxu0 0.0
    %3465 = vmatpush1.msra.mxu0 0.0
    %3466 = vmatprep.subr.mxu0 0.0
    %3467 = vmatpush1.msra.mxu0 0.0
    %3468 = vmatprep.subr.mxu0 0.0
    %3469 = vmatpush1.msra.mxu0 0.0
    %3470 = vmatprep.subr.mxu0 0.0
    %3471 = vmatpush1.msra.mxu0 0.0
    %3472 = vmatprep.subr.mxu0 0.0
    %3473 = vmatpush1.msra.mxu0 0.0
    %3474 = vmatprep.subr.mxu0 0.0
    %3475 = vmatpush1.msra.mxu0 %v3423
    %3476 = vmatprep.subr.mxu0 0.0
    %3477 = vmatpush2.msra.mxu0 0.0
    %3478 = vmatprep.subr.mxu0 0.0
    %3479 = vmatpush2.msra.mxu0 0.0
    %3480 = vmatprep.subr.mxu0 0.0
    %3481 = vmatpush2.msra.mxu0 0.0
    %3482 = vmatprep.subr.mxu0 0.0
    %3483 = vmatpush2.msra.mxu0 0.0
    %3484 = vmatprep.subr.mxu0 0.0
    %3485 = vmatpush2.msra.mxu0 0.0
    %3486 = vmatprep.subr.mxu0 0.0
    %3487 = vmatpush2.msra.mxu0 0.0
    %3488 = vmatprep.subr.mxu0 0.0
    %3489 = vmatpush2.msra.mxu0 0.0
    %3490 = vmatprep.subr.mxu0 0.0
    %3491 = vmatpush2.msra.mxu0 0.0
    %3492 = vmatprep.subr.mxu0 0.0
    %3493 = vmatpush2.msra.mxu0 0.0
    %3494 = vmatprep.subr.mxu0 0.0
    %3495 = vmatpush2.msra.mxu0 0.0
    %3496 = vmatprep.subr.mxu0 0.0
    %3497 = vmatpush2.msra.mxu0 0.0
    %3498 = vmatprep.subr.mxu0 0.0
    %3499 = vmatpush2.msra.mxu0 0.0
    %3500 = vmatprep.subr.mxu0 0.0
    %3501 = vmatpush2.msra.mxu0 0.0
    %3502 = vmatprep.subr.mxu0 0.0
    %3503 = vmatpush2.msra.mxu0 0.0
    %3504 = vmatprep.subr.mxu0 0.0
    %3505 = vmatpush2.msra.mxu0 0.0
    %3506 = vmatprep.subr.mxu0 0.0
    %3507 = vmatpush2.msra.mxu0 0.0
    %3508 = vmatprep.mubr.f32.mxu0 0.0
    %3509 = vmatmul.mubr.f32.gmra.mxu0 %v3436
    %v3510 = vpop.f32.mrf.mxu0
    %v3511 = vadd.f32 0.0, %v3510
    %v3512 = vpop.f32.mrf.mxu0
    %3513 = vmatprep.mubr.f32.mxu0 0.0
    %3514 = vmatmul.mubr.f32.gmra.mxu0 %v3438
    %v3515 = vpop.f32.mrf.mxu0
    %v3516 = vadd.f32 0.0, %v3515
    %v3517 = vpop.f32.mrf.mxu0
    %3518 = vmatprep.mubr.f32.mxu0 0.0
    %3519 = vmatmul.mubr.f32.gmra.mxu0 %v3440
    %v3520 = vpop.f32.mrf.mxu0
    %v3521 = vadd.f32 0.0, %v3520
    %v3522 = vpop.f32.mrf.mxu0
    %3523 = vmatprep.mubr.f32.mxu0 0.0
    %3524 = vmatmul.mubr.f32.gmra.mxu0 %v3442
    %v3525 = vpop.f32.mrf.mxu0
    %v3526 = vadd.f32 0.0, %v3525
    %v3527 = vpop.f32.mrf.mxu0
    %3528 = vdwg.mxu0
    %v3529 = vld [vmem:[#allocation3] sm:$0xff]
    %v3530 = vld [vmem:[#allocation3 + $0x8] sm:$0xff]
    %v3531 = vld [vmem:[#allocation3 + $0x10] sm:$0xff]
    %v3532 = vld [vmem:[#allocation3 + $0x18] sm:$0xff]
    %v3533 = vadd.f32 %v3529, %v3511
    %v3534 = vadd.f32 %v3530, %v3516
    %v3535 = vadd.f32 %v3531, %v3521
    %v3536 = vadd.f32 %v3532, %v3526
    %3537 = vst.msk [vmem:[#allocation3] sm:$0xff] %vm77, %v3533
    %3538 = vst.msk [vmem:[#allocation3 + $0x8] sm:$0xff] %vm77, %v3534
    %3539 = vst.msk [vmem:[#allocation3 + $0x10] sm:$0xff] %vm77, %v3535
    %3540 = vst.msk [vmem:[#allocation3 + $0x18] sm:$0xff] %vm77, %v3536
    %v3541 = vld [vmem:[#allocation3] sm:$0xff]
    %v3542 = vld [vmem:[#allocation3 + $0x8] sm:$0xff]
    %v3543 = vld [vmem:[#allocation3 + $0x10] sm:$0xff]
    %v3544 = vld [vmem:[#allocation3 + $0x18] sm:$0xff]
    %s3545 = scalar_lea.vmem %s2, 2
    %v3546 = vld [vmem:[%s3545] sm:$0x1]
    %v3548 = vlaneseq
    %v3549 = vshrl.u32 %v3548, 7
    %v3550 = vsub.s32 0, %v3549
    %v3551 = vrot.slane %v3546, %v3550
    %v3553 = vadd.f32 %v3541, %v3551
    %v3554 = vadd.f32 %v3542, %v3551
    %v3555 = vadd.f32 %v3543, %v3551
    %v3556 = vadd.f32 %v3544, %v3551
    %v3557 = vmax.f32 %v3553, 0.0
    %v3558 = vmax.f32 %v3554, 0.0
    %v3559 = vmax.f32 %v3555, 0.0
    %v3560 = vmax.f32 %v3556, 0.0
    %v3565 = vcombine.high %v3557, %v3557
    %v3566 = vcombine.high %v3558, %v3558
    %v3567 = vcombine.high %v3559, %v3559
    %v3568 = vcombine.high %v3560, %v3560
    %3573 = vst.msk [vmem:[%s21 + $0x1] sm:$0xf] %vm47, %v3557
    %3574 = vst.msk [vmem:[%s21 + $0x9] sm:$0xf] %vm47, %v3565
    %3575 = vst.msk [vmem:[%s21 + $0x11] sm:$0xf] %vm47, %v3558
    %3576 = vst.msk [vmem:[%s21 + $0x19] sm:$0xf] %vm47, %v3566
    %3577 = vst.msk [vmem:[%s21 + $0x31] sm:$0xf] %vm47, %v3559
    %3578 = vst.msk [vmem:[%s21 + $0x39] sm:$0xf] %vm47, %v3567
    %3579 = vst.msk [vmem:[%s21 + $0x41] sm:$0xf] %vm47, %v3560
    %3580 = vst.msk [vmem:[%s21 + $0x49] sm:$0xf] %vm47, %v3568
    %v3581 = vld [vmem:[#allocation2] sm:$0xf]
    %v3582 = vld [vmem:[#allocation2 + $0x8] sm:$0xf]
    %v3583 = vld [vmem:[#allocation2 + $0x10] sm:$0xf]
    %v3584 = vld [vmem:[#allocation2 + $0x18] sm:$0xf]
    %v3585 = vld [vmem:[#allocation2 + $0x30] sm:$0xf]
    %v3586 = vld [vmem:[#allocation2 + $0x38] sm:$0xf]
    %v3587 = vld [vmem:[#allocation2 + $0x40] sm:$0xf]
    %v3588 = vld [vmem:[#allocation2 + $0x48] sm:$0xf]
    %s3589 = scalar_lea.vmem %s1, 216
    %v3590 = vld [vmem:[%s3589] sm:$0xff]
    %v3599 = vcombine.low %v3581, %v3582
    %v3600 = vcombine.low %v3583, %v3584
    %v3601 = vcombine.low %v3585, %v3586
    %v3602 = vcombine.low %v3587, %v3588
    %v3603 = vsel %vm77, %v3599, 0
    %v3605 = vsel %vm77, %v3600, 0
    %v3607 = vsel %vm77, %v3601, 0
    %v3609 = vsel %vm77, %v3602, 0
    %3611 = vmatprep.subr.mxu0 0.0
    %3612 = vmatpush1.msra.mxu0 0.0
    %3613 = vmatprep.subr.mxu0 0.0
    %3614 = vmatpush1.msra.mxu0 0.0
    %3615 = vmatprep.subr.mxu0 0.0
    %3616 = vmatpush1.msra.mxu0 0.0
    %3617 = vmatprep.subr.mxu0 0.0
    %3618 = vmatpush1.msra.mxu0 0.0
    %3619 = vmatprep.subr.mxu0 0.0
    %3620 = vmatpush1.msra.mxu0 0.0
    %3621 = vmatprep.subr.mxu0 0.0
    %3622 = vmatpush1.msra.mxu0 0.0
    %3623 = vmatprep.subr.mxu0 0.0
    %3624 = vmatpush1.msra.mxu0 0.0
    %3625 = vmatprep.subr.mxu0 0.0
    %3626 = vmatpush1.msra.mxu0 0.0
    %3627 = vmatprep.subr.mxu0 0.0
    %3628 = vmatpush1.msra.mxu0 0.0
    %3629 = vmatprep.subr.mxu0 0.0
    %3630 = vmatpush1.msra.mxu0 0.0
    %3631 = vmatprep.subr.mxu0 0.0
    %3632 = vmatpush1.msra.mxu0 0.0
    %3633 = vmatprep.subr.mxu0 0.0
    %3634 = vmatpush1.msra.mxu0 0.0
    %3635 = vmatprep.subr.mxu0 0.0
    %3636 = vmatpush1.msra.mxu0 0.0
    %3637 = vmatprep.subr.mxu0 0.0
    %3638 = vmatpush1.msra.mxu0 0.0
    %3639 = vmatprep.subr.mxu0 0.0
    %3640 = vmatpush1.msra.mxu0 0.0
    %3641 = vmatprep.subr.mxu0 0.0
    %3642 = vmatpush1.msra.mxu0 %v3590
    %3643 = vmatprep.subr.mxu0 0.0
    %3644 = vmatpush2.msra.mxu0 0.0
    %3645 = vmatprep.subr.mxu0 0.0
    %3646 = vmatpush2.msra.mxu0 0.0
    %3647 = vmatprep.subr.mxu0 0.0
    %3648 = vmatpush2.msra.mxu0 0.0
    %3649 = vmatprep.subr.mxu0 0.0
    %3650 = vmatpush2.msra.mxu0 0.0
    %3651 = vmatprep.subr.mxu0 0.0
    %3652 = vmatpush2.msra.mxu0 0.0
    %3653 = vmatprep.subr.mxu0 0.0
    %3654 = vmatpush2.msra.mxu0 0.0
    %3655 = vmatprep.subr.mxu0 0.0
    %3656 = vmatpush2.msra.mxu0 0.0
    %3657 = vmatprep.subr.mxu0 0.0
    %3658 = vmatpush2.msra.mxu0 0.0
    %3659 = vmatprep.subr.mxu0 0.0
    %3660 = vmatpush2.msra.mxu0 0.0
    %3661 = vmatprep.subr.mxu0 0.0
    %3662 = vmatpush2.msra.mxu0 0.0
    %3663 = vmatprep.subr.mxu0 0.0
    %3664 = vmatpush2.msra.mxu0 0.0
    %3665 = vmatprep.subr.mxu0 0.0
    %3666 = vmatpush2.msra.mxu0 0.0
    %3667 = vmatprep.subr.mxu0 0.0
    %3668 = vmatpush2.msra.mxu0 0.0
    %3669 = vmatprep.subr.mxu0 0.0
    %3670 = vmatpush2.msra.mxu0 0.0
    %3671 = vmatprep.subr.mxu0 0.0
    %3672 = vmatpush2.msra.mxu0 0.0
    %3673 = vmatprep.subr.mxu0 0.0
    %3674 = vmatpush2.msra.mxu0 0.0
    %3675 = vmatprep.mubr.f32.mxu0 0.0
    %3676 = vmatmul.mubr.f32.gmra.mxu0 %v3603
    %v3677 = vpop.f32.mrf.mxu0
    %v3678 = vadd.f32 0.0, %v3677
    %v3679 = vpop.f32.mrf.mxu0
    %3680 = vmatprep.mubr.f32.mxu0 0.0
    %3681 = vmatmul.mubr.f32.gmra.mxu0 %v3605
    %v3682 = vpop.f32.mrf.mxu0
    %v3683 = vadd.f32 0.0, %v3682
    %v3684 = vpop.f32.mrf.mxu0
    %3685 = vmatprep.mubr.f32.mxu0 0.0
    %3686 = vmatmul.mubr.f32.gmra.mxu0 %v3607
    %v3687 = vpop.f32.mrf.mxu0
    %v3688 = vadd.f32 0.0, %v3687
    %v3689 = vpop.f32.mrf.mxu0
    %3690 = vmatprep.mubr.f32.mxu0 0.0
    %3691 = vmatmul.mubr.f32.gmra.mxu0 %v3609
    %v3692 = vpop.f32.mrf.mxu0
    %v3693 = vadd.f32 0.0, %v3692
    %v3694 = vpop.f32.mrf.mxu0
    %3695 = vdwg.mxu0
    %3696 = vst.msk [vmem:[#allocation3] sm:$0xff] %vm77, %v3678
    %3697 = vst.msk [vmem:[#allocation3 + $0x8] sm:$0xff] %vm77, %v3683
    %3698 = vst.msk [vmem:[#allocation3 + $0x10] sm:$0xff] %vm77, %v3688
    %3699 = vst.msk [vmem:[#allocation3 + $0x18] sm:$0xff] %vm77, %v3693
    %v3700 = vld [vmem:[#allocation2 + $0x1] sm:$0xf]
    %v3701 = vld [vmem:[#allocation2 + $0x9] sm:$0xf]
    %v3702 = vld [vmem:[#allocation2 + $0x11] sm:$0xf]
    %v3703 = vld [vmem:[#allocation2 + $0x19] sm:$0xf]
    %v3704 = vld [vmem:[#allocation2 + $0x31] sm:$0xf]
    %v3705 = vld [vmem:[#allocation2 + $0x39] sm:$0xf]
    %v3706 = vld [vmem:[#allocation2 + $0x41] sm:$0xf]
    %v3707 = vld [vmem:[#allocation2 + $0x49] sm:$0xf]
    %s3708 = scalar_lea.vmem %s1, 224
    %v3709 = vld [vmem:[%s3708] sm:$0xff]
    %v3718 = vcombine.low %v3700, %v3701
    %v3719 = vcombine.low %v3702, %v3703
    %v3720 = vcombine.low %v3704, %v3705
    %v3721 = vcombine.low %v3706, %v3707
    %v3722 = vsel %vm77, %v3718, 0
    %v3724 = vsel %vm77, %v3719, 0
    %v3726 = vsel %vm77, %v3720, 0
    %v3728 = vsel %vm77, %v3721, 0
    %3730 = vmatprep.subr.mxu0 0.0
    %3731 = vmatpush1.msra.mxu0 0.0
    %3732 = vmatprep.subr.mxu0 0.0
    %3733 = vmatpush1.msra.mxu0 0.0
    %3734 = vmatprep.subr.mxu0 0.0
    %3735 = vmatpush1.msra.mxu0 0.0
    %3736 = vmatprep.subr.mxu0 0.0
    %3737 = vmatpush1.msra.mxu0 0.0
    %3738 = vmatprep.subr.mxu0 0.0
    %3739 = vmatpush1.msra.mxu0 0.0
    %3740 = vmatprep.subr.mxu0 0.0
    %3741 = vmatpush1.msra.mxu0 0.0
    %3742 = vmatprep.subr.mxu0 0.0
    %3743 = vmatpush1.msra.mxu0 0.0
    %3744 = vmatprep.subr.mxu0 0.0
    %3745 = vmatpush1.msra.mxu0 0.0
    %3746 = vmatprep.subr.mxu0 0.0
    %3747 = vmatpush1.msra.mxu0 0.0
    %3748 = vmatprep.subr.mxu0 0.0
    %3749 = vmatpush1.msra.mxu0 0.0
    %3750 = vmatprep.subr.mxu0 0.0
    %3751 = vmatpush1.msra.mxu0 0.0
    %3752 = vmatprep.subr.mxu0 0.0
    %3753 = vmatpush1.msra.mxu0 0.0
    %3754 = vmatprep.subr.mxu0 0.0
    %3755 = vmatpush1.msra.mxu0 0.0
    %3756 = vmatprep.subr.mxu0 0.0
    %3757 = vmatpush1.msra.mxu0 0.0
    %3758 = vmatprep.subr.mxu0 0.0
    %3759 = vmatpush1.msra.mxu0 0.0
    %3760 = vmatprep.subr.mxu0 0.0
    %3761 = vmatpush1.msra.mxu0 %v3709
    %3762 = vmatprep.subr.mxu0 0.0
    %3763 = vmatpush2.msra.mxu0 0.0
    %3764 = vmatprep.subr.mxu0 0.0
    %3765 = vmatpush2.msra.mxu0 0.0
    %3766 = vmatprep.subr.mxu0 0.0
    %3767 = vmatpush2.msra.mxu0 0.0
    %3768 = vmatprep.subr.mxu0 0.0
    %3769 = vmatpush2.msra.mxu0 0.0
    %3770 = vmatprep.subr.mxu0 0.0
    %3771 = vmatpush2.msra.mxu0 0.0
    %3772 = vmatprep.subr.mxu0 0.0
    %3773 = vmatpush2.msra.mxu0 0.0
    %3774 = vmatprep.subr.mxu0 0.0
    %3775 = vmatpush2.msra.mxu0 0.0
    %3776 = vmatprep.subr.mxu0 0.0
    %3777 = vmatpush2.msra.mxu0 0.0
    %3778 = vmatprep.subr.mxu0 0.0
    %3779 = vmatpush2.msra.mxu0 0.0
    %3780 = vmatprep.subr.mxu0 0.0
    %3781 = vmatpush2.msra.mxu0 0.0
    %3782 = vmatprep.subr.mxu0 0.0
    %3783 = vmatpush2.msra.mxu0 0.0
    %3784 = vmatprep.subr.mxu0 0.0
    %3785 = vmatpush2.msra.mxu0 0.0
    %3786 = vmatprep.subr.mxu0 0.0
    %3787 = vmatpush2.msra.mxu0 0.0
    %3788 = vmatprep.subr.mxu0 0.0
    %3789 = vmatpush2.msra.mxu0 0.0
    %3790 = vmatprep.subr.mxu0 0.0
    %3791 = vmatpush2.msra.mxu0 0.0
    %3792 = vmatprep.subr.mxu0 0.0
    %3793 = vmatpush2.msra.mxu0 0.0
    %3794 = vmatprep.mubr.f32.mxu0 0.0
    %3795 = vmatmul.mubr.f32.gmra.mxu0 %v3722
    %v3796 = vpop.f32.mrf.mxu0
    %v3797 = vadd.f32 0.0, %v3796
    %v3798 = vpop.f32.mrf.mxu0
    %3799 = vmatprep.mubr.f32.mxu0 0.0
    %3800 = vmatmul.mubr.f32.gmra.mxu0 %v3724
    %v3801 = vpop.f32.mrf.mxu0
    %v3802 = vadd.f32 0.0, %v3801
    %v3803 = vpop.f32.mrf.mxu0
    %3804 = vmatprep.mubr.f32.mxu0 0.0
    %3805 = vmatmul.mubr.f32.gmra.mxu0 %v3726
    %v3806 = vpop.f32.mrf.mxu0
    %v3807 = vadd.f32 0.0, %v3806
    %v3808 = vpop.f32.mrf.mxu0
    %3809 = vmatprep.mubr.f32.mxu0 0.0
    %3810 = vmatmul.mubr.f32.gmra.mxu0 %v3728
    %v3811 = vpop.f32.mrf.mxu0
    %v3812 = vadd.f32 0.0, %v3811
    %v3813 = vpop.f32.mrf.mxu0
    %3814 = vdwg.mxu0
    %v3815 = vld [vmem:[#allocation3] sm:$0xff]
    %v3816 = vld [vmem:[#allocation3 + $0x8] sm:$0xff]
    %v3817 = vld [vmem:[#allocation3 + $0x10] sm:$0xff]
    %v3818 = vld [vmem:[#allocation3 + $0x18] sm:$0xff]
    %v3819 = vadd.f32 %v3815, %v3797
    %v3820 = vadd.f32 %v3816, %v3802
    %v3821 = vadd.f32 %v3817, %v3807
    %v3822 = vadd.f32 %v3818, %v3812
    %3823 = vst.msk [vmem:[#allocation3] sm:$0xff] %vm77, %v3819
    %3824 = vst.msk [vmem:[#allocation3 + $0x8] sm:$0xff] %vm77, %v3820
    %3825 = vst.msk [vmem:[#allocation3 + $0x10] sm:$0xff] %vm77, %v3821
    %3826 = vst.msk [vmem:[#allocation3 + $0x18] sm:$0xff] %vm77, %v3822
    %v3827 = vld [vmem:[#allocation2 + $0x2] sm:$0xf]
    %v3828 = vld [vmem:[#allocation2 + $0xa] sm:$0xf]
    %v3829 = vld [vmem:[#allocation2 + $0x12] sm:$0xf]
    %v3830 = vld [vmem:[#allocation2 + $0x1a] sm:$0xf]
    %v3831 = vld [vmem:[#allocation2 + $0x32] sm:$0xf]
    %v3832 = vld [vmem:[#allocation2 + $0x3a] sm:$0xf]
    %v3833 = vld [vmem:[#allocation2 + $0x42] sm:$0xf]
    %v3834 = vld [vmem:[#allocation2 + $0x4a] sm:$0xf]
    %s3835 = scalar_lea.vmem %s1, 232
    %v3836 = vld [vmem:[%s3835] sm:$0xff]
    %v3845 = vcombine.low %v3827, %v3828
    %v3846 = vcombine.low %v3829, %v3830
    %v3847 = vcombine.low %v3831, %v3832
    %v3848 = vcombine.low %v3833, %v3834
    %v3849 = vsel %vm77, %v3845, 0
    %v3851 = vsel %vm77, %v3846, 0
    %v3853 = vsel %vm77, %v3847, 0
    %v3855 = vsel %vm77, %v3848, 0
    %3857 = vmatprep.subr.mxu0 0.0
    %3858 = vmatpush1.msra.mxu0 0.0
    %3859 = vmatprep.subr.mxu0 0.0
    %3860 = vmatpush1.msra.mxu0 0.0
    %3861 = vmatprep.subr.mxu0 0.0
    %3862 = vmatpush1.msra.mxu0 0.0
    %3863 = vmatprep.subr.mxu0 0.0
    %3864 = vmatpush1.msra.mxu0 0.0
    %3865 = vmatprep.subr.mxu0 0.0
    %3866 = vmatpush1.msra.mxu0 0.0
    %3867 = vmatprep.subr.mxu0 0.0
    %3868 = vmatpush1.msra.mxu0 0.0
    %3869 = vmatprep.subr.mxu0 0.0
    %3870 = vmatpush1.msra.mxu0 0.0
    %3871 = vmatprep.subr.mxu0 0.0
    %3872 = vmatpush1.msra.mxu0 0.0
    %3873 = vmatprep.subr.mxu0 0.0
    %3874 = vmatpush1.msra.mxu0 0.0
    %3875 = vmatprep.subr.mxu0 0.0
    %3876 = vmatpush1.msra.mxu0 0.0
    %3877 = vmatprep.subr.mxu0 0.0
    %3878 = vmatpush1.msra.mxu0 0.0
    %3879 = vmatprep.subr.mxu0 0.0
    %3880 = vmatpush1.msra.mxu0 0.0
    %3881 = vmatprep.subr.mxu0 0.0
    %3882 = vmatpush1.msra.mxu0 0.0
    %3883 = vmatprep.subr.mxu0 0.0
    %3884 = vmatpush1.msra.mxu0 0.0
    %3885 = vmatprep.subr.mxu0 0.0
    %3886 = vmatpush1.msra.mxu0 0.0
    %3887 = vmatprep.subr.mxu0 0.0
    %3888 = vmatpush1.msra.mxu0 %v3836
    %3889 = vmatprep.subr.mxu0 0.0
    %3890 = vmatpush2.msra.mxu0 0.0
    %3891 = vmatprep.subr.mxu0 0.0
    %3892 = vmatpush2.msra.mxu0 0.0
    %3893 = vmatprep.subr.mxu0 0.0
    %3894 = vmatpush2.msra.mxu0 0.0
    %3895 = vmatprep.subr.mxu0 0.0
    %3896 = vmatpush2.msra.mxu0 0.0
    %3897 = vmatprep.subr.mxu0 0.0
    %3898 = vmatpush2.msra.mxu0 0.0
    %3899 = vmatprep.subr.mxu0 0.0
    %3900 = vmatpush2.msra.mxu0 0.0
    %3901 = vmatprep.subr.mxu0 0.0
    %3902 = vmatpush2.msra.mxu0 0.0
    %3903 = vmatprep.subr.mxu0 0.0
    %3904 = vmatpush2.msra.mxu0 0.0
    %3905 = vmatprep.subr.mxu0 0.0
    %3906 = vmatpush2.msra.mxu0 0.0
    %3907 = vmatprep.subr.mxu0 0.0
    %3908 = vmatpush2.msra.mxu0 0.0
    %3909 = vmatprep.subr.mxu0 0.0
    %3910 = vmatpush2.msra.mxu0 0.0
    %3911 = vmatprep.subr.mxu0 0.0
    %3912 = vmatpush2.msra.mxu0 0.0
    %3913 = vmatprep.subr.mxu0 0.0
    %3914 = vmatpush2.msra.mxu0 0.0
    %3915 = vmatprep.subr.mxu0 0.0
    %3916 = vmatpush2.msra.mxu0 0.0
    %3917 = vmatprep.subr.mxu0 0.0
    %3918 = vmatpush2.msra.mxu0 0.0
    %3919 = vmatprep.subr.mxu0 0.0
    %3920 = vmatpush2.msra.mxu0 0.0
    %3921 = vmatprep.mubr.f32.mxu0 0.0
    %3922 = vmatmul.mubr.f32.gmra.mxu0 %v3849
    %v3923 = vpop.f32.mrf.mxu0
    %v3924 = vadd.f32 0.0, %v3923
    %v3925 = vpop.f32.mrf.mxu0
    %3926 = vmatprep.mubr.f32.mxu0 0.0
    %3927 = vmatmul.mubr.f32.gmra.mxu0 %v3851
    %v3928 = vpop.f32.mrf.mxu0
    %v3929 = vadd.f32 0.0, %v3928
    %v3930 = vpop.f32.mrf.mxu0
    %3931 = vmatprep.mubr.f32.mxu0 0.0
    %3932 = vmatmul.mubr.f32.gmra.mxu0 %v3853
    %v3933 = vpop.f32.mrf.mxu0
    %v3934 = vadd.f32 0.0, %v3933
    %v3935 = vpop.f32.mrf.mxu0
    %3936 = vmatprep.mubr.f32.mxu0 0.0
    %3937 = vmatmul.mubr.f32.gmra.mxu0 %v3855
    %v3938 = vpop.f32.mrf.mxu0
    %v3939 = vadd.f32 0.0, %v3938
    %v3940 = vpop.f32.mrf.mxu0
    %3941 = vdwg.mxu0
    %v3942 = vld [vmem:[#allocation3] sm:$0xff]
    %v3943 = vld [vmem:[#allocation3 + $0x8] sm:$0xff]
    %v3944 = vld [vmem:[#allocation3 + $0x10] sm:$0xff]
    %v3945 = vld [vmem:[#allocation3 + $0x18] sm:$0xff]
    %v3946 = vadd.f32 %v3942, %v3924
    %v3947 = vadd.f32 %v3943, %v3929
    %v3948 = vadd.f32 %v3944, %v3934
    %v3949 = vadd.f32 %v3945, %v3939
    %3950 = vst.msk [vmem:[#allocation3] sm:$0xff] %vm77, %v3946
    %3951 = vst.msk [vmem:[#allocation3 + $0x8] sm:$0xff] %vm77, %v3947
    %3952 = vst.msk [vmem:[#allocation3 + $0x10] sm:$0xff] %vm77, %v3948
    %3953 = vst.msk [vmem:[#allocation3 + $0x18] sm:$0xff] %vm77, %v3949
    %v3954 = vld [vmem:[%s21] sm:$0xf]
    %v3955 = vld [vmem:[%s21 + $0x8] sm:$0xf]
    %v3956 = vld [vmem:[%s21 + $0x10] sm:$0xf]
    %v3957 = vld [vmem:[%s21 + $0x18] sm:$0xf]
    %v3958 = vld [vmem:[%s21 + $0x30] sm:$0xf]
    %v3959 = vld [vmem:[%s21 + $0x38] sm:$0xf]
    %v3960 = vld [vmem:[%s21 + $0x40] sm:$0xf]
    %v3961 = vld [vmem:[%s21 + $0x48] sm:$0xf]
    %s3962 = scalar_lea.vmem %s1, 240
    %v3963 = vld [vmem:[%s3962] sm:$0xff]
    %v3972 = vcombine.low %v3954, %v3955
    %v3973 = vcombine.low %v3956, %v3957
    %v3974 = vcombine.low %v3958, %v3959
    %v3975 = vcombine.low %v3960, %v3961
    %v3976 = vsel %vm77, %v3972, 0
    %v3978 = vsel %vm77, %v3973, 0
    %v3980 = vsel %vm77, %v3974, 0
    %v3982 = vsel %vm77, %v3975, 0
    %3984 = vmatprep.subr.mxu0 0.0
    %3985 = vmatpush1.msra.mxu0 0.0
    %3986 = vmatprep.subr.mxu0 0.0
    %3987 = vmatpush1.msra.mxu0 0.0
    %3988 = vmatprep.subr.mxu0 0.0
    %3989 = vmatpush1.msra.mxu0 0.0
    %3990 = vmatprep.subr.mxu0 0.0
    %3991 = vmatpush1.msra.mxu0 0.0
    %3992 = vmatprep.subr.mxu0 0.0
    %3993 = vmatpush1.msra.mxu0 0.0
    %3994 = vmatprep.subr.mxu0 0.0
    %3995 = vmatpush1.msra.mxu0 0.0
    %3996 = vmatprep.subr.mxu0 0.0
    %3997 = vmatpush1.msra.mxu0 0.0
    %3998 = vmatprep.subr.mxu0 0.0
    %3999 = vmatpush1.msra.mxu0 0.0
    %4000 = vmatprep.subr.mxu0 0.0
    %4001 = vmatpush1.msra.mxu0 0.0
    %4002 = vmatprep.subr.mxu0 0.0
    %4003 = vmatpush1.msra.mxu0 0.0
    %4004 = vmatprep.subr.mxu0 0.0
    %4005 = vmatpush1.msra.mxu0 0.0
    %4006 = vmatprep.subr.mxu0 0.0
    %4007 = vmatpush1.msra.mxu0 0.0
    %4008 = vmatprep.subr.mxu0 0.0
    %4009 = vmatpush1.msra.mxu0 0.0
    %4010 = vmatprep.subr.mxu0 0.0
    %4011 = vmatpush1.msra.mxu0 0.0
    %4012 = vmatprep.subr.mxu0 0.0
    %4013 = vmatpush1.msra.mxu0 0.0
    %4014 = vmatprep.subr.mxu0 0.0
    %4015 = vmatpush1.msra.mxu0 %v3963
    %4016 = vmatprep.subr.mxu0 0.0
    %4017 = vmatpush2.msra.mxu0 0.0
    %4018 = vmatprep.subr.mxu0 0.0
    %4019 = vmatpush2.msra.mxu0 0.0
    %4020 = vmatprep.subr.mxu0 0.0
    %4021 = vmatpush2.msra.mxu0 0.0
    %4022 = vmatprep.subr.mxu0 0.0
    %4023 = vmatpush2.msra.mxu0 0.0
    %4024 = vmatprep.subr.mxu0 0.0
    %4025 = vmatpush2.msra.mxu0 0.0
    %4026 = vmatprep.subr.mxu0 0.0
    %4027 = vmatpush2.msra.mxu0 0.0
    %4028 = vmatprep.subr.mxu0 0.0
    %4029 = vmatpush2.msra.mxu0 0.0
    %4030 = vmatprep.subr.mxu0 0.0
    %4031 = vmatpush2.msra.mxu0 0.0
    %4032 = vmatprep.subr.mxu0 0.0
    %4033 = vmatpush2.msra.mxu0 0.0
    %4034 = vmatprep.subr.mxu0 0.0
    %4035 = vmatpush2.msra.mxu0 0.0
    %4036 = vmatprep.subr.mxu0 0.0
    %4037 = vmatpush2.msra.mxu0 0.0
    %4038 = vmatprep.subr.mxu0 0.0
    %4039 = vmatpush2.msra.mxu0 0.0
    %4040 = vmatprep.subr.mxu0 0.0
    %4041 = vmatpush2.msra.mxu0 0.0
    %4042 = vmatprep.subr.mxu0 0.0
    %4043 = vmatpush2.msra.mxu0 0.0
    %4044 = vmatprep.subr.mxu0 0.0
    %4045 = vmatpush2.msra.mxu0 0.0
    %4046 = vmatprep.subr.mxu0 0.0
    %4047 = vmatpush2.msra.mxu0 0.0
    %4048 = vmatprep.mubr.f32.mxu0 0.0
    %4049 = vmatmul.mubr.f32.gmra.mxu0 %v3976
    %v4050 = vpop.f32.mrf.mxu0
    %v4051 = vadd.f32 0.0, %v4050
    %v4052 = vpop.f32.mrf.mxu0
    %4053 = vmatprep.mubr.f32.mxu0 0.0
    %4054 = vmatmul.mubr.f32.gmra.mxu0 %v3978
    %v4055 = vpop.f32.mrf.mxu0
    %v4056 = vadd.f32 0.0, %v4055
    %v4057 = vpop.f32.mrf.mxu0
    %4058 = vmatprep.mubr.f32.mxu0 0.0
    %4059 = vmatmul.mubr.f32.gmra.mxu0 %v3980
    %v4060 = vpop.f32.mrf.mxu0
    %v4061 = vadd.f32 0.0, %v4060
    %v4062 = vpop.f32.mrf.mxu0
    %4063 = vmatprep.mubr.f32.mxu0 0.0
    %4064 = vmatmul.mubr.f32.gmra.mxu0 %v3982
    %v4065 = vpop.f32.mrf.mxu0
    %v4066 = vadd.f32 0.0, %v4065
    %v4067 = vpop.f32.mrf.mxu0
    %4068 = vdwg.mxu0
    %v4069 = vld [vmem:[#allocation3] sm:$0xff]
    %v4070 = vld [vmem:[#allocation3 + $0x8] sm:$0xff]
    %v4071 = vld [vmem:[#allocation3 + $0x10] sm:$0xff]
    %v4072 = vld [vmem:[#allocation3 + $0x18] sm:$0xff]
    %v4073 = vadd.f32 %v4069, %v4051
    %v4074 = vadd.f32 %v4070, %v4056
    %v4075 = vadd.f32 %v4071, %v4061
    %v4076 = vadd.f32 %v4072, %v4066
    %4077 = vst.msk [vmem:[#allocation3] sm:$0xff] %vm77, %v4073
    %4078 = vst.msk [vmem:[#allocation3 + $0x8] sm:$0xff] %vm77, %v4074
    %4079 = vst.msk [vmem:[#allocation3 + $0x10] sm:$0xff] %vm77, %v4075
    %4080 = vst.msk [vmem:[#allocation3 + $0x18] sm:$0xff] %vm77, %v4076
    %v4081 = vld [vmem:[%s21 + $0x1] sm:$0xf]
    %v4082 = vld [vmem:[%s21 + $0x9] sm:$0xf]
    %v4083 = vld [vmem:[%s21 + $0x11] sm:$0xf]
    %v4084 = vld [vmem:[%s21 + $0x19] sm:$0xf]
    %v4085 = vld [vmem:[%s21 + $0x31] sm:$0xf]
    %v4086 = vld [vmem:[%s21 + $0x39] sm:$0xf]
    %v4087 = vld [vmem:[%s21 + $0x41] sm:$0xf]
    %v4088 = vld [vmem:[%s21 + $0x49] sm:$0xf]
    %s4089 = scalar_lea.vmem %s1, 248
    %v4090 = vld [vmem:[%s4089] sm:$0xff]
    %v4099 = vcombine.low %v4081, %v4082
    %v4100 = vcombine.low %v4083, %v4084
    %v4101 = vcombine.low %v4085, %v4086
    %v4102 = vcombine.low %v4087, %v4088
    %v4103 = vsel %vm77, %v4099, 0
    %v4105 = vsel %vm77, %v4100, 0
    %v4107 = vsel %vm77, %v4101, 0
    %v4109 = vsel %vm77, %v4102, 0
    %4111 = vmatprep.subr.mxu0 0.0
    %4112 = vmatpush1.msra.mxu0 0.0
    %4113 = vmatprep.subr.mxu0 0.0
    %4114 = vmatpush1.msra.mxu0 0.0
    %4115 = vmatprep.subr.mxu0 0.0
    %4116 = vmatpush1.msra.mxu0 0.0
    %4117 = vmatprep.subr.mxu0 0.0
    %4118 = vmatpush1.msra.mxu0 0.0
    %4119 = vmatprep.subr.mxu0 0.0
    %4120 = vmatpush1.msra.mxu0 0.0
    %4121 = vmatprep.subr.mxu0 0.0
    %4122 = vmatpush1.msra.mxu0 0.0
    %4123 = vmatprep.subr.mxu0 0.0
    %4124 = vmatpush1.msra.mxu0 0.0
    %4125 = vmatprep.subr.mxu0 0.0
    %4126 = vmatpush1.msra.mxu0 0.0
    %4127 = vmatprep.subr.mxu0 0.0
    %4128 = vmatpush1.msra.mxu0 0.0
    %4129 = vmatprep.subr.mxu0 0.0
    %4130 = vmatpush1.msra.mxu0 0.0
    %4131 = vmatprep.subr.mxu0 0.0
    %4132 = vmatpush1.msra.mxu0 0.0
    %4133 = vmatprep.subr.mxu0 0.0
    %4134 = vmatpush1.msra.mxu0 0.0
    %4135 = vmatprep.subr.mxu0 0.0
    %4136 = vmatpush1.msra.mxu0 0.0
    %4137 = vmatprep.subr.mxu0 0.0
    %4138 = vmatpush1.msra.mxu0 0.0
    %4139 = vmatprep.subr.mxu0 0.0
    %4140 = vmatpush1.msra.mxu0 0.0
    %4141 = vmatprep.subr.mxu0 0.0
    %4142 = vmatpush1.msra.mxu0 %v4090
    %4143 = vmatprep.subr.mxu0 0.0
    %4144 = vmatpush2.msra.mxu0 0.0
    %4145 = vmatprep.subr.mxu0 0.0
    %4146 = vmatpush2.msra.mxu0 0.0
    %4147 = vmatprep.subr.mxu0 0.0
    %4148 = vmatpush2.msra.mxu0 0.0
    %4149 = vmatprep.subr.mxu0 0.0
    %4150 = vmatpush2.msra.mxu0 0.0
    %4151 = vmatprep.subr.mxu0 0.0
    %4152 = vmatpush2.msra.mxu0 0.0
    %4153 = vmatprep.subr.mxu0 0.0
    %4154 = vmatpush2.msra.mxu0 0.0
    %4155 = vmatprep.subr.mxu0 0.0
    %4156 = vmatpush2.msra.mxu0 0.0
    %4157 = vmatprep.subr.mxu0 0.0
    %4158 = vmatpush2.msra.mxu0 0.0
    %4159 = vmatprep.subr.mxu0 0.0
    %4160 = vmatpush2.msra.mxu0 0.0
    %4161 = vmatprep.subr.mxu0 0.0
    %4162 = vmatpush2.msra.mxu0 0.0
    %4163 = vmatprep.subr.mxu0 0.0
    %4164 = vmatpush2.msra.mxu0 0.0
    %4165 = vmatprep.subr.mxu0 0.0
    %4166 = vmatpush2.msra.mxu0 0.0
    %4167 = vmatprep.subr.mxu0 0.0
    %4168 = vmatpush2.msra.mxu0 0.0
    %4169 = vmatprep.subr.mxu0 0.0
    %4170 = vmatpush2.msra.mxu0 0.0
    %4171 = vmatprep.subr.mxu0 0.0
    %4172 = vmatpush2.msra.mxu0 0.0
    %4173 = vmatprep.subr.mxu0 0.0
    %4174 = vmatpush2.msra.mxu0 0.0
    %4175 = vmatprep.mubr.f32.mxu0 0.0
    %4176 = vmatmul.mubr.f32.gmra.mxu0 %v4103
    %v4177 = vpop.f32.mrf.mxu0
    %v4178 = vadd.f32 0.0, %v4177
    %v4179 = vpop.f32.mrf.mxu0
    %4180 = vmatprep.mubr.f32.mxu0 0.0
    %4181 = vmatmul.mubr.f32.gmra.mxu0 %v4105
    %v4182 = vpop.f32.mrf.mxu0
    %v4183 = vadd.f32 0.0, %v4182
    %v4184 = vpop.f32.mrf.mxu0
    %4185 = vmatprep.mubr.f32.mxu0 0.0
    %4186 = vmatmul.mubr.f32.gmra.mxu0 %v4107
    %v4187 = vpop.f32.mrf.mxu0
    %v4188 = vadd.f32 0.0, %v4187
    %v4189 = vpop.f32.mrf.mxu0
    %4190 = vmatprep.mubr.f32.mxu0 0.0
    %4191 = vmatmul.mubr.f32.gmra.mxu0 %v4109
    %v4192 = vpop.f32.mrf.mxu0
    %v4193 = vadd.f32 0.0, %v4192
    %v4194 = vpop.f32.mrf.mxu0
    %4195 = vdwg.mxu0
    %v4196 = vld [vmem:[#allocation3] sm:$0xff]
    %v4197 = vld [vmem:[#allocation3 + $0x8] sm:$0xff]
    %v4198 = vld [vmem:[#allocation3 + $0x10] sm:$0xff]
    %v4199 = vld [vmem:[#allocation3 + $0x18] sm:$0xff]
    %v4200 = vadd.f32 %v4196, %v4178
    %v4201 = vadd.f32 %v4197, %v4183
    %v4202 = vadd.f32 %v4198, %v4188
    %v4203 = vadd.f32 %v4199, %v4193
    %4204 = vst.msk [vmem:[#allocation3] sm:$0xff] %vm77, %v4200
    %4205 = vst.msk [vmem:[#allocation3 + $0x8] sm:$0xff] %vm77, %v4201
    %4206 = vst.msk [vmem:[#allocation3 + $0x10] sm:$0xff] %vm77, %v4202
    %4207 = vst.msk [vmem:[#allocation3 + $0x18] sm:$0xff] %vm77, %v4203
    %v4208 = vld [vmem:[%s21 + $0x2] sm:$0xf]
    %v4209 = vld [vmem:[%s21 + $0xa] sm:$0xf]
    %v4210 = vld [vmem:[%s21 + $0x12] sm:$0xf]
    %v4211 = vld [vmem:[%s21 + $0x1a] sm:$0xf]
    %v4212 = vld [vmem:[%s21 + $0x32] sm:$0xf]
    %v4213 = vld [vmem:[%s21 + $0x3a] sm:$0xf]
    %v4214 = vld [vmem:[%s21 + $0x42] sm:$0xf]
    %v4215 = vld [vmem:[%s21 + $0x4a] sm:$0xf]
    %s4216 = scalar_lea.vmem %s1, 256
    %v4217 = vld [vmem:[%s4216] sm:$0xff]
    %v4226 = vcombine.low %v4208, %v4209
    %v4227 = vcombine.low %v4210, %v4211
    %v4228 = vcombine.low %v4212, %v4213
    %v4229 = vcombine.low %v4214, %v4215
    %v4230 = vsel %vm77, %v4226, 0
    %v4232 = vsel %vm77, %v4227, 0
    %v4234 = vsel %vm77, %v4228, 0
    %v4236 = vsel %vm77, %v4229, 0
    %4238 = vmatprep.subr.mxu0 0.0
    %4239 = vmatpush1.msra.mxu0 0.0
    %4240 = vmatprep.subr.mxu0 0.0
    %4241 = vmatpush1.msra.mxu0 0.0
    %4242 = vmatprep.subr.mxu0 0.0
    %4243 = vmatpush1.msra.mxu0 0.0
    %4244 = vmatprep.subr.mxu0 0.0
    %4245 = vmatpush1.msra.mxu0 0.0
    %4246 = vmatprep.subr.mxu0 0.0
    %4247 = vmatpush1.msra.mxu0 0.0
    %4248 = vmatprep.subr.mxu0 0.0
    %4249 = vmatpush1.msra.mxu0 0.0
    %4250 = vmatprep.subr.mxu0 0.0
    %4251 = vmatpush1.msra.mxu0 0.0
    %4252 = vmatprep.subr.mxu0 0.0
    %4253 = vmatpush1.msra.mxu0 0.0
    %4254 = vmatprep.subr.mxu0 0.0
    %4255 = vmatpush1.msra.mxu0 0.0
    %4256 = vmatprep.subr.mxu0 0.0
    %4257 = vmatpush1.msra.mxu0 0.0
    %4258 = vmatprep.subr.mxu0 0.0
    %4259 = vmatpush1.msra.mxu0 0.0
    %4260 = vmatprep.subr.mxu0 0.0
    %4261 = vmatpush1.msra.mxu0 0.0
    %4262 = vmatprep.subr.mxu0 0.0
    %4263 = vmatpush1.msra.mxu0 0.0
    %4264 = vmatprep.subr.mxu0 0.0
    %4265 = vmatpush1.msra.mxu0 0.0
    %4266 = vmatprep.subr.mxu0 0.0
    %4267 = vmatpush1.msra.mxu0 0.0
    %4268 = vmatprep.subr.mxu0 0.0
    %4269 = vmatpush1.msra.mxu0 %v4217
    %4270 = vmatprep.subr.mxu0 0.0
    %4271 = vmatpush2.msra.mxu0 0.0
    %4272 = vmatprep.subr.mxu0 0.0
    %4273 = vmatpush2.msra.mxu0 0.0
    %4274 = vmatprep.subr.mxu0 0.0
    %4275 = vmatpush2.msra.mxu0 0.0
    %4276 = vmatprep.subr.mxu0 0.0
    %4277 = vmatpush2.msra.mxu0 0.0
    %4278 = vmatprep.subr.mxu0 0.0
    %4279 = vmatpush2.msra.mxu0 0.0
    %4280 = vmatprep.subr.mxu0 0.0
    %4281 = vmatpush2.msra.mxu0 0.0
    %4282 = vmatprep.subr.mxu0 0.0
    %4283 = vmatpush2.msra.mxu0 0.0
    %4284 = vmatprep.subr.mxu0 0.0
    %4285 = vmatpush2.msra.mxu0 0.0
    %4286 = vmatprep.subr.mxu0 0.0
    %4287 = vmatpush2.msra.mxu0 0.0
    %4288 = vmatprep.subr.mxu0 0.0
    %4289 = vmatpush2.msra.mxu0 0.0
    %4290 = vmatprep.subr.mxu0 0.0
    %4291 = vmatpush2.msra.mxu0 0.0
    %4292 = vmatprep.subr.mxu0 0.0
    %4293 = vmatpush2.msra.mxu0 0.0
    %4294 = vmatprep.subr.mxu0 0.0
    %4295 = vmatpush2.msra.mxu0 0.0
    %4296 = vmatprep.subr.mxu0 0.0
    %4297 = vmatpush2.msra.mxu0 0.0
    %4298 = vmatprep.subr.mxu0 0.0
    %4299 = vmatpush2.msra.mxu0 0.0
    %4300 = vmatprep.subr.mxu0 0.0
    %4301 = vmatpush2.msra.mxu0 0.0
    %4302 = vmatprep.mubr.f32.mxu0 0.0
    %4303 = vmatmul.mubr.f32.gmra.mxu0 %v4230
    %v4304 = vpop.f32.mrf.mxu0
    %v4305 = vadd.f32 0.0, %v4304
    %v4306 = vpop.f32.mrf.mxu0
    %4307 = vmatprep.mubr.f32.mxu0 0.0
    %4308 = vmatmul.mubr.f32.gmra.mxu0 %v4232
    %v4309 = vpop.f32.mrf.mxu0
    %v4310 = vadd.f32 0.0, %v4309
    %v4311 = vpop.f32.mrf.mxu0
    %4312 = vmatprep.mubr.f32.mxu0 0.0
    %4313 = vmatmul.mubr.f32.gmra.mxu0 %v4234
    %v4314 = vpop.f32.mrf.mxu0
    %v4315 = vadd.f32 0.0, %v4314
    %v4316 = vpop.f32.mrf.mxu0
    %4317 = vmatprep.mubr.f32.mxu0 0.0
    %4318 = vmatmul.mubr.f32.gmra.mxu0 %v4236
    %v4319 = vpop.f32.mrf.mxu0
    %v4320 = vadd.f32 0.0, %v4319
    %v4321 = vpop.f32.mrf.mxu0
    %4322 = vdwg.mxu0
    %v4323 = vld [vmem:[#allocation3] sm:$0xff]
    %v4324 = vld [vmem:[#allocation3 + $0x8] sm:$0xff]
    %v4325 = vld [vmem:[#allocation3 + $0x10] sm:$0xff]
    %v4326 = vld [vmem:[#allocation3 + $0x18] sm:$0xff]
    %v4327 = vadd.f32 %v4323, %v4305
    %v4328 = vadd.f32 %v4324, %v4310
    %v4329 = vadd.f32 %v4325, %v4315
    %v4330 = vadd.f32 %v4326, %v4320
    %4331 = vst.msk [vmem:[#allocation3] sm:$0xff] %vm77, %v4327
    %4332 = vst.msk [vmem:[#allocation3 + $0x8] sm:$0xff] %vm77, %v4328
    %4333 = vst.msk [vmem:[#allocation3 + $0x10] sm:$0xff] %vm77, %v4329
    %4334 = vst.msk [vmem:[#allocation3 + $0x18] sm:$0xff] %vm77, %v4330
    %v4335 = vld [vmem:[%s810] sm:$0xf]
    %v4336 = vld [vmem:[%s810 + $0x8] sm:$0xf]
    %v4337 = vld [vmem:[%s810 + $0x10] sm:$0xf]
    %v4338 = vld [vmem:[%s810 + $0x18] sm:$0xf]
    %v4339 = vld [vmem:[%s810 + $0x30] sm:$0xf]
    %v4340 = vld [vmem:[%s810 + $0x38] sm:$0xf]
    %v4341 = vld [vmem:[%s810 + $0x40] sm:$0xf]
    %v4342 = vld [vmem:[%s810 + $0x48] sm:$0xf]
    %s4343 = scalar_lea.vmem %s1, 264
    %v4344 = vld [vmem:[%s4343] sm:$0xff]
    %v4353 = vcombine.low %v4335, %v4336
    %v4354 = vcombine.low %v4337, %v4338
    %v4355 = vcombine.low %v4339, %v4340
    %v4356 = vcombine.low %v4341, %v4342
    %v4357 = vsel %vm77, %v4353, 0
    %v4359 = vsel %vm77, %v4354, 0
    %v4361 = vsel %vm77, %v4355, 0
    %v4363 = vsel %vm77, %v4356, 0
    %4365 = vmatprep.subr.mxu0 0.0
    %4366 = vmatpush1.msra.mxu0 0.0
    %4367 = vmatprep.subr.mxu0 0.0
    %4368 = vmatpush1.msra.mxu0 0.0
    %4369 = vmatprep.subr.mxu0 0.0
    %4370 = vmatpush1.msra.mxu0 0.0
    %4371 = vmatprep.subr.mxu0 0.0
    %4372 = vmatpush1.msra.mxu0 0.0
    %4373 = vmatprep.subr.mxu0 0.0
    %4374 = vmatpush1.msra.mxu0 0.0
    %4375 = vmatprep.subr.mxu0 0.0
    %4376 = vmatpush1.msra.mxu0 0.0
    %4377 = vmatprep.subr.mxu0 0.0
    %4378 = vmatpush1.msra.mxu0 0.0
    %4379 = vmatprep.subr.mxu0 0.0
    %4380 = vmatpush1.msra.mxu0 0.0
    %4381 = vmatprep.subr.mxu0 0.0
    %4382 = vmatpush1.msra.mxu0 0.0
    %4383 = vmatprep.subr.mxu0 0.0
    %4384 = vmatpush1.msra.mxu0 0.0
    %4385 = vmatprep.subr.mxu0 0.0
    %4386 = vmatpush1.msra.mxu0 0.0
    %4387 = vmatprep.subr.mxu0 0.0
    %4388 = vmatpush1.msra.mxu0 0.0
    %4389 = vmatprep.subr.mxu0 0.0
    %4390 = vmatpush1.msra.mxu0 0.0
    %4391 = vmatprep.subr.mxu0 0.0
    %4392 = vmatpush1.msra.mxu0 0.0
    %4393 = vmatprep.subr.mxu0 0.0
    %4394 = vmatpush1.msra.mxu0 0.0
    %4395 = vmatprep.subr.mxu0 0.0
    %4396 = vmatpush1.msra.mxu0 %v4344
    %4397 = vmatprep.subr.mxu0 0.0
    %4398 = vmatpush2.msra.mxu0 0.0
    %4399 = vmatprep.subr.mxu0 0.0
    %4400 = vmatpush2.msra.mxu0 0.0
    %4401 = vmatprep.subr.mxu0 0.0
    %4402 = vmatpush2.msra.mxu0 0.0
    %4403 = vmatprep.subr.mxu0 0.0
    %4404 = vmatpush2.msra.mxu0 0.0
    %4405 = vmatprep.subr.mxu0 0.0
    %4406 = vmatpush2.msra.mxu0 0.0
    %4407 = vmatprep.subr.mxu0 0.0
    %4408 = vmatpush2.msra.mxu0 0.0
    %4409 = vmatprep.subr.mxu0 0.0
    %4410 = vmatpush2.msra.mxu0 0.0
    %4411 = vmatprep.subr.mxu0 0.0
    %4412 = vmatpush2.msra.mxu0 0.0
    %4413 = vmatprep.subr.mxu0 0.0
    %4414 = vmatpush2.msra.mxu0 0.0
    %4415 = vmatprep.subr.mxu0 0.0
    %4416 = vmatpush2.msra.mxu0 0.0
    %4417 = vmatprep.subr.mxu0 0.0
    %4418 = vmatpush2.msra.mxu0 0.0
    %4419 = vmatprep.subr.mxu0 0.0
    %4420 = vmatpush2.msra.mxu0 0.0
    %4421 = vmatprep.subr.mxu0 0.0
    %4422 = vmatpush2.msra.mxu0 0.0
    %4423 = vmatprep.subr.mxu0 0.0
    %4424 = vmatpush2.msra.mxu0 0.0
    %4425 = vmatprep.subr.mxu0 0.0
    %4426 = vmatpush2.msra.mxu0 0.0
    %4427 = vmatprep.subr.mxu0 0.0
    %4428 = vmatpush2.msra.mxu0 0.0
    %4429 = vmatprep.mubr.f32.mxu0 0.0
    %4430 = vmatmul.mubr.f32.gmra.mxu0 %v4357
    %v4431 = vpop.f32.mrf.mxu0
    %v4432 = vadd.f32 0.0, %v4431
    %v4433 = vpop.f32.mrf.mxu0
    %4434 = vmatprep.mubr.f32.mxu0 0.0
    %4435 = vmatmul.mubr.f32.gmra.mxu0 %v4359
    %v4436 = vpop.f32.mrf.mxu0
    %v4437 = vadd.f32 0.0, %v4436
    %v4438 = vpop.f32.mrf.mxu0
    %4439 = vmatprep.mubr.f32.mxu0 0.0
    %4440 = vmatmul.mubr.f32.gmra.mxu0 %v4361
    %v4441 = vpop.f32.mrf.mxu0
    %v4442 = vadd.f32 0.0, %v4441
    %v4443 = vpop.f32.mrf.mxu0
    %4444 = vmatprep.mubr.f32.mxu0 0.0
    %4445 = vmatmul.mubr.f32.gmra.mxu0 %v4363
    %v4446 = vpop.f32.mrf.mxu0
    %v4447 = vadd.f32 0.0, %v4446
    %v4448 = vpop.f32.mrf.mxu0
    %4449 = vdwg.mxu0
    %v4450 = vld [vmem:[#allocation3] sm:$0xff]
    %v4451 = vld [vmem:[#allocation3 + $0x8] sm:$0xff]
    %v4452 = vld [vmem:[#allocation3 + $0x10] sm:$0xff]
    %v4453 = vld [vmem:[#allocation3 + $0x18] sm:$0xff]
    %v4454 = vadd.f32 %v4450, %v4432
    %v4455 = vadd.f32 %v4451, %v4437
    %v4456 = vadd.f32 %v4452, %v4442
    %v4457 = vadd.f32 %v4453, %v4447
    %4458 = vst.msk [vmem:[#allocation3] sm:$0xff] %vm77, %v4454
    %4459 = vst.msk [vmem:[#allocation3 + $0x8] sm:$0xff] %vm77, %v4455
    %4460 = vst.msk [vmem:[#allocation3 + $0x10] sm:$0xff] %vm77, %v4456
    %4461 = vst.msk [vmem:[#allocation3 + $0x18] sm:$0xff] %vm77, %v4457
    %v4462 = vld [vmem:[%s810 + $0x1] sm:$0xf]
    %v4463 = vld [vmem:[%s810 + $0x9] sm:$0xf]
    %v4464 = vld [vmem:[%s810 + $0x11] sm:$0xf]
    %v4465 = vld [vmem:[%s810 + $0x19] sm:$0xf]
    %v4466 = vld [vmem:[%s810 + $0x31] sm:$0xf]
    %v4467 = vld [vmem:[%s810 + $0x39] sm:$0xf]
    %v4468 = vld [vmem:[%s810 + $0x41] sm:$0xf]
    %v4469 = vld [vmem:[%s810 + $0x49] sm:$0xf]
    %s4470 = scalar_lea.vmem %s1, 272
    %v4471 = vld [vmem:[%s4470] sm:$0xff]
    %v4480 = vcombine.low %v4462, %v4463
    %v4481 = vcombine.low %v4464, %v4465
    %v4482 = vcombine.low %v4466, %v4467
    %v4483 = vcombine.low %v4468, %v4469
    %v4484 = vsel %vm77, %v4480, 0
    %v4486 = vsel %vm77, %v4481, 0
    %v4488 = vsel %vm77, %v4482, 0
    %v4490 = vsel %vm77, %v4483, 0
    %4492 = vmatprep.subr.mxu0 0.0
    %4493 = vmatpush1.msra.mxu0 0.0
    %4494 = vmatprep.subr.mxu0 0.0
    %4495 = vmatpush1.msra.mxu0 0.0
    %4496 = vmatprep.subr.mxu0 0.0
    %4497 = vmatpush1.msra.mxu0 0.0
    %4498 = vmatprep.subr.mxu0 0.0
    %4499 = vmatpush1.msra.mxu0 0.0
    %4500 = vmatprep.subr.mxu0 0.0
    %4501 = vmatpush1.msra.mxu0 0.0
    %4502 = vmatprep.subr.mxu0 0.0
    %4503 = vmatpush1.msra.mxu0 0.0
    %4504 = vmatprep.subr.mxu0 0.0
    %4505 = vmatpush1.msra.mxu0 0.0
    %4506 = vmatprep.subr.mxu0 0.0
    %4507 = vmatpush1.msra.mxu0 0.0
    %4508 = vmatprep.subr.mxu0 0.0
    %4509 = vmatpush1.msra.mxu0 0.0
    %4510 = vmatprep.subr.mxu0 0.0
    %4511 = vmatpush1.msra.mxu0 0.0
    %4512 = vmatprep.subr.mxu0 0.0
    %4513 = vmatpush1.msra.mxu0 0.0
    %4514 = vmatprep.subr.mxu0 0.0
    %4515 = vmatpush1.msra.mxu0 0.0
    %4516 = vmatprep.subr.mxu0 0.0
    %4517 = vmatpush1.msra.mxu0 0.0
    %4518 = vmatprep.subr.mxu0 0.0
    %4519 = vmatpush1.msra.mxu0 0.0
    %4520 = vmatprep.subr.mxu0 0.0
    %4521 = vmatpush1.msra.mxu0 0.0
    %4522 = vmatprep.subr.mxu0 0.0
    %4523 = vmatpush1.msra.mxu0 %v4471
    %4524 = vmatprep.subr.mxu0 0.0
    %4525 = vmatpush2.msra.mxu0 0.0
    %4526 = vmatprep.subr.mxu0 0.0
    %4527 = vmatpush2.msra.mxu0 0.0
    %4528 = vmatprep.subr.mxu0 0.0
    %4529 = vmatpush2.msra.mxu0 0.0
    %4530 = vmatprep.subr.mxu0 0.0
    %4531 = vmatpush2.msra.mxu0 0.0
    %4532 = vmatprep.subr.mxu0 0.0
    %4533 = vmatpush2.msra.mxu0 0.0
    %4534 = vmatprep.subr.mxu0 0.0
    %4535 = vmatpush2.msra.mxu0 0.0
    %4536 = vmatprep.subr.mxu0 0.0
    %4537 = vmatpush2.msra.mxu0 0.0
    %4538 = vmatprep.subr.mxu0 0.0
    %4539 = vmatpush2.msra.mxu0 0.0
    %4540 = vmatprep.subr.mxu0 0.0
    %4541 = vmatpush2.msra.mxu0 0.0
    %4542 = vmatprep.subr.mxu0 0.0
    %4543 = vmatpush2.msra.mxu0 0.0
    %4544 = vmatprep.subr.mxu0 0.0
    %4545 = vmatpush2.msra.mxu0 0.0
    %4546 = vmatprep.subr.mxu0 0.0
    %4547 = vmatpush2.msra.mxu0 0.0
    %4548 = vmatprep.subr.mxu0 0.0
    %4549 = vmatpush2.msra.mxu0 0.0
    %4550 = vmatprep.subr.mxu0 0.0
    %4551 = vmatpush2.msra.mxu0 0.0
    %4552 = vmatprep.subr.mxu0 0.0
    %4553 = vmatpush2.msra.mxu0 0.0
    %4554 = vmatprep.subr.mxu0 0.0
    %4555 = vmatpush2.msra.mxu0 0.0
    %4556 = vmatprep.mubr.f32.mxu0 0.0
    %4557 = vmatmul.mubr.f32.gmra.mxu0 %v4484
    %v4558 = vpop.f32.mrf.mxu0
    %v4559 = vadd.f32 0.0, %v4558
    %v4560 = vpop.f32.mrf.mxu0
    %4561 = vmatprep.mubr.f32.mxu0 0.0
    %4562 = vmatmul.mubr.f32.gmra.mxu0 %v4486
    %v4563 = vpop.f32.mrf.mxu0
    %v4564 = vadd.f32 0.0, %v4563
    %v4565 = vpop.f32.mrf.mxu0
    %4566 = vmatprep.mubr.f32.mxu0 0.0
    %4567 = vmatmul.mubr.f32.gmra.mxu0 %v4488
    %v4568 = vpop.f32.mrf.mxu0
    %v4569 = vadd.f32 0.0, %v4568
    %v4570 = vpop.f32.mrf.mxu0
    %4571 = vmatprep.mubr.f32.mxu0 0.0
    %4572 = vmatmul.mubr.f32.gmra.mxu0 %v4490
    %v4573 = vpop.f32.mrf.mxu0
    %v4574 = vadd.f32 0.0, %v4573
    %v4575 = vpop.f32.mrf.mxu0
    %4576 = vdwg.mxu0
    %v4577 = vld [vmem:[#allocation3] sm:$0xff]
    %v4578 = vld [vmem:[#allocation3 + $0x8] sm:$0xff]
    %v4579 = vld [vmem:[#allocation3 + $0x10] sm:$0xff]
    %v4580 = vld [vmem:[#allocation3 + $0x18] sm:$0xff]
    %v4581 = vadd.f32 %v4577, %v4559
    %v4582 = vadd.f32 %v4578, %v4564
    %v4583 = vadd.f32 %v4579, %v4569
    %v4584 = vadd.f32 %v4580, %v4574
    %4585 = vst.msk [vmem:[#allocation3] sm:$0xff] %vm77, %v4581
    %4586 = vst.msk [vmem:[#allocation3 + $0x8] sm:$0xff] %vm77, %v4582
    %4587 = vst.msk [vmem:[#allocation3 + $0x10] sm:$0xff] %vm77, %v4583
    %4588 = vst.msk [vmem:[#allocation3 + $0x18] sm:$0xff] %vm77, %v4584
    %v4589 = vld [vmem:[%s810 + $0x2] sm:$0xf]
    %v4590 = vld [vmem:[%s810 + $0xa] sm:$0xf]
    %v4591 = vld [vmem:[%s810 + $0x12] sm:$0xf]
    %v4592 = vld [vmem:[%s810 + $0x1a] sm:$0xf]
    %v4593 = vld [vmem:[%s810 + $0x32] sm:$0xf]
    %v4594 = vld [vmem:[%s810 + $0x3a] sm:$0xf]
    %v4595 = vld [vmem:[%s810 + $0x42] sm:$0xf]
    %v4596 = vld [vmem:[%s810 + $0x4a] sm:$0xf]
    %s4597 = scalar_lea.vmem %s1, 280
    %v4598 = vld [vmem:[%s4597] sm:$0xff]
    %v4607 = vcombine.low %v4589, %v4590
    %v4608 = vcombine.low %v4591, %v4592
    %v4609 = vcombine.low %v4593, %v4594
    %v4610 = vcombine.low %v4595, %v4596
    %v4611 = vsel %vm77, %v4607, 0
    %v4613 = vsel %vm77, %v4608, 0
    %v4615 = vsel %vm77, %v4609, 0
    %v4617 = vsel %vm77, %v4610, 0
    %4619 = vmatprep.subr.mxu0 0.0
    %4620 = vmatpush1.msra.mxu0 0.0
    %4621 = vmatprep.subr.mxu0 0.0
    %4622 = vmatpush1.msra.mxu0 0.0
    %4623 = vmatprep.subr.mxu0 0.0
    %4624 = vmatpush1.msra.mxu0 0.0
    %4625 = vmatprep.subr.mxu0 0.0
    %4626 = vmatpush1.msra.mxu0 0.0
    %4627 = vmatprep.subr.mxu0 0.0
    %4628 = vmatpush1.msra.mxu0 0.0
    %4629 = vmatprep.subr.mxu0 0.0
    %4630 = vmatpush1.msra.mxu0 0.0
    %4631 = vmatprep.subr.mxu0 0.0
    %4632 = vmatpush1.msra.mxu0 0.0
    %4633 = vmatprep.subr.mxu0 0.0
    %4634 = vmatpush1.msra.mxu0 0.0
    %4635 = vmatprep.subr.mxu0 0.0
    %4636 = vmatpush1.msra.mxu0 0.0
    %4637 = vmatprep.subr.mxu0 0.0
    %4638 = vmatpush1.msra.mxu0 0.0
    %4639 = vmatprep.subr.mxu0 0.0
    %4640 = vmatpush1.msra.mxu0 0.0
    %4641 = vmatprep.subr.mxu0 0.0
    %4642 = vmatpush1.msra.mxu0 0.0
    %4643 = vmatprep.subr.mxu0 0.0
    %4644 = vmatpush1.msra.mxu0 0.0
    %4645 = vmatprep.subr.mxu0 0.0
    %4646 = vmatpush1.msra.mxu0 0.0
    %4647 = vmatprep.subr.mxu0 0.0
    %4648 = vmatpush1.msra.mxu0 0.0
    %4649 = vmatprep.subr.mxu0 0.0
    %4650 = vmatpush1.msra.mxu0 %v4598
    %4651 = vmatprep.subr.mxu0 0.0
    %4652 = vmatpush2.msra.mxu0 0.0
    %4653 = vmatprep.subr.mxu0 0.0
    %4654 = vmatpush2.msra.mxu0 0.0
    %4655 = vmatprep.subr.mxu0 0.0
    %4656 = vmatpush2.msra.mxu0 0.0
    %4657 = vmatprep.subr.mxu0 0.0
    %4658 = vmatpush2.msra.mxu0 0.0
    %4659 = vmatprep.subr.mxu0 0.0
    %4660 = vmatpush2.msra.mxu0 0.0
    %4661 = vmatprep.subr.mxu0 0.0
    %4662 = vmatpush2.msra.mxu0 0.0
    %4663 = vmatprep.subr.mxu0 0.0
    %4664 = vmatpush2.msra.mxu0 0.0
    %4665 = vmatprep.subr.mxu0 0.0
    %4666 = vmatpush2.msra.mxu0 0.0
    %4667 = vmatprep.subr.mxu0 0.0
    %4668 = vmatpush2.msra.mxu0 0.0
    %4669 = vmatprep.subr.mxu0 0.0
    %4670 = vmatpush2.msra.mxu0 0.0
    %4671 = vmatprep.subr.mxu0 0.0
    %4672 = vmatpush2.msra.mxu0 0.0
    %4673 = vmatprep.subr.mxu0 0.0
    %4674 = vmatpush2.msra.mxu0 0.0
    %4675 = vmatprep.subr.mxu0 0.0
    %4676 = vmatpush2.msra.mxu0 0.0
    %4677 = vmatprep.subr.mxu0 0.0
    %4678 = vmatpush2.msra.mxu0 0.0
    %4679 = vmatprep.subr.mxu0 0.0
    %4680 = vmatpush2.msra.mxu0 0.0
    %4681 = vmatprep.subr.mxu0 0.0
    %4682 = vmatpush2.msra.mxu0 0.0
    %4683 = vmatprep.mubr.f32.mxu0 0.0
    %4684 = vmatmul.mubr.f32.gmra.mxu0 %v4611
    %v4685 = vpop.f32.mrf.mxu0
    %v4686 = vadd.f32 0.0, %v4685
    %v4687 = vpop.f32.mrf.mxu0
    %4688 = vmatprep.mubr.f32.mxu0 0.0
    %4689 = vmatmul.mubr.f32.gmra.mxu0 %v4613
    %v4690 = vpop.f32.mrf.mxu0
    %v4691 = vadd.f32 0.0, %v4690
    %v4692 = vpop.f32.mrf.mxu0
    %4693 = vmatprep.mubr.f32.mxu0 0.0
    %4694 = vmatmul.mubr.f32.gmra.mxu0 %v4615
    %v4695 = vpop.f32.mrf.mxu0
    %v4696 = vadd.f32 0.0, %v4695
    %v4697 = vpop.f32.mrf.mxu0
    %4698 = vmatprep.mubr.f32.mxu0 0.0
    %4699 = vmatmul.mubr.f32.gmra.mxu0 %v4617
    %v4700 = vpop.f32.mrf.mxu0
    %v4701 = vadd.f32 0.0, %v4700
    %v4702 = vpop.f32.mrf.mxu0
    %4703 = vdwg.mxu0
    %v4704 = vld [vmem:[#allocation3] sm:$0xff]
    %v4705 = vld [vmem:[#allocation3 + $0x8] sm:$0xff]
    %v4706 = vld [vmem:[#allocation3 + $0x10] sm:$0xff]
    %v4707 = vld [vmem:[#allocation3 + $0x18] sm:$0xff]
    %v4708 = vadd.f32 %v4704, %v4686
    %v4709 = vadd.f32 %v4705, %v4691
    %v4710 = vadd.f32 %v4706, %v4696
    %v4711 = vadd.f32 %v4707, %v4701
    %4712 = vst.msk [vmem:[#allocation3] sm:$0xff] %vm77, %v4708
    %4713 = vst.msk [vmem:[#allocation3 + $0x8] sm:$0xff] %vm77, %v4709
    %4714 = vst.msk [vmem:[#allocation3 + $0x10] sm:$0xff] %vm77, %v4710
    %4715 = vst.msk [vmem:[#allocation3 + $0x18] sm:$0xff] %vm77, %v4711
    %v4716 = vld [vmem:[#allocation3] sm:$0xff]
    %v4717 = vld [vmem:[#allocation3 + $0x8] sm:$0xff]
    %v4718 = vld [vmem:[#allocation3 + $0x10] sm:$0xff]
    %v4719 = vld [vmem:[#allocation3 + $0x18] sm:$0xff]
    %s4720 = scalar_lea.vmem %s2, 3
    %v4721 = vld [vmem:[%s4720] sm:$0x1]
    %v4723 = vlaneseq
    %v4724 = vshrl.u32 %v4723, 7
    %v4725 = vsub.s32 0, %v4724
    %v4726 = vrot.slane %v4721, %v4725
    %v4728 = vadd.f32 %v4716, %v4726
    %v4729 = vadd.f32 %v4717, %v4726
    %v4730 = vadd.f32 %v4718, %v4726
    %v4731 = vadd.f32 %v4719, %v4726
    %v4732 = vmax.f32 %v4728, 0.0
    %v4733 = vmax.f32 %v4729, 0.0
    %v4734 = vmax.f32 %v4730, 0.0
    %v4735 = vmax.f32 %v4731, 0.0
    %v4740 = vcombine.high %v4732, %v4732
    %v4741 = vcombine.high %v4733, %v4733
    %v4742 = vcombine.high %v4734, %v4734
    %v4743 = vcombine.high %v4735, %v4735
    %4748 = vst.msk [vmem:[%s21 + $0x1] sm:$0xf] %vm47, %v4732
    %4749 = vst.msk [vmem:[%s21 + $0x9] sm:$0xf] %vm47, %v4740
    %4750 = vst.msk [vmem:[%s21 + $0x11] sm:$0xf] %vm47, %v4733
    %4751 = vst.msk [vmem:[%s21 + $0x19] sm:$0xf] %vm47, %v4741
    %4752 = vst.msk [vmem:[%s21 + $0x31] sm:$0xf] %vm47, %v4734
    %4753 = vst.msk [vmem:[%s21 + $0x39] sm:$0xf] %vm47, %v4742
    %4754 = vst.msk [vmem:[%s21 + $0x41] sm:$0xf] %vm47, %v4735
    %4755 = vst.msk [vmem:[%s21 + $0x49] sm:$0xf] %vm47, %v4743
    %v4756 = vld [vmem:[#allocation2] sm:$0xf]
    %v4757 = vld [vmem:[#allocation2 + $0x8] sm:$0xf]
    %v4758 = vld [vmem:[#allocation2 + $0x10] sm:$0xf]
    %v4759 = vld [vmem:[#allocation2 + $0x18] sm:$0xf]
    %v4760 = vld [vmem:[#allocation2 + $0x30] sm:$0xf]
    %v4761 = vld [vmem:[#allocation2 + $0x38] sm:$0xf]
    %v4762 = vld [vmem:[#allocation2 + $0x40] sm:$0xf]
    %v4763 = vld [vmem:[#allocation2 + $0x48] sm:$0xf]
    %s4764 = scalar_lea.vmem %s1, 288
    %v4765 = vld [vmem:[%s4764] sm:$0xff]
    %v4774 = vcombine.low %v4756, %v4757
    %v4775 = vcombine.low %v4758, %v4759
    %v4776 = vcombine.low %v4760, %v4761
    %v4777 = vcombine.low %v4762, %v4763
    %v4778 = vsel %vm77, %v4774, 0
    %v4780 = vsel %vm77, %v4775, 0
    %v4782 = vsel %vm77, %v4776, 0
    %v4784 = vsel %vm77, %v4777, 0
    %4786 = vmatprep.subr.mxu0 0.0
    %4787 = vmatpush1.msra.mxu0 0.0
    %4788 = vmatprep.subr.mxu0 0.0
    %4789 = vmatpush1.msra.mxu0 0.0
    %4790 = vmatprep.subr.mxu0 0.0
    %4791 = vmatpush1.msra.mxu0 0.0
    %4792 = vmatprep.subr.mxu0 0.0
    %4793 = vmatpush1.msra.mxu0 0.0
    %4794 = vmatprep.subr.mxu0 0.0
    %4795 = vmatpush1.msra.mxu0 0.0
    %4796 = vmatprep.subr.mxu0 0.0
    %4797 = vmatpush1.msra.mxu0 0.0
    %4798 = vmatprep.subr.mxu0 0.0
    %4799 = vmatpush1.msra.mxu0 0.0
    %4800 = vmatprep.subr.mxu0 0.0
    %4801 = vmatpush1.msra.mxu0 0.0
    %4802 = vmatprep.subr.mxu0 0.0
    %4803 = vmatpush1.msra.mxu0 0.0
    %4804 = vmatprep.subr.mxu0 0.0
    %4805 = vmatpush1.msra.mxu0 0.0
    %4806 = vmatprep.subr.mxu0 0.0
    %4807 = vmatpush1.msra.mxu0 0.0
    %4808 = vmatprep.subr.mxu0 0.0
    %4809 = vmatpush1.msra.mxu0 0.0
    %4810 = vmatprep.subr.mxu0 0.0
    %4811 = vmatpush1.msra.mxu0 0.0
    %4812 = vmatprep.subr.mxu0 0.0
    %4813 = vmatpush1.msra.mxu0 0.0
    %4814 = vmatprep.subr.mxu0 0.0
    %4815 = vmatpush1.msra.mxu0 0.0
    %4816 = vmatprep.subr.mxu0 0.0
    %4817 = vmatpush1.msra.mxu0 %v4765
    %4818 = vmatprep.subr.mxu0 0.0
    %4819 = vmatpush2.msra.mxu0 0.0
    %4820 = vmatprep.subr.mxu0 0.0
    %4821 = vmatpush2.msra.mxu0 0.0
    %4822 = vmatprep.subr.mxu0 0.0
    %4823 = vmatpush2.msra.mxu0 0.0
    %4824 = vmatprep.subr.mxu0 0.0
    %4825 = vmatpush2.msra.mxu0 0.0
    %4826 = vmatprep.subr.mxu0 0.0
    %4827 = vmatpush2.msra.mxu0 0.0
    %4828 = vmatprep.subr.mxu0 0.0
    %4829 = vmatpush2.msra.mxu0 0.0
    %4830 = vmatprep.subr.mxu0 0.0
    %4831 = vmatpush2.msra.mxu0 0.0
    %4832 = vmatprep.subr.mxu0 0.0
    %4833 = vmatpush2.msra.mxu0 0.0
    %4834 = vmatprep.subr.mxu0 0.0
    %4835 = vmatpush2.msra.mxu0 0.0
    %4836 = vmatprep.subr.mxu0 0.0
    %4837 = vmatpush2.msra.mxu0 0.0
    %4838 = vmatprep.subr.mxu0 0.0
    %4839 = vmatpush2.msra.mxu0 0.0
    %4840 = vmatprep.subr.mxu0 0.0
    %4841 = vmatpush2.msra.mxu0 0.0
    %4842 = vmatprep.subr.mxu0 0.0
    %4843 = vmatpush2.msra.mxu0 0.0
    %4844 = vmatprep.subr.mxu0 0.0
    %4845 = vmatpush2.msra.mxu0 0.0
    %4846 = vmatprep.subr.mxu0 0.0
    %4847 = vmatpush2.msra.mxu0 0.0
    %4848 = vmatprep.subr.mxu0 0.0
    %4849 = vmatpush2.msra.mxu0 0.0
    %4850 = vmatprep.mubr.f32.mxu0 0.0
    %4851 = vmatmul.mubr.f32.gmra.mxu0 %v4778
    %v4852 = vpop.f32.mrf.mxu0
    %v4853 = vadd.f32 0.0, %v4852
    %v4854 = vpop.f32.mrf.mxu0
    %4855 = vmatprep.mubr.f32.mxu0 0.0
    %4856 = vmatmul.mubr.f32.gmra.mxu0 %v4780
    %v4857 = vpop.f32.mrf.mxu0
    %v4858 = vadd.f32 0.0, %v4857
    %v4859 = vpop.f32.mrf.mxu0
    %4860 = vmatprep.mubr.f32.mxu0 0.0
    %4861 = vmatmul.mubr.f32.gmra.mxu0 %v4782
    %v4862 = vpop.f32.mrf.mxu0
    %v4863 = vadd.f32 0.0, %v4862
    %v4864 = vpop.f32.mrf.mxu0
    %4865 = vmatprep.mubr.f32.mxu0 0.0
    %4866 = vmatmul.mubr.f32.gmra.mxu0 %v4784
    %v4867 = vpop.f32.mrf.mxu0
    %v4868 = vadd.f32 0.0, %v4867
    %v4869 = vpop.f32.mrf.mxu0
    %4870 = vdwg.mxu0
    %4871 = vst.msk [vmem:[#allocation3] sm:$0xff] %vm77, %v4853
    %4872 = vst.msk [vmem:[#allocation3 + $0x8] sm:$0xff] %vm77, %v4858
    %4873 = vst.msk [vmem:[#allocation3 + $0x10] sm:$0xff] %vm77, %v4863
    %4874 = vst.msk [vmem:[#allocation3 + $0x18] sm:$0xff] %vm77, %v4868
    %v4875 = vld [vmem:[#allocation2 + $0x1] sm:$0xf]
    %v4876 = vld [vmem:[#allocation2 + $0x9] sm:$0xf]
    %v4877 = vld [vmem:[#allocation2 + $0x11] sm:$0xf]
    %v4878 = vld [vmem:[#allocation2 + $0x19] sm:$0xf]
    %v4879 = vld [vmem:[#allocation2 + $0x31] sm:$0xf]
    %v4880 = vld [vmem:[#allocation2 + $0x39] sm:$0xf]
    %v4881 = vld [vmem:[#allocation2 + $0x41] sm:$0xf]
    %v4882 = vld [vmem:[#allocation2 + $0x49] sm:$0xf]
    %s4883 = scalar_lea.vmem %s1, 296
    %v4884 = vld [vmem:[%s4883] sm:$0xff]
    %v4893 = vcombine.low %v4875, %v4876
    %v4894 = vcombine.low %v4877, %v4878
    %v4895 = vcombine.low %v4879, %v4880
    %v4896 = vcombine.low %v4881, %v4882
    %v4897 = vsel %vm77, %v4893, 0
    %v4899 = vsel %vm77, %v4894, 0
    %v4901 = vsel %vm77, %v4895, 0
    %v4903 = vsel %vm77, %v4896, 0
    %4905 = vmatprep.subr.mxu0 0.0
    %4906 = vmatpush1.msra.mxu0 0.0
    %4907 = vmatprep.subr.mxu0 0.0
    %4908 = vmatpush1.msra.mxu0 0.0
    %4909 = vmatprep.subr.mxu0 0.0
    %4910 = vmatpush1.msra.mxu0 0.0
    %4911 = vmatprep.subr.mxu0 0.0
    %4912 = vmatpush1.msra.mxu0 0.0
    %4913 = vmatprep.subr.mxu0 0.0
    %4914 = vmatpush1.msra.mxu0 0.0
    %4915 = vmatprep.subr.mxu0 0.0
    %4916 = vmatpush1.msra.mxu0 0.0
    %4917 = vmatprep.subr.mxu0 0.0
    %4918 = vmatpush1.msra.mxu0 0.0
    %4919 = vmatprep.subr.mxu0 0.0
    %4920 = vmatpush1.msra.mxu0 0.0
    %4921 = vmatprep.subr.mxu0 0.0
    %4922 = vmatpush1.msra.mxu0 0.0
    %4923 = vmatprep.subr.mxu0 0.0
    %4924 = vmatpush1.msra.mxu0 0.0
    %4925 = vmatprep.subr.mxu0 0.0
    %4926 = vmatpush1.msra.mxu0 0.0
    %4927 = vmatprep.subr.mxu0 0.0
    %4928 = vmatpush1.msra.mxu0 0.0
    %4929 = vmatprep.subr.mxu0 0.0
    %4930 = vmatpush1.msra.mxu0 0.0
    %4931 = vmatprep.subr.mxu0 0.0
    %4932 = vmatpush1.msra.mxu0 0.0
    %4933 = vmatprep.subr.mxu0 0.0
    %4934 = vmatpush1.msra.mxu0 0.0
    %4935 = vmatprep.subr.mxu0 0.0
    %4936 = vmatpush1.msra.mxu0 %v4884
    %4937 = vmatprep.subr.mxu0 0.0
    %4938 = vmatpush2.msra.mxu0 0.0
    %4939 = vmatprep.subr.mxu0 0.0
    %4940 = vmatpush2.msra.mxu0 0.0
    %4941 = vmatprep.subr.mxu0 0.0
    %4942 = vmatpush2.msra.mxu0 0.0
    %4943 = vmatprep.subr.mxu0 0.0
    %4944 = vmatpush2.msra.mxu0 0.0
    %4945 = vmatprep.subr.mxu0 0.0
    %4946 = vmatpush2.msra.mxu0 0.0
    %4947 = vmatprep.subr.mxu0 0.0
    %4948 = vmatpush2.msra.mxu0 0.0
    %4949 = vmatprep.subr.mxu0 0.0
    %4950 = vmatpush2.msra.mxu0 0.0
    %4951 = vmatprep.subr.mxu0 0.0
    %4952 = vmatpush2.msra.mxu0 0.0
    %4953 = vmatprep.subr.mxu0 0.0
    %4954 = vmatpush2.msra.mxu0 0.0
    %4955 = vmatprep.subr.mxu0 0.0
    %4956 = vmatpush2.msra.mxu0 0.0
    %4957 = vmatprep.subr.mxu0 0.0
    %4958 = vmatpush2.msra.mxu0 0.0
    %4959 = vmatprep.subr.mxu0 0.0
    %4960 = vmatpush2.msra.mxu0 0.0
    %4961 = vmatprep.subr.mxu0 0.0
    %4962 = vmatpush2.msra.mxu0 0.0
    %4963 = vmatprep.subr.mxu0 0.0
    %4964 = vmatpush2.msra.mxu0 0.0
    %4965 = vmatprep.subr.mxu0 0.0
    %4966 = vmatpush2.msra.mxu0 0.0
    %4967 = vmatprep.subr.mxu0 0.0
    %4968 = vmatpush2.msra.mxu0 0.0
    %4969 = vmatprep.mubr.f32.mxu0 0.0
    %4970 = vmatmul.mubr.f32.gmra.mxu0 %v4897
    %v4971 = vpop.f32.mrf.mxu0
    %v4972 = vadd.f32 0.0, %v4971
    %v4973 = vpop.f32.mrf.mxu0
    %4974 = vmatprep.mubr.f32.mxu0 0.0
    %4975 = vmatmul.mubr.f32.gmra.mxu0 %v4899
    %v4976 = vpop.f32.mrf.mxu0
    %v4977 = vadd.f32 0.0, %v4976
    %v4978 = vpop.f32.mrf.mxu0
    %4979 = vmatprep.mubr.f32.mxu0 0.0
    %4980 = vmatmul.mubr.f32.gmra.mxu0 %v4901
    %v4981 = vpop.f32.mrf.mxu0
    %v4982 = vadd.f32 0.0, %v4981
    %v4983 = vpop.f32.mrf.mxu0
    %4984 = vmatprep.mubr.f32.mxu0 0.0
    %4985 = vmatmul.mubr.f32.gmra.mxu0 %v4903
    %v4986 = vpop.f32.mrf.mxu0
    %v4987 = vadd.f32 0.0, %v4986
    %v4988 = vpop.f32.mrf.mxu0
    %4989 = vdwg.mxu0
    %v4990 = vld [vmem:[#allocation3] sm:$0xff]
    %v4991 = vld [vmem:[#allocation3 + $0x8] sm:$0xff]
    %v4992 = vld [vmem:[#allocation3 + $0x10] sm:$0xff]
    %v4993 = vld [vmem:[#allocation3 + $0x18] sm:$0xff]
    %v4994 = vadd.f32 %v4990, %v4972
    %v4995 = vadd.f32 %v4991, %v4977
    %v4996 = vadd.f32 %v4992, %v4982
    %v4997 = vadd.f32 %v4993, %v4987
    %4998 = vst.msk [vmem:[#allocation3] sm:$0xff] %vm77, %v4994
    %4999 = vst.msk [vmem:[#allocation3 + $0x8] sm:$0xff] %vm77, %v4995
    %5000 = vst.msk [vmem:[#allocation3 + $0x10] sm:$0xff] %vm77, %v4996
    %5001 = vst.msk [vmem:[#allocation3 + $0x18] sm:$0xff] %vm77, %v4997
    %v5002 = vld [vmem:[#allocation2 + $0x2] sm:$0xf]
    %v5003 = vld [vmem:[#allocation2 + $0xa] sm:$0xf]
    %v5004 = vld [vmem:[#allocation2 + $0x12] sm:$0xf]
    %v5005 = vld [vmem:[#allocation2 + $0x1a] sm:$0xf]
    %v5006 = vld [vmem:[#allocation2 + $0x32] sm:$0xf]
    %v5007 = vld [vmem:[#allocation2 + $0x3a] sm:$0xf]
    %v5008 = vld [vmem:[#allocation2 + $0x42] sm:$0xf]
    %v5009 = vld [vmem:[#allocation2 + $0x4a] sm:$0xf]
    %s5010 = scalar_lea.vmem %s1, 304
    %v5011 = vld [vmem:[%s5010] sm:$0xff]
    %v5020 = vcombine.low %v5002, %v5003
    %v5021 = vcombine.low %v5004, %v5005
    %v5022 = vcombine.low %v5006, %v5007
    %v5023 = vcombine.low %v5008, %v5009
    %v5024 = vsel %vm77, %v5020, 0
    %v5026 = vsel %vm77, %v5021, 0
    %v5028 = vsel %vm77, %v5022, 0
    %v5030 = vsel %vm77, %v5023, 0
    %5032 = vmatprep.subr.mxu0 0.0
    %5033 = vmatpush1.msra.mxu0 0.0
    %5034 = vmatprep.subr.mxu0 0.0
    %5035 = vmatpush1.msra.mxu0 0.0
    %5036 = vmatprep.subr.mxu0 0.0
    %5037 = vmatpush1.msra.mxu0 0.0
    %5038 = vmatprep.subr.mxu0 0.0
    %5039 = vmatpush1.msra.mxu0 0.0
    %5040 = vmatprep.subr.mxu0 0.0
    %5041 = vmatpush1.msra.mxu0 0.0
    %5042 = vmatprep.subr.mxu0 0.0
    %5043 = vmatpush1.msra.mxu0 0.0
    %5044 = vmatprep.subr.mxu0 0.0
    %5045 = vmatpush1.msra.mxu0 0.0
    %5046 = vmatprep.subr.mxu0 0.0
    %5047 = vmatpush1.msra.mxu0 0.0
    %5048 = vmatprep.subr.mxu0 0.0
    %5049 = vmatpush1.msra.mxu0 0.0
    %5050 = vmatprep.subr.mxu0 0.0
    %5051 = vmatpush1.msra.mxu0 0.0
    %5052 = vmatprep.subr.mxu0 0.0
    %5053 = vmatpush1.msra.mxu0 0.0
    %5054 = vmatprep.subr.mxu0 0.0
    %5055 = vmatpush1.msra.mxu0 0.0
    %5056 = vmatprep.subr.mxu0 0.0
    %5057 = vmatpush1.msra.mxu0 0.0
    %5058 = vmatprep.subr.mxu0 0.0
    %5059 = vmatpush1.msra.mxu0 0.0
    %5060 = vmatprep.subr.mxu0 0.0
    %5061 = vmatpush1.msra.mxu0 0.0
    %5062 = vmatprep.subr.mxu0 0.0
    %5063 = vmatpush1.msra.mxu0 %v5011
    %5064 = vmatprep.subr.mxu0 0.0
    %5065 = vmatpush2.msra.mxu0 0.0
    %5066 = vmatprep.subr.mxu0 0.0
    %5067 = vmatpush2.msra.mxu0 0.0
    %5068 = vmatprep.subr.mxu0 0.0
    %5069 = vmatpush2.msra.mxu0 0.0
    %5070 = vmatprep.subr.mxu0 0.0
    %5071 = vmatpush2.msra.mxu0 0.0
    %5072 = vmatprep.subr.mxu0 0.0
    %5073 = vmatpush2.msra.mxu0 0.0
    %5074 = vmatprep.subr.mxu0 0.0
    %5075 = vmatpush2.msra.mxu0 0.0
    %5076 = vmatprep.subr.mxu0 0.0
    %5077 = vmatpush2.msra.mxu0 0.0
    %5078 = vmatprep.subr.mxu0 0.0
    %5079 = vmatpush2.msra.mxu0 0.0
    %5080 = vmatprep.subr.mxu0 0.0
    %5081 = vmatpush2.msra.mxu0 0.0
    %5082 = vmatprep.subr.mxu0 0.0
    %5083 = vmatpush2.msra.mxu0 0.0
    %5084 = vmatprep.subr.mxu0 0.0
    %5085 = vmatpush2.msra.mxu0 0.0
    %5086 = vmatprep.subr.mxu0 0.0
    %5087 = vmatpush2.msra.mxu0 0.0
    %5088 = vmatprep.subr.mxu0 0.0
    %5089 = vmatpush2.msra.mxu0 0.0
    %5090 = vmatprep.subr.mxu0 0.0
    %5091 = vmatpush2.msra.mxu0 0.0
    %5092 = vmatprep.subr.mxu0 0.0
    %5093 = vmatpush2.msra.mxu0 0.0
    %5094 = vmatprep.subr.mxu0 0.0
    %5095 = vmatpush2.msra.mxu0 0.0
    %5096 = vmatprep.mubr.f32.mxu0 0.0
    %5097 = vmatmul.mubr.f32.gmra.mxu0 %v5024
    %v5098 = vpop.f32.mrf.mxu0
    %v5099 = vadd.f32 0.0, %v5098
    %v5100 = vpop.f32.mrf.mxu0
    %5101 = vmatprep.mubr.f32.mxu0 0.0
    %5102 = vmatmul.mubr.f32.gmra.mxu0 %v5026
    %v5103 = vpop.f32.mrf.mxu0
    %v5104 = vadd.f32 0.0, %v5103
    %v5105 = vpop.f32.mrf.mxu0
    %5106 = vmatprep.mubr.f32.mxu0 0.0
    %5107 = vmatmul.mubr.f32.gmra.mxu0 %v5028
    %v5108 = vpop.f32.mrf.mxu0
    %v5109 = vadd.f32 0.0, %v5108
    %v5110 = vpop.f32.mrf.mxu0
    %5111 = vmatprep.mubr.f32.mxu0 0.0
    %5112 = vmatmul.mubr.f32.gmra.mxu0 %v5030
    %v5113 = vpop.f32.mrf.mxu0
    %v5114 = vadd.f32 0.0, %v5113
    %v5115 = vpop.f32.mrf.mxu0
    %5116 = vdwg.mxu0
    %v5117 = vld [vmem:[#allocation3] sm:$0xff]
    %v5118 = vld [vmem:[#allocation3 + $0x8] sm:$0xff]
    %v5119 = vld [vmem:[#allocation3 + $0x10] sm:$0xff]
    %v5120 = vld [vmem:[#allocation3 + $0x18] sm:$0xff]
    %v5121 = vadd.f32 %v5117, %v5099
    %v5122 = vadd.f32 %v5118, %v5104
    %v5123 = vadd.f32 %v5119, %v5109
    %v5124 = vadd.f32 %v5120, %v5114
    %5125 = vst.msk [vmem:[#allocation3] sm:$0xff] %vm77, %v5121
    %5126 = vst.msk [vmem:[#allocation3 + $0x8] sm:$0xff] %vm77, %v5122
    %5127 = vst.msk [vmem:[#allocation3 + $0x10] sm:$0xff] %vm77, %v5123
    %5128 = vst.msk [vmem:[#allocation3 + $0x18] sm:$0xff] %vm77, %v5124
    %v5129 = vld [vmem:[%s21] sm:$0xf]
    %v5130 = vld [vmem:[%s21 + $0x8] sm:$0xf]
    %v5131 = vld [vmem:[%s21 + $0x10] sm:$0xf]
    %v5132 = vld [vmem:[%s21 + $0x18] sm:$0xf]
    %v5133 = vld [vmem:[%s21 + $0x30] sm:$0xf]
    %v5134 = vld [vmem:[%s21 + $0x38] sm:$0xf]
    %v5135 = vld [vmem:[%s21 + $0x40] sm:$0xf]
    %v5136 = vld [vmem:[%s21 + $0x48] sm:$0xf]
    %s5137 = scalar_lea.vmem %s1, 312
    %v5138 = vld [vmem:[%s5137] sm:$0xff]
    %v5147 = vcombine.low %v5129, %v5130
    %v5148 = vcombine.low %v5131, %v5132
    %v5149 = vcombine.low %v5133, %v5134
    %v5150 = vcombine.low %v5135, %v5136
    %v5151 = vsel %vm77, %v5147, 0
    %v5153 = vsel %vm77, %v5148, 0
    %v5155 = vsel %vm77, %v5149, 0
    %v5157 = vsel %vm77, %v5150, 0
    %5159 = vmatprep.subr.mxu0 0.0
    %5160 = vmatpush1.msra.mxu0 0.0
    %5161 = vmatprep.subr.mxu0 0.0
    %5162 = vmatpush1.msra.mxu0 0.0
    %5163 = vmatprep.subr.mxu0 0.0
    %5164 = vmatpush1.msra.mxu0 0.0
    %5165 = vmatprep.subr.mxu0 0.0
    %5166 = vmatpush1.msra.mxu0 0.0
    %5167 = vmatprep.subr.mxu0 0.0
    %5168 = vmatpush1.msra.mxu0 0.0
    %5169 = vmatprep.subr.mxu0 0.0
    %5170 = vmatpush1.msra.mxu0 0.0
    %5171 = vmatprep.subr.mxu0 0.0
    %5172 = vmatpush1.msra.mxu0 0.0
    %5173 = vmatprep.subr.mxu0 0.0
    %5174 = vmatpush1.msra.mxu0 0.0
    %5175 = vmatprep.subr.mxu0 0.0
    %5176 = vmatpush1.msra.mxu0 0.0
    %5177 = vmatprep.subr.mxu0 0.0
    %5178 = vmatpush1.msra.mxu0 0.0
    %5179 = vmatprep.subr.mxu0 0.0
    %5180 = vmatpush1.msra.mxu0 0.0
    %5181 = vmatprep.subr.mxu0 0.0
    %5182 = vmatpush1.msra.mxu0 0.0
    %5183 = vmatprep.subr.mxu0 0.0
    %5184 = vmatpush1.msra.mxu0 0.0
    %5185 = vmatprep.subr.mxu0 0.0
    %5186 = vmatpush1.msra.mxu0 0.0
    %5187 = vmatprep.subr.mxu0 0.0
    %5188 = vmatpush1.msra.mxu0 0.0
    %5189 = vmatprep.subr.mxu0 0.0
    %5190 = vmatpush1.msra.mxu0 %v5138
    %5191 = vmatprep.subr.mxu0 0.0
    %5192 = vmatpush2.msra.mxu0 0.0
    %5193 = vmatprep.subr.mxu0 0.0
    %5194 = vmatpush2.msra.mxu0 0.0
    %5195 = vmatprep.subr.mxu0 0.0
    %5196 = vmatpush2.msra.mxu0 0.0
    %5197 = vmatprep.subr.mxu0 0.0
    %5198 = vmatpush2.msra.mxu0 0.0
    %5199 = vmatprep.subr.mxu0 0.0
    %5200 = vmatpush2.msra.mxu0 0.0
    %5201 = vmatprep.subr.mxu0 0.0
    %5202 = vmatpush2.msra.mxu0 0.0
    %5203 = vmatprep.subr.mxu0 0.0
    %5204 = vmatpush2.msra.mxu0 0.0
    %5205 = vmatprep.subr.mxu0 0.0
    %5206 = vmatpush2.msra.mxu0 0.0
    %5207 = vmatprep.subr.mxu0 0.0
    %5208 = vmatpush2.msra.mxu0 0.0
    %5209 = vmatprep.subr.mxu0 0.0
    %5210 = vmatpush2.msra.mxu0 0.0
    %5211 = vmatprep.subr.mxu0 0.0
    %5212 = vmatpush2.msra.mxu0 0.0
    %5213 = vmatprep.subr.mxu0 0.0
    %5214 = vmatpush2.msra.mxu0 0.0
    %5215 = vmatprep.subr.mxu0 0.0
    %5216 = vmatpush2.msra.mxu0 0.0
    %5217 = vmatprep.subr.mxu0 0.0
    %5218 = vmatpush2.msra.mxu0 0.0
    %5219 = vmatprep.subr.mxu0 0.0
    %5220 = vmatpush2.msra.mxu0 0.0
    %5221 = vmatprep.subr.mxu0 0.0
    %5222 = vmatpush2.msra.mxu0 0.0
    %5223 = vmatprep.mubr.f32.mxu0 0.0
    %5224 = vmatmul.mubr.f32.gmra.mxu0 %v5151
    %v5225 = vpop.f32.mrf.mxu0
    %v5226 = vadd.f32 0.0, %v5225
    %v5227 = vpop.f32.mrf.mxu0
    %5228 = vmatprep.mubr.f32.mxu0 0.0
    %5229 = vmatmul.mubr.f32.gmra.mxu0 %v5153
    %v5230 = vpop.f32.mrf.mxu0
    %v5231 = vadd.f32 0.0, %v5230
    %v5232 = vpop.f32.mrf.mxu0
    %5233 = vmatprep.mubr.f32.mxu0 0.0
    %5234 = vmatmul.mubr.f32.gmra.mxu0 %v5155
    %v5235 = vpop.f32.mrf.mxu0
    %v5236 = vadd.f32 0.0, %v5235
    %v5237 = vpop.f32.mrf.mxu0
    %5238 = vmatprep.mubr.f32.mxu0 0.0
    %5239 = vmatmul.mubr.f32.gmra.mxu0 %v5157
    %v5240 = vpop.f32.mrf.mxu0
    %v5241 = vadd.f32 0.0, %v5240
    %v5242 = vpop.f32.mrf.mxu0
    %5243 = vdwg.mxu0
    %v5244 = vld [vmem:[#allocation3] sm:$0xff]
    %v5245 = vld [vmem:[#allocation3 + $0x8] sm:$0xff]
    %v5246 = vld [vmem:[#allocation3 + $0x10] sm:$0xff]
    %v5247 = vld [vmem:[#allocation3 + $0x18] sm:$0xff]
    %v5248 = vadd.f32 %v5244, %v5226
    %v5249 = vadd.f32 %v5245, %v5231
    %v5250 = vadd.f32 %v5246, %v5236
    %v5251 = vadd.f32 %v5247, %v5241
    %5252 = vst.msk [vmem:[#allocation3] sm:$0xff] %vm77, %v5248
    %5253 = vst.msk [vmem:[#allocation3 + $0x8] sm:$0xff] %vm77, %v5249
    %5254 = vst.msk [vmem:[#allocation3 + $0x10] sm:$0xff] %vm77, %v5250
    %5255 = vst.msk [vmem:[#allocation3 + $0x18] sm:$0xff] %vm77, %v5251
    %v5256 = vld [vmem:[%s21 + $0x1] sm:$0xf]
    %v5257 = vld [vmem:[%s21 + $0x9] sm:$0xf]
    %v5258 = vld [vmem:[%s21 + $0x11] sm:$0xf]
    %v5259 = vld [vmem:[%s21 + $0x19] sm:$0xf]
    %v5260 = vld [vmem:[%s21 + $0x31] sm:$0xf]
    %v5261 = vld [vmem:[%s21 + $0x39] sm:$0xf]
    %v5262 = vld [vmem:[%s21 + $0x41] sm:$0xf]
    %v5263 = vld [vmem:[%s21 + $0x49] sm:$0xf]
    %s5264 = scalar_lea.vmem %s1, 320
    %v5265 = vld [vmem:[%s5264] sm:$0xff]
    %v5274 = vcombine.low %v5256, %v5257
    %v5275 = vcombine.low %v5258, %v5259
    %v5276 = vcombine.low %v5260, %v5261
    %v5277 = vcombine.low %v5262, %v5263
    %v5278 = vsel %vm77, %v5274, 0
    %v5280 = vsel %vm77, %v5275, 0
    %v5282 = vsel %vm77, %v5276, 0
    %v5284 = vsel %vm77, %v5277, 0
    %5286 = vmatprep.subr.mxu0 0.0
    %5287 = vmatpush1.msra.mxu0 0.0
    %5288 = vmatprep.subr.mxu0 0.0
    %5289 = vmatpush1.msra.mxu0 0.0
    %5290 = vmatprep.subr.mxu0 0.0
    %5291 = vmatpush1.msra.mxu0 0.0
    %5292 = vmatprep.subr.mxu0 0.0
    %5293 = vmatpush1.msra.mxu0 0.0
    %5294 = vmatprep.subr.mxu0 0.0
    %5295 = vmatpush1.msra.mxu0 0.0
    %5296 = vmatprep.subr.mxu0 0.0
    %5297 = vmatpush1.msra.mxu0 0.0
    %5298 = vmatprep.subr.mxu0 0.0
    %5299 = vmatpush1.msra.mxu0 0.0
    %5300 = vmatprep.subr.mxu0 0.0
    %5301 = vmatpush1.msra.mxu0 0.0
    %5302 = vmatprep.subr.mxu0 0.0
    %5303 = vmatpush1.msra.mxu0 0.0
    %5304 = vmatprep.subr.mxu0 0.0
    %5305 = vmatpush1.msra.mxu0 0.0
    %5306 = vmatprep.subr.mxu0 0.0
    %5307 = vmatpush1.msra.mxu0 0.0
    %5308 = vmatprep.subr.mxu0 0.0
    %5309 = vmatpush1.msra.mxu0 0.0
    %5310 = vmatprep.subr.mxu0 0.0
    %5311 = vmatpush1.msra.mxu0 0.0
    %5312 = vmatprep.subr.mxu0 0.0
    %5313 = vmatpush1.msra.mxu0 0.0
    %5314 = vmatprep.subr.mxu0 0.0
    %5315 = vmatpush1.msra.mxu0 0.0
    %5316 = vmatprep.subr.mxu0 0.0
    %5317 = vmatpush1.msra.mxu0 %v5265
    %5318 = vmatprep.subr.mxu0 0.0
    %5319 = vmatpush2.msra.mxu0 0.0
    %5320 = vmatprep.subr.mxu0 0.0
    %5321 = vmatpush2.msra.mxu0 0.0
    %5322 = vmatprep.subr.mxu0 0.0
    %5323 = vmatpush2.msra.mxu0 0.0
    %5324 = vmatprep.subr.mxu0 0.0
    %5325 = vmatpush2.msra.mxu0 0.0
    %5326 = vmatprep.subr.mxu0 0.0
    %5327 = vmatpush2.msra.mxu0 0.0
    %5328 = vmatprep.subr.mxu0 0.0
    %5329 = vmatpush2.msra.mxu0 0.0
    %5330 = vmatprep.subr.mxu0 0.0
    %5331 = vmatpush2.msra.mxu0 0.0
    %5332 = vmatprep.subr.mxu0 0.0
    %5333 = vmatpush2.msra.mxu0 0.0
    %5334 = vmatprep.subr.mxu0 0.0
    %5335 = vmatpush2.msra.mxu0 0.0
    %5336 = vmatprep.subr.mxu0 0.0
    %5337 = vmatpush2.msra.mxu0 0.0
    %5338 = vmatprep.subr.mxu0 0.0
    %5339 = vmatpush2.msra.mxu0 0.0
    %5340 = vmatprep.subr.mxu0 0.0
    %5341 = vmatpush2.msra.mxu0 0.0
    %5342 = vmatprep.subr.mxu0 0.0
    %5343 = vmatpush2.msra.mxu0 0.0
    %5344 = vmatprep.subr.mxu0 0.0
    %5345 = vmatpush2.msra.mxu0 0.0
    %5346 = vmatprep.subr.mxu0 0.0
    %5347 = vmatpush2.msra.mxu0 0.0
    %5348 = vmatprep.subr.mxu0 0.0
    %5349 = vmatpush2.msra.mxu0 0.0
    %5350 = vmatprep.mubr.f32.mxu0 0.0
    %5351 = vmatmul.mubr.f32.gmra.mxu0 %v5278
    %v5352 = vpop.f32.mrf.mxu0
    %v5353 = vadd.f32 0.0, %v5352
    %v5354 = vpop.f32.mrf.mxu0
    %5355 = vmatprep.mubr.f32.mxu0 0.0
    %5356 = vmatmul.mubr.f32.gmra.mxu0 %v5280
    %v5357 = vpop.f32.mrf.mxu0
    %v5358 = vadd.f32 0.0, %v5357
    %v5359 = vpop.f32.mrf.mxu0
    %5360 = vmatprep.mubr.f32.mxu0 0.0
    %5361 = vmatmul.mubr.f32.gmra.mxu0 %v5282
    %v5362 = vpop.f32.mrf.mxu0
    %v5363 = vadd.f32 0.0, %v5362
    %v5364 = vpop.f32.mrf.mxu0
    %5365 = vmatprep.mubr.f32.mxu0 0.0
    %5366 = vmatmul.mubr.f32.gmra.mxu0 %v5284
    %v5367 = vpop.f32.mrf.mxu0
    %v5368 = vadd.f32 0.0, %v5367
    %v5369 = vpop.f32.mrf.mxu0
    %5370 = vdwg.mxu0
    %v5371 = vld [vmem:[#allocation3] sm:$0xff]
    %v5372 = vld [vmem:[#allocation3 + $0x8] sm:$0xff]
    %v5373 = vld [vmem:[#allocation3 + $0x10] sm:$0xff]
    %v5374 = vld [vmem:[#allocation3 + $0x18] sm:$0xff]
    %v5375 = vadd.f32 %v5371, %v5353
    %v5376 = vadd.f32 %v5372, %v5358
    %v5377 = vadd.f32 %v5373, %v5363
    %v5378 = vadd.f32 %v5374, %v5368
    %5379 = vst.msk [vmem:[#allocation3] sm:$0xff] %vm77, %v5375
    %5380 = vst.msk [vmem:[#allocation3 + $0x8] sm:$0xff] %vm77, %v5376
    %5381 = vst.msk [vmem:[#allocation3 + $0x10] sm:$0xff] %vm77, %v5377
    %5382 = vst.msk [vmem:[#allocation3 + $0x18] sm:$0xff] %vm77, %v5378
    %v5383 = vld [vmem:[%s21 + $0x2] sm:$0xf]
    %v5384 = vld [vmem:[%s21 + $0xa] sm:$0xf]
    %v5385 = vld [vmem:[%s21 + $0x12] sm:$0xf]
    %v5386 = vld [vmem:[%s21 + $0x1a] sm:$0xf]
    %v5387 = vld [vmem:[%s21 + $0x32] sm:$0xf]
    %v5388 = vld [vmem:[%s21 + $0x3a] sm:$0xf]
    %v5389 = vld [vmem:[%s21 + $0x42] sm:$0xf]
    %v5390 = vld [vmem:[%s21 + $0x4a] sm:$0xf]
    %s5391 = scalar_lea.vmem %s1, 328
    %v5392 = vld [vmem:[%s5391] sm:$0xff]
    %v5401 = vcombine.low %v5383, %v5384
    %v5402 = vcombine.low %v5385, %v5386
    %v5403 = vcombine.low %v5387, %v5388
    %v5404 = vcombine.low %v5389, %v5390
    %v5405 = vsel %vm77, %v5401, 0
    %v5407 = vsel %vm77, %v5402, 0
    %v5409 = vsel %vm77, %v5403, 0
    %v5411 = vsel %vm77, %v5404, 0
    %5413 = vmatprep.subr.mxu0 0.0
    %5414 = vmatpush1.msra.mxu0 0.0
    %5415 = vmatprep.subr.mxu0 0.0
    %5416 = vmatpush1.msra.mxu0 0.0
    %5417 = vmatprep.subr.mxu0 0.0
    %5418 = vmatpush1.msra.mxu0 0.0
    %5419 = vmatprep.subr.mxu0 0.0
    %5420 = vmatpush1.msra.mxu0 0.0
    %5421 = vmatprep.subr.mxu0 0.0
    %5422 = vmatpush1.msra.mxu0 0.0
    %5423 = vmatprep.subr.mxu0 0.0
    %5424 = vmatpush1.msra.mxu0 0.0
    %5425 = vmatprep.subr.mxu0 0.0
    %5426 = vmatpush1.msra.mxu0 0.0
    %5427 = vmatprep.subr.mxu0 0.0
    %5428 = vmatpush1.msra.mxu0 0.0
    %5429 = vmatprep.subr.mxu0 0.0
    %5430 = vmatpush1.msra.mxu0 0.0
    %5431 = vmatprep.subr.mxu0 0.0
    %5432 = vmatpush1.msra.mxu0 0.0
    %5433 = vmatprep.subr.mxu0 0.0
    %5434 = vmatpush1.msra.mxu0 0.0
    %5435 = vmatprep.subr.mxu0 0.0
    %5436 = vmatpush1.msra.mxu0 0.0
    %5437 = vmatprep.subr.mxu0 0.0
    %5438 = vmatpush1.msra.mxu0 0.0
    %5439 = vmatprep.subr.mxu0 0.0
    %5440 = vmatpush1.msra.mxu0 0.0
    %5441 = vmatprep.subr.mxu0 0.0
    %5442 = vmatpush1.msra.mxu0 0.0
    %5443 = vmatprep.subr.mxu0 0.0
    %5444 = vmatpush1.msra.mxu0 %v5392
    %5445 = vmatprep.subr.mxu0 0.0
    %5446 = vmatpush2.msra.mxu0 0.0
    %5447 = vmatprep.subr.mxu0 0.0
    %5448 = vmatpush2.msra.mxu0 0.0
    %5449 = vmatprep.subr.mxu0 0.0
    %5450 = vmatpush2.msra.mxu0 0.0
    %5451 = vmatprep.subr.mxu0 0.0
    %5452 = vmatpush2.msra.mxu0 0.0
    %5453 = vmatprep.subr.mxu0 0.0
    %5454 = vmatpush2.msra.mxu0 0.0
    %5455 = vmatprep.subr.mxu0 0.0
    %5456 = vmatpush2.msra.mxu0 0.0
    %5457 = vmatprep.subr.mxu0 0.0
    %5458 = vmatpush2.msra.mxu0 0.0
    %5459 = vmatprep.subr.mxu0 0.0
    %5460 = vmatpush2.msra.mxu0 0.0
    %5461 = vmatprep.subr.mxu0 0.0
    %5462 = vmatpush2.msra.mxu0 0.0
    %5463 = vmatprep.subr.mxu0 0.0
    %5464 = vmatpush2.msra.mxu0 0.0
    %5465 = vmatprep.subr.mxu0 0.0
    %5466 = vmatpush2.msra.mxu0 0.0
    %5467 = vmatprep.subr.mxu0 0.0
    %5468 = vmatpush2.msra.mxu0 0.0
    %5469 = vmatprep.subr.mxu0 0.0
    %5470 = vmatpush2.msra.mxu0 0.0
    %5471 = vmatprep.subr.mxu0 0.0
    %5472 = vmatpush2.msra.mxu0 0.0
    %5473 = vmatprep.subr.mxu0 0.0
    %5474 = vmatpush2.msra.mxu0 0.0
    %5475 = vmatprep.subr.mxu0 0.0
    %5476 = vmatpush2.msra.mxu0 0.0
    %5477 = vmatprep.mubr.f32.mxu0 0.0
    %5478 = vmatmul.mubr.f32.gmra.mxu0 %v5405
    %v5479 = vpop.f32.mrf.mxu0
    %v5480 = vadd.f32 0.0, %v5479
    %v5481 = vpop.f32.mrf.mxu0
    %5482 = vmatprep.mubr.f32.mxu0 0.0
    %5483 = vmatmul.mubr.f32.gmra.mxu0 %v5407
    %v5484 = vpop.f32.mrf.mxu0
    %v5485 = vadd.f32 0.0, %v5484
    %v5486 = vpop.f32.mrf.mxu0
    %5487 = vmatprep.mubr.f32.mxu0 0.0
    %5488 = vmatmul.mubr.f32.gmra.mxu0 %v5409
    %v5489 = vpop.f32.mrf.mxu0
    %v5490 = vadd.f32 0.0, %v5489
    %v5491 = vpop.f32.mrf.mxu0
    %5492 = vmatprep.mubr.f32.mxu0 0.0
    %5493 = vmatmul.mubr.f32.gmra.mxu0 %v5411
    %v5494 = vpop.f32.mrf.mxu0
    %v5495 = vadd.f32 0.0, %v5494
    %v5496 = vpop.f32.mrf.mxu0
    %5497 = vdwg.mxu0
    %v5498 = vld [vmem:[#allocation3] sm:$0xff]
    %v5499 = vld [vmem:[#allocation3 + $0x8] sm:$0xff]
    %v5500 = vld [vmem:[#allocation3 + $0x10] sm:$0xff]
    %v5501 = vld [vmem:[#allocation3 + $0x18] sm:$0xff]
    %v5502 = vadd.f32 %v5498, %v5480
    %v5503 = vadd.f32 %v5499, %v5485
    %v5504 = vadd.f32 %v5500, %v5490
    %v5505 = vadd.f32 %v5501, %v5495
    %5506 = vst.msk [vmem:[#allocation3] sm:$0xff] %vm77, %v5502
    %5507 = vst.msk [vmem:[#allocation3 + $0x8] sm:$0xff] %vm77, %v5503
    %5508 = vst.msk [vmem:[#allocation3 + $0x10] sm:$0xff] %vm77, %v5504
    %5509 = vst.msk [vmem:[#allocation3 + $0x18] sm:$0xff] %vm77, %v5505
    %v5510 = vld [vmem:[%s810] sm:$0xf]
    %v5511 = vld [vmem:[%s810 + $0x8] sm:$0xf]
    %v5512 = vld [vmem:[%s810 + $0x10] sm:$0xf]
    %v5513 = vld [vmem:[%s810 + $0x18] sm:$0xf]
    %v5514 = vld [vmem:[%s810 + $0x30] sm:$0xf]
    %v5515 = vld [vmem:[%s810 + $0x38] sm:$0xf]
    %v5516 = vld [vmem:[%s810 + $0x40] sm:$0xf]
    %v5517 = vld [vmem:[%s810 + $0x48] sm:$0xf]
    %s5518 = scalar_lea.vmem %s1, 336
    %v5519 = vld [vmem:[%s5518] sm:$0xff]
    %v5528 = vcombine.low %v5510, %v5511
    %v5529 = vcombine.low %v5512, %v5513
    %v5530 = vcombine.low %v5514, %v5515
    %v5531 = vcombine.low %v5516, %v5517
    %v5532 = vsel %vm77, %v5528, 0
    %v5534 = vsel %vm77, %v5529, 0
    %v5536 = vsel %vm77, %v5530, 0
    %v5538 = vsel %vm77, %v5531, 0
    %5540 = vmatprep.subr.mxu0 0.0
    %5541 = vmatpush1.msra.mxu0 0.0
    %5542 = vmatprep.subr.mxu0 0.0
    %5543 = vmatpush1.msra.mxu0 0.0
    %5544 = vmatprep.subr.mxu0 0.0
    %5545 = vmatpush1.msra.mxu0 0.0
    %5546 = vmatprep.subr.mxu0 0.0
    %5547 = vmatpush1.msra.mxu0 0.0
    %5548 = vmatprep.subr.mxu0 0.0
    %5549 = vmatpush1.msra.mxu0 0.0
    %5550 = vmatprep.subr.mxu0 0.0
    %5551 = vmatpush1.msra.mxu0 0.0
    %5552 = vmatprep.subr.mxu0 0.0
    %5553 = vmatpush1.msra.mxu0 0.0
    %5554 = vmatprep.subr.mxu0 0.0
    %5555 = vmatpush1.msra.mxu0 0.0
    %5556 = vmatprep.subr.mxu0 0.0
    %5557 = vmatpush1.msra.mxu0 0.0
    %5558 = vmatprep.subr.mxu0 0.0
    %5559 = vmatpush1.msra.mxu0 0.0
    %5560 = vmatprep.subr.mxu0 0.0
    %5561 = vmatpush1.msra.mxu0 0.0
    %5562 = vmatprep.subr.mxu0 0.0
    %5563 = vmatpush1.msra.mxu0 0.0
    %5564 = vmatprep.subr.mxu0 0.0
    %5565 = vmatpush1.msra.mxu0 0.0
    %5566 = vmatprep.subr.mxu0 0.0
    %5567 = vmatpush1.msra.mxu0 0.0
    %5568 = vmatprep.subr.mxu0 0.0
    %5569 = vmatpush1.msra.mxu0 0.0
    %5570 = vmatprep.subr.mxu0 0.0
    %5571 = vmatpush1.msra.mxu0 %v5519
    %5572 = vmatprep.subr.mxu0 0.0
    %5573 = vmatpush2.msra.mxu0 0.0
    %5574 = vmatprep.subr.mxu0 0.0
    %5575 = vmatpush2.msra.mxu0 0.0
    %5576 = vmatprep.subr.mxu0 0.0
    %5577 = vmatpush2.msra.mxu0 0.0
    %5578 = vmatprep.subr.mxu0 0.0
    %5579 = vmatpush2.msra.mxu0 0.0
    %5580 = vmatprep.subr.mxu0 0.0
    %5581 = vmatpush2.msra.mxu0 0.0
    %5582 = vmatprep.subr.mxu0 0.0
    %5583 = vmatpush2.msra.mxu0 0.0
    %5584 = vmatprep.subr.mxu0 0.0
    %5585 = vmatpush2.msra.mxu0 0.0
    %5586 = vmatprep.subr.mxu0 0.0
    %5587 = vmatpush2.msra.mxu0 0.0
    %5588 = vmatprep.subr.mxu0 0.0
    %5589 = vmatpush2.msra.mxu0 0.0
    %5590 = vmatprep.subr.mxu0 0.0
    %5591 = vmatpush2.msra.mxu0 0.0
    %5592 = vmatprep.subr.mxu0 0.0
    %5593 = vmatpush2.msra.mxu0 0.0
    %5594 = vmatprep.subr.mxu0 0.0
    %5595 = vmatpush2.msra.mxu0 0.0
    %5596 = vmatprep.subr.mxu0 0.0
    %5597 = vmatpush2.msra.mxu0 0.0
    %5598 = vmatprep.subr.mxu0 0.0
    %5599 = vmatpush2.msra.mxu0 0.0
    %5600 = vmatprep.subr.mxu0 0.0
    %5601 = vmatpush2.msra.mxu0 0.0
    %5602 = vmatprep.subr.mxu0 0.0
    %5603 = vmatpush2.msra.mxu0 0.0
    %5604 = vmatprep.mubr.f32.mxu0 0.0
    %5605 = vmatmul.mubr.f32.gmra.mxu0 %v5532
    %v5606 = vpop.f32.mrf.mxu0
    %v5607 = vadd.f32 0.0, %v5606
    %v5608 = vpop.f32.mrf.mxu0
    %5609 = vmatprep.mubr.f32.mxu0 0.0
    %5610 = vmatmul.mubr.f32.gmra.mxu0 %v5534
    %v5611 = vpop.f32.mrf.mxu0
    %v5612 = vadd.f32 0.0, %v5611
    %v5613 = vpop.f32.mrf.mxu0
    %5614 = vmatprep.mubr.f32.mxu0 0.0
    %5615 = vmatmul.mubr.f32.gmra.mxu0 %v5536
    %v5616 = vpop.f32.mrf.mxu0
    %v5617 = vadd.f32 0.0, %v5616
    %v5618 = vpop.f32.mrf.mxu0
    %5619 = vmatprep.mubr.f32.mxu0 0.0
    %5620 = vmatmul.mubr.f32.gmra.mxu0 %v5538
    %v5621 = vpop.f32.mrf.mxu0
    %v5622 = vadd.f32 0.0, %v5621
    %v5623 = vpop.f32.mrf.mxu0
    %5624 = vdwg.mxu0
    %v5625 = vld [vmem:[#allocation3] sm:$0xff]
    %v5626 = vld [vmem:[#allocation3 + $0x8] sm:$0xff]
    %v5627 = vld [vmem:[#allocation3 + $0x10] sm:$0xff]
    %v5628 = vld [vmem:[#allocation3 + $0x18] sm:$0xff]
    %v5629 = vadd.f32 %v5625, %v5607
    %v5630 = vadd.f32 %v5626, %v5612
    %v5631 = vadd.f32 %v5627, %v5617
    %v5632 = vadd.f32 %v5628, %v5622
    %5633 = vst.msk [vmem:[#allocation3] sm:$0xff] %vm77, %v5629
    %5634 = vst.msk [vmem:[#allocation3 + $0x8] sm:$0xff] %vm77, %v5630
    %5635 = vst.msk [vmem:[#allocation3 + $0x10] sm:$0xff] %vm77, %v5631
    %5636 = vst.msk [vmem:[#allocation3 + $0x18] sm:$0xff] %vm77, %v5632
    %v5637 = vld [vmem:[%s810 + $0x1] sm:$0xf]
    %v5638 = vld [vmem:[%s810 + $0x9] sm:$0xf]
    %v5639 = vld [vmem:[%s810 + $0x11] sm:$0xf]
    %v5640 = vld [vmem:[%s810 + $0x19] sm:$0xf]
    %v5641 = vld [vmem:[%s810 + $0x31] sm:$0xf]
    %v5642 = vld [vmem:[%s810 + $0x39] sm:$0xf]
    %v5643 = vld [vmem:[%s810 + $0x41] sm:$0xf]
    %v5644 = vld [vmem:[%s810 + $0x49] sm:$0xf]
    %s5645 = scalar_lea.vmem %s1, 344
    %v5646 = vld [vmem:[%s5645] sm:$0xff]
    %v5655 = vcombine.low %v5637, %v5638
    %v5656 = vcombine.low %v5639, %v5640
    %v5657 = vcombine.low %v5641, %v5642
    %v5658 = vcombine.low %v5643, %v5644
    %v5659 = vsel %vm77, %v5655, 0
    %v5661 = vsel %vm77, %v5656, 0
    %v5663 = vsel %vm77, %v5657, 0
    %v5665 = vsel %vm77, %v5658, 0
    %5667 = vmatprep.subr.mxu0 0.0
    %5668 = vmatpush1.msra.mxu0 0.0
    %5669 = vmatprep.subr.mxu0 0.0
    %5670 = vmatpush1.msra.mxu0 0.0
    %5671 = vmatprep.subr.mxu0 0.0
    %5672 = vmatpush1.msra.mxu0 0.0
    %5673 = vmatprep.subr.mxu0 0.0
    %5674 = vmatpush1.msra.mxu0 0.0
    %5675 = vmatprep.subr.mxu0 0.0
    %5676 = vmatpush1.msra.mxu0 0.0
    %5677 = vmatprep.subr.mxu0 0.0
    %5678 = vmatpush1.msra.mxu0 0.0
    %5679 = vmatprep.subr.mxu0 0.0
    %5680 = vmatpush1.msra.mxu0 0.0
    %5681 = vmatprep.subr.mxu0 0.0
    %5682 = vmatpush1.msra.mxu0 0.0
    %5683 = vmatprep.subr.mxu0 0.0
    %5684 = vmatpush1.msra.mxu0 0.0
    %5685 = vmatprep.subr.mxu0 0.0
    %5686 = vmatpush1.msra.mxu0 0.0
    %5687 = vmatprep.subr.mxu0 0.0
    %5688 = vmatpush1.msra.mxu0 0.0
    %5689 = vmatprep.subr.mxu0 0.0
    %5690 = vmatpush1.msra.mxu0 0.0
    %5691 = vmatprep.subr.mxu0 0.0
    %5692 = vmatpush1.msra.mxu0 0.0
    %5693 = vmatprep.subr.mxu0 0.0
    %5694 = vmatpush1.msra.mxu0 0.0
    %5695 = vmatprep.subr.mxu0 0.0
    %5696 = vmatpush1.msra.mxu0 0.0
    %5697 = vmatprep.subr.mxu0 0.0
    %5698 = vmatpush1.msra.mxu0 %v5646
    %5699 = vmatprep.subr.mxu0 0.0
    %5700 = vmatpush2.msra.mxu0 0.0
    %5701 = vmatprep.subr.mxu0 0.0
    %5702 = vmatpush2.msra.mxu0 0.0
    %5703 = vmatprep.subr.mxu0 0.0
    %5704 = vmatpush2.msra.mxu0 0.0
    %5705 = vmatprep.subr.mxu0 0.0
    %5706 = vmatpush2.msra.mxu0 0.0
    %5707 = vmatprep.subr.mxu0 0.0
    %5708 = vmatpush2.msra.mxu0 0.0
    %5709 = vmatprep.subr.mxu0 0.0
    %5710 = vmatpush2.msra.mxu0 0.0
    %5711 = vmatprep.subr.mxu0 0.0
    %5712 = vmatpush2.msra.mxu0 0.0
    %5713 = vmatprep.subr.mxu0 0.0
    %5714 = vmatpush2.msra.mxu0 0.0
    %5715 = vmatprep.subr.mxu0 0.0
    %5716 = vmatpush2.msra.mxu0 0.0
    %5717 = vmatprep.subr.mxu0 0.0
    %5718 = vmatpush2.msra.mxu0 0.0
    %5719 = vmatprep.subr.mxu0 0.0
    %5720 = vmatpush2.msra.mxu0 0.0
    %5721 = vmatprep.subr.mxu0 0.0
    %5722 = vmatpush2.msra.mxu0 0.0
    %5723 = vmatprep.subr.mxu0 0.0
    %5724 = vmatpush2.msra.mxu0 0.0
    %5725 = vmatprep.subr.mxu0 0.0
    %5726 = vmatpush2.msra.mxu0 0.0
    %5727 = vmatprep.subr.mxu0 0.0
    %5728 = vmatpush2.msra.mxu0 0.0
    %5729 = vmatprep.subr.mxu0 0.0
    %5730 = vmatpush2.msra.mxu0 0.0
    %5731 = vmatprep.mubr.f32.mxu0 0.0
    %5732 = vmatmul.mubr.f32.gmra.mxu0 %v5659
    %v5733 = vpop.f32.mrf.mxu0
    %v5734 = vadd.f32 0.0, %v5733
    %v5735 = vpop.f32.mrf.mxu0
    %5736 = vmatprep.mubr.f32.mxu0 0.0
    %5737 = vmatmul.mubr.f32.gmra.mxu0 %v5661
    %v5738 = vpop.f32.mrf.mxu0
    %v5739 = vadd.f32 0.0, %v5738
    %v5740 = vpop.f32.mrf.mxu0
    %5741 = vmatprep.mubr.f32.mxu0 0.0
    %5742 = vmatmul.mubr.f32.gmra.mxu0 %v5663
    %v5743 = vpop.f32.mrf.mxu0
    %v5744 = vadd.f32 0.0, %v5743
    %v5745 = vpop.f32.mrf.mxu0
    %5746 = vmatprep.mubr.f32.mxu0 0.0
    %5747 = vmatmul.mubr.f32.gmra.mxu0 %v5665
    %v5748 = vpop.f32.mrf.mxu0
    %v5749 = vadd.f32 0.0, %v5748
    %v5750 = vpop.f32.mrf.mxu0
    %5751 = vdwg.mxu0
    %v5752 = vld [vmem:[#allocation3] sm:$0xff]
    %v5753 = vld [vmem:[#allocation3 + $0x8] sm:$0xff]
    %v5754 = vld [vmem:[#allocation3 + $0x10] sm:$0xff]
    %v5755 = vld [vmem:[#allocation3 + $0x18] sm:$0xff]
    %v5756 = vadd.f32 %v5752, %v5734
    %v5757 = vadd.f32 %v5753, %v5739
    %v5758 = vadd.f32 %v5754, %v5744
    %v5759 = vadd.f32 %v5755, %v5749
    %5760 = vst.msk [vmem:[#allocation3] sm:$0xff] %vm77, %v5756
    %5761 = vst.msk [vmem:[#allocation3 + $0x8] sm:$0xff] %vm77, %v5757
    %5762 = vst.msk [vmem:[#allocation3 + $0x10] sm:$0xff] %vm77, %v5758
    %5763 = vst.msk [vmem:[#allocation3 + $0x18] sm:$0xff] %vm77, %v5759
    %v5764 = vld [vmem:[%s810 + $0x2] sm:$0xf]
    %v5765 = vld [vmem:[%s810 + $0xa] sm:$0xf]
    %v5766 = vld [vmem:[%s810 + $0x12] sm:$0xf]
    %v5767 = vld [vmem:[%s810 + $0x1a] sm:$0xf]
    %v5768 = vld [vmem:[%s810 + $0x32] sm:$0xf]
    %v5769 = vld [vmem:[%s810 + $0x3a] sm:$0xf]
    %v5770 = vld [vmem:[%s810 + $0x42] sm:$0xf]
    %v5771 = vld [vmem:[%s810 + $0x4a] sm:$0xf]
    %s5772 = scalar_lea.vmem %s1, 352
    %v5773 = vld [vmem:[%s5772] sm:$0xff]
    %v5782 = vcombine.low %v5764, %v5765
    %v5783 = vcombine.low %v5766, %v5767
    %v5784 = vcombine.low %v5768, %v5769
    %v5785 = vcombine.low %v5770, %v5771
    %v5786 = vsel %vm77, %v5782, 0
    %v5788 = vsel %vm77, %v5783, 0
    %v5790 = vsel %vm77, %v5784, 0
    %v5792 = vsel %vm77, %v5785, 0
    %5794 = vmatprep.subr.mxu0 0.0
    %5795 = vmatpush1.msra.mxu0 0.0
    %5796 = vmatprep.subr.mxu0 0.0
    %5797 = vmatpush1.msra.mxu0 0.0
    %5798 = vmatprep.subr.mxu0 0.0
    %5799 = vmatpush1.msra.mxu0 0.0
    %5800 = vmatprep.subr.mxu0 0.0
    %5801 = vmatpush1.msra.mxu0 0.0
    %5802 = vmatprep.subr.mxu0 0.0
    %5803 = vmatpush1.msra.mxu0 0.0
    %5804 = vmatprep.subr.mxu0 0.0
    %5805 = vmatpush1.msra.mxu0 0.0
    %5806 = vmatprep.subr.mxu0 0.0
    %5807 = vmatpush1.msra.mxu0 0.0
    %5808 = vmatprep.subr.mxu0 0.0
    %5809 = vmatpush1.msra.mxu0 0.0
    %5810 = vmatprep.subr.mxu0 0.0
    %5811 = vmatpush1.msra.mxu0 0.0
    %5812 = vmatprep.subr.mxu0 0.0
    %5813 = vmatpush1.msra.mxu0 0.0
    %5814 = vmatprep.subr.mxu0 0.0
    %5815 = vmatpush1.msra.mxu0 0.0
    %5816 = vmatprep.subr.mxu0 0.0
    %5817 = vmatpush1.msra.mxu0 0.0
    %5818 = vmatprep.subr.mxu0 0.0
    %5819 = vmatpush1.msra.mxu0 0.0
    %5820 = vmatprep.subr.mxu0 0.0
    %5821 = vmatpush1.msra.mxu0 0.0
    %5822 = vmatprep.subr.mxu0 0.0
    %5823 = vmatpush1.msra.mxu0 0.0
    %5824 = vmatprep.subr.mxu0 0.0
    %5825 = vmatpush1.msra.mxu0 %v5773
    %5826 = vmatprep.subr.mxu0 0.0
    %5827 = vmatpush2.msra.mxu0 0.0
    %5828 = vmatprep.subr.mxu0 0.0
    %5829 = vmatpush2.msra.mxu0 0.0
    %5830 = vmatprep.subr.mxu0 0.0
    %5831 = vmatpush2.msra.mxu0 0.0
    %5832 = vmatprep.subr.mxu0 0.0
    %5833 = vmatpush2.msra.mxu0 0.0
    %5834 = vmatprep.subr.mxu0 0.0
    %5835 = vmatpush2.msra.mxu0 0.0
    %5836 = vmatprep.subr.mxu0 0.0
    %5837 = vmatpush2.msra.mxu0 0.0
    %5838 = vmatprep.subr.mxu0 0.0
    %5839 = vmatpush2.msra.mxu0 0.0
    %5840 = vmatprep.subr.mxu0 0.0
    %5841 = vmatpush2.msra.mxu0 0.0
    %5842 = vmatprep.subr.mxu0 0.0
    %5843 = vmatpush2.msra.mxu0 0.0
    %5844 = vmatprep.subr.mxu0 0.0
    %5845 = vmatpush2.msra.mxu0 0.0
    %5846 = vmatprep.subr.mxu0 0.0
    %5847 = vmatpush2.msra.mxu0 0.0
    %5848 = vmatprep.subr.mxu0 0.0
    %5849 = vmatpush2.msra.mxu0 0.0
    %5850 = vmatprep.subr.mxu0 0.0
    %5851 = vmatpush2.msra.mxu0 0.0
    %5852 = vmatprep.subr.mxu0 0.0
    %5853 = vmatpush2.msra.mxu0 0.0
    %5854 = vmatprep.subr.mxu0 0.0
    %5855 = vmatpush2.msra.mxu0 0.0
    %5856 = vmatprep.subr.mxu0 0.0
    %5857 = vmatpush2.msra.mxu0 0.0
    %5858 = vmatprep.mubr.f32.mxu0 0.0
    %5859 = vmatmul.mubr.f32.gmra.mxu0 %v5786
    %v5860 = vpop.f32.mrf.mxu0
    %v5861 = vadd.f32 0.0, %v5860
    %v5862 = vpop.f32.mrf.mxu0
    %5863 = vmatprep.mubr.f32.mxu0 0.0
    %5864 = vmatmul.mubr.f32.gmra.mxu0 %v5788
    %v5865 = vpop.f32.mrf.mxu0
    %v5866 = vadd.f32 0.0, %v5865
    %v5867 = vpop.f32.mrf.mxu0
    %5868 = vmatprep.mubr.f32.mxu0 0.0
    %5869 = vmatmul.mubr.f32.gmra.mxu0 %v5790
    %v5870 = vpop.f32.mrf.mxu0
    %v5871 = vadd.f32 0.0, %v5870
    %v5872 = vpop.f32.mrf.mxu0
    %5873 = vmatprep.mubr.f32.mxu0 0.0
    %5874 = vmatmul.mubr.f32.gmra.mxu0 %v5792
    %v5875 = vpop.f32.mrf.mxu0
    %v5876 = vadd.f32 0.0, %v5875
    %v5877 = vpop.f32.mrf.mxu0
    %5878 = vdwg.mxu0
    %v5879 = vld [vmem:[#allocation3] sm:$0xff]
    %v5880 = vld [vmem:[#allocation3 + $0x8] sm:$0xff]
    %v5881 = vld [vmem:[#allocation3 + $0x10] sm:$0xff]
    %v5882 = vld [vmem:[#allocation3 + $0x18] sm:$0xff]
    %v5883 = vadd.f32 %v5879, %v5861
    %v5884 = vadd.f32 %v5880, %v5866
    %v5885 = vadd.f32 %v5881, %v5871
    %v5886 = vadd.f32 %v5882, %v5876
    %5887 = vst.msk [vmem:[#allocation3] sm:$0xff] %vm77, %v5883
    %5888 = vst.msk [vmem:[#allocation3 + $0x8] sm:$0xff] %vm77, %v5884
    %5889 = vst.msk [vmem:[#allocation3 + $0x10] sm:$0xff] %vm77, %v5885
    %5890 = vst.msk [vmem:[#allocation3 + $0x18] sm:$0xff] %vm77, %v5886
    %v5891 = vld [vmem:[#allocation3] sm:$0xff]
    %v5892 = vld [vmem:[#allocation3 + $0x8] sm:$0xff]
    %v5893 = vld [vmem:[#allocation3 + $0x10] sm:$0xff]
    %v5894 = vld [vmem:[#allocation3 + $0x18] sm:$0xff]
    %s5895 = scalar_lea.vmem %s2, 4
    %v5896 = vld [vmem:[%s5895] sm:$0x1]
    %v5898 = vlaneseq
    %v5899 = vshrl.u32 %v5898, 7
    %v5900 = vsub.s32 0, %v5899
    %v5901 = vrot.slane %v5896, %v5900
    %v5903 = vadd.f32 %v5891, %v5901
    %v5904 = vadd.f32 %v5892, %v5901
    %v5905 = vadd.f32 %v5893, %v5901
    %v5906 = vadd.f32 %v5894, %v5901
    %v5911 = vcombine.high %v5903, %v5903
    %v5912 = vcombine.high %v5904, %v5904
    %v5913 = vcombine.high %v5905, %v5905
    %v5914 = vcombine.high %v5906, %v5906
    %5919 = vst.msk [vmem:[#allocation4] sm:$0xf] %vm47, %v5903
    %5920 = vst.msk [vmem:[#allocation4 + $0x4] sm:$0xf] %vm47, %v5911
    %5921 = vst.msk [vmem:[#allocation4 + $0x8] sm:$0xf] %vm47, %v5904
    %5922 = vst.msk [vmem:[#allocation4 + $0xc] sm:$0xf] %vm47, %v5912
    %5923 = vst.msk [vmem:[#allocation4 + $0x10] sm:$0xf] %vm47, %v5905
    %5924 = vst.msk [vmem:[#allocation4 + $0x14] sm:$0xf] %vm47, %v5913
    %5925 = vst.msk [vmem:[#allocation4 + $0x18] sm:$0xf] %vm47, %v5906
    %5926 = vst.msk [vmem:[#allocation4 + $0x1c] sm:$0xf] %vm47, %v5914
    // Predicated region
    $region14: #{dense_feat_head_forward.1} parent=1 // pred_check
      _
    $region15: #{dense_feat_head_forward.1} parent=1 // pred_check_branch
      %5928 = sbr.rel (0) target = $region17
    $region16: #{dense_feat_head_forward.1} parent=1 // pred_region
      %s5930 = ssub.s32 512, 512
      %5931 = vsyncadd [#allocation5], %s5930
      %s5932 = sshll.u32 [#allocation4], 4
      %s5933 = int_to_ptr.vmem [resolvable:$true] %s5932
      %5938 = dma.vmem_to_hbm [thread:$0]  %s5933, 512, %s3, [#allocation5], 64, 64, 4
    $region17: #{dense_feat_head_forward.1} parent=1 // pred_fallthru
      _
    // Predicated region
    $region18: #{dense_feat_head_forward.1} parent=1 // pred_check
      _
    $region19: #{dense_feat_head_forward.1} parent=1 // pred_check_branch
      %5940 = sbr.rel (0) target = $region21
    $region20: #{dense_feat_head_forward.1} parent=1 // pred_region
      %5941 = dma.done [#allocation5], 512
    $region21: #{dense_feat_head_forward.1} parent=1 // pred_fallthru
      _
    %5942 = vsyncpa [#allocation5], 1

</llo_original>
